<compile_context>
chip_gen: v7x
topology: tpu7x:2x2x1
jax: 0.10.0
libtpu: 0.0.40
codegen_flags: <defaults>
</compile_context>

<pallas_src>
import jax
import jax.numpy as jnp
from jax.experimental import pallas as pl
from jax.experimental.pallas import tpu as pltpu

OBS_DIM = 349      # 19 availability flags + 330 encoded features
ENC_DIM = 330
ENC_PAD = 384      # 330 zero-padded up to a multiple of 128 lanes
HIDDEN = 512       # rnn_shape = [1, 1, 1, 512]
N_ACT = 20         # avail_actions = zeros(20); [:19] taken from obs
ACT_PAD = 128      # action head padded to one full lane group


def actor_kernel(enc_ref, avail_ref, h_ref,
                 w1_ref, b1_ref, w2_ref, b2_ref,
                 wgru_ref, bgru_ref, bhhn_ref,
                 wact_ref, bact_ref,
                 act_ref, hout_ref):
    bf16 = jnp.bfloat16
    enc = enc_ref[...]            # (N, 384) f32, zero-padded K
    avail = avail_ref[...]        # (N, 128) f32, cols >= 19 are zero
    h = h_ref[...]                # (N, 512) f32  (recurrence kept in f32)

    # --- MLP base: two Linear + ReLU layers (bf16 operands, f32 accumulate) --
    x = jnp.dot(enc.astype(bf16), w1_ref[...],
                preferred_element_type=jnp.float32) + b1_ref[...]
    x = jnp.maximum(x, 0.0)
    x = jnp.dot(x.astype(bf16), w2_ref[...],
                preferred_element_type=jnp.float32) + b2_ref[...]
    x = jnp.maximum(x, 0.0)

    # --- GRU cell (PyTorch gate order r, z, n), fused input/hidden matmul ---
    # s = x@Wih + h@Whh + (bih + bhh) over all three gates in one MXU pass.
    xh = jnp.concatenate([x.astype(bf16), h.astype(bf16)], axis=1)   # (N, 1024)
    s = jnp.dot(xh, wgru_ref[...],
                preferred_element_type=jnp.float32) + bgru_ref[...]  # (N, 1536)

    # gh_n = h @ Whh_n + bhh_n, reusing the VMEM-resident slice of wgru
    whh_n = wgru_ref[pl.ds(HIDDEN, HIDDEN), pl.ds(2 * HIDDEN, HIDDEN)]  # (512,512) bf16
    gh_n = jnp.dot(h.astype(bf16), whh_n,
                   preferred_element_type=jnp.float32) + bhhn_ref[...]

    r = jax.nn.sigmoid(s[:, 0:HIDDEN])
    z = jax.nn.sigmoid(s[:, HIDDEN:2 * HIDDEN])
    # i_n + r*h_n == (i_n + h_n) - (1 - r)*h_n == s_n - (1 - r)*gh_n
    n_gate = jnp.tanh(s[:, 2 * HIDDEN:3 * HIDDEN] - (1.0 - r) * gh_n)
    h_new = (1.0 - z) * n_gate + z * h
    hout_ref[...] = h_new

    # --- action head + availability masking + deterministic argmax ----------
    logits = jnp.dot(h_new.astype(bf16), wact_ref[...],
                     preferred_element_type=jnp.float32) + bact_ref[...]   # (N, 128)
    # If every flag is <= 0.5 the argmax silently falls back to action 0
    # (same behaviour as the masked torch argmax on an all -1e10 row).
    masked = jnp.where(avail > 0.5, logits, jnp.float32(-1e10))
    col = jax.lax.broadcasted_iota(jnp.int32, masked.shape, 1)
    max_val = jnp.max(masked, axis=-1, keepdims=True)
    cand = jnp.where(masked == max_val, col, jnp.int32(2 ** 30))
    action = jnp.min(cand, axis=-1, keepdims=True)            # first max index
    # Lane-dense store; wrapper reads column 0.
    act_ref[...] = jnp.broadcast_to(action, act_ref.shape).astype(jnp.int32)


def init_params(key):
    """Logical (f32, un-padded) parameters matching the PyTorch module."""
    ks = jax.random.split(key, 10)

    def lin(k, fan_in, fan_out):
        s = 1.0 / jnp.sqrt(jnp.float32(fan_in))
        return jax.random.normal(k, (fan_in, fan_out), jnp.float32) * s

    def bias(k, fan_in, width):
        s = 1.0 / jnp.sqrt(jnp.float32(fan_in))
        return jax.random.uniform(k, (1, width), jnp.float32, -s, s)

    return dict(
        w1=lin(ks[0], ENC_DIM, HIDDEN), b1=bias(ks[1], ENC_DIM, HIDDEN),
        w2=lin(ks[2], HIDDEN, HIDDEN), b2=bias(ks[3], HIDDEN, HIDDEN),
        wih=lin(ks[4], HIDDEN, 3 * HIDDEN), bih=bias(ks[5], HIDDEN, 3 * HIDDEN),
        whh=lin(ks[6], HIDDEN, 3 * HIDDEN), bhh=bias(ks[7], HIDDEN, 3 * HIDDEN),
        wact=lin(ks[8], HIDDEN, N_ACT), bact=bias(ks[9], HIDDEN, N_ACT),
    )


def pack_params(p):
    """Kernel-format parameters: bf16 weights, padded K/N, fused GRU weight."""
    bf16 = jnp.bfloat16
    w1_pad = jnp.zeros((ENC_PAD, HIDDEN), jnp.float32).at[:ENC_DIM, :].set(p["w1"])
    wgru = jnp.concatenate([p["wih"], p["whh"]], axis=0)                 # (1024, 1536)
    wact_pad = jnp.zeros((HIDDEN, ACT_PAD), jnp.float32).at[:, :N_ACT].set(p["wact"])
    bact_pad = jnp.zeros((1, ACT_PAD), jnp.float32).at[:, :N_ACT].set(p["bact"])
    return dict(
        w1=w1_pad.astype(bf16), b1=p["b1"],
        w2=p["w2"].astype(bf16), b2=p["b2"],
        wgru=wgru.astype(bf16), bgru=p["bih"] + p["bhh"],
        bhh_n=p["bhh"][:, 2 * HIDDEN:3 * HIDDEN],
        wact=wact_pad.astype(bf16), bact=bact_pad,
    )


def actor_forward(obs, rnn_hidden, packed):
    """obs: (N, 349) f32; rnn_hidden: (N, 512) f32. Deterministic (explore=False)."""
    n = obs.shape[0]
    # Glue: split obs into encoded features (padded to 384) and the
    # availability mask (padded to 128 lanes; padding columns are unavailable).
    enc = jnp.concatenate(
        [obs[:, 19:], jnp.zeros((n, ENC_PAD - ENC_DIM), jnp.float32)], axis=1)
    avail = jnp.concatenate(
        [obs[:, :19], jnp.zeros((n, ACT_PAD - 19), jnp.float32)], axis=1)

    vmem = pl.BlockSpec(memory_space=pltpu.MemorySpace.VMEM)
    act128, h_new = pl.pallas_call(
        actor_kernel,
        out_shape=(
            jax.ShapeDtypeStruct((n, ACT_PAD), jnp.int32),
            jax.ShapeDtypeStruct((n, HIDDEN), jnp.float32),
        ),
        in_specs=[vmem] * 12,
        out_specs=(vmem, vmem),
        compiler_params=pltpu.CompilerParams(vmem_limit_bytes=32 * 1024 * 1024),
    )(enc, avail, rnn_hidden,
      packed["w1"], packed["b1"], packed["w2"], packed["b2"],
      packed["wgru"], packed["bgru"], packed["bhh_n"],
      packed["wact"], packed["bact"])

    # TODO(synk): the original post-hoc fix `if action==17 and sticky_actions[8]==1 -> 15`
    # indexes a tensor with a string key in the reference code and has no clean equivalent.
    # TODO(synk): stochastic sampling branch (explore=True) not implemented; argmax only.
    # TODO(synk): the module is called with a single timestep; a T-step grid keeping the
    # hidden state in VMEM scratch would amortize the weight DMA but changes the call contract.
    return act128[:, 0], h_new


def reference_forward(obs, rnn_hidden, params):
    """Pure-JAX mirror (standard GRU formulation, same bf16 weight casts)."""
    n = obs.shape[0]
    bf = jnp.bfloat16
    enc = obs[:, 19:]
    avail = jnp.concatenate([obs[:, :19], jnp.zeros((n, 1), jnp.float32)], axis=1)
    x = jnp.dot(enc.astype(bf), params["w1"].astype(bf),
                preferred_element_type=jnp.float32) + params["b1"]
    x = jnp.maximum(x, 0.0)
    x = jnp.dot(x.astype(bf), params["w2"].astype(bf),
                preferred_element_type=jnp.float32) + params["b2"]
    x = jnp.maximum(x, 0.0)
    gi = jnp.dot(x.astype(bf), params["wih"].astype(bf),
                 preferred_element_type=jnp.float32) + params["bih"]
    gh = jnp.dot(rnn_hidden.astype(bf), params["whh"].astype(bf),
                 preferred_element_type=jnp.float32) + params["bhh"]
    r = jax.nn.sigmoid(gi[:, :HIDDEN] + gh[:, :HIDDEN])
    z = jax.nn.sigmoid(gi[:, HIDDEN:2 * HIDDEN] + gh[:, HIDDEN:2 * HIDDEN])
    ng = jnp.tanh(gi[:, 2 * HIDDEN:] + r * gh[:, 2 * HIDDEN:])
    h_new = (1.0 - z) * ng + z * rnn_hidden
    logits = jnp.dot(h_new.astype(bf), params["wact"].astype(bf),
                     preferred_element_type=jnp.float32) + params["bact"]
    masked = jnp.where(avail > 0.5, logits, jnp.float32(-1e10))
    return jnp.argmax(masked, axis=-1).astype(jnp.int32), h_new


if __name__ == "__main__":
    key = jax.random.PRNGKey(0)
    k_obs, k_av, k_h, k_par = jax.random.split(key, 4)

    N = 8  # number of controlled agents (module loops over obs.shape[0])

    # obs[:, :19]  -> availability flags (0/1), guarantee at least one available
    # obs[:, 19:]  -> 330 encoded features
    avail_flags = jax.random.bernoulli(k_av, 0.5, (N, 19)).astype(jnp.float32)
    avail_flags = avail_flags.at[:, 0].set(1.0)
    enc_feats = jax.random.normal(k_obs, (N, ENC_DIM), jnp.float32)
    obs = jnp.concatenate([avail_flags, enc_feats], axis=1)            # (N, 349)

    rnn_hidden = jax.random.normal(k_h, (N, HIDDEN), jnp.float32) * 0.1
    rnn_states = jnp.zeros((N, 1, HIDDEN), jnp.float32)                # passthrough arg

    params = init_params(k_par)
    packed = pack_params(params)

    actions, new_hidden = actor_forward(obs, rnn_hidden, packed)
    actions, new_hidden = jax.block_until_ready((actions, new_hidden))

    # Correctness checks against a pure-JAX mirror of the same (bf16) math.
    ref_actions, ref_hidden = reference_forward(obs, rnn_hidden, params)
    assert actions.shape == (N,)
    assert bool(jnp.all((actions >= 0) & (actions < N_ACT)))
    rows = jnp.arange(N)
    assert bool(jnp.all(obs[rows, actions] > 0.5)), "picked an unavailable action"
    assert bool(jnp.all(actions == ref_actions)), "action mismatch vs reference"
    assert bool(jnp.allclose(new_hidden, ref_hidden, atol=1e-3, rtol=1e-3)), \
        "hidden state mismatch vs reference"

    # Mirror the module's return tuple:
    # (action_list, torch.tensor(rnn_states), ones_like(actions), ones_like(actions))
    out = (actions, rnn_states, jnp.ones_like(actions), jnp.ones_like(actions))
    jax.block_until_ready(out)
    print("KERNEL_OK")
</pallas_src>

<mosaic_0001>
module attributes {stable_mosaic.version = 11 : i64} {
  func.func @actor_kernel(%arg0: memref<8x384xf32, #tpu.memory_space<vmem>>, %arg1: memref<8x128xf32, #tpu.memory_space<vmem>>, %arg2: memref<8x512xf32, #tpu.memory_space<vmem>>, %arg3: memref<384x512xbf16, #tpu.memory_space<vmem>>, %arg4: memref<1x512xf32, #tpu.memory_space<vmem>>, %arg5: memref<512x512xbf16, #tpu.memory_space<vmem>>, %arg6: memref<1x512xf32, #tpu.memory_space<vmem>>, %arg7: memref<1024x1536xbf16, #tpu.memory_space<vmem>>, %arg8: memref<1x1536xf32, #tpu.memory_space<vmem>>, %arg9: memref<1x512xf32, #tpu.memory_space<vmem>>, %arg10: memref<512x128xbf16, #tpu.memory_space<vmem>>, %arg11: memref<1x128xf32, #tpu.memory_space<vmem>>, %arg12: memref<8x128xi32, #tpu.memory_space<vmem>>, %arg13: memref<8x512xf32, #tpu.memory_space<vmem>>) attributes {dimension_semantics = [], scalar_prefetch = 0 : i64, scratch_operands = 0 : i64, tpu.core_type = #tpu.core_type<tc>} {
    %c0 = arith.constant 0 : index
    %c0_0 = arith.constant 0 : index
    %0 = vector.load %arg0[%c0, %c0_0] : memref<8x384xf32, #tpu.memory_space<vmem>>, vector<8x384xf32>
    %c0_1 = arith.constant 0 : index
    %c0_2 = arith.constant 0 : index
    %1 = vector.load %arg1[%c0_1, %c0_2] : memref<8x128xf32, #tpu.memory_space<vmem>>, vector<8x128xf32>
    %c0_3 = arith.constant 0 : index
    %c0_4 = arith.constant 0 : index
    %2 = vector.load %arg2[%c0_3, %c0_4] : memref<8x512xf32, #tpu.memory_space<vmem>>, vector<8x512xf32>
    %3 = arith.truncf %0 : vector<8x384xf32> to vector<8x384xbf16>
    %c0_5 = arith.constant 0 : index
    %c0_6 = arith.constant 0 : index
    %4 = vector.load %arg3[%c0_5, %c0_6] : memref<384x512xbf16, #tpu.memory_space<vmem>>, vector<384x512xbf16>
    %cst = arith.constant dense<0.000000e+00> : vector<8x512xf32>
    %5 = tpu.matmul %3, %4, %cst {dimension_numbers = #tpu.dot_dimension_numbers<[1], [0], [0], [1], [0, 0, 1, 1], [], []>} : vector<8x384xbf16>, vector<384x512xbf16>, vector<8x512xf32> -> vector<8x512xf32>
    %c0_7 = arith.constant 0 : index
    %c0_8 = arith.constant 0 : index
    %6 = vector.load %arg4[%c0_7, %c0_8] : memref<1x512xf32, #tpu.memory_space<vmem>>, vector<1x512xf32>
    %7 = vector.broadcast %6 : vector<1x512xf32> to vector<8x512xf32>
    %8 = arith.addf %5, %7 : vector<8x512xf32>
    %cst_9 = arith.constant 0.000000e+00 : f32
    %9 = vector.broadcast %cst_9 : f32 to vector<8x512xf32>
    %10 = arith.maximumf %8, %9 : vector<8x512xf32>
    %11 = arith.truncf %10 : vector<8x512xf32> to vector<8x512xbf16>
    %c0_10 = arith.constant 0 : index
    %c0_11 = arith.constant 0 : index
    %12 = vector.load %arg5[%c0_10, %c0_11] : memref<512x512xbf16, #tpu.memory_space<vmem>>, vector<512x512xbf16>
    %cst_12 = arith.constant dense<0.000000e+00> : vector<8x512xf32>
    %13 = tpu.matmul %11, %12, %cst_12 {dimension_numbers = #tpu.dot_dimension_numbers<[1], [0], [0], [1], [0, 0, 1, 1], [], []>} : vector<8x512xbf16>, vector<512x512xbf16>, vector<8x512xf32> -> vector<8x512xf32>
    %c0_13 = arith.constant 0 : index
    %c0_14 = arith.constant 0 : index
    %14 = vector.load %arg6[%c0_13, %c0_14] : memref<1x512xf32, #tpu.memory_space<vmem>>, vector<1x512xf32>
    %15 = vector.broadcast %14 : vector<1x512xf32> to vector<8x512xf32>
    %16 = arith.addf %13, %15 : vector<8x512xf32>
    %cst_15 = arith.constant 0.000000e+00 : f32
    %17 = vector.broadcast %cst_15 : f32 to vector<8x512xf32>
    %18 = arith.maximumf %16, %17 : vector<8x512xf32>
    %19 = arith.truncf %18 : vector<8x512xf32> to vector<8x512xbf16>
    %20 = arith.truncf %2 : vector<8x512xf32> to vector<8x512xbf16>
    %21 = tpu.concatenate %19, %20 in 1 : vector<8x512xbf16>, vector<8x512xbf16> -> vector<8x1024xbf16>
    %c0_16 = arith.constant 0 : index
    %c0_17 = arith.constant 0 : index
    %22 = vector.load %arg7[%c0_16, %c0_17] : memref<1024x1536xbf16, #tpu.memory_space<vmem>>, vector<1024x1536xbf16>
    %cst_18 = arith.constant dense<0.000000e+00> : vector<8x1536xf32>
    %23 = tpu.matmul %21, %22, %cst_18 {dimension_numbers = #tpu.dot_dimension_numbers<[1], [0], [0], [1], [0, 0, 1, 1], [], []>} : vector<8x1024xbf16>, vector<1024x1536xbf16>, vector<8x1536xf32> -> vector<8x1536xf32>
    %c0_19 = arith.constant 0 : index
    %c0_20 = arith.constant 0 : index
    %24 = vector.load %arg8[%c0_19, %c0_20] : memref<1x1536xf32, #tpu.memory_space<vmem>>, vector<1x1536xf32>
    %25 = vector.broadcast %24 : vector<1x1536xf32> to vector<8x1536xf32>
    %26 = arith.addf %23, %25 : vector<8x1536xf32>
    %c512 = arith.constant 512 : index
    %c1024 = arith.constant 1024 : index
    %27 = vector.load %arg7[%c512, %c1024] : memref<1024x1536xbf16, #tpu.memory_space<vmem>>, vector<512x512xbf16>
    %28 = arith.truncf %2 : vector<8x512xf32> to vector<8x512xbf16>
    %cst_21 = arith.constant dense<0.000000e+00> : vector<8x512xf32>
    %29 = tpu.matmul %28, %27, %cst_21 {dimension_numbers = #tpu.dot_dimension_numbers<[1], [0], [0], [1], [0, 0, 1, 1], [], []>} : vector<8x512xbf16>, vector<512x512xbf16>, vector<8x512xf32> -> vector<8x512xf32>
    %c0_22 = arith.constant 0 : index
    %c0_23 = arith.constant 0 : index
    %30 = vector.load %arg9[%c0_22, %c0_23] : memref<1x512xf32, #tpu.memory_space<vmem>>, vector<1x512xf32>
    %31 = vector.broadcast %30 : vector<1x512xf32> to vector<8x512xf32>
    %32 = arith.addf %29, %31 : vector<8x512xf32>
    %33 = vector.extract_strided_slice %26 {offsets = [0, 0], sizes = [8, 512], strides = [1, 1]} : vector<8x1536xf32> to vector<8x512xf32>
    %34 = arith.negf %33 : vector<8x512xf32>
    %35 = math.exp %34 : vector<8x512xf32>
    %cst_24 = arith.constant 1.000000e+00 : f32
    %36 = vector.broadcast %cst_24 : f32 to vector<8x512xf32>
    %37 = arith.addf %36, %35 : vector<8x512xf32>
    %38 = arith.divf %36, %37 : vector<8x512xf32>
    %39 = vector.extract_strided_slice %26 {offsets = [0, 512], sizes = [8, 512], strides = [1, 1]} : vector<8x1536xf32> to vector<8x512xf32>
    %40 = arith.negf %39 : vector<8x512xf32>
    %41 = math.exp %40 : vector<8x512xf32>
    %cst_25 = arith.constant 1.000000e+00 : f32
    %42 = vector.broadcast %cst_25 : f32 to vector<8x512xf32>
    %43 = arith.addf %42, %41 : vector<8x512xf32>
    %44 = arith.divf %42, %43 : vector<8x512xf32>
    %45 = vector.extract_strided_slice %26 {offsets = [0, 1024], sizes = [8, 512], strides = [1, 1]} : vector<8x1536xf32> to vector<8x512xf32>
    %cst_26 = arith.constant 1.000000e+00 : f32
    %46 = vector.broadcast %cst_26 : f32 to vector<8x512xf32>
    %47 = arith.subf %46, %38 : vector<8x512xf32>
    %48 = arith.mulf %47, %32 : vector<8x512xf32>
    %49 = arith.subf %45, %48 : vector<8x512xf32>
    %50 = math.tanh %49 : vector<8x512xf32>
    %cst_27 = arith.constant 1.000000e+00 : f32
    %51 = vector.broadcast %cst_27 : f32 to vector<8x512xf32>
    %52 = arith.subf %51, %44 : vector<8x512xf32>
    %53 = arith.mulf %52, %50 : vector<8x512xf32>
    %54 = arith.mulf %44, %2 : vector<8x512xf32>
    %55 = arith.addf %53, %54 : vector<8x512xf32>
    %c0_28 = arith.constant 0 : index
    %c0_29 = arith.constant 0 : index
    %56 = vector.load %arg13[%c0_28, %c0_29] : memref<8x512xf32, #tpu.memory_space<vmem>>, vector<8x512xf32>
    tpu.vector_store %arg13[%c0_28, %c0_29], %55 {strides = array<i32>} : memref<8x512xf32, #tpu.memory_space<vmem>>, vector<8x512xf32>,
    %57 = arith.truncf %55 : vector<8x512xf32> to vector<8x512xbf16>
    %c0_30 = arith.constant 0 : index
    %c0_31 = arith.constant 0 : index
    %58 = vector.load %arg10[%c0_30, %c0_31] : memref<512x128xbf16, #tpu.memory_space<vmem>>, vector<512x128xbf16>
    %cst_32 = arith.constant dense<0.000000e+00> : vector<8x128xf32>
    %59 = tpu.matmul %57, %58, %cst_32 {dimension_numbers = #tpu.dot_dimension_numbers<[1], [0], [0], [1], [0, 0, 1, 1], [], []>} : vector<8x512xbf16>, vector<512x128xbf16>, vector<8x128xf32> -> vector<8x128xf32>
    %c0_33 = arith.constant 0 : index
    %c0_34 = arith.constant 0 : index
    %60 = vector.load %arg11[%c0_33, %c0_34] : memref<1x128xf32, #tpu.memory_space<vmem>>, vector<1x128xf32>
    %61 = vector.broadcast %60 : vector<1x128xf32> to vector<8x128xf32>
    %62 = arith.addf %59, %61 : vector<8x128xf32>
    %cst_35 = arith.constant 5.000000e-01 : f32
    %63 = vector.broadcast %cst_35 : f32 to vector<8x128xf32>
    %64 = arith.cmpf ogt, %1, %63 : vector<8x128xf32>
    %cst_36 = arith.constant -1.000000e+10 : f32
    %65 = vector.broadcast %cst_36 : f32 to vector<8x128xf32>
    %66 = arith.select %64, %62, %65 : vector<8x128xi1>, vector<8x128xf32>
    %67 = tpu.iota {dimensions = array<i32: 1>} : vector<8x128xi32>
    %cst_37 = arith.constant dense<0xFF800000> : vector<8xf32>
    %68 = vector.multi_reduction <maximumf>, %66, %cst_37 [1] : vector<8x128xf32> to vector<8xf32>
    %69 = vector.shape_cast %68 : vector<8xf32> to vector<8x1xf32>
    %70 = vector.broadcast %69 : vector<8x1xf32> to vector<8x128xf32>
    %71 = arith.cmpf oeq, %66, %70 : vector<8x128xf32>
    %c1073741824_i32 = arith.constant 1073741824 : i32
    %72 = vector.broadcast %c1073741824_i32 : i32 to vector<8x128xi32>
    %73 = arith.select %71, %67, %72 : vector<8x128xi1>, vector<8x128xi32>
    %cst_38 = arith.constant dense<2147483647> : vector<8xi32>
    %74 = vector.multi_reduction <minsi>, %73, %cst_38 [1] : vector<8x128xi32> to vector<8xi32>
    %75 = vector.shape_cast %74 : vector<8xi32> to vector<8x1xi32>
    %76 = vector.shape_cast %75 : vector<8x1xi32> to vector<8x1xi32>
    %77 = vector.broadcast %76 : vector<8x1xi32> to vector<8x128xi32>
    %c0_39 = arith.constant 0 : index
    %c0_40 = arith.constant 0 : index
    %78 = vector.load %arg12[%c0_39, %c0_40] : memref<8x128xi32, #tpu.memory_space<vmem>>, vector<8x128xi32>
    tpu.vector_store %arg12[%c0_39, %c0_40], %77 {strides = array<i32>} : memref<8x128xi32, #tpu.memory_space<vmem>>, vector<8x128xi32>,
    return
  }
}

</mosaic_0001>

<llo_original>
// kernel: tpu_custom_call.1
$region0: #{tpu_custom_call.1}
  #allocation0 [shape = 'u32[]', space=smem, size = 0x4, offset = 0x4, fixed_abs, tag = 'smem constant byte address 0x4 - core index']
  #allocation1 [shape = 'u32[144,128]{1,0:T(1,128)}', space=vmem, size = 0x12000, scoped, tag = 'internal scratch']
  %s0 = inlined_call_operand.hbm [shape: f32[8,384], index: 0, kind: input, shape index: {}]
  %s1 = inlined_call_operand.hbm [shape: f32[8,128], index: 1, kind: input, shape index: {}]
  %s2 = inlined_call_operand.hbm [shape: f32[8,512], index: 2, kind: input, shape index: {}]
  %s3 = inlined_call_operand.hbm [shape: bf16[384,512], index: 3, kind: input, shape index: {}]
  %s4 = inlined_call_operand.hbm [shape: f32[1,512], index: 4, kind: input, shape index: {}]
  %s5 = inlined_call_operand.hbm [shape: bf16[512,512], index: 5, kind: input, shape index: {}]
  %s6 = inlined_call_operand.hbm [shape: f32[1,512], index: 6, kind: input, shape index: {}]
  %s7 = inlined_call_operand.hbm [shape: bf16[1024,1536], index: 7, kind: input, shape index: {}]
  %s8 = inlined_call_operand.hbm [shape: f32[1,1536], index: 8, kind: input, shape index: {}]
  %s9 = inlined_call_operand.hbm [shape: f32[1,512], index: 9, kind: input, shape index: {}]
  %s10 = inlined_call_operand.hbm [shape: bf16[512,128], index: 10, kind: input, shape index: {}]
  %s11 = inlined_call_operand.hbm [shape: f32[1,128], index: 11, kind: input, shape index: {}]
  %s12 = inlined_call_operand.hbm [shape: s32[8,128], index: 12, kind: output, shape index: {0}]
  %s13 = inlined_call_operand.hbm [shape: f32[8,512], index: 13, kind: output, shape index: {1}]
  %14 = xla_tuple %s12, %s13
  %s15 = sld [smem:[#allocation0]]
  $region114: #{tpu_custom_call.1} parent=0
    _
  %s17 = ssub.s32 1, %s15
  %s18 = scalar_select 0, %s17, %s15
  $region1: #{tpu_custom_call.1} parent=0
    #allocation2 [shape = 'u8[12288]{0}', space=vmem, size = 0x3000, scoped, tag = 'input window, operand 0, single buffered']
    #allocation3 [shape = 's32[1]{0}', space=sflag, size = 0x4, scoped, tag = 'scoped memory for tpu_custom_call.1']
    #allocation4 [shape = 's32[1]{0}', space=sflag, size = 0x4, scoped, tag = 'scoped memory for tpu_custom_call.1']
    #allocation5 [shape = 'u8[4096]{0}', space=vmem, size = 0x1000, scoped, tag = 'input window, operand 1, single buffered']
    #allocation6 [shape = 's32[1]{0}', space=sflag, size = 0x4, scoped, tag = 'scoped memory for tpu_custom_call.1']
    #allocation7 [shape = 'u8[16384]{0}', space=vmem, size = 0x4000, scoped, tag = 'input window, operand 2, single buffered']
    #allocation8 [shape = 'u8[393216]{0}', space=vmem, size = 0x60000, scoped, tag = 'input window, operand 3, single buffered']
    #allocation9 [shape = 's32[1]{0}', space=sflag, size = 0x4, scoped, tag = 'scoped memory for tpu_custom_call.1']
    #allocation10 [shape = 'u8[2048]{0}', space=vmem, size = 0x800, scoped, tag = 'input window, operand 4, single buffered']
    #allocation11 [shape = 'u8[524288]{0}', space=vmem, size = 0x80000, scoped, tag = 'input window, operand 5, single buffered']
    #allocation12 [shape = 's32[1]{0}', space=sflag, size = 0x4, scoped, tag = 'scoped memory for tpu_custom_call.1']
    #allocation13 [shape = 'u8[2048]{0}', space=vmem, size = 0x800, scoped, tag = 'input window, operand 6, single buffered']
    #allocation14 [shape = 'u8[3145728]{0}', space=vmem, size = 0x300000, scoped, tag = 'input window, operand 7, single buffered']
    #allocation15 [shape = 's32[1]{0}', space=sflag, size = 0x4, scoped, tag = 'scoped memory for tpu_custom_call.1']
    #allocation16 [shape = 'u8[6144]{0}', space=vmem, size = 0x1800, scoped, tag = 'input window, operand 8, single buffered']
    #allocation17 [shape = 'u8[2048]{0}', space=vmem, size = 0x800, scoped, tag = 'input window, operand 9, single buffered']
    #allocation18 [shape = 's32[1]{0}', space=sflag, size = 0x4, scoped, tag = 'scoped memory for tpu_custom_call.1']
    #allocation19 [shape = 'u8[131072]{0}', space=vmem, size = 0x20000, scoped, tag = 'input window, operand 10, single buffered']
    #allocation20 [shape = 'u8[512]{0}', space=vmem, size = 0x400, scoped, tag = 'input window, operand 11, single buffered']
    #allocation21 [shape = 's32[1]{0}', space=sflag, size = 0x4, scoped, tag = 'scoped memory for tpu_custom_call.1']
    #allocation22 [shape = 'u8[4096]{0}', space=vmem, size = 0x1000, scoped, tag = 'output window, operand 0, single buffered']
    #allocation23 [shape = 'u8[16384]{0}', space=vmem, size = 0x4000, scoped, tag = 'output window, operand 1, single buffered']
    #allocation24 [shape = 's32[1]{0}', space=sflag, size = 0x4, scoped, tag = 'scoped memory for tpu_custom_call.1']
    %19 = vsyncpa [#allocation3], 0
    %20 = vsyncpa [#allocation6], 0
    %21 = vsyncpa [#allocation9], 0
    %22 = vsyncpa [#allocation12], 0
    %23 = vsyncpa [#allocation15], 0
    %24 = vsyncpa [#allocation18], 0
    %25 = vsyncpa [#allocation21], 0
    %26 = vsyncpa [#allocation4], 0
    %27 = vsyncpa [#allocation24], 0
    // Predicated region
    $region2: #{tpu_custom_call.1} parent=1 // pred_check
      _
    $region3: #{tpu_custom_call.1} parent=1 // pred_check_branch
      %29 = sbr.rel (0) target = $region5
    $region4: #{tpu_custom_call.1} parent=1 // pred_region
      %s31 = ssub.s32 384, 384
      %32 = vsyncadd [#allocation3], %s31
      %s34 = sshll.u32 [#allocation2], 4
      %s35 = int_to_ptr.vmem [resolvable:$true] %s34
      %37 = dma.hbm_to_vmem [thread:$0]  %s0, 384, %s35, [#allocation3]
    $region5: #{tpu_custom_call.1} parent=1 // pred_fallthru
      _
    // Predicated region
    $region6: #{tpu_custom_call.1} parent=1 // pred_check
      _
    $region7: #{tpu_custom_call.1} parent=1 // pred_check_branch
      %39 = sbr.rel (0) target = $region9
    $region8: #{tpu_custom_call.1} parent=1 // pred_region
      %s41 = ssub.s32 128, 128
      %42 = vsyncadd [#allocation6], %s41
      %s44 = sshll.u32 [#allocation5], 4
      %s45 = int_to_ptr.vmem [resolvable:$true] %s44
      %47 = dma.hbm_to_vmem [thread:$0]  %s1, 128, %s45, [#allocation6]
    $region9: #{tpu_custom_call.1} parent=1 // pred_fallthru
      _
    // Predicated region
    $region10: #{tpu_custom_call.1} parent=1 // pred_check
      _
    $region11: #{tpu_custom_call.1} parent=1 // pred_check_branch
      %49 = sbr.rel (0) target = $region13
    $region12: #{tpu_custom_call.1} parent=1 // pred_region
      %s51 = ssub.s32 512, 512
      %52 = vsyncadd [#allocation6], %s51
      %s54 = sshll.u32 [#allocation7], 4
      %s55 = int_to_ptr.vmem [resolvable:$true] %s54
      %57 = dma.hbm_to_vmem [thread:$0]  %s2, 512, %s55, [#allocation6]
    $region13: #{tpu_custom_call.1} parent=1 // pred_fallthru
      _
    // Predicated region
    $region14: #{tpu_custom_call.1} parent=1 // pred_check
      _
    $region15: #{tpu_custom_call.1} parent=1 // pred_check_branch
      %59 = sbr.rel (0) target = $region17
    $region16: #{tpu_custom_call.1} parent=1 // pred_region
      %s61 = ssub.s32 12288, 12288
      %62 = vsyncadd [#allocation9], %s61
      %s63 = sshll.u32 [#allocation8], 4
      %s64 = int_to_ptr.vmem [resolvable:$true] %s63
      %69 = dma.hbm_to_vmem [thread:$0]  %s3, 12288, %s64, [#allocation9], 256, 256, 16
    $region17: #{tpu_custom_call.1} parent=1 // pred_fallthru
      _
    // Predicated region
    $region18: #{tpu_custom_call.1} parent=1 // pred_check
      _
    $region19: #{tpu_custom_call.1} parent=1 // pred_check_branch
      %71 = sbr.rel (0) target = $region21
    $region20: #{tpu_custom_call.1} parent=1 // pred_region
      %s73 = ssub.s32 64, 64
      %74 = vsyncadd [#allocation9], %s73
      %s76 = sshll.u32 [#allocation10], 4
      %s77 = int_to_ptr.vmem [resolvable:$true] %s76
      %79 = dma.hbm_to_vmem [thread:$0]  %s4, 64, %s77, [#allocation9]
    $region21: #{tpu_custom_call.1} parent=1 // pred_fallthru
      _
    // Predicated region
    $region22: #{tpu_custom_call.1} parent=1 // pred_check
      _
    $region23: #{tpu_custom_call.1} parent=1 // pred_check_branch
      %81 = sbr.rel (0) target = $region25
    $region24: #{tpu_custom_call.1} parent=1 // pred_region
      %s83 = ssub.s32 16384, 16384
      %84 = vsyncadd [#allocation12], %s83
      %s85 = sshll.u32 [#allocation11], 4
      %s86 = int_to_ptr.vmem [resolvable:$true] %s85
      %91 = dma.hbm_to_vmem [thread:$0]  %s5, 16384, %s86, [#allocation12], 256, 256, 16
    $region25: #{tpu_custom_call.1} parent=1 // pred_fallthru
      _
    // Predicated region
    $region26: #{tpu_custom_call.1} parent=1 // pred_check
      _
    $region27: #{tpu_custom_call.1} parent=1 // pred_check_branch
      %93 = sbr.rel (0) target = $region29
    $region28: #{tpu_custom_call.1} parent=1 // pred_region
      %s95 = ssub.s32 64, 64
      %96 = vsyncadd [#allocation12], %s95
      %s98 = sshll.u32 [#allocation13], 4
      %s99 = int_to_ptr.vmem [resolvable:$true] %s98
      %101 = dma.hbm_to_vmem [thread:$0]  %s6, 64, %s99, [#allocation12]
    $region29: #{tpu_custom_call.1} parent=1 // pred_fallthru
      _
    // Predicated region
    $region30: #{tpu_custom_call.1} parent=1 // pred_check
      _
    $region31: #{tpu_custom_call.1} parent=1 // pred_check_branch
      %103 = sbr.rel (0) target = $region33
    $region32: #{tpu_custom_call.1} parent=1 // pred_region
      %s105 = ssub.s32 98304, 98304
      %106 = vsyncadd [#allocation15], %s105
      %s107 = sshll.u32 [#allocation14], 4
      %s108 = int_to_ptr.vmem [resolvable:$true] %s107
      %113 = dma.hbm_to_vmem [thread:$0]  %s7, 98304, %s108, [#allocation15], 768, 768, 48
    $region33: #{tpu_custom_call.1} parent=1 // pred_fallthru
      _
    // Predicated region
    $region34: #{tpu_custom_call.1} parent=1 // pred_check
      _
    $region35: #{tpu_custom_call.1} parent=1 // pred_check_branch
      %115 = sbr.rel (0) target = $region37
    $region36: #{tpu_custom_call.1} parent=1 // pred_region
      %s117 = ssub.s32 192, 192
      %118 = vsyncadd [#allocation15], %s117
      %s120 = sshll.u32 [#allocation16], 4
      %s121 = int_to_ptr.vmem [resolvable:$true] %s120
      %123 = dma.hbm_to_vmem [thread:$0]  %s8, 192, %s121, [#allocation15]
    $region37: #{tpu_custom_call.1} parent=1 // pred_fallthru
      _
    // Predicated region
    $region38: #{tpu_custom_call.1} parent=1 // pred_check
      _
    $region39: #{tpu_custom_call.1} parent=1 // pred_check_branch
      %125 = sbr.rel (0) target = $region41
    $region40: #{tpu_custom_call.1} parent=1 // pred_region
      %s127 = ssub.s32 64, 64
      %128 = vsyncadd [#allocation18], %s127
      %s130 = sshll.u32 [#allocation17], 4
      %s131 = int_to_ptr.vmem [resolvable:$true] %s130
      %133 = dma.hbm_to_vmem [thread:$0]  %s9, 64, %s131, [#allocation18]
    $region41: #{tpu_custom_call.1} parent=1 // pred_fallthru
      _
    // Predicated region
    $region42: #{tpu_custom_call.1} parent=1 // pred_check
      _
    $region43: #{tpu_custom_call.1} parent=1 // pred_check_branch
      %135 = sbr.rel (0) target = $region45
    $region44: #{tpu_custom_call.1} parent=1 // pred_region
      %s137 = ssub.s32 4096, 4096
      %138 = vsyncadd [#allocation18], %s137
      %s139 = sshll.u32 [#allocation19], 4
      %s140 = int_to_ptr.vmem [resolvable:$true] %s139
      %145 = dma.hbm_to_vmem [thread:$0]  %s10, 4096, %s140, [#allocation18], 64, 64, 4
    $region45: #{tpu_custom_call.1} parent=1 // pred_fallthru
      _
    // Predicated region
    $region46: #{tpu_custom_call.1} parent=1 // pred_check
      _
    $region47: #{tpu_custom_call.1} parent=1 // pred_check_branch
      %147 = sbr.rel (0) target = $region49
    $region48: #{tpu_custom_call.1} parent=1 // pred_region
      %s149 = ssub.s32 16, 16
      %150 = vsyncadd [#allocation21], %s149
      %s152 = sshll.u32 [#allocation20], 4
      %s153 = int_to_ptr.vmem [resolvable:$true] %s152
      %155 = dma.hbm_to_vmem [thread:$0]  %s11, 16, %s153, [#allocation21]
    $region49: #{tpu_custom_call.1} parent=1 // pred_fallthru
      _
    // Predicated region
    $region50: #{tpu_custom_call.1} parent=1 // pred_check
      _
    $region51: #{tpu_custom_call.1} parent=1 // pred_check_branch
      %157 = sbr.rel (0) target = $region53
    $region52: #{tpu_custom_call.1} parent=1 // pred_region
      %158 = dma.done [#allocation3], 384
    $region53: #{tpu_custom_call.1} parent=1 // pred_fallthru
      _
    // Predicated region
    $region54: #{tpu_custom_call.1} parent=1 // pred_check
      _
    $region55: #{tpu_custom_call.1} parent=1 // pred_check_branch
      %160 = sbr.rel (0) target = $region57
    $region56: #{tpu_custom_call.1} parent=1 // pred_region
      %161 = dma.done [#allocation6], 128
    $region57: #{tpu_custom_call.1} parent=1 // pred_fallthru
      _
    // Predicated region
    $region58: #{tpu_custom_call.1} parent=1 // pred_check
      _
    $region59: #{tpu_custom_call.1} parent=1 // pred_check_branch
      %163 = sbr.rel (0) target = $region61
    $region60: #{tpu_custom_call.1} parent=1 // pred_region
      %164 = dma.done [#allocation6], 512
    $region61: #{tpu_custom_call.1} parent=1 // pred_fallthru
      _
    // Predicated region
    $region62: #{tpu_custom_call.1} parent=1 // pred_check
      _
    $region63: #{tpu_custom_call.1} parent=1 // pred_check_branch
      %166 = sbr.rel (0) target = $region65
    $region64: #{tpu_custom_call.1} parent=1 // pred_region
      %167 = dma.done [#allocation9], 12288
    $region65: #{tpu_custom_call.1} parent=1 // pred_fallthru
      _
    // Predicated region
    $region66: #{tpu_custom_call.1} parent=1 // pred_check
      _
    $region67: #{tpu_custom_call.1} parent=1 // pred_check_branch
      %169 = sbr.rel (0) target = $region69
    $region68: #{tpu_custom_call.1} parent=1 // pred_region
      %170 = dma.done [#allocation9], 64
    $region69: #{tpu_custom_call.1} parent=1 // pred_fallthru
      _
    // Predicated region
    $region70: #{tpu_custom_call.1} parent=1 // pred_check
      _
    $region71: #{tpu_custom_call.1} parent=1 // pred_check_branch
      %172 = sbr.rel (0) target = $region73
    $region72: #{tpu_custom_call.1} parent=1 // pred_region
      %173 = dma.done [#allocation12], 16384
    $region73: #{tpu_custom_call.1} parent=1 // pred_fallthru
      _
    // Predicated region
    $region74: #{tpu_custom_call.1} parent=1 // pred_check
      _
    $region75: #{tpu_custom_call.1} parent=1 // pred_check_branch
      %175 = sbr.rel (0) target = $region77
    $region76: #{tpu_custom_call.1} parent=1 // pred_region
      %176 = dma.done [#allocation12], 64
    $region77: #{tpu_custom_call.1} parent=1 // pred_fallthru
      _
    // Predicated region
    $region78: #{tpu_custom_call.1} parent=1 // pred_check
      _
    $region79: #{tpu_custom_call.1} parent=1 // pred_check_branch
      %178 = sbr.rel (0) target = $region81
    $region80: #{tpu_custom_call.1} parent=1 // pred_region
      %179 = dma.done [#allocation15], 98304
    $region81: #{tpu_custom_call.1} parent=1 // pred_fallthru
      _
    // Predicated region
    $region82: #{tpu_custom_call.1} parent=1 // pred_check
      _
    $region83: #{tpu_custom_call.1} parent=1 // pred_check_branch
      %181 = sbr.rel (0) target = $region85
    $region84: #{tpu_custom_call.1} parent=1 // pred_region
      %182 = dma.done [#allocation15], 192
    $region85: #{tpu_custom_call.1} parent=1 // pred_fallthru
      _
    // Predicated region
    $region86: #{tpu_custom_call.1} parent=1 // pred_check
      _
    $region87: #{tpu_custom_call.1} parent=1 // pred_check_branch
      %184 = sbr.rel (0) target = $region89
    $region88: #{tpu_custom_call.1} parent=1 // pred_region
      %185 = dma.done [#allocation18], 64
    $region89: #{tpu_custom_call.1} parent=1 // pred_fallthru
      _
    // Predicated region
    $region90: #{tpu_custom_call.1} parent=1 // pred_check
      _
    $region91: #{tpu_custom_call.1} parent=1 // pred_check_branch
      %187 = sbr.rel (0) target = $region93
    $region92: #{tpu_custom_call.1} parent=1 // pred_region
      %188 = dma.done [#allocation18], 4096
    $region93: #{tpu_custom_call.1} parent=1 // pred_fallthru
      _
    // Predicated region
    $region94: #{tpu_custom_call.1} parent=1 // pred_check
      _
    $region95: #{tpu_custom_call.1} parent=1 // pred_check_branch
      %190 = sbr.rel (0) target = $region97
    $region96: #{tpu_custom_call.1} parent=1 // pred_region
      %191 = dma.done [#allocation21], 16
    $region97: #{tpu_custom_call.1} parent=1 // pred_fallthru
      _
    %v193 = vld [vmem:[#allocation2] sm:$0xff]
    %v194 = vld [vmem:[#allocation2 + $0x8] sm:$0xff]
    %v195 = vld [vmem:[#allocation2 + $0x10] sm:$0xff]
    %v196 = vld [vmem:[#allocation5] sm:$0xff]
    %v197 = vld [vmem:[#allocation7] sm:$0xff]
    %v198 = vld [vmem:[#allocation7 + $0x8] sm:$0xff]
    %v199 = vld [vmem:[#allocation7 + $0x10] sm:$0xff]
    %v200 = vld [vmem:[#allocation7 + $0x18] sm:$0xff]
    %v201 = vpack.c.bf16 %v193, %v193
    %v202 = vpack.c.bf16 %v194, %v194
    %v203 = vpack.c.bf16 %v195, %v195
    %v204 = vld [vmem:[#allocation8] sm:$0xff]
    %v205 = vld [vmem:[#allocation8 + $0x8] sm:$0xff]
    %v206 = vld [vmem:[#allocation8 + $0x10] sm:$0xff]
    %v207 = vld [vmem:[#allocation8 + $0x18] sm:$0xff]
    %v208 = vld [vmem:[#allocation8 + $0x20] sm:$0xff]
    %v209 = vld [vmem:[#allocation8 + $0x28] sm:$0xff]
    %v210 = vld [vmem:[#allocation8 + $0x30] sm:$0xff]
    %v211 = vld [vmem:[#allocation8 + $0x38] sm:$0xff]
    %v212 = vld [vmem:[#allocation8 + $0x40] sm:$0xff]
    %v213 = vld [vmem:[#allocation8 + $0x48] sm:$0xff]
    %v214 = vld [vmem:[#allocation8 + $0x50] sm:$0xff]
    %v215 = vld [vmem:[#allocation8 + $0x58] sm:$0xff]
    %v216 = vld [vmem:[#allocation8 + $0x60] sm:$0xff]
    %v217 = vld [vmem:[#allocation8 + $0x68] sm:$0xff]
    %v218 = vld [vmem:[#allocation8 + $0x70] sm:$0xff]
    %v219 = vld [vmem:[#allocation8 + $0x78] sm:$0xff]
    %v220 = vld [vmem:[#allocation8 + $0x80] sm:$0xff]
    %v221 = vld [vmem:[#allocation8 + $0x88] sm:$0xff]
    %v222 = vld [vmem:[#allocation8 + $0x90] sm:$0xff]
    %v223 = vld [vmem:[#allocation8 + $0x98] sm:$0xff]
    %v224 = vld [vmem:[#allocation8 + $0xa0] sm:$0xff]
    %v225 = vld [vmem:[#allocation8 + $0xa8] sm:$0xff]
    %v226 = vld [vmem:[#allocation8 + $0xb0] sm:$0xff]
    %v227 = vld [vmem:[#allocation8 + $0xb8] sm:$0xff]
    %v228 = vld [vmem:[#allocation8 + $0xc0] sm:$0xff]
    %v229 = vld [vmem:[#allocation8 + $0xc8] sm:$0xff]
    %v230 = vld [vmem:[#allocation8 + $0xd0] sm:$0xff]
    %v231 = vld [vmem:[#allocation8 + $0xd8] sm:$0xff]
    %v232 = vld [vmem:[#allocation8 + $0xe0] sm:$0xff]
    %v233 = vld [vmem:[#allocation8 + $0xe8] sm:$0xff]
    %v234 = vld [vmem:[#allocation8 + $0xf0] sm:$0xff]
    %v235 = vld [vmem:[#allocation8 + $0xf8] sm:$0xff]
    %v236 = vld [vmem:[#allocation8 + $0x100] sm:$0xff]
    %v237 = vld [vmem:[#allocation8 + $0x108] sm:$0xff]
    %v238 = vld [vmem:[#allocation8 + $0x110] sm:$0xff]
    %v239 = vld [vmem:[#allocation8 + $0x118] sm:$0xff]
    %v240 = vld [vmem:[#allocation8 + $0x120] sm:$0xff]
    %v241 = vld [vmem:[#allocation8 + $0x128] sm:$0xff]
    %v242 = vld [vmem:[#allocation8 + $0x130] sm:$0xff]
    %v243 = vld [vmem:[#allocation8 + $0x138] sm:$0xff]
    %v244 = vld [vmem:[#allocation8 + $0x140] sm:$0xff]
    %v245 = vld [vmem:[#allocation8 + $0x148] sm:$0xff]
    %v246 = vld [vmem:[#allocation8 + $0x150] sm:$0xff]
    %v247 = vld [vmem:[#allocation8 + $0x158] sm:$0xff]
    %v248 = vld [vmem:[#allocation8 + $0x160] sm:$0xff]
    %v249 = vld [vmem:[#allocation8 + $0x168] sm:$0xff]
    %v250 = vld [vmem:[#allocation8 + $0x170] sm:$0xff]
    %v251 = vld [vmem:[#allocation8 + $0x178] sm:$0xff]
    %v252 = vld [vmem:[#allocation8 + $0x180] sm:$0xff]
    %v253 = vld [vmem:[#allocation8 + $0x188] sm:$0xff]
    %v254 = vld [vmem:[#allocation8 + $0x190] sm:$0xff]
    %v255 = vld [vmem:[#allocation8 + $0x198] sm:$0xff]
    %v256 = vld [vmem:[#allocation8 + $0x1a0] sm:$0xff]
    %v257 = vld [vmem:[#allocation8 + $0x1a8] sm:$0xff]
    %v258 = vld [vmem:[#allocation8 + $0x1b0] sm:$0xff]
    %v259 = vld [vmem:[#allocation8 + $0x1b8] sm:$0xff]
    %v260 = vld [vmem:[#allocation8 + $0x1c0] sm:$0xff]
    %v261 = vld [vmem:[#allocation8 + $0x1c8] sm:$0xff]
    %v262 = vld [vmem:[#allocation8 + $0x1d0] sm:$0xff]
    %v263 = vld [vmem:[#allocation8 + $0x1d8] sm:$0xff]
    %v264 = vld [vmem:[#allocation8 + $0x1e0] sm:$0xff]
    %v265 = vld [vmem:[#allocation8 + $0x1e8] sm:$0xff]
    %v266 = vld [vmem:[#allocation8 + $0x1f0] sm:$0xff]
    %v267 = vld [vmem:[#allocation8 + $0x1f8] sm:$0xff]
    %v268 = vld [vmem:[#allocation8 + $0x200] sm:$0xff]
    %v269 = vld [vmem:[#allocation8 + $0x208] sm:$0xff]
    %v270 = vld [vmem:[#allocation8 + $0x210] sm:$0xff]
    %v271 = vld [vmem:[#allocation8 + $0x218] sm:$0xff]
    %v272 = vld [vmem:[#allocation8 + $0x220] sm:$0xff]
    %v273 = vld [vmem:[#allocation8 + $0x228] sm:$0xff]
    %v274 = vld [vmem:[#allocation8 + $0x230] sm:$0xff]
    %v275 = vld [vmem:[#allocation8 + $0x238] sm:$0xff]
    %v276 = vld [vmem:[#allocation8 + $0x240] sm:$0xff]
    %v277 = vld [vmem:[#allocation8 + $0x248] sm:$0xff]
    %v278 = vld [vmem:[#allocation8 + $0x250] sm:$0xff]
    %v279 = vld [vmem:[#allocation8 + $0x258] sm:$0xff]
    %v280 = vld [vmem:[#allocation8 + $0x260] sm:$0xff]
    %v281 = vld [vmem:[#allocation8 + $0x268] sm:$0xff]
    %v282 = vld [vmem:[#allocation8 + $0x270] sm:$0xff]
    %v283 = vld [vmem:[#allocation8 + $0x278] sm:$0xff]
    %v284 = vld [vmem:[#allocation8 + $0x280] sm:$0xff]
    %v285 = vld [vmem:[#allocation8 + $0x288] sm:$0xff]
    %v286 = vld [vmem:[#allocation8 + $0x290] sm:$0xff]
    %v287 = vld [vmem:[#allocation8 + $0x298] sm:$0xff]
    %v288 = vld [vmem:[#allocation8 + $0x2a0] sm:$0xff]
    %v289 = vld [vmem:[#allocation8 + $0x2a8] sm:$0xff]
    %v290 = vld [vmem:[#allocation8 + $0x2b0] sm:$0xff]
    %v291 = vld [vmem:[#allocation8 + $0x2b8] sm:$0xff]
    %v292 = vld [vmem:[#allocation8 + $0x2c0] sm:$0xff]
    %v293 = vld [vmem:[#allocation8 + $0x2c8] sm:$0xff]
    %v294 = vld [vmem:[#allocation8 + $0x2d0] sm:$0xff]
    %v295 = vld [vmem:[#allocation8 + $0x2d8] sm:$0xff]
    %v296 = vld [vmem:[#allocation8 + $0x2e0] sm:$0xff]
    %v297 = vld [vmem:[#allocation8 + $0x2e8] sm:$0xff]
    %v298 = vld [vmem:[#allocation8 + $0x2f0] sm:$0xff]
    %v299 = vld [vmem:[#allocation8 + $0x2f8] sm:$0xff]
    %v300 = vld [vmem:[#allocation10] sm:$0xf]
    %v302 = vlaneseq
    %v303 = vshrl.u32 %v302, 7
    %v304 = vsub.s32 0, %v303
    %v305 = vrot.slane %v300, %v304
    %v306 = vlaneseq
    %v307 = vshrl.u32 %v306, 7
    %v308 = vsub.s32 1, %v307
    %v309 = vrot.slane %v300, %v308
    %v310 = vlaneseq
    %v311 = vshrl.u32 %v310, 7
    %v312 = vsub.s32 2, %v311
    %v313 = vrot.slane %v300, %v312
    %v314 = vlaneseq
    %v315 = vshrl.u32 %v314, 7
    %v316 = vsub.s32 3, %v315
    %v317 = vrot.slane %v300, %v316
    %v418 = vunpack.c.l.b16 %v204
    %v419 = vunpack.c.h.b16 %v204
    %v420 = vunpack.c.l.b16 %v205
    %v421 = vunpack.c.h.b16 %v205
    %v422 = vunpack.c.l.b16 %v206
    %v423 = vunpack.c.h.b16 %v206
    %v424 = vunpack.c.l.b16 %v207
    %v425 = vunpack.c.h.b16 %v207
    %v426 = vunpack.c.l.b16 %v208
    %v427 = vunpack.c.h.b16 %v208
    %v428 = vunpack.c.l.b16 %v209
    %v429 = vunpack.c.h.b16 %v209
    %v430 = vunpack.c.l.b16 %v210
    %v431 = vunpack.c.h.b16 %v210
    %v432 = vunpack.c.l.b16 %v211
    %v433 = vunpack.c.h.b16 %v211
    %v434 = vunpack.c.l.b16 %v212
    %v435 = vunpack.c.h.b16 %v212
    %v436 = vunpack.c.l.b16 %v213
    %v437 = vunpack.c.h.b16 %v213
    %v438 = vunpack.c.l.b16 %v214
    %v439 = vunpack.c.h.b16 %v214
    %v440 = vunpack.c.l.b16 %v215
    %v441 = vunpack.c.h.b16 %v215
    %v442 = vunpack.c.l.b16 %v216
    %v443 = vunpack.c.h.b16 %v216
    %v444 = vunpack.c.l.b16 %v217
    %v445 = vunpack.c.h.b16 %v217
    %v446 = vunpack.c.l.b16 %v218
    %v447 = vunpack.c.h.b16 %v218
    %v448 = vunpack.c.l.b16 %v219
    %v449 = vunpack.c.h.b16 %v219
    %v450 = vunpack.c.l.b16 %v220
    %v451 = vunpack.c.h.b16 %v220
    %v452 = vunpack.c.l.b16 %v221
    %v453 = vunpack.c.h.b16 %v221
    %v454 = vunpack.c.l.b16 %v222
    %v455 = vunpack.c.h.b16 %v222
    %v456 = vunpack.c.l.b16 %v223
    %v457 = vunpack.c.h.b16 %v223
    %v458 = vunpack.c.l.b16 %v224
    %v459 = vunpack.c.h.b16 %v224
    %v460 = vunpack.c.l.b16 %v225
    %v461 = vunpack.c.h.b16 %v225
    %v462 = vunpack.c.l.b16 %v226
    %v463 = vunpack.c.h.b16 %v226
    %v464 = vunpack.c.l.b16 %v227
    %v465 = vunpack.c.h.b16 %v227
    %v466 = vunpack.c.l.b16 %v228
    %v467 = vunpack.c.h.b16 %v228
    %v468 = vunpack.c.l.b16 %v229
    %v469 = vunpack.c.h.b16 %v229
    %v470 = vunpack.c.l.b16 %v230
    %v471 = vunpack.c.h.b16 %v230
    %v472 = vunpack.c.l.b16 %v231
    %v473 = vunpack.c.h.b16 %v231
    %v474 = vunpack.c.l.b16 %v232
    %v475 = vunpack.c.h.b16 %v232
    %v476 = vunpack.c.l.b16 %v233
    %v477 = vunpack.c.h.b16 %v233
    %v478 = vunpack.c.l.b16 %v234
    %v479 = vunpack.c.h.b16 %v234
    %v480 = vunpack.c.l.b16 %v235
    %v481 = vunpack.c.h.b16 %v235
    %v482 = vunpack.c.l.b16 %v236
    %v483 = vunpack.c.h.b16 %v236
    %v484 = vunpack.c.l.b16 %v237
    %v485 = vunpack.c.h.b16 %v237
    %v486 = vunpack.c.l.b16 %v238
    %v487 = vunpack.c.h.b16 %v238
    %v488 = vunpack.c.l.b16 %v239
    %v489 = vunpack.c.h.b16 %v239
    %v490 = vunpack.c.l.b16 %v240
    %v491 = vunpack.c.h.b16 %v240
    %v492 = vunpack.c.l.b16 %v241
    %v493 = vunpack.c.h.b16 %v241
    %v494 = vunpack.c.l.b16 %v242
    %v495 = vunpack.c.h.b16 %v242
    %v496 = vunpack.c.l.b16 %v243
    %v497 = vunpack.c.h.b16 %v243
    %v498 = vunpack.c.l.b16 %v244
    %v499 = vunpack.c.h.b16 %v244
    %v500 = vunpack.c.l.b16 %v245
    %v501 = vunpack.c.h.b16 %v245
    %v502 = vunpack.c.l.b16 %v246
    %v503 = vunpack.c.h.b16 %v246
    %v504 = vunpack.c.l.b16 %v247
    %v505 = vunpack.c.h.b16 %v247
    %v506 = vunpack.c.l.b16 %v248
    %v507 = vunpack.c.h.b16 %v248
    %v508 = vunpack.c.l.b16 %v249
    %v509 = vunpack.c.h.b16 %v249
    %v510 = vunpack.c.l.b16 %v250
    %v511 = vunpack.c.h.b16 %v250
    %v512 = vunpack.c.l.b16 %v251
    %v513 = vunpack.c.h.b16 %v251
    %v514 = vunpack.c.l.b16 %v252
    %v515 = vunpack.c.h.b16 %v252
    %v516 = vunpack.c.l.b16 %v253
    %v517 = vunpack.c.h.b16 %v253
    %v518 = vunpack.c.l.b16 %v254
    %v519 = vunpack.c.h.b16 %v254
    %v520 = vunpack.c.l.b16 %v255
    %v521 = vunpack.c.h.b16 %v255
    %v522 = vunpack.c.l.b16 %v256
    %v523 = vunpack.c.h.b16 %v256
    %v524 = vunpack.c.l.b16 %v257
    %v525 = vunpack.c.h.b16 %v257
    %v526 = vunpack.c.l.b16 %v258
    %v527 = vunpack.c.h.b16 %v258
    %v528 = vunpack.c.l.b16 %v259
    %v529 = vunpack.c.h.b16 %v259
    %v530 = vunpack.c.l.b16 %v260
    %v531 = vunpack.c.h.b16 %v260
    %v532 = vunpack.c.l.b16 %v261
    %v533 = vunpack.c.h.b16 %v261
    %v534 = vunpack.c.l.b16 %v262
    %v535 = vunpack.c.h.b16 %v262
    %v536 = vunpack.c.l.b16 %v263
    %v537 = vunpack.c.h.b16 %v263
    %v538 = vunpack.c.l.b16 %v264
    %v539 = vunpack.c.h.b16 %v264
    %v540 = vunpack.c.l.b16 %v265
    %v541 = vunpack.c.h.b16 %v265
    %v542 = vunpack.c.l.b16 %v266
    %v543 = vunpack.c.h.b16 %v266
    %v544 = vunpack.c.l.b16 %v267
    %v545 = vunpack.c.h.b16 %v267
    %v546 = vunpack.c.l.b16 %v268
    %v547 = vunpack.c.h.b16 %v268
    %v548 = vunpack.c.l.b16 %v269
    %v549 = vunpack.c.h.b16 %v269
    %v550 = vunpack.c.l.b16 %v270
    %v551 = vunpack.c.h.b16 %v270
    %v552 = vunpack.c.l.b16 %v271
    %v553 = vunpack.c.h.b16 %v271
    %v554 = vunpack.c.l.b16 %v272
    %v555 = vunpack.c.h.b16 %v272
    %v556 = vunpack.c.l.b16 %v273
    %v557 = vunpack.c.h.b16 %v273
    %v558 = vunpack.c.l.b16 %v274
    %v559 = vunpack.c.h.b16 %v274
    %v560 = vunpack.c.l.b16 %v275
    %v561 = vunpack.c.h.b16 %v275
    %v562 = vunpack.c.l.b16 %v276
    %v563 = vunpack.c.h.b16 %v276
    %v564 = vunpack.c.l.b16 %v277
    %v565 = vunpack.c.h.b16 %v277
    %v566 = vunpack.c.l.b16 %v278
    %v567 = vunpack.c.h.b16 %v278
    %v568 = vunpack.c.l.b16 %v279
    %v569 = vunpack.c.h.b16 %v279
    %v570 = vunpack.c.l.b16 %v280
    %v571 = vunpack.c.h.b16 %v280
    %v572 = vunpack.c.l.b16 %v281
    %v573 = vunpack.c.h.b16 %v281
    %v574 = vunpack.c.l.b16 %v282
    %v575 = vunpack.c.h.b16 %v282
    %v576 = vunpack.c.l.b16 %v283
    %v577 = vunpack.c.h.b16 %v283
    %v578 = vunpack.c.l.b16 %v284
    %v579 = vunpack.c.h.b16 %v284
    %v580 = vunpack.c.l.b16 %v285
    %v581 = vunpack.c.h.b16 %v285
    %v582 = vunpack.c.l.b16 %v286
    %v583 = vunpack.c.h.b16 %v286
    %v584 = vunpack.c.l.b16 %v287
    %v585 = vunpack.c.h.b16 %v287
    %v586 = vunpack.c.l.b16 %v288
    %v587 = vunpack.c.h.b16 %v288
    %v588 = vunpack.c.l.b16 %v289
    %v589 = vunpack.c.h.b16 %v289
    %v590 = vunpack.c.l.b16 %v290
    %v591 = vunpack.c.h.b16 %v290
    %v592 = vunpack.c.l.b16 %v291
    %v593 = vunpack.c.h.b16 %v291
    %v594 = vunpack.c.l.b16 %v292
    %v595 = vunpack.c.h.b16 %v292
    %v596 = vunpack.c.l.b16 %v293
    %v597 = vunpack.c.h.b16 %v293
    %v598 = vunpack.c.l.b16 %v294
    %v599 = vunpack.c.h.b16 %v294
    %v600 = vunpack.c.l.b16 %v295
    %v601 = vunpack.c.h.b16 %v295
    %v602 = vunpack.c.l.b16 %v296
    %v603 = vunpack.c.h.b16 %v296
    %v604 = vunpack.c.l.b16 %v297
    %v605 = vunpack.c.h.b16 %v297
    %v606 = vunpack.c.l.b16 %v298
    %v607 = vunpack.c.h.b16 %v298
    %v608 = vunpack.c.l.b16 %v299
    %v609 = vunpack.c.h.b16 %v299
    %v610 = vpack.c.b16 %v422, %v418
    %v611 = vpack.c.b16 %v423, %v419
    %v612 = vpack.c.b16 %v424, %v420
    %v613 = vpack.c.b16 %v425, %v421
    %v614 = vpack.c.b16 %v430, %v426
    %v615 = vpack.c.b16 %v431, %v427
    %v616 = vpack.c.b16 %v432, %v428
    %v617 = vpack.c.b16 %v433, %v429
    %v618 = vpack.c.b16 %v438, %v434
    %v619 = vpack.c.b16 %v439, %v435
    %v620 = vpack.c.b16 %v440, %v436
    %v621 = vpack.c.b16 %v441, %v437
    %v622 = vpack.c.b16 %v446, %v442
    %v623 = vpack.c.b16 %v447, %v443
    %v624 = vpack.c.b16 %v448, %v444
    %v625 = vpack.c.b16 %v449, %v445
    %v626 = vpack.c.b16 %v454, %v450
    %v627 = vpack.c.b16 %v455, %v451
    %v628 = vpack.c.b16 %v456, %v452
    %v629 = vpack.c.b16 %v457, %v453
    %v630 = vpack.c.b16 %v462, %v458
    %v631 = vpack.c.b16 %v463, %v459
    %v632 = vpack.c.b16 %v464, %v460
    %v633 = vpack.c.b16 %v465, %v461
    %v634 = vpack.c.b16 %v470, %v466
    %v635 = vpack.c.b16 %v471, %v467
    %v636 = vpack.c.b16 %v472, %v468
    %v637 = vpack.c.b16 %v473, %v469
    %v638 = vpack.c.b16 %v478, %v474
    %v639 = vpack.c.b16 %v479, %v475
    %v640 = vpack.c.b16 %v480, %v476
    %v641 = vpack.c.b16 %v481, %v477
    %v642 = vpack.c.b16 %v486, %v482
    %v643 = vpack.c.b16 %v487, %v483
    %v644 = vpack.c.b16 %v488, %v484
    %v645 = vpack.c.b16 %v489, %v485
    %v646 = vpack.c.b16 %v494, %v490
    %v647 = vpack.c.b16 %v495, %v491
    %v648 = vpack.c.b16 %v496, %v492
    %v649 = vpack.c.b16 %v497, %v493
    %v650 = vpack.c.b16 %v502, %v498
    %v651 = vpack.c.b16 %v503, %v499
    %v652 = vpack.c.b16 %v504, %v500
    %v653 = vpack.c.b16 %v505, %v501
    %v654 = vpack.c.b16 %v510, %v506
    %v655 = vpack.c.b16 %v511, %v507
    %v656 = vpack.c.b16 %v512, %v508
    %v657 = vpack.c.b16 %v513, %v509
    %v658 = vpack.c.b16 %v518, %v514
    %v659 = vpack.c.b16 %v519, %v515
    %v660 = vpack.c.b16 %v520, %v516
    %v661 = vpack.c.b16 %v521, %v517
    %v662 = vpack.c.b16 %v526, %v522
    %v663 = vpack.c.b16 %v527, %v523
    %v664 = vpack.c.b16 %v528, %v524
    %v665 = vpack.c.b16 %v529, %v525
    %v666 = vpack.c.b16 %v534, %v530
    %v667 = vpack.c.b16 %v535, %v531
    %v668 = vpack.c.b16 %v536, %v532
    %v669 = vpack.c.b16 %v537, %v533
    %v670 = vpack.c.b16 %v542, %v538
    %v671 = vpack.c.b16 %v543, %v539
    %v672 = vpack.c.b16 %v544, %v540
    %v673 = vpack.c.b16 %v545, %v541
    %v674 = vpack.c.b16 %v550, %v546
    %v675 = vpack.c.b16 %v551, %v547
    %v676 = vpack.c.b16 %v552, %v548
    %v677 = vpack.c.b16 %v553, %v549
    %v678 = vpack.c.b16 %v558, %v554
    %v679 = vpack.c.b16 %v559, %v555
    %v680 = vpack.c.b16 %v560, %v556
    %v681 = vpack.c.b16 %v561, %v557
    %v682 = vpack.c.b16 %v566, %v562
    %v683 = vpack.c.b16 %v567, %v563
    %v684 = vpack.c.b16 %v568, %v564
    %v685 = vpack.c.b16 %v569, %v565
    %v686 = vpack.c.b16 %v574, %v570
    %v687 = vpack.c.b16 %v575, %v571
    %v688 = vpack.c.b16 %v576, %v572
    %v689 = vpack.c.b16 %v577, %v573
    %v690 = vpack.c.b16 %v582, %v578
    %v691 = vpack.c.b16 %v583, %v579
    %v692 = vpack.c.b16 %v584, %v580
    %v693 = vpack.c.b16 %v585, %v581
    %v694 = vpack.c.b16 %v590, %v586
    %v695 = vpack.c.b16 %v591, %v587
    %v696 = vpack.c.b16 %v592, %v588
    %v697 = vpack.c.b16 %v593, %v589
    %v698 = vpack.c.b16 %v598, %v594
    %v699 = vpack.c.b16 %v599, %v595
    %v700 = vpack.c.b16 %v600, %v596
    %v701 = vpack.c.b16 %v601, %v597
    %v702 = vpack.c.b16 %v606, %v602
    %v703 = vpack.c.b16 %v607, %v603
    %v704 = vpack.c.b16 %v608, %v604
    %v705 = vpack.c.b16 %v609, %v605
    %802 = vmatprep.subr.bf16.mxu0 %v611
    %803 = vmatpush1.bf16.msra.mxu0 %v610
    %804 = vmatprep.subr.bf16.mxu0 %v615
    %805 = vmatpush1.bf16.msra.mxu0 %v614
    %806 = vmatprep.subr.bf16.mxu0 %v619
    %807 = vmatpush1.bf16.msra.mxu0 %v618
    %808 = vmatprep.subr.bf16.mxu0 %v623
    %809 = vmatpush1.bf16.msra.mxu0 %v622
    %810 = vmatprep.subr.bf16.mxu0 %v627
    %811 = vmatpush1.bf16.msra.mxu0 %v626
    %812 = vmatprep.subr.bf16.mxu0 %v631
    %813 = vmatpush1.bf16.msra.mxu0 %v630
    %814 = vmatprep.subr.bf16.mxu0 %v635
    %815 = vmatpush1.bf16.msra.mxu0 %v634
    %816 = vmatprep.subr.bf16.mxu0 %v639
    %817 = vmatpush1.bf16.msra.mxu0 %v638
    %818 = vmatprep.subr.bf16.mxu0 %v643
    %819 = vmatpush1.bf16.msra.mxu0 %v642
    %820 = vmatprep.subr.bf16.mxu0 %v647
    %821 = vmatpush1.bf16.msra.mxu0 %v646
    %822 = vmatprep.subr.bf16.mxu0 %v651
    %823 = vmatpush1.bf16.msra.mxu0 %v650
    %824 = vmatprep.subr.bf16.mxu0 %v655
    %825 = vmatpush1.bf16.msra.mxu0 %v654
    %826 = vmatprep.subr.bf16.mxu0 %v659
    %827 = vmatpush1.bf16.msra.mxu0 %v658
    %828 = vmatprep.subr.bf16.mxu0 %v663
    %829 = vmatpush1.bf16.msra.mxu0 %v662
    %830 = vmatprep.subr.bf16.mxu0 %v667
    %831 = vmatpush1.bf16.msra.mxu0 %v666
    %832 = vmatprep.subr.bf16.mxu0 %v671
    %833 = vmatpush1.bf16.msra.mxu0 %v670
    %834 = vmatprep.mubr.bf16.mxu0 %v202
    %835 = vmatmul.mubr.bf16.gmra.mrb[0].mxu0 %v201
    %v836 = vpop.f32.mrb[0].mxu0
    %v837 = vadd.f32 %v305, %v836
    %v838 = vpop.f32.mrb[0].mxu0
    %v839 = vadd.f32 %v309, %v838
    %v840 = vpop.f32.mrb[0].mxu0
    %v841 = vpop.f32.mrb[0].mxu0
    %842 = vdwg.mxu0
    %843 = vmatprep.subr.bf16.mxu0 %v675
    %844 = vmatpush1.bf16.msra.mxu0 %v674
    %845 = vmatprep.subr.bf16.mxu0 %v679
    %846 = vmatpush1.bf16.msra.mxu0 %v678
    %847 = vmatprep.subr.bf16.mxu0 %v683
    %848 = vmatpush1.bf16.msra.mxu0 %v682
    %849 = vmatprep.subr.bf16.mxu0 %v687
    %850 = vmatpush1.bf16.msra.mxu0 %v686
    %851 = vmatprep.subr.bf16.mxu0 %v691
    %852 = vmatpush1.bf16.msra.mxu0 %v690
    %853 = vmatprep.subr.bf16.mxu0 %v695
    %854 = vmatpush1.bf16.msra.mxu0 %v694
    %855 = vmatprep.subr.bf16.mxu0 %v699
    %856 = vmatpush1.bf16.msra.mxu0 %v698
    %857 = vmatprep.subr.bf16.mxu0 %v703
    %858 = vmatpush1.bf16.msra.mxu0 %v702
    %859 = vmatprep.subr.bf16.mxu0 0
    %860 = vmatpush1.bf16.msra.mxu0 0
    %861 = vmatprep.subr.bf16.mxu0 0
    %862 = vmatpush1.bf16.msra.mxu0 0
    %863 = vmatprep.subr.bf16.mxu0 0
    %864 = vmatpush1.bf16.msra.mxu0 0
    %865 = vmatprep.subr.bf16.mxu0 0
    %866 = vmatpush1.bf16.msra.mxu0 0
    %867 = vmatprep.subr.bf16.mxu0 0
    %868 = vmatpush1.bf16.msra.mxu0 0
    %869 = vmatprep.subr.bf16.mxu0 0
    %870 = vmatpush1.bf16.msra.mxu0 0
    %871 = vmatprep.subr.bf16.mxu0 0
    %872 = vmatpush1.bf16.msra.mxu0 0
    %873 = vmatprep.subr.bf16.mxu0 0
    %874 = vmatpush1.bf16.msra.mxu0 0
    %875 = vmatprep.mubr.bf16.mxu0 0
    %876 = vmatmul.mubr.bf16.gmra.mrb[0].mxu0 %v203
    %v877 = vpop.f32.mrb[0].mxu0
    %v878 = vadd.f32 %v837, %v877
    %v879 = vpop.f32.mrb[0].mxu0
    %v880 = vadd.f32 %v839, %v879
    %v881 = vpop.f32.mrb[0].mxu0
    %v882 = vpop.f32.mrb[0].mxu0
    %883 = vdwg.mxu0
    %884 = vmatprep.subr.bf16.mxu0 %v613
    %885 = vmatpush1.bf16.msra.mxu0 %v612
    %886 = vmatprep.subr.bf16.mxu0 %v617
    %887 = vmatpush1.bf16.msra.mxu0 %v616
    %888 = vmatprep.subr.bf16.mxu0 %v621
    %889 = vmatpush1.bf16.msra.mxu0 %v620
    %890 = vmatprep.subr.bf16.mxu0 %v625
    %891 = vmatpush1.bf16.msra.mxu0 %v624
    %892 = vmatprep.subr.bf16.mxu0 %v629
    %893 = vmatpush1.bf16.msra.mxu0 %v628
    %894 = vmatprep.subr.bf16.mxu0 %v633
    %895 = vmatpush1.bf16.msra.mxu0 %v632
    %896 = vmatprep.subr.bf16.mxu0 %v637
    %897 = vmatpush1.bf16.msra.mxu0 %v636
    %898 = vmatprep.subr.bf16.mxu0 %v641
    %899 = vmatpush1.bf16.msra.mxu0 %v640
    %900 = vmatprep.subr.bf16.mxu0 %v645
    %901 = vmatpush1.bf16.msra.mxu0 %v644
    %902 = vmatprep.subr.bf16.mxu0 %v649
    %903 = vmatpush1.bf16.msra.mxu0 %v648
    %904 = vmatprep.subr.bf16.mxu0 %v653
    %905 = vmatpush1.bf16.msra.mxu0 %v652
    %906 = vmatprep.subr.bf16.mxu0 %v657
    %907 = vmatpush1.bf16.msra.mxu0 %v656
    %908 = vmatprep.subr.bf16.mxu0 %v661
    %909 = vmatpush1.bf16.msra.mxu0 %v660
    %910 = vmatprep.subr.bf16.mxu0 %v665
    %911 = vmatpush1.bf16.msra.mxu0 %v664
    %912 = vmatprep.subr.bf16.mxu0 %v669
    %913 = vmatpush1.bf16.msra.mxu0 %v668
    %914 = vmatprep.subr.bf16.mxu0 %v673
    %915 = vmatpush1.bf16.msra.mxu0 %v672
    %916 = vmatprep.mubr.bf16.mxu0 %v202
    %917 = vmatmul.mubr.bf16.gmra.mrb[0].mxu0 %v201
    %v918 = vpop.f32.mrb[0].mxu0
    %v919 = vadd.f32 %v313, %v918
    %v920 = vpop.f32.mrb[0].mxu0
    %v921 = vadd.f32 %v317, %v920
    %v922 = vpop.f32.mrb[0].mxu0
    %v923 = vpop.f32.mrb[0].mxu0
    %924 = vdwg.mxu0
    %925 = vmatprep.subr.bf16.mxu0 %v677
    %926 = vmatpush1.bf16.msra.mxu0 %v676
    %927 = vmatprep.subr.bf16.mxu0 %v681
    %928 = vmatpush1.bf16.msra.mxu0 %v680
    %929 = vmatprep.subr.bf16.mxu0 %v685
    %930 = vmatpush1.bf16.msra.mxu0 %v684
    %931 = vmatprep.subr.bf16.mxu0 %v689
    %932 = vmatpush1.bf16.msra.mxu0 %v688
    %933 = vmatprep.subr.bf16.mxu0 %v693
    %934 = vmatpush1.bf16.msra.mxu0 %v692
    %935 = vmatprep.subr.bf16.mxu0 %v697
    %936 = vmatpush1.bf16.msra.mxu0 %v696
    %937 = vmatprep.subr.bf16.mxu0 %v701
    %938 = vmatpush1.bf16.msra.mxu0 %v700
    %939 = vmatprep.subr.bf16.mxu0 %v705
    %940 = vmatpush1.bf16.msra.mxu0 %v704
    %941 = vmatprep.subr.bf16.mxu0 0
    %942 = vmatpush1.bf16.msra.mxu0 0
    %943 = vmatprep.subr.bf16.mxu0 0
    %944 = vmatpush1.bf16.msra.mxu0 0
    %945 = vmatprep.subr.bf16.mxu0 0
    %946 = vmatpush1.bf16.msra.mxu0 0
    %947 = vmatprep.subr.bf16.mxu0 0
    %948 = vmatpush1.bf16.msra.mxu0 0
    %949 = vmatprep.subr.bf16.mxu0 0
    %950 = vmatpush1.bf16.msra.mxu0 0
    %951 = vmatprep.subr.bf16.mxu0 0
    %952 = vmatpush1.bf16.msra.mxu0 0
    %953 = vmatprep.subr.bf16.mxu0 0
    %954 = vmatpush1.bf16.msra.mxu0 0
    %955 = vmatprep.subr.bf16.mxu0 0
    %956 = vmatpush1.bf16.msra.mxu0 0
    %957 = vmatprep.mubr.bf16.mxu0 0
    %958 = vmatmul.mubr.bf16.gmra.mrb[0].mxu0 %v203
    %v959 = vpop.f32.mrb[0].mxu0
    %v960 = vadd.f32 %v919, %v959
    %v961 = vpop.f32.mrb[0].mxu0
    %v962 = vadd.f32 %v921, %v961
    %v963 = vpop.f32.mrb[0].mxu0
    %v964 = vpop.f32.mrb[0].mxu0
    %965 = vdwg.mxu0
    %v966 = vmax.f32 %v878, 0.0
    %v967 = vmax.f32 %v880, 0.0
    %v968 = vmax.f32 %v960, 0.0
    %v969 = vmax.f32 %v962, 0.0
    %v970 = vpack.c.bf16 %v966, %v966
    %v971 = vpack.c.bf16 %v967, %v967
    %v972 = vpack.c.bf16 %v968, %v968
    %v973 = vpack.c.bf16 %v969, %v969
    %v974 = vld [vmem:[#allocation11] sm:$0xff]
    %v975 = vld [vmem:[#allocation11 + $0x8] sm:$0xff]
    %v976 = vld [vmem:[#allocation11 + $0x10] sm:$0xff]
    %v977 = vld [vmem:[#allocation11 + $0x18] sm:$0xff]
    %v978 = vld [vmem:[#allocation11 + $0x20] sm:$0xff]
    %v979 = vld [vmem:[#allocation11 + $0x28] sm:$0xff]
    %v980 = vld [vmem:[#allocation11 + $0x30] sm:$0xff]
    %v981 = vld [vmem:[#allocation11 + $0x38] sm:$0xff]
    %v982 = vld [vmem:[#allocation11 + $0x40] sm:$0xff]
    %v983 = vld [vmem:[#allocation11 + $0x48] sm:$0xff]
    %v984 = vld [vmem:[#allocation11 + $0x50] sm:$0xff]
    %v985 = vld [vmem:[#allocation11 + $0x58] sm:$0xff]
    %v986 = vld [vmem:[#allocation11 + $0x60] sm:$0xff]
    %v987 = vld [vmem:[#allocation11 + $0x68] sm:$0xff]
    %v988 = vld [vmem:[#allocation11 + $0x70] sm:$0xff]
    %v989 = vld [vmem:[#allocation11 + $0x78] sm:$0xff]
    %v990 = vld [vmem:[#allocation11 + $0x80] sm:$0xff]
    %v991 = vld [vmem:[#allocation11 + $0x88] sm:$0xff]
    %v992 = vld [vmem:[#allocation11 + $0x90] sm:$0xff]
    %v993 = vld [vmem:[#allocation11 + $0x98] sm:$0xff]
    %v994 = vld [vmem:[#allocation11 + $0xa0] sm:$0xff]
    %v995 = vld [vmem:[#allocation11 + $0xa8] sm:$0xff]
    %v996 = vld [vmem:[#allocation11 + $0xb0] sm:$0xff]
    %v997 = vld [vmem:[#allocation11 + $0xb8] sm:$0xff]
    %v998 = vld [vmem:[#allocation11 + $0xc0] sm:$0xff]
    %v999 = vld [vmem:[#allocation11 + $0xc8] sm:$0xff]
    %v1000 = vld [vmem:[#allocation11 + $0xd0] sm:$0xff]
    %v1001 = vld [vmem:[#allocation11 + $0xd8] sm:$0xff]
    %v1002 = vld [vmem:[#allocation11 + $0xe0] sm:$0xff]
    %v1003 = vld [vmem:[#allocation11 + $0xe8] sm:$0xff]
    %v1004 = vld [vmem:[#allocation11 + $0xf0] sm:$0xff]
    %v1005 = vld [vmem:[#allocation11 + $0xf8] sm:$0xff]
    %v1006 = vld [vmem:[#allocation11 + $0x100] sm:$0xff]
    %v1007 = vld [vmem:[#allocation11 + $0x108] sm:$0xff]
    %v1008 = vld [vmem:[#allocation11 + $0x110] sm:$0xff]
    %v1009 = vld [vmem:[#allocation11 + $0x118] sm:$0xff]
    %v1010 = vld [vmem:[#allocation11 + $0x120] sm:$0xff]
    %v1011 = vld [vmem:[#allocation11 + $0x128] sm:$0xff]
    %v1012 = vld [vmem:[#allocation11 + $0x130] sm:$0xff]
    %v1013 = vld [vmem:[#allocation11 + $0x138] sm:$0xff]
    %v1014 = vld [vmem:[#allocation11 + $0x140] sm:$0xff]
    %v1015 = vld [vmem:[#allocation11 + $0x148] sm:$0xff]
    %v1016 = vld [vmem:[#allocation11 + $0x150] sm:$0xff]
    %v1017 = vld [vmem:[#allocation11 + $0x158] sm:$0xff]
    %v1018 = vld [vmem:[#allocation11 + $0x160] sm:$0xff]
    %v1019 = vld [vmem:[#allocation11 + $0x168] sm:$0xff]
    %v1020 = vld [vmem:[#allocation11 + $0x170] sm:$0xff]
    %v1021 = vld [vmem:[#allocation11 + $0x178] sm:$0xff]
    %v1022 = vld [vmem:[#allocation11 + $0x180] sm:$0xff]
    %v1023 = vld [vmem:[#allocation11 + $0x188] sm:$0xff]
    %v1024 = vld [vmem:[#allocation11 + $0x190] sm:$0xff]
    %v1025 = vld [vmem:[#allocation11 + $0x198] sm:$0xff]
    %v1026 = vld [vmem:[#allocation11 + $0x1a0] sm:$0xff]
    %v1027 = vld [vmem:[#allocation11 + $0x1a8] sm:$0xff]
    %v1028 = vld [vmem:[#allocation11 + $0x1b0] sm:$0xff]
    %v1029 = vld [vmem:[#allocation11 + $0x1b8] sm:$0xff]
    %v1030 = vld [vmem:[#allocation11 + $0x1c0] sm:$0xff]
    %v1031 = vld [vmem:[#allocation11 + $0x1c8] sm:$0xff]
    %v1032 = vld [vmem:[#allocation11 + $0x1d0] sm:$0xff]
    %v1033 = vld [vmem:[#allocation11 + $0x1d8] sm:$0xff]
    %v1034 = vld [vmem:[#allocation11 + $0x1e0] sm:$0xff]
    %v1035 = vld [vmem:[#allocation11 + $0x1e8] sm:$0xff]
    %v1036 = vld [vmem:[#allocation11 + $0x1f0] sm:$0xff]
    %v1037 = vld [vmem:[#allocation11 + $0x1f8] sm:$0xff]
    %v1038 = vld [vmem:[#allocation11 + $0x200] sm:$0xff]
    %v1039 = vld [vmem:[#allocation11 + $0x208] sm:$0xff]
    %v1040 = vld [vmem:[#allocation11 + $0x210] sm:$0xff]
    %v1041 = vld [vmem:[#allocation11 + $0x218] sm:$0xff]
    %v1042 = vld [vmem:[#allocation11 + $0x220] sm:$0xff]
    %v1043 = vld [vmem:[#allocation11 + $0x228] sm:$0xff]
    %v1044 = vld [vmem:[#allocation11 + $0x230] sm:$0xff]
    %v1045 = vld [vmem:[#allocation11 + $0x238] sm:$0xff]
    %v1046 = vld [vmem:[#allocation11 + $0x240] sm:$0xff]
    %v1047 = vld [vmem:[#allocation11 + $0x248] sm:$0xff]
    %v1048 = vld [vmem:[#allocation11 + $0x250] sm:$0xff]
    %v1049 = vld [vmem:[#allocation11 + $0x258] sm:$0xff]
    %v1050 = vld [vmem:[#allocation11 + $0x260] sm:$0xff]
    %v1051 = vld [vmem:[#allocation11 + $0x268] sm:$0xff]
    %v1052 = vld [vmem:[#allocation11 + $0x270] sm:$0xff]
    %v1053 = vld [vmem:[#allocation11 + $0x278] sm:$0xff]
    %v1054 = vld [vmem:[#allocation11 + $0x280] sm:$0xff]
    %v1055 = vld [vmem:[#allocation11 + $0x288] sm:$0xff]
    %v1056 = vld [vmem:[#allocation11 + $0x290] sm:$0xff]
    %v1057 = vld [vmem:[#allocation11 + $0x298] sm:$0xff]
    %v1058 = vld [vmem:[#allocation11 + $0x2a0] sm:$0xff]
    %v1059 = vld [vmem:[#allocation11 + $0x2a8] sm:$0xff]
    %v1060 = vld [vmem:[#allocation11 + $0x2b0] sm:$0xff]
    %v1061 = vld [vmem:[#allocation11 + $0x2b8] sm:$0xff]
    %v1062 = vld [vmem:[#allocation11 + $0x2c0] sm:$0xff]
    %v1063 = vld [vmem:[#allocation11 + $0x2c8] sm:$0xff]
    %v1064 = vld [vmem:[#allocation11 + $0x2d0] sm:$0xff]
    %v1065 = vld [vmem:[#allocation11 + $0x2d8] sm:$0xff]
    %v1066 = vld [vmem:[#allocation11 + $0x2e0] sm:$0xff]
    %v1067 = vld [vmem:[#allocation11 + $0x2e8] sm:$0xff]
    %v1068 = vld [vmem:[#allocation11 + $0x2f0] sm:$0xff]
    %v1069 = vld [vmem:[#allocation11 + $0x2f8] sm:$0xff]
    %v1070 = vld [vmem:[#allocation11 + $0x300] sm:$0xff]
    %v1071 = vld [vmem:[#allocation11 + $0x308] sm:$0xff]
    %v1072 = vld [vmem:[#allocation11 + $0x310] sm:$0xff]
    %v1073 = vld [vmem:[#allocation11 + $0x318] sm:$0xff]
    %v1074 = vld [vmem:[#allocation11 + $0x320] sm:$0xff]
    %v1075 = vld [vmem:[#allocation11 + $0x328] sm:$0xff]
    %v1076 = vld [vmem:[#allocation11 + $0x330] sm:$0xff]
    %v1077 = vld [vmem:[#allocation11 + $0x338] sm:$0xff]
    %v1078 = vld [vmem:[#allocation11 + $0x340] sm:$0xff]
    %v1079 = vld [vmem:[#allocation11 + $0x348] sm:$0xff]
    %v1080 = vld [vmem:[#allocation11 + $0x350] sm:$0xff]
    %v1081 = vld [vmem:[#allocation11 + $0x358] sm:$0xff]
    %v1082 = vld [vmem:[#allocation11 + $0x360] sm:$0xff]
    %v1083 = vld [vmem:[#allocation11 + $0x368] sm:$0xff]
    %v1084 = vld [vmem:[#allocation11 + $0x370] sm:$0xff]
    %v1085 = vld [vmem:[#allocation11 + $0x378] sm:$0xff]
    %v1086 = vld [vmem:[#allocation11 + $0x380] sm:$0xff]
    %v1087 = vld [vmem:[#allocation11 + $0x388] sm:$0xff]
    %v1088 = vld [vmem:[#allocation11 + $0x390] sm:$0xff]
    %v1089 = vld [vmem:[#allocation11 + $0x398] sm:$0xff]
    %v1090 = vld [vmem:[#allocation11 + $0x3a0] sm:$0xff]
    %v1091 = vld [vmem:[#allocation11 + $0x3a8] sm:$0xff]
    %v1092 = vld [vmem:[#allocation11 + $0x3b0] sm:$0xff]
    %v1093 = vld [vmem:[#allocation11 + $0x3b8] sm:$0xff]
    %v1094 = vld [vmem:[#allocation11 + $0x3c0] sm:$0xff]
    %v1095 = vld [vmem:[#allocation11 + $0x3c8] sm:$0xff]
    %v1096 = vld [vmem:[#allocation11 + $0x3d0] sm:$0xff]
    %v1097 = vld [vmem:[#allocation11 + $0x3d8] sm:$0xff]
    %v1098 = vld [vmem:[#allocation11 + $0x3e0] sm:$0xff]
    %v1099 = vld [vmem:[#allocation11 + $0x3e8] sm:$0xff]
    %v1100 = vld [vmem:[#allocation11 + $0x3f0] sm:$0xff]
    %v1101 = vld [vmem:[#allocation11 + $0x3f8] sm:$0xff]
    %v1102 = vld [vmem:[#allocation13] sm:$0xf]
    %v1104 = vlaneseq
    %v1105 = vshrl.u32 %v1104, 7
    %v1106 = vsub.s32 0, %v1105
    %v1107 = vrot.slane %v1102, %v1106
    %v1108 = vlaneseq
    %v1109 = vshrl.u32 %v1108, 7
    %v1110 = vsub.s32 1, %v1109
    %v1111 = vrot.slane %v1102, %v1110
    %v1112 = vlaneseq
    %v1113 = vshrl.u32 %v1112, 7
    %v1114 = vsub.s32 2, %v1113
    %v1115 = vrot.slane %v1102, %v1114
    %v1116 = vlaneseq
    %v1117 = vshrl.u32 %v1116, 7
    %v1118 = vsub.s32 3, %v1117
    %v1119 = vrot.slane %v1102, %v1118
    %v1252 = vunpack.c.l.b16 %v974
    %v1253 = vunpack.c.h.b16 %v974
    %v1254 = vunpack.c.l.b16 %v975
    %v1255 = vunpack.c.h.b16 %v975
    %v1256 = vunpack.c.l.b16 %v976
    %v1257 = vunpack.c.h.b16 %v976
    %v1258 = vunpack.c.l.b16 %v977
    %v1259 = vunpack.c.h.b16 %v977
    %v1260 = vunpack.c.l.b16 %v978
    %v1261 = vunpack.c.h.b16 %v978
    %v1262 = vunpack.c.l.b16 %v979
    %v1263 = vunpack.c.h.b16 %v979
    %v1264 = vunpack.c.l.b16 %v980
    %v1265 = vunpack.c.h.b16 %v980
    %v1266 = vunpack.c.l.b16 %v981
    %v1267 = vunpack.c.h.b16 %v981
    %v1268 = vunpack.c.l.b16 %v982
    %v1269 = vunpack.c.h.b16 %v982
    %v1270 = vunpack.c.l.b16 %v983
    %v1271 = vunpack.c.h.b16 %v983
    %v1272 = vunpack.c.l.b16 %v984
    %v1273 = vunpack.c.h.b16 %v984
    %v1274 = vunpack.c.l.b16 %v985
    %v1275 = vunpack.c.h.b16 %v985
    %v1276 = vunpack.c.l.b16 %v986
    %v1277 = vunpack.c.h.b16 %v986
    %v1278 = vunpack.c.l.b16 %v987
    %v1279 = vunpack.c.h.b16 %v987
    %v1280 = vunpack.c.l.b16 %v988
    %v1281 = vunpack.c.h.b16 %v988
    %v1282 = vunpack.c.l.b16 %v989
    %v1283 = vunpack.c.h.b16 %v989
    %v1284 = vunpack.c.l.b16 %v990
    %v1285 = vunpack.c.h.b16 %v990
    %v1286 = vunpack.c.l.b16 %v991
    %v1287 = vunpack.c.h.b16 %v991
    %v1288 = vunpack.c.l.b16 %v992
    %v1289 = vunpack.c.h.b16 %v992
    %v1290 = vunpack.c.l.b16 %v993
    %v1291 = vunpack.c.h.b16 %v993
    %v1292 = vunpack.c.l.b16 %v994
    %v1293 = vunpack.c.h.b16 %v994
    %v1294 = vunpack.c.l.b16 %v995
    %v1295 = vunpack.c.h.b16 %v995
    %v1296 = vunpack.c.l.b16 %v996
    %v1297 = vunpack.c.h.b16 %v996
    %v1298 = vunpack.c.l.b16 %v997
    %v1299 = vunpack.c.h.b16 %v997
    %v1300 = vunpack.c.l.b16 %v998
    %v1301 = vunpack.c.h.b16 %v998
    %v1302 = vunpack.c.l.b16 %v999
    %v1303 = vunpack.c.h.b16 %v999
    %v1304 = vunpack.c.l.b16 %v1000
    %v1305 = vunpack.c.h.b16 %v1000
    %v1306 = vunpack.c.l.b16 %v1001
    %v1307 = vunpack.c.h.b16 %v1001
    %v1308 = vunpack.c.l.b16 %v1002
    %v1309 = vunpack.c.h.b16 %v1002
    %v1310 = vunpack.c.l.b16 %v1003
    %v1311 = vunpack.c.h.b16 %v1003
    %v1312 = vunpack.c.l.b16 %v1004
    %v1313 = vunpack.c.h.b16 %v1004
    %v1314 = vunpack.c.l.b16 %v1005
    %v1315 = vunpack.c.h.b16 %v1005
    %v1316 = vunpack.c.l.b16 %v1006
    %v1317 = vunpack.c.h.b16 %v1006
    %v1318 = vunpack.c.l.b16 %v1007
    %v1319 = vunpack.c.h.b16 %v1007
    %v1320 = vunpack.c.l.b16 %v1008
    %v1321 = vunpack.c.h.b16 %v1008
    %v1322 = vunpack.c.l.b16 %v1009
    %v1323 = vunpack.c.h.b16 %v1009
    %v1324 = vunpack.c.l.b16 %v1010
    %v1325 = vunpack.c.h.b16 %v1010
    %v1326 = vunpack.c.l.b16 %v1011
    %v1327 = vunpack.c.h.b16 %v1011
    %v1328 = vunpack.c.l.b16 %v1012
    %v1329 = vunpack.c.h.b16 %v1012
    %v1330 = vunpack.c.l.b16 %v1013
    %v1331 = vunpack.c.h.b16 %v1013
    %v1332 = vunpack.c.l.b16 %v1014
    %v1333 = vunpack.c.h.b16 %v1014
    %v1334 = vunpack.c.l.b16 %v1015
    %v1335 = vunpack.c.h.b16 %v1015
    %v1336 = vunpack.c.l.b16 %v1016
    %v1337 = vunpack.c.h.b16 %v1016
    %v1338 = vunpack.c.l.b16 %v1017
    %v1339 = vunpack.c.h.b16 %v1017
    %v1340 = vunpack.c.l.b16 %v1018
    %v1341 = vunpack.c.h.b16 %v1018
    %v1342 = vunpack.c.l.b16 %v1019
    %v1343 = vunpack.c.h.b16 %v1019
    %v1344 = vunpack.c.l.b16 %v1020
    %v1345 = vunpack.c.h.b16 %v1020
    %v1346 = vunpack.c.l.b16 %v1021
    %v1347 = vunpack.c.h.b16 %v1021
    %v1348 = vunpack.c.l.b16 %v1022
    %v1349 = vunpack.c.h.b16 %v1022
    %v1350 = vunpack.c.l.b16 %v1023
    %v1351 = vunpack.c.h.b16 %v1023
    %v1352 = vunpack.c.l.b16 %v1024
    %v1353 = vunpack.c.h.b16 %v1024
    %v1354 = vunpack.c.l.b16 %v1025
    %v1355 = vunpack.c.h.b16 %v1025
    %v1356 = vunpack.c.l.b16 %v1026
    %v1357 = vunpack.c.h.b16 %v1026
    %v1358 = vunpack.c.l.b16 %v1027
    %v1359 = vunpack.c.h.b16 %v1027
    %v1360 = vunpack.c.l.b16 %v1028
    %v1361 = vunpack.c.h.b16 %v1028
    %v1362 = vunpack.c.l.b16 %v1029
    %v1363 = vunpack.c.h.b16 %v1029
    %v1364 = vunpack.c.l.b16 %v1030
    %v1365 = vunpack.c.h.b16 %v1030
    %v1366 = vunpack.c.l.b16 %v1031
    %v1367 = vunpack.c.h.b16 %v1031
    %v1368 = vunpack.c.l.b16 %v1032
    %v1369 = vunpack.c.h.b16 %v1032
    %v1370 = vunpack.c.l.b16 %v1033
    %v1371 = vunpack.c.h.b16 %v1033
    %v1372 = vunpack.c.l.b16 %v1034
    %v1373 = vunpack.c.h.b16 %v1034
    %v1374 = vunpack.c.l.b16 %v1035
    %v1375 = vunpack.c.h.b16 %v1035
    %v1376 = vunpack.c.l.b16 %v1036
    %v1377 = vunpack.c.h.b16 %v1036
    %v1378 = vunpack.c.l.b16 %v1037
    %v1379 = vunpack.c.h.b16 %v1037
    %v1380 = vunpack.c.l.b16 %v1038
    %v1381 = vunpack.c.h.b16 %v1038
    %v1382 = vunpack.c.l.b16 %v1039
    %v1383 = vunpack.c.h.b16 %v1039
    %v1384 = vunpack.c.l.b16 %v1040
    %v1385 = vunpack.c.h.b16 %v1040
    %v1386 = vunpack.c.l.b16 %v1041
    %v1387 = vunpack.c.h.b16 %v1041
    %v1388 = vunpack.c.l.b16 %v1042
    %v1389 = vunpack.c.h.b16 %v1042
    %v1390 = vunpack.c.l.b16 %v1043
    %v1391 = vunpack.c.h.b16 %v1043
    %v1392 = vunpack.c.l.b16 %v1044
    %v1393 = vunpack.c.h.b16 %v1044
    %v1394 = vunpack.c.l.b16 %v1045
    %v1395 = vunpack.c.h.b16 %v1045
    %v1396 = vunpack.c.l.b16 %v1046
    %v1397 = vunpack.c.h.b16 %v1046
    %v1398 = vunpack.c.l.b16 %v1047
    %v1399 = vunpack.c.h.b16 %v1047
    %v1400 = vunpack.c.l.b16 %v1048
    %v1401 = vunpack.c.h.b16 %v1048
    %v1402 = vunpack.c.l.b16 %v1049
    %v1403 = vunpack.c.h.b16 %v1049
    %v1404 = vunpack.c.l.b16 %v1050
    %v1405 = vunpack.c.h.b16 %v1050
    %v1406 = vunpack.c.l.b16 %v1051
    %v1407 = vunpack.c.h.b16 %v1051
    %v1408 = vunpack.c.l.b16 %v1052
    %v1409 = vunpack.c.h.b16 %v1052
    %v1410 = vunpack.c.l.b16 %v1053
    %v1411 = vunpack.c.h.b16 %v1053
    %v1412 = vunpack.c.l.b16 %v1054
    %v1413 = vunpack.c.h.b16 %v1054
    %v1414 = vunpack.c.l.b16 %v1055
    %v1415 = vunpack.c.h.b16 %v1055
    %v1416 = vunpack.c.l.b16 %v1056
    %v1417 = vunpack.c.h.b16 %v1056
    %v1418 = vunpack.c.l.b16 %v1057
    %v1419 = vunpack.c.h.b16 %v1057
    %v1420 = vunpack.c.l.b16 %v1058
    %v1421 = vunpack.c.h.b16 %v1058
    %v1422 = vunpack.c.l.b16 %v1059
    %v1423 = vunpack.c.h.b16 %v1059
    %v1424 = vunpack.c.l.b16 %v1060
    %v1425 = vunpack.c.h.b16 %v1060
    %v1426 = vunpack.c.l.b16 %v1061
    %v1427 = vunpack.c.h.b16 %v1061
    %v1428 = vunpack.c.l.b16 %v1062
    %v1429 = vunpack.c.h.b16 %v1062
    %v1430 = vunpack.c.l.b16 %v1063
    %v1431 = vunpack.c.h.b16 %v1063
    %v1432 = vunpack.c.l.b16 %v1064
    %v1433 = vunpack.c.h.b16 %v1064
    %v1434 = vunpack.c.l.b16 %v1065
    %v1435 = vunpack.c.h.b16 %v1065
    %v1436 = vunpack.c.l.b16 %v1066
    %v1437 = vunpack.c.h.b16 %v1066
    %v1438 = vunpack.c.l.b16 %v1067
    %v1439 = vunpack.c.h.b16 %v1067
    %v1440 = vunpack.c.l.b16 %v1068
    %v1441 = vunpack.c.h.b16 %v1068
    %v1442 = vunpack.c.l.b16 %v1069
    %v1443 = vunpack.c.h.b16 %v1069
    %v1444 = vunpack.c.l.b16 %v1070
    %v1445 = vunpack.c.h.b16 %v1070
    %v1446 = vunpack.c.l.b16 %v1071
    %v1447 = vunpack.c.h.b16 %v1071
    %v1448 = vunpack.c.l.b16 %v1072
    %v1449 = vunpack.c.h.b16 %v1072
    %v1450 = vunpack.c.l.b16 %v1073
    %v1451 = vunpack.c.h.b16 %v1073
    %v1452 = vunpack.c.l.b16 %v1074
    %v1453 = vunpack.c.h.b16 %v1074
    %v1454 = vunpack.c.l.b16 %v1075
    %v1455 = vunpack.c.h.b16 %v1075
    %v1456 = vunpack.c.l.b16 %v1076
    %v1457 = vunpack.c.h.b16 %v1076
    %v1458 = vunpack.c.l.b16 %v1077
    %v1459 = vunpack.c.h.b16 %v1077
    %v1460 = vunpack.c.l.b16 %v1078
    %v1461 = vunpack.c.h.b16 %v1078
    %v1462 = vunpack.c.l.b16 %v1079
    %v1463 = vunpack.c.h.b16 %v1079
    %v1464 = vunpack.c.l.b16 %v1080
    %v1465 = vunpack.c.h.b16 %v1080
    %v1466 = vunpack.c.l.b16 %v1081
    %v1467 = vunpack.c.h.b16 %v1081
    %v1468 = vunpack.c.l.b16 %v1082
    %v1469 = vunpack.c.h.b16 %v1082
    %v1470 = vunpack.c.l.b16 %v1083
    %v1471 = vunpack.c.h.b16 %v1083
    %v1472 = vunpack.c.l.b16 %v1084
    %v1473 = vunpack.c.h.b16 %v1084
    %v1474 = vunpack.c.l.b16 %v1085
    %v1475 = vunpack.c.h.b16 %v1085
    %v1476 = vunpack.c.l.b16 %v1086
    %v1477 = vunpack.c.h.b16 %v1086
    %v1478 = vunpack.c.l.b16 %v1087
    %v1479 = vunpack.c.h.b16 %v1087
    %v1480 = vunpack.c.l.b16 %v1088
    %v1481 = vunpack.c.h.b16 %v1088
    %v1482 = vunpack.c.l.b16 %v1089
    %v1483 = vunpack.c.h.b16 %v1089
    %v1484 = vunpack.c.l.b16 %v1090
    %v1485 = vunpack.c.h.b16 %v1090
    %v1486 = vunpack.c.l.b16 %v1091
    %v1487 = vunpack.c.h.b16 %v1091
    %v1488 = vunpack.c.l.b16 %v1092
    %v1489 = vunpack.c.h.b16 %v1092
    %v1490 = vunpack.c.l.b16 %v1093
    %v1491 = vunpack.c.h.b16 %v1093
    %v1492 = vunpack.c.l.b16 %v1094
    %v1493 = vunpack.c.h.b16 %v1094
    %v1494 = vunpack.c.l.b16 %v1095
    %v1495 = vunpack.c.h.b16 %v1095
    %v1496 = vunpack.c.l.b16 %v1096
    %v1497 = vunpack.c.h.b16 %v1096
    %v1498 = vunpack.c.l.b16 %v1097
    %v1499 = vunpack.c.h.b16 %v1097
    %v1500 = vunpack.c.l.b16 %v1098
    %v1501 = vunpack.c.h.b16 %v1098
    %v1502 = vunpack.c.l.b16 %v1099
    %v1503 = vunpack.c.h.b16 %v1099
    %v1504 = vunpack.c.l.b16 %v1100
    %v1505 = vunpack.c.h.b16 %v1100
    %v1506 = vunpack.c.l.b16 %v1101
    %v1507 = vunpack.c.h.b16 %v1101
    %v1508 = vpack.c.b16 %v1256, %v1252
    %v1509 = vpack.c.b16 %v1257, %v1253
    %v1510 = vpack.c.b16 %v1258, %v1254
    %v1511 = vpack.c.b16 %v1259, %v1255
    %v1512 = vpack.c.b16 %v1264, %v1260
    %v1513 = vpack.c.b16 %v1265, %v1261
    %v1514 = vpack.c.b16 %v1266, %v1262
    %v1515 = vpack.c.b16 %v1267, %v1263
    %v1516 = vpack.c.b16 %v1272, %v1268
    %v1517 = vpack.c.b16 %v1273, %v1269
    %v1518 = vpack.c.b16 %v1274, %v1270
    %v1519 = vpack.c.b16 %v1275, %v1271
    %v1520 = vpack.c.b16 %v1280, %v1276
    %v1521 = vpack.c.b16 %v1281, %v1277
    %v1522 = vpack.c.b16 %v1282, %v1278
    %v1523 = vpack.c.b16 %v1283, %v1279
    %v1524 = vpack.c.b16 %v1288, %v1284
    %v1525 = vpack.c.b16 %v1289, %v1285
    %v1526 = vpack.c.b16 %v1290, %v1286
    %v1527 = vpack.c.b16 %v1291, %v1287
    %v1528 = vpack.c.b16 %v1296, %v1292
    %v1529 = vpack.c.b16 %v1297, %v1293
    %v1530 = vpack.c.b16 %v1298, %v1294
    %v1531 = vpack.c.b16 %v1299, %v1295
    %v1532 = vpack.c.b16 %v1304, %v1300
    %v1533 = vpack.c.b16 %v1305, %v1301
    %v1534 = vpack.c.b16 %v1306, %v1302
    %v1535 = vpack.c.b16 %v1307, %v1303
    %v1536 = vpack.c.b16 %v1312, %v1308
    %v1537 = vpack.c.b16 %v1313, %v1309
    %v1538 = vpack.c.b16 %v1314, %v1310
    %v1539 = vpack.c.b16 %v1315, %v1311
    %v1540 = vpack.c.b16 %v1320, %v1316
    %v1541 = vpack.c.b16 %v1321, %v1317
    %v1542 = vpack.c.b16 %v1322, %v1318
    %v1543 = vpack.c.b16 %v1323, %v1319
    %v1544 = vpack.c.b16 %v1328, %v1324
    %v1545 = vpack.c.b16 %v1329, %v1325
    %v1546 = vpack.c.b16 %v1330, %v1326
    %v1547 = vpack.c.b16 %v1331, %v1327
    %v1548 = vpack.c.b16 %v1336, %v1332
    %v1549 = vpack.c.b16 %v1337, %v1333
    %v1550 = vpack.c.b16 %v1338, %v1334
    %v1551 = vpack.c.b16 %v1339, %v1335
    %v1552 = vpack.c.b16 %v1344, %v1340
    %v1553 = vpack.c.b16 %v1345, %v1341
    %v1554 = vpack.c.b16 %v1346, %v1342
    %v1555 = vpack.c.b16 %v1347, %v1343
    %v1556 = vpack.c.b16 %v1352, %v1348
    %v1557 = vpack.c.b16 %v1353, %v1349
    %v1558 = vpack.c.b16 %v1354, %v1350
    %v1559 = vpack.c.b16 %v1355, %v1351
    %v1560 = vpack.c.b16 %v1360, %v1356
    %v1561 = vpack.c.b16 %v1361, %v1357
    %v1562 = vpack.c.b16 %v1362, %v1358
    %v1563 = vpack.c.b16 %v1363, %v1359
    %v1564 = vpack.c.b16 %v1368, %v1364
    %v1565 = vpack.c.b16 %v1369, %v1365
    %v1566 = vpack.c.b16 %v1370, %v1366
    %v1567 = vpack.c.b16 %v1371, %v1367
    %v1568 = vpack.c.b16 %v1376, %v1372
    %v1569 = vpack.c.b16 %v1377, %v1373
    %v1570 = vpack.c.b16 %v1378, %v1374
    %v1571 = vpack.c.b16 %v1379, %v1375
    %v1572 = vpack.c.b16 %v1384, %v1380
    %v1573 = vpack.c.b16 %v1385, %v1381
    %v1574 = vpack.c.b16 %v1386, %v1382
    %v1575 = vpack.c.b16 %v1387, %v1383
    %v1576 = vpack.c.b16 %v1392, %v1388
    %v1577 = vpack.c.b16 %v1393, %v1389
    %v1578 = vpack.c.b16 %v1394, %v1390
    %v1579 = vpack.c.b16 %v1395, %v1391
    %v1580 = vpack.c.b16 %v1400, %v1396
    %v1581 = vpack.c.b16 %v1401, %v1397
    %v1582 = vpack.c.b16 %v1402, %v1398
    %v1583 = vpack.c.b16 %v1403, %v1399
    %v1584 = vpack.c.b16 %v1408, %v1404
    %v1585 = vpack.c.b16 %v1409, %v1405
    %v1586 = vpack.c.b16 %v1410, %v1406
    %v1587 = vpack.c.b16 %v1411, %v1407
    %v1588 = vpack.c.b16 %v1416, %v1412
    %v1589 = vpack.c.b16 %v1417, %v1413
    %v1590 = vpack.c.b16 %v1418, %v1414
    %v1591 = vpack.c.b16 %v1419, %v1415
    %v1592 = vpack.c.b16 %v1424, %v1420
    %v1593 = vpack.c.b16 %v1425, %v1421
    %v1594 = vpack.c.b16 %v1426, %v1422
    %v1595 = vpack.c.b16 %v1427, %v1423
    %v1596 = vpack.c.b16 %v1432, %v1428
    %v1597 = vpack.c.b16 %v1433, %v1429
    %v1598 = vpack.c.b16 %v1434, %v1430
    %v1599 = vpack.c.b16 %v1435, %v1431
    %v1600 = vpack.c.b16 %v1440, %v1436
    %v1601 = vpack.c.b16 %v1441, %v1437
    %v1602 = vpack.c.b16 %v1442, %v1438
    %v1603 = vpack.c.b16 %v1443, %v1439
    %v1604 = vpack.c.b16 %v1448, %v1444
    %v1605 = vpack.c.b16 %v1449, %v1445
    %v1606 = vpack.c.b16 %v1450, %v1446
    %v1607 = vpack.c.b16 %v1451, %v1447
    %v1608 = vpack.c.b16 %v1456, %v1452
    %v1609 = vpack.c.b16 %v1457, %v1453
    %v1610 = vpack.c.b16 %v1458, %v1454
    %v1611 = vpack.c.b16 %v1459, %v1455
    %v1612 = vpack.c.b16 %v1464, %v1460
    %v1613 = vpack.c.b16 %v1465, %v1461
    %v1614 = vpack.c.b16 %v1466, %v1462
    %v1615 = vpack.c.b16 %v1467, %v1463
    %v1616 = vpack.c.b16 %v1472, %v1468
    %v1617 = vpack.c.b16 %v1473, %v1469
    %v1618 = vpack.c.b16 %v1474, %v1470
    %v1619 = vpack.c.b16 %v1475, %v1471
    %v1620 = vpack.c.b16 %v1480, %v1476
    %v1621 = vpack.c.b16 %v1481, %v1477
    %v1622 = vpack.c.b16 %v1482, %v1478
    %v1623 = vpack.c.b16 %v1483, %v1479
    %v1624 = vpack.c.b16 %v1488, %v1484
    %v1625 = vpack.c.b16 %v1489, %v1485
    %v1626 = vpack.c.b16 %v1490, %v1486
    %v1627 = vpack.c.b16 %v1491, %v1487
    %v1628 = vpack.c.b16 %v1496, %v1492
    %v1629 = vpack.c.b16 %v1497, %v1493
    %v1630 = vpack.c.b16 %v1498, %v1494
    %v1631 = vpack.c.b16 %v1499, %v1495
    %v1632 = vpack.c.b16 %v1504, %v1500
    %v1633 = vpack.c.b16 %v1505, %v1501
    %v1634 = vpack.c.b16 %v1506, %v1502
    %v1635 = vpack.c.b16 %v1507, %v1503
    %1764 = vmatprep.subr.bf16.mxu0 %v1509
    %1765 = vmatpush1.bf16.msra.mxu0 %v1508
    %1766 = vmatprep.subr.bf16.mxu0 %v1513
    %1767 = vmatpush1.bf16.msra.mxu0 %v1512
    %1768 = vmatprep.subr.bf16.mxu0 %v1517
    %1769 = vmatpush1.bf16.msra.mxu0 %v1516
    %1770 = vmatprep.subr.bf16.mxu0 %v1521
    %1771 = vmatpush1.bf16.msra.mxu0 %v1520
    %1772 = vmatprep.subr.bf16.mxu0 %v1525
    %1773 = vmatpush1.bf16.msra.mxu0 %v1524
    %1774 = vmatprep.subr.bf16.mxu0 %v1529
    %1775 = vmatpush1.bf16.msra.mxu0 %v1528
    %1776 = vmatprep.subr.bf16.mxu0 %v1533
    %1777 = vmatpush1.bf16.msra.mxu0 %v1532
    %1778 = vmatprep.subr.bf16.mxu0 %v1537
    %1779 = vmatpush1.bf16.msra.mxu0 %v1536
    %1780 = vmatprep.subr.bf16.mxu0 %v1541
    %1781 = vmatpush1.bf16.msra.mxu0 %v1540
    %1782 = vmatprep.subr.bf16.mxu0 %v1545
    %1783 = vmatpush1.bf16.msra.mxu0 %v1544
    %1784 = vmatprep.subr.bf16.mxu0 %v1549
    %1785 = vmatpush1.bf16.msra.mxu0 %v1548
    %1786 = vmatprep.subr.bf16.mxu0 %v1553
    %1787 = vmatpush1.bf16.msra.mxu0 %v1552
    %1788 = vmatprep.subr.bf16.mxu0 %v1557
    %1789 = vmatpush1.bf16.msra.mxu0 %v1556
    %1790 = vmatprep.subr.bf16.mxu0 %v1561
    %1791 = vmatpush1.bf16.msra.mxu0 %v1560
    %1792 = vmatprep.subr.bf16.mxu0 %v1565
    %1793 = vmatpush1.bf16.msra.mxu0 %v1564
    %1794 = vmatprep.subr.bf16.mxu0 %v1569
    %1795 = vmatpush1.bf16.msra.mxu0 %v1568
    %1796 = vmatprep.mubr.bf16.mxu0 %v971
    %1797 = vmatmul.mubr.bf16.gmra.mrb[0].mxu0 %v970
    %v1798 = vpop.f32.mrb[0].mxu0
    %v1799 = vadd.f32 %v1107, %v1798
    %v1800 = vpop.f32.mrb[0].mxu0
    %v1801 = vadd.f32 %v1111, %v1800
    %v1802 = vpop.f32.mrb[0].mxu0
    %v1803 = vpop.f32.mrb[0].mxu0
    %1804 = vdwg.mxu0
    %1805 = vmatprep.subr.bf16.mxu0 %v1573
    %1806 = vmatpush1.bf16.msra.mxu0 %v1572
    %1807 = vmatprep.subr.bf16.mxu0 %v1577
    %1808 = vmatpush1.bf16.msra.mxu0 %v1576
    %1809 = vmatprep.subr.bf16.mxu0 %v1581
    %1810 = vmatpush1.bf16.msra.mxu0 %v1580
    %1811 = vmatprep.subr.bf16.mxu0 %v1585
    %1812 = vmatpush1.bf16.msra.mxu0 %v1584
    %1813 = vmatprep.subr.bf16.mxu0 %v1589
    %1814 = vmatpush1.bf16.msra.mxu0 %v1588
    %1815 = vmatprep.subr.bf16.mxu0 %v1593
    %1816 = vmatpush1.bf16.msra.mxu0 %v1592
    %1817 = vmatprep.subr.bf16.mxu0 %v1597
    %1818 = vmatpush1.bf16.msra.mxu0 %v1596
    %1819 = vmatprep.subr.bf16.mxu0 %v1601
    %1820 = vmatpush1.bf16.msra.mxu0 %v1600
    %1821 = vmatprep.subr.bf16.mxu0 %v1605
    %1822 = vmatpush1.bf16.msra.mxu0 %v1604
    %1823 = vmatprep.subr.bf16.mxu0 %v1609
    %1824 = vmatpush1.bf16.msra.mxu0 %v1608
    %1825 = vmatprep.subr.bf16.mxu0 %v1613
    %1826 = vmatpush1.bf16.msra.mxu0 %v1612
    %1827 = vmatprep.subr.bf16.mxu0 %v1617
    %1828 = vmatpush1.bf16.msra.mxu0 %v1616
    %1829 = vmatprep.subr.bf16.mxu0 %v1621
    %1830 = vmatpush1.bf16.msra.mxu0 %v1620
    %1831 = vmatprep.subr.bf16.mxu0 %v1625
    %1832 = vmatpush1.bf16.msra.mxu0 %v1624
    %1833 = vmatprep.subr.bf16.mxu0 %v1629
    %1834 = vmatpush1.bf16.msra.mxu0 %v1628
    %1835 = vmatprep.subr.bf16.mxu0 %v1633
    %1836 = vmatpush1.bf16.msra.mxu0 %v1632
    %1837 = vmatprep.mubr.bf16.mxu0 %v973
    %1838 = vmatmul.mubr.bf16.gmra.mrb[0].mxu0 %v972
    %v1839 = vpop.f32.mrb[0].mxu0
    %v1840 = vadd.f32 %v1799, %v1839
    %v1841 = vpop.f32.mrb[0].mxu0
    %v1842 = vadd.f32 %v1801, %v1841
    %v1843 = vpop.f32.mrb[0].mxu0
    %v1844 = vpop.f32.mrb[0].mxu0
    %1845 = vdwg.mxu0
    %1846 = vmatprep.subr.bf16.mxu0 %v1511
    %1847 = vmatpush1.bf16.msra.mxu0 %v1510
    %1848 = vmatprep.subr.bf16.mxu0 %v1515
    %1849 = vmatpush1.bf16.msra.mxu0 %v1514
    %1850 = vmatprep.subr.bf16.mxu0 %v1519
    %1851 = vmatpush1.bf16.msra.mxu0 %v1518
    %1852 = vmatprep.subr.bf16.mxu0 %v1523
    %1853 = vmatpush1.bf16.msra.mxu0 %v1522
    %1854 = vmatprep.subr.bf16.mxu0 %v1527
    %1855 = vmatpush1.bf16.msra.mxu0 %v1526
    %1856 = vmatprep.subr.bf16.mxu0 %v1531
    %1857 = vmatpush1.bf16.msra.mxu0 %v1530
    %1858 = vmatprep.subr.bf16.mxu0 %v1535
    %1859 = vmatpush1.bf16.msra.mxu0 %v1534
    %1860 = vmatprep.subr.bf16.mxu0 %v1539
    %1861 = vmatpush1.bf16.msra.mxu0 %v1538
    %1862 = vmatprep.subr.bf16.mxu0 %v1543
    %1863 = vmatpush1.bf16.msra.mxu0 %v1542
    %1864 = vmatprep.subr.bf16.mxu0 %v1547
    %1865 = vmatpush1.bf16.msra.mxu0 %v1546
    %1866 = vmatprep.subr.bf16.mxu0 %v1551
    %1867 = vmatpush1.bf16.msra.mxu0 %v1550
    %1868 = vmatprep.subr.bf16.mxu0 %v1555
    %1869 = vmatpush1.bf16.msra.mxu0 %v1554
    %1870 = vmatprep.subr.bf16.mxu0 %v1559
    %1871 = vmatpush1.bf16.msra.mxu0 %v1558
    %1872 = vmatprep.subr.bf16.mxu0 %v1563
    %1873 = vmatpush1.bf16.msra.mxu0 %v1562
    %1874 = vmatprep.subr.bf16.mxu0 %v1567
    %1875 = vmatpush1.bf16.msra.mxu0 %v1566
    %1876 = vmatprep.subr.bf16.mxu0 %v1571
    %1877 = vmatpush1.bf16.msra.mxu0 %v1570
    %1878 = vmatprep.mubr.bf16.mxu0 %v971
    %1879 = vmatmul.mubr.bf16.gmra.mrb[0].mxu0 %v970
    %v1880 = vpop.f32.mrb[0].mxu0
    %v1881 = vadd.f32 %v1115, %v1880
    %v1882 = vpop.f32.mrb[0].mxu0
    %v1883 = vadd.f32 %v1119, %v1882
    %v1884 = vpop.f32.mrb[0].mxu0
    %v1885 = vpop.f32.mrb[0].mxu0
    %1886 = vdwg.mxu0
    %1887 = vmatprep.subr.bf16.mxu0 %v1575
    %1888 = vmatpush1.bf16.msra.mxu0 %v1574
    %1889 = vmatprep.subr.bf16.mxu0 %v1579
    %1890 = vmatpush1.bf16.msra.mxu0 %v1578
    %1891 = vmatprep.subr.bf16.mxu0 %v1583
    %1892 = vmatpush1.bf16.msra.mxu0 %v1582
    %1893 = vmatprep.subr.bf16.mxu0 %v1587
    %1894 = vmatpush1.bf16.msra.mxu0 %v1586
    %1895 = vmatprep.subr.bf16.mxu0 %v1591
    %1896 = vmatpush1.bf16.msra.mxu0 %v1590
    %1897 = vmatprep.subr.bf16.mxu0 %v1595
    %1898 = vmatpush1.bf16.msra.mxu0 %v1594
    %1899 = vmatprep.subr.bf16.mxu0 %v1599
    %1900 = vmatpush1.bf16.msra.mxu0 %v1598
    %1901 = vmatprep.subr.bf16.mxu0 %v1603
    %1902 = vmatpush1.bf16.msra.mxu0 %v1602
    %1903 = vmatprep.subr.bf16.mxu0 %v1607
    %1904 = vmatpush1.bf16.msra.mxu0 %v1606
    %1905 = vmatprep.subr.bf16.mxu0 %v1611
    %1906 = vmatpush1.bf16.msra.mxu0 %v1610
    %1907 = vmatprep.subr.bf16.mxu0 %v1615
    %1908 = vmatpush1.bf16.msra.mxu0 %v1614
    %1909 = vmatprep.subr.bf16.mxu0 %v1619
    %1910 = vmatpush1.bf16.msra.mxu0 %v1618
    %1911 = vmatprep.subr.bf16.mxu0 %v1623
    %1912 = vmatpush1.bf16.msra.mxu0 %v1622
    %1913 = vmatprep.subr.bf16.mxu0 %v1627
    %1914 = vmatpush1.bf16.msra.mxu0 %v1626
    %1915 = vmatprep.subr.bf16.mxu0 %v1631
    %1916 = vmatpush1.bf16.msra.mxu0 %v1630
    %1917 = vmatprep.subr.bf16.mxu0 %v1635
    %1918 = vmatpush1.bf16.msra.mxu0 %v1634
    %1919 = vmatprep.mubr.bf16.mxu0 %v973
    %1920 = vmatmul.mubr.bf16.gmra.mrb[0].mxu0 %v972
    %v1921 = vpop.f32.mrb[0].mxu0
    %v1922 = vadd.f32 %v1881, %v1921
    %v1923 = vpop.f32.mrb[0].mxu0
    %v1924 = vadd.f32 %v1883, %v1923
    %v1925 = vpop.f32.mrb[0].mxu0
    %v1926 = vpop.f32.mrb[0].mxu0
    %1927 = vdwg.mxu0
    %v1928 = vmax.f32 %v1840, 0.0
    %v1929 = vmax.f32 %v1842, 0.0
    %v1930 = vmax.f32 %v1922, 0.0
    %v1931 = vmax.f32 %v1924, 0.0
    %v1932 = vpack.c.bf16 %v1928, %v1928
    %v1933 = vpack.c.bf16 %v1929, %v1929
    %v1934 = vpack.c.bf16 %v1930, %v1930
    %v1935 = vpack.c.bf16 %v1931, %v1931
    %v1936 = vpack.c.bf16 %v197, %v197
    %v1937 = vpack.c.bf16 %v198, %v198
    %v1938 = vpack.c.bf16 %v199, %v199
    %v1939 = vpack.c.bf16 %v200, %v200
    %v1940 = vld [vmem:[#allocation14] sm:$0xff]
    %v1941 = vld [vmem:[#allocation14 + $0x8] sm:$0xff]
    %v1942 = vld [vmem:[#allocation14 + $0x10] sm:$0xff]
    %v1943 = vld [vmem:[#allocation14 + $0x18] sm:$0xff]
    %v1944 = vld [vmem:[#allocation14 + $0x20] sm:$0xff]
    %v1945 = vld [vmem:[#allocation14 + $0x28] sm:$0xff]
    %v1946 = vld [vmem:[#allocation14 + $0x30] sm:$0xff]
    %v1947 = vld [vmem:[#allocation14 + $0x38] sm:$0xff]
    %v1948 = vld [vmem:[#allocation14 + $0x40] sm:$0xff]
    %v1949 = vld [vmem:[#allocation14 + $0x48] sm:$0xff]
    %v1950 = vld [vmem:[#allocation14 + $0x50] sm:$0xff]
    %v1951 = vld [vmem:[#allocation14 + $0x58] sm:$0xff]
    %v1952 = vld [vmem:[#allocation14 + $0x60] sm:$0xff]
    %v1953 = vld [vmem:[#allocation14 + $0x68] sm:$0xff]
    %v1954 = vld [vmem:[#allocation14 + $0x70] sm:$0xff]
    %v1955 = vld [vmem:[#allocation14 + $0x78] sm:$0xff]
    %v1956 = vld [vmem:[#allocation14 + $0x80] sm:$0xff]
    %v1957 = vld [vmem:[#allocation14 + $0x88] sm:$0xff]
    %v1958 = vld [vmem:[#allocation14 + $0x90] sm:$0xff]
    %v1959 = vld [vmem:[#allocation14 + $0x98] sm:$0xff]
    %v1960 = vld [vmem:[#allocation14 + $0xa0] sm:$0xff]
    %v1961 = vld [vmem:[#allocation14 + $0xa8] sm:$0xff]
    %v1962 = vld [vmem:[#allocation14 + $0xb0] sm:$0xff]
    %v1963 = vld [vmem:[#allocation14 + $0xb8] sm:$0xff]
    %v1964 = vld [vmem:[#allocation14 + $0xc0] sm:$0xff]
    %v1965 = vld [vmem:[#allocation14 + $0xc8] sm:$0xff]
    %v1966 = vld [vmem:[#allocation14 + $0xd0] sm:$0xff]
    %v1967 = vld [vmem:[#allocation14 + $0xd8] sm:$0xff]
    %v1968 = vld [vmem:[#allocation14 + $0xe0] sm:$0xff]
    %v1969 = vld [vmem:[#allocation14 + $0xe8] sm:$0xff]
    %v1970 = vld [vmem:[#allocation14 + $0xf0] sm:$0xff]
    %v1971 = vld [vmem:[#allocation14 + $0xf8] sm:$0xff]
    %v1972 = vld [vmem:[#allocation14 + $0x100] sm:$0xff]
    %v1973 = vld [vmem:[#allocation14 + $0x108] sm:$0xff]
    %v1974 = vld [vmem:[#allocation14 + $0x110] sm:$0xff]
    %v1975 = vld [vmem:[#allocation14 + $0x118] sm:$0xff]
    %v1976 = vld [vmem:[#allocation14 + $0x120] sm:$0xff]
    %v1977 = vld [vmem:[#allocation14 + $0x128] sm:$0xff]
    %v1978 = vld [vmem:[#allocation14 + $0x130] sm:$0xff]
    %v1979 = vld [vmem:[#allocation14 + $0x138] sm:$0xff]
    %v1980 = vld [vmem:[#allocation14 + $0x140] sm:$0xff]
    %v1981 = vld [vmem:[#allocation14 + $0x148] sm:$0xff]
    %v1982 = vld [vmem:[#allocation14 + $0x150] sm:$0xff]
    %v1983 = vld [vmem:[#allocation14 + $0x158] sm:$0xff]
    %v1984 = vld [vmem:[#allocation14 + $0x160] sm:$0xff]
    %v1985 = vld [vmem:[#allocation14 + $0x168] sm:$0xff]
    %v1986 = vld [vmem:[#allocation14 + $0x170] sm:$0xff]
    %v1987 = vld [vmem:[#allocation14 + $0x178] sm:$0xff]
    %v1988 = vld [vmem:[#allocation14 + $0x180] sm:$0xff]
    %v1989 = vld [vmem:[#allocation14 + $0x188] sm:$0xff]
    %v1990 = vld [vmem:[#allocation14 + $0x190] sm:$0xff]
    %v1991 = vld [vmem:[#allocation14 + $0x198] sm:$0xff]
    %v1992 = vld [vmem:[#allocation14 + $0x1a0] sm:$0xff]
    %v1993 = vld [vmem:[#allocation14 + $0x1a8] sm:$0xff]
    %v1994 = vld [vmem:[#allocation14 + $0x1b0] sm:$0xff]
    %v1995 = vld [vmem:[#allocation14 + $0x1b8] sm:$0xff]
    %v1996 = vld [vmem:[#allocation14 + $0x1c0] sm:$0xff]
    %v1997 = vld [vmem:[#allocation14 + $0x1c8] sm:$0xff]
    %v1998 = vld [vmem:[#allocation14 + $0x1d0] sm:$0xff]
    %v1999 = vld [vmem:[#allocation14 + $0x1d8] sm:$0xff]
    %v2000 = vld [vmem:[#allocation14 + $0x1e0] sm:$0xff]
    %v2001 = vld [vmem:[#allocation14 + $0x1e8] sm:$0xff]
    %v2002 = vld [vmem:[#allocation14 + $0x1f0] sm:$0xff]
    %v2003 = vld [vmem:[#allocation14 + $0x1f8] sm:$0xff]
    %v2004 = vld [vmem:[#allocation14 + $0x200] sm:$0xff]
    %v2005 = vld [vmem:[#allocation14 + $0x208] sm:$0xff]
    %v2006 = vld [vmem:[#allocation14 + $0x210] sm:$0xff]
    %v2007 = vld [vmem:[#allocation14 + $0x218] sm:$0xff]
    %v2008 = vld [vmem:[#allocation14 + $0x220] sm:$0xff]
    %v2009 = vld [vmem:[#allocation14 + $0x228] sm:$0xff]
    %v2010 = vld [vmem:[#allocation14 + $0x230] sm:$0xff]
    %v2011 = vld [vmem:[#allocation14 + $0x238] sm:$0xff]
    %v2012 = vld [vmem:[#allocation14 + $0x240] sm:$0xff]
    %v2013 = vld [vmem:[#allocation14 + $0x248] sm:$0xff]
    %v2014 = vld [vmem:[#allocation14 + $0x250] sm:$0xff]
    %v2015 = vld [vmem:[#allocation14 + $0x258] sm:$0xff]
    %v2016 = vld [vmem:[#allocation14 + $0x260] sm:$0xff]
    %v2017 = vld [vmem:[#allocation14 + $0x268] sm:$0xff]
    %v2018 = vld [vmem:[#allocation14 + $0x270] sm:$0xff]
    %v2019 = vld [vmem:[#allocation14 + $0x278] sm:$0xff]
    %v2020 = vld [vmem:[#allocation14 + $0x280] sm:$0xff]
    %v2021 = vld [vmem:[#allocation14 + $0x288] sm:$0xff]
    %v2022 = vld [vmem:[#allocation14 + $0x290] sm:$0xff]
    %v2023 = vld [vmem:[#allocation14 + $0x298] sm:$0xff]
    %v2024 = vld [vmem:[#allocation14 + $0x2a0] sm:$0xff]
    %v2025 = vld [vmem:[#allocation14 + $0x2a8] sm:$0xff]
    %v2026 = vld [vmem:[#allocation14 + $0x2b0] sm:$0xff]
    %v2027 = vld [vmem:[#allocation14 + $0x2b8] sm:$0xff]
    %v2028 = vld [vmem:[#allocation14 + $0x2c0] sm:$0xff]
    %v2029 = vld [vmem:[#allocation14 + $0x2c8] sm:$0xff]
    %v2030 = vld [vmem:[#allocation14 + $0x2d0] sm:$0xff]
    %v2031 = vld [vmem:[#allocation14 + $0x2d8] sm:$0xff]
    %v2032 = vld [vmem:[#allocation14 + $0x2e0] sm:$0xff]
    %v2033 = vld [vmem:[#allocation14 + $0x2e8] sm:$0xff]
    %v2034 = vld [vmem:[#allocation14 + $0x2f0] sm:$0xff]
    %v2035 = vld [vmem:[#allocation14 + $0x2f8] sm:$0xff]
    %v2036 = vld [vmem:[#allocation14 + $0x300] sm:$0xff]
    %v2037 = vld [vmem:[#allocation14 + $0x308] sm:$0xff]
    %v2038 = vld [vmem:[#allocation14 + $0x310] sm:$0xff]
    %v2039 = vld [vmem:[#allocation14 + $0x318] sm:$0xff]
    %v2040 = vld [vmem:[#allocation14 + $0x320] sm:$0xff]
    %v2041 = vld [vmem:[#allocation14 + $0x328] sm:$0xff]
    %v2042 = vld [vmem:[#allocation14 + $0x330] sm:$0xff]
    %v2043 = vld [vmem:[#allocation14 + $0x338] sm:$0xff]
    %v2044 = vld [vmem:[#allocation14 + $0x340] sm:$0xff]
    %v2045 = vld [vmem:[#allocation14 + $0x348] sm:$0xff]
    %v2046 = vld [vmem:[#allocation14 + $0x350] sm:$0xff]
    %v2047 = vld [vmem:[#allocation14 + $0x358] sm:$0xff]
    %v2048 = vld [vmem:[#allocation14 + $0x360] sm:$0xff]
    %v2049 = vld [vmem:[#allocation14 + $0x368] sm:$0xff]
    %v2050 = vld [vmem:[#allocation14 + $0x370] sm:$0xff]
    %v2051 = vld [vmem:[#allocation14 + $0x378] sm:$0xff]
    %v2052 = vld [vmem:[#allocation14 + $0x380] sm:$0xff]
    %v2053 = vld [vmem:[#allocation14 + $0x388] sm:$0xff]
    %v2054 = vld [vmem:[#allocation14 + $0x390] sm:$0xff]
    %v2055 = vld [vmem:[#allocation14 + $0x398] sm:$0xff]
    %v2056 = vld [vmem:[#allocation14 + $0x3a0] sm:$0xff]
    %v2057 = vld [vmem:[#allocation14 + $0x3a8] sm:$0xff]
    %v2058 = vld [vmem:[#allocation14 + $0x3b0] sm:$0xff]
    %v2059 = vld [vmem:[#allocation14 + $0x3b8] sm:$0xff]
    %v2060 = vld [vmem:[#allocation14 + $0x3c0] sm:$0xff]
    %v2061 = vld [vmem:[#allocation14 + $0x3c8] sm:$0xff]
    %v2062 = vld [vmem:[#allocation14 + $0x3d0] sm:$0xff]
    %v2063 = vld [vmem:[#allocation14 + $0x3d8] sm:$0xff]
    %v2064 = vld [vmem:[#allocation14 + $0x3e0] sm:$0xff]
    %v2065 = vld [vmem:[#allocation14 + $0x3e8] sm:$0xff]
    %v2066 = vld [vmem:[#allocation14 + $0x3f0] sm:$0xff]
    %v2067 = vld [vmem:[#allocation14 + $0x3f8] sm:$0xff]
    %v2068 = vld [vmem:[#allocation14 + $0x400] sm:$0xff]
    %v2069 = vld [vmem:[#allocation14 + $0x408] sm:$0xff]
    %v2070 = vld [vmem:[#allocation14 + $0x410] sm:$0xff]
    %v2071 = vld [vmem:[#allocation14 + $0x418] sm:$0xff]
    %v2072 = vld [vmem:[#allocation14 + $0x420] sm:$0xff]
    %v2073 = vld [vmem:[#allocation14 + $0x428] sm:$0xff]
    %v2074 = vld [vmem:[#allocation14 + $0x430] sm:$0xff]
    %v2075 = vld [vmem:[#allocation14 + $0x438] sm:$0xff]
    %v2076 = vld [vmem:[#allocation14 + $0x440] sm:$0xff]
    %v2077 = vld [vmem:[#allocation14 + $0x448] sm:$0xff]
    %v2078 = vld [vmem:[#allocation14 + $0x450] sm:$0xff]
    %v2079 = vld [vmem:[#allocation14 + $0x458] sm:$0xff]
    %v2080 = vld [vmem:[#allocation14 + $0x460] sm:$0xff]
    %v2081 = vld [vmem:[#allocation14 + $0x468] sm:$0xff]
    %v2082 = vld [vmem:[#allocation14 + $0x470] sm:$0xff]
    %v2083 = vld [vmem:[#allocation14 + $0x478] sm:$0xff]
    %v2084 = vld [vmem:[#allocation14 + $0x480] sm:$0xff]
    %v2085 = vld [vmem:[#allocation14 + $0x488] sm:$0xff]
    %v2086 = vld [vmem:[#allocation14 + $0x490] sm:$0xff]
    %v2087 = vld [vmem:[#allocation14 + $0x498] sm:$0xff]
    %v2088 = vld [vmem:[#allocation14 + $0x4a0] sm:$0xff]
    %v2089 = vld [vmem:[#allocation14 + $0x4a8] sm:$0xff]
    %v2090 = vld [vmem:[#allocation14 + $0x4b0] sm:$0xff]
    %v2091 = vld [vmem:[#allocation14 + $0x4b8] sm:$0xff]
    %v2092 = vld [vmem:[#allocation14 + $0x4c0] sm:$0xff]
    %v2093 = vld [vmem:[#allocation14 + $0x4c8] sm:$0xff]
    %v2094 = vld [vmem:[#allocation14 + $0x4d0] sm:$0xff]
    %v2095 = vld [vmem:[#allocation14 + $0x4d8] sm:$0xff]
    %v2096 = vld [vmem:[#allocation14 + $0x4e0] sm:$0xff]
    %v2097 = vld [vmem:[#allocation14 + $0x4e8] sm:$0xff]
    %v2098 = vld [vmem:[#allocation14 + $0x4f0] sm:$0xff]
    %v2099 = vld [vmem:[#allocation14 + $0x4f8] sm:$0xff]
    %v2100 = vld [vmem:[#allocation14 + $0x500] sm:$0xff]
    %v2101 = vld [vmem:[#allocation14 + $0x508] sm:$0xff]
    %v2102 = vld [vmem:[#allocation14 + $0x510] sm:$0xff]
    %v2103 = vld [vmem:[#allocation14 + $0x518] sm:$0xff]
    %v2104 = vld [vmem:[#allocation14 + $0x520] sm:$0xff]
    %v2105 = vld [vmem:[#allocation14 + $0x528] sm:$0xff]
    %v2106 = vld [vmem:[#allocation14 + $0x530] sm:$0xff]
    %v2107 = vld [vmem:[#allocation14 + $0x538] sm:$0xff]
    %v2108 = vld [vmem:[#allocation14 + $0x540] sm:$0xff]
    %v2109 = vld [vmem:[#allocation14 + $0x548] sm:$0xff]
    %v2110 = vld [vmem:[#allocation14 + $0x550] sm:$0xff]
    %v2111 = vld [vmem:[#allocation14 + $0x558] sm:$0xff]
    %v2112 = vld [vmem:[#allocation14 + $0x560] sm:$0xff]
    %v2113 = vld [vmem:[#allocation14 + $0x568] sm:$0xff]
    %v2114 = vld [vmem:[#allocation14 + $0x570] sm:$0xff]
    %v2115 = vld [vmem:[#allocation14 + $0x578] sm:$0xff]
    %v2116 = vld [vmem:[#allocation14 + $0x580] sm:$0xff]
    %v2117 = vld [vmem:[#allocation14 + $0x588] sm:$0xff]
    %v2118 = vld [vmem:[#allocation14 + $0x590] sm:$0xff]
    %v2119 = vld [vmem:[#allocation14 + $0x598] sm:$0xff]
    %v2120 = vld [vmem:[#allocation14 + $0x5a0] sm:$0xff]
    %v2121 = vld [vmem:[#allocation14 + $0x5a8] sm:$0xff]
    %v2122 = vld [vmem:[#allocation14 + $0x5b0] sm:$0xff]
    %v2123 = vld [vmem:[#allocation14 + $0x5b8] sm:$0xff]
    %v2124 = vld [vmem:[#allocation14 + $0x5c0] sm:$0xff]
    %v2125 = vld [vmem:[#allocation14 + $0x5c8] sm:$0xff]
    %v2126 = vld [vmem:[#allocation14 + $0x5d0] sm:$0xff]
    %v2127 = vld [vmem:[#allocation14 + $0x5d8] sm:$0xff]
    %v2128 = vld [vmem:[#allocation14 + $0x5e0] sm:$0xff]
    %v2129 = vld [vmem:[#allocation14 + $0x5e8] sm:$0xff]
    %v2130 = vld [vmem:[#allocation14 + $0x5f0] sm:$0xff]
    %v2131 = vld [vmem:[#allocation14 + $0x5f8] sm:$0xff]
    %v2132 = vld [vmem:[#allocation14 + $0x600] sm:$0xff]
    %v2133 = vld [vmem:[#allocation14 + $0x608] sm:$0xff]
    %v2134 = vld [vmem:[#allocation14 + $0x610] sm:$0xff]
    %v2135 = vld [vmem:[#allocation14 + $0x618] sm:$0xff]
    %v2136 = vld [vmem:[#allocation14 + $0x620] sm:$0xff]
    %v2137 = vld [vmem:[#allocation14 + $0x628] sm:$0xff]
    %v2138 = vld [vmem:[#allocation14 + $0x630] sm:$0xff]
    %v2139 = vld [vmem:[#allocation14 + $0x638] sm:$0xff]
    %v2140 = vld [vmem:[#allocation14 + $0x640] sm:$0xff]
    %v2141 = vld [vmem:[#allocation14 + $0x648] sm:$0xff]
    %v2142 = vld [vmem:[#allocation14 + $0x650] sm:$0xff]
    %v2143 = vld [vmem:[#allocation14 + $0x658] sm:$0xff]
    %v2144 = vld [vmem:[#allocation14 + $0x660] sm:$0xff]
    %v2145 = vld [vmem:[#allocation14 + $0x668] sm:$0xff]
    %v2146 = vld [vmem:[#allocation14 + $0x670] sm:$0xff]
    %v2147 = vld [vmem:[#allocation14 + $0x678] sm:$0xff]
    %v2148 = vld [vmem:[#allocation14 + $0x680] sm:$0xff]
    %v2149 = vld [vmem:[#allocation14 + $0x688] sm:$0xff]
    %v2150 = vld [vmem:[#allocation14 + $0x690] sm:$0xff]
    %v2151 = vld [vmem:[#allocation14 + $0x698] sm:$0xff]
    %v2152 = vld [vmem:[#allocation14 + $0x6a0] sm:$0xff]
    %v2153 = vld [vmem:[#allocation14 + $0x6a8] sm:$0xff]
    %v2154 = vld [vmem:[#allocation14 + $0x6b0] sm:$0xff]
    %v2155 = vld [vmem:[#allocation14 + $0x6b8] sm:$0xff]
    %v2156 = vld [vmem:[#allocation14 + $0x6c0] sm:$0xff]
    %v2157 = vld [vmem:[#allocation14 + $0x6c8] sm:$0xff]
    %v2158 = vld [vmem:[#allocation14 + $0x6d0] sm:$0xff]
    %v2159 = vld [vmem:[#allocation14 + $0x6d8] sm:$0xff]
    %v2160 = vld [vmem:[#allocation14 + $0x6e0] sm:$0xff]
    %v2161 = vld [vmem:[#allocation14 + $0x6e8] sm:$0xff]
    %v2162 = vld [vmem:[#allocation14 + $0x6f0] sm:$0xff]
    %v2163 = vld [vmem:[#allocation14 + $0x6f8] sm:$0xff]
    %v2164 = vld [vmem:[#allocation14 + $0x700] sm:$0xff]
    %v2165 = vld [vmem:[#allocation14 + $0x708] sm:$0xff]
    %v2166 = vld [vmem:[#allocation14 + $0x710] sm:$0xff]
    %v2167 = vld [vmem:[#allocation14 + $0x718] sm:$0xff]
    %v2168 = vld [vmem:[#allocation14 + $0x720] sm:$0xff]
    %v2169 = vld [vmem:[#allocation14 + $0x728] sm:$0xff]
    %v2170 = vld [vmem:[#allocation14 + $0x730] sm:$0xff]
    %v2171 = vld [vmem:[#allocation14 + $0x738] sm:$0xff]
    %v2172 = vld [vmem:[#allocation14 + $0x740] sm:$0xff]
    %v2173 = vld [vmem:[#allocation14 + $0x748] sm:$0xff]
    %v2174 = vld [vmem:[#allocation14 + $0x750] sm:$0xff]
    %v2175 = vld [vmem:[#allocation14 + $0x758] sm:$0xff]
    %v2176 = vld [vmem:[#allocation14 + $0x760] sm:$0xff]
    %v2177 = vld [vmem:[#allocation14 + $0x768] sm:$0xff]
    %v2178 = vld [vmem:[#allocation14 + $0x770] sm:$0xff]
    %v2179 = vld [vmem:[#allocation14 + $0x778] sm:$0xff]
    %v2180 = vld [vmem:[#allocation14 + $0x780] sm:$0xff]
    %v2181 = vld [vmem:[#allocation14 + $0x788] sm:$0xff]
    %v2182 = vld [vmem:[#allocation14 + $0x790] sm:$0xff]
    %v2183 = vld [vmem:[#allocation14 + $0x798] sm:$0xff]
    %v2184 = vld [vmem:[#allocation14 + $0x7a0] sm:$0xff]
    %v2185 = vld [vmem:[#allocation14 + $0x7a8] sm:$0xff]
    %v2186 = vld [vmem:[#allocation14 + $0x7b0] sm:$0xff]
    %v2187 = vld [vmem:[#allocation14 + $0x7b8] sm:$0xff]
    %v2188 = vld [vmem:[#allocation14 + $0x7c0] sm:$0xff]
    %v2189 = vld [vmem:[#allocation14 + $0x7c8] sm:$0xff]
    %v2190 = vld [vmem:[#allocation14 + $0x7d0] sm:$0xff]
    %v2191 = vld [vmem:[#allocation14 + $0x7d8] sm:$0xff]
    %v2192 = vld [vmem:[#allocation14 + $0x7e0] sm:$0xff]
    %v2193 = vld [vmem:[#allocation14 + $0x7e8] sm:$0xff]
    %v2194 = vld [vmem:[#allocation14 + $0x7f0] sm:$0xff]
    %v2195 = vld [vmem:[#allocation14 + $0x7f8] sm:$0xff]
    %v2196 = vld [vmem:[#allocation14 + $0x800] sm:$0xff]
    %v2197 = vld [vmem:[#allocation14 + $0x808] sm:$0xff]
    %v2198 = vld [vmem:[#allocation14 + $0x810] sm:$0xff]
    %v2199 = vld [vmem:[#allocation14 + $0x818] sm:$0xff]
    %v2200 = vld [vmem:[#allocation14 + $0x820] sm:$0xff]
    %v2201 = vld [vmem:[#allocation14 + $0x828] sm:$0xff]
    %v2202 = vld [vmem:[#allocation14 + $0x830] sm:$0xff]
    %v2203 = vld [vmem:[#allocation14 + $0x838] sm:$0xff]
    %v2204 = vld [vmem:[#allocation14 + $0x840] sm:$0xff]
    %v2205 = vld [vmem:[#allocation14 + $0x848] sm:$0xff]
    %v2206 = vld [vmem:[#allocation14 + $0x850] sm:$0xff]
    %v2207 = vld [vmem:[#allocation14 + $0x858] sm:$0xff]
    %v2208 = vld [vmem:[#allocation14 + $0x860] sm:$0xff]
    %v2209 = vld [vmem:[#allocation14 + $0x868] sm:$0xff]
    %v2210 = vld [vmem:[#allocation14 + $0x870] sm:$0xff]
    %v2211 = vld [vmem:[#allocation14 + $0x878] sm:$0xff]
    %v2212 = vld [vmem:[#allocation14 + $0x880] sm:$0xff]
    %v2213 = vld [vmem:[#allocation14 + $0x888] sm:$0xff]
    %v2214 = vld [vmem:[#allocation14 + $0x890] sm:$0xff]
    %v2215 = vld [vmem:[#allocation14 + $0x898] sm:$0xff]
    %v2216 = vld [vmem:[#allocation14 + $0x8a0] sm:$0xff]
    %v2217 = vld [vmem:[#allocation14 + $0x8a8] sm:$0xff]
    %v2218 = vld [vmem:[#allocation14 + $0x8b0] sm:$0xff]
    %v2219 = vld [vmem:[#allocation14 + $0x8b8] sm:$0xff]
    %v2220 = vld [vmem:[#allocation14 + $0x8c0] sm:$0xff]
    %v2221 = vld [vmem:[#allocation14 + $0x8c8] sm:$0xff]
    %v2222 = vld [vmem:[#allocation14 + $0x8d0] sm:$0xff]
    %v2223 = vld [vmem:[#allocation14 + $0x8d8] sm:$0xff]
    %v2224 = vld [vmem:[#allocation14 + $0x8e0] sm:$0xff]
    %v2225 = vld [vmem:[#allocation14 + $0x8e8] sm:$0xff]
    %v2226 = vld [vmem:[#allocation14 + $0x8f0] sm:$0xff]
    %v2227 = vld [vmem:[#allocation14 + $0x8f8] sm:$0xff]
    %v2228 = vld [vmem:[#allocation14 + $0x900] sm:$0xff]
    %v2229 = vld [vmem:[#allocation14 + $0x908] sm:$0xff]
    %v2230 = vld [vmem:[#allocation14 + $0x910] sm:$0xff]
    %v2231 = vld [vmem:[#allocation14 + $0x918] sm:$0xff]
    %v2232 = vld [vmem:[#allocation14 + $0x920] sm:$0xff]
    %v2233 = vld [vmem:[#allocation14 + $0x928] sm:$0xff]
    %v2234 = vld [vmem:[#allocation14 + $0x930] sm:$0xff]
    %v2235 = vld [vmem:[#allocation14 + $0x938] sm:$0xff]
    %v2236 = vld [vmem:[#allocation14 + $0x940] sm:$0xff]
    %v2237 = vld [vmem:[#allocation14 + $0x948] sm:$0xff]
    %v2238 = vld [vmem:[#allocation14 + $0x950] sm:$0xff]
    %v2239 = vld [vmem:[#allocation14 + $0x958] sm:$0xff]
    %v2240 = vld [vmem:[#allocation14 + $0x960] sm:$0xff]
    %v2241 = vld [vmem:[#allocation14 + $0x968] sm:$0xff]
    %v2242 = vld [vmem:[#allocation14 + $0x970] sm:$0xff]
    %v2243 = vld [vmem:[#allocation14 + $0x978] sm:$0xff]
    %v2244 = vld [vmem:[#allocation14 + $0x980] sm:$0xff]
    %v2245 = vld [vmem:[#allocation14 + $0x988] sm:$0xff]
    %v2246 = vld [vmem:[#allocation14 + $0x990] sm:$0xff]
    %v2247 = vld [vmem:[#allocation14 + $0x998] sm:$0xff]
    %v2248 = vld [vmem:[#allocation14 + $0x9a0] sm:$0xff]
    %v2249 = vld [vmem:[#allocation14 + $0x9a8] sm:$0xff]
    %v2250 = vld [vmem:[#allocation14 + $0x9b0] sm:$0xff]
    %v2251 = vld [vmem:[#allocation14 + $0x9b8] sm:$0xff]
    %v2252 = vld [vmem:[#allocation14 + $0x9c0] sm:$0xff]
    %v2253 = vld [vmem:[#allocation14 + $0x9c8] sm:$0xff]
    %v2254 = vld [vmem:[#allocation14 + $0x9d0] sm:$0xff]
    %v2255 = vld [vmem:[#allocation14 + $0x9d8] sm:$0xff]
    %v2256 = vld [vmem:[#allocation14 + $0x9e0] sm:$0xff]
    %v2257 = vld [vmem:[#allocation14 + $0x9e8] sm:$0xff]
    %v2258 = vld [vmem:[#allocation14 + $0x9f0] sm:$0xff]
    %v2259 = vld [vmem:[#allocation14 + $0x9f8] sm:$0xff]
    %v2260 = vld [vmem:[#allocation14 + $0xa00] sm:$0xff]
    %v2261 = vld [vmem:[#allocation14 + $0xa08] sm:$0xff]
    %v2262 = vld [vmem:[#allocation14 + $0xa10] sm:$0xff]
    %v2263 = vld [vmem:[#allocation14 + $0xa18] sm:$0xff]
    %v2264 = vld [vmem:[#allocation14 + $0xa20] sm:$0xff]
    %v2265 = vld [vmem:[#allocation14 + $0xa28] sm:$0xff]
    %v2266 = vld [vmem:[#allocation14 + $0xa30] sm:$0xff]
    %v2267 = vld [vmem:[#allocation14 + $0xa38] sm:$0xff]
    %v2268 = vld [vmem:[#allocation14 + $0xa40] sm:$0xff]
    %v2269 = vld [vmem:[#allocation14 + $0xa48] sm:$0xff]
    %v2270 = vld [vmem:[#allocation14 + $0xa50] sm:$0xff]
    %v2271 = vld [vmem:[#allocation14 + $0xa58] sm:$0xff]
    %v2272 = vld [vmem:[#allocation14 + $0xa60] sm:$0xff]
    %v2273 = vld [vmem:[#allocation14 + $0xa68] sm:$0xff]
    %v2274 = vld [vmem:[#allocation14 + $0xa70] sm:$0xff]
    %v2275 = vld [vmem:[#allocation14 + $0xa78] sm:$0xff]
    %v2276 = vld [vmem:[#allocation14 + $0xa80] sm:$0xff]
    %v2277 = vld [vmem:[#allocation14 + $0xa88] sm:$0xff]
    %v2278 = vld [vmem:[#allocation14 + $0xa90] sm:$0xff]
    %v2279 = vld [vmem:[#allocation14 + $0xa98] sm:$0xff]
    %v2280 = vld [vmem:[#allocation14 + $0xaa0] sm:$0xff]
    %v2281 = vld [vmem:[#allocation14 + $0xaa8] sm:$0xff]
    %v2282 = vld [vmem:[#allocation14 + $0xab0] sm:$0xff]
    %v2283 = vld [vmem:[#allocation14 + $0xab8] sm:$0xff]
    %v2284 = vld [vmem:[#allocation14 + $0xac0] sm:$0xff]
    %v2285 = vld [vmem:[#allocation14 + $0xac8] sm:$0xff]
    %v2286 = vld [vmem:[#allocation14 + $0xad0] sm:$0xff]
    %v2287 = vld [vmem:[#allocation14 + $0xad8] sm:$0xff]
    %v2288 = vld [vmem:[#allocation14 + $0xae0] sm:$0xff]
    %v2289 = vld [vmem:[#allocation14 + $0xae8] sm:$0xff]
    %v2290 = vld [vmem:[#allocation14 + $0xaf0] sm:$0xff]
    %v2291 = vld [vmem:[#allocation14 + $0xaf8] sm:$0xff]
    %v2292 = vld [vmem:[#allocation14 + $0xb00] sm:$0xff]
    %v2293 = vld [vmem:[#allocation14 + $0xb08] sm:$0xff]
    %v2294 = vld [vmem:[#allocation14 + $0xb10] sm:$0xff]
    %v2295 = vld [vmem:[#allocation14 + $0xb18] sm:$0xff]
    %v2296 = vld [vmem:[#allocation14 + $0xb20] sm:$0xff]
    %v2297 = vld [vmem:[#allocation14 + $0xb28] sm:$0xff]
    %v2298 = vld [vmem:[#allocation14 + $0xb30] sm:$0xff]
    %v2299 = vld [vmem:[#allocation14 + $0xb38] sm:$0xff]
    %v2300 = vld [vmem:[#allocation14 + $0xb40] sm:$0xff]
    %v2301 = vld [vmem:[#allocation14 + $0xb48] sm:$0xff]
    %v2302 = vld [vmem:[#allocation14 + $0xb50] sm:$0xff]
    %v2303 = vld [vmem:[#allocation14 + $0xb58] sm:$0xff]
    %v2304 = vld [vmem:[#allocation14 + $0xb60] sm:$0xff]
    %v2305 = vld [vmem:[#allocation14 + $0xb68] sm:$0xff]
    %v2306 = vld [vmem:[#allocation14 + $0xb70] sm:$0xff]
    %v2307 = vld [vmem:[#allocation14 + $0xb78] sm:$0xff]
    %v2308 = vld [vmem:[#allocation14 + $0xb80] sm:$0xff]
    %v2309 = vld [vmem:[#allocation14 + $0xb88] sm:$0xff]
    %v2310 = vld [vmem:[#allocation14 + $0xb90] sm:$0xff]
    %v2311 = vld [vmem:[#allocation14 + $0xb98] sm:$0xff]
    %v2312 = vld [vmem:[#allocation14 + $0xba0] sm:$0xff]
    %v2313 = vld [vmem:[#allocation14 + $0xba8] sm:$0xff]
    %v2314 = vld [vmem:[#allocation14 + $0xbb0] sm:$0xff]
    %v2315 = vld [vmem:[#allocation14 + $0xbb8] sm:$0xff]
    %v2316 = vld [vmem:[#allocation14 + $0xbc0] sm:$0xff]
    %v2317 = vld [vmem:[#allocation14 + $0xbc8] sm:$0xff]
    %v2318 = vld [vmem:[#allocation14 + $0xbd0] sm:$0xff]
    %v2319 = vld [vmem:[#allocation14 + $0xbd8] sm:$0xff]
    %v2320 = vld [vmem:[#allocation14 + $0xbe0] sm:$0xff]
    %v2321 = vld [vmem:[#allocation14 + $0xbe8] sm:$0xff]
    %v2322 = vld [vmem:[#allocation14 + $0xbf0] sm:$0xff]
    %v2323 = vld [vmem:[#allocation14 + $0xbf8] sm:$0xff]
    %v2324 = vld [vmem:[#allocation14 + $0xc00] sm:$0xff]
    %v2325 = vld [vmem:[#allocation14 + $0xc08] sm:$0xff]
    %v2326 = vld [vmem:[#allocation14 + $0xc10] sm:$0xff]
    %v2327 = vld [vmem:[#allocation14 + $0xc18] sm:$0xff]
    %v2328 = vld [vmem:[#allocation14 + $0xc20] sm:$0xff]
    %v2329 = vld [vmem:[#allocation14 + $0xc28] sm:$0xff]
    %v2330 = vld [vmem:[#allocation14 + $0xc30] sm:$0xff]
    %v2331 = vld [vmem:[#allocation14 + $0xc38] sm:$0xff]
    %v2332 = vld [vmem:[#allocation14 + $0xc40] sm:$0xff]
    %v2333 = vld [vmem:[#allocation14 + $0xc48] sm:$0xff]
    %v2334 = vld [vmem:[#allocation14 + $0xc50] sm:$0xff]
    %v2335 = vld [vmem:[#allocation14 + $0xc58] sm:$0xff]
    %v2336 = vld [vmem:[#allocation14 + $0xc60] sm:$0xff]
    %v2337 = vld [vmem:[#allocation14 + $0xc68] sm:$0xff]
    %v2338 = vld [vmem:[#allocation14 + $0xc70] sm:$0xff]
    %v2339 = vld [vmem:[#allocation14 + $0xc78] sm:$0xff]
    %v2340 = vld [vmem:[#allocation14 + $0xc80] sm:$0xff]
    %v2341 = vld [vmem:[#allocation14 + $0xc88] sm:$0xff]
    %v2342 = vld [vmem:[#allocation14 + $0xc90] sm:$0xff]
    %v2343 = vld [vmem:[#allocation14 + $0xc98] sm:$0xff]
    %v2344 = vld [vmem:[#allocation14 + $0xca0] sm:$0xff]
    %v2345 = vld [vmem:[#allocation14 + $0xca8] sm:$0xff]
    %v2346 = vld [vmem:[#allocation14 + $0xcb0] sm:$0xff]
    %v2347 = vld [vmem:[#allocation14 + $0xcb8] sm:$0xff]
    %v2348 = vld [vmem:[#allocation14 + $0xcc0] sm:$0xff]
    %v2349 = vld [vmem:[#allocation14 + $0xcc8] sm:$0xff]
    %v2350 = vld [vmem:[#allocation14 + $0xcd0] sm:$0xff]
    %v2351 = vld [vmem:[#allocation14 + $0xcd8] sm:$0xff]
    %v2352 = vld [vmem:[#allocation14 + $0xce0] sm:$0xff]
    %v2353 = vld [vmem:[#allocation14 + $0xce8] sm:$0xff]
    %v2354 = vld [vmem:[#allocation14 + $0xcf0] sm:$0xff]
    %v2355 = vld [vmem:[#allocation14 + $0xcf8] sm:$0xff]
    %v2356 = vld [vmem:[#allocation14 + $0xd00] sm:$0xff]
    %v2357 = vld [vmem:[#allocation14 + $0xd08] sm:$0xff]
    %v2358 = vld [vmem:[#allocation14 + $0xd10] sm:$0xff]
    %v2359 = vld [vmem:[#allocation14 + $0xd18] sm:$0xff]
    %v2360 = vld [vmem:[#allocation14 + $0xd20] sm:$0xff]
    %v2361 = vld [vmem:[#allocation14 + $0xd28] sm:$0xff]
    %v2362 = vld [vmem:[#allocation14 + $0xd30] sm:$0xff]
    %v2363 = vld [vmem:[#allocation14 + $0xd38] sm:$0xff]
    %v2364 = vld [vmem:[#allocation14 + $0xd40] sm:$0xff]
    %v2365 = vld [vmem:[#allocation14 + $0xd48] sm:$0xff]
    %v2366 = vld [vmem:[#allocation14 + $0xd50] sm:$0xff]
    %v2367 = vld [vmem:[#allocation14 + $0xd58] sm:$0xff]
    %v2368 = vld [vmem:[#allocation14 + $0xd60] sm:$0xff]
    %v2369 = vld [vmem:[#allocation14 + $0xd68] sm:$0xff]
    %v2370 = vld [vmem:[#allocation14 + $0xd70] sm:$0xff]
    %v2371 = vld [vmem:[#allocation14 + $0xd78] sm:$0xff]
    %v2372 = vld [vmem:[#allocation14 + $0xd80] sm:$0xff]
    %v2373 = vld [vmem:[#allocation14 + $0xd88] sm:$0xff]
    %v2374 = vld [vmem:[#allocation14 + $0xd90] sm:$0xff]
    %v2375 = vld [vmem:[#allocation14 + $0xd98] sm:$0xff]
    %v2376 = vld [vmem:[#allocation14 + $0xda0] sm:$0xff]
    %v2377 = vld [vmem:[#allocation14 + $0xda8] sm:$0xff]
    %v2378 = vld [vmem:[#allocation14 + $0xdb0] sm:$0xff]
    %v2379 = vld [vmem:[#allocation14 + $0xdb8] sm:$0xff]
    %v2380 = vld [vmem:[#allocation14 + $0xdc0] sm:$0xff]
    %v2381 = vld [vmem:[#allocation14 + $0xdc8] sm:$0xff]
    %v2382 = vld [vmem:[#allocation14 + $0xdd0] sm:$0xff]
    %v2383 = vld [vmem:[#allocation14 + $0xdd8] sm:$0xff]
    %v2384 = vld [vmem:[#allocation14 + $0xde0] sm:$0xff]
    %v2385 = vld [vmem:[#allocation14 + $0xde8] sm:$0xff]
    %v2386 = vld [vmem:[#allocation14 + $0xdf0] sm:$0xff]
    %v2387 = vld [vmem:[#allocation14 + $0xdf8] sm:$0xff]
    %v2388 = vld [vmem:[#allocation14 + $0xe00] sm:$0xff]
    %v2389 = vld [vmem:[#allocation14 + $0xe08] sm:$0xff]
    %v2390 = vld [vmem:[#allocation14 + $0xe10] sm:$0xff]
    %v2391 = vld [vmem:[#allocation14 + $0xe18] sm:$0xff]
    %v2392 = vld [vmem:[#allocation14 + $0xe20] sm:$0xff]
    %v2393 = vld [vmem:[#allocation14 + $0xe28] sm:$0xff]
    %v2394 = vld [vmem:[#allocation14 + $0xe30] sm:$0xff]
    %v2395 = vld [vmem:[#allocation14 + $0xe38] sm:$0xff]
    %v2396 = vld [vmem:[#allocation14 + $0xe40] sm:$0xff]
    %v2397 = vld [vmem:[#allocation14 + $0xe48] sm:$0xff]
    %v2398 = vld [vmem:[#allocation14 + $0xe50] sm:$0xff]
    %v2399 = vld [vmem:[#allocation14 + $0xe58] sm:$0xff]
    %v2400 = vld [vmem:[#allocation14 + $0xe60] sm:$0xff]
    %v2401 = vld [vmem:[#allocation14 + $0xe68] sm:$0xff]
    %v2402 = vld [vmem:[#allocation14 + $0xe70] sm:$0xff]
    %v2403 = vld [vmem:[#allocation14 + $0xe78] sm:$0xff]
    %v2404 = vld [vmem:[#allocation14 + $0xe80] sm:$0xff]
    %v2405 = vld [vmem:[#allocation14 + $0xe88] sm:$0xff]
    %v2406 = vld [vmem:[#allocation14 + $0xe90] sm:$0xff]
    %v2407 = vld [vmem:[#allocation14 + $0xe98] sm:$0xff]
    %v2408 = vld [vmem:[#allocation14 + $0xea0] sm:$0xff]
    %v2409 = vld [vmem:[#allocation14 + $0xea8] sm:$0xff]
    %v2410 = vld [vmem:[#allocation14 + $0xeb0] sm:$0xff]
    %v2411 = vld [vmem:[#allocation14 + $0xeb8] sm:$0xff]
    %v2412 = vld [vmem:[#allocation14 + $0xec0] sm:$0xff]
    %v2413 = vld [vmem:[#allocation14 + $0xec8] sm:$0xff]
    %v2414 = vld [vmem:[#allocation14 + $0xed0] sm:$0xff]
    %v2415 = vld [vmem:[#allocation14 + $0xed8] sm:$0xff]
    %v2416 = vld [vmem:[#allocation14 + $0xee0] sm:$0xff]
    %v2417 = vld [vmem:[#allocation14 + $0xee8] sm:$0xff]
    %v2418 = vld [vmem:[#allocation14 + $0xef0] sm:$0xff]
    %v2419 = vld [vmem:[#allocation14 + $0xef8] sm:$0xff]
    %v2420 = vld [vmem:[#allocation14 + $0xf00] sm:$0xff]
    %v2421 = vld [vmem:[#allocation14 + $0xf08] sm:$0xff]
    %v2422 = vld [vmem:[#allocation14 + $0xf10] sm:$0xff]
    %v2423 = vld [vmem:[#allocation14 + $0xf18] sm:$0xff]
    %v2424 = vld [vmem:[#allocation14 + $0xf20] sm:$0xff]
    %v2425 = vld [vmem:[#allocation14 + $0xf28] sm:$0xff]
    %v2426 = vld [vmem:[#allocation14 + $0xf30] sm:$0xff]
    %v2427 = vld [vmem:[#allocation14 + $0xf38] sm:$0xff]
    %v2428 = vld [vmem:[#allocation14 + $0xf40] sm:$0xff]
    %v2429 = vld [vmem:[#allocation14 + $0xf48] sm:$0xff]
    %v2430 = vld [vmem:[#allocation14 + $0xf50] sm:$0xff]
    %v2431 = vld [vmem:[#allocation14 + $0xf58] sm:$0xff]
    %v2432 = vld [vmem:[#allocation14 + $0xf60] sm:$0xff]
    %v2433 = vld [vmem:[#allocation14 + $0xf68] sm:$0xff]
    %v2434 = vld [vmem:[#allocation14 + $0xf70] sm:$0xff]
    %v2435 = vld [vmem:[#allocation14 + $0xf78] sm:$0xff]
    %v2436 = vld [vmem:[#allocation14 + $0xf80] sm:$0xff]
    %v2437 = vld [vmem:[#allocation14 + $0xf88] sm:$0xff]
    %v2438 = vld [vmem:[#allocation14 + $0xf90] sm:$0xff]
    %v2439 = vld [vmem:[#allocation14 + $0xf98] sm:$0xff]
    %v2440 = vld [vmem:[#allocation14 + $0xfa0] sm:$0xff]
    %v2441 = vld [vmem:[#allocation14 + $0xfa8] sm:$0xff]
    %v2442 = vld [vmem:[#allocation14 + $0xfb0] sm:$0xff]
    %v2443 = vld [vmem:[#allocation14 + $0xfb8] sm:$0xff]
    %v2444 = vld [vmem:[#allocation14 + $0xfc0] sm:$0xff]
    %v2445 = vld [vmem:[#allocation14 + $0xfc8] sm:$0xff]
    %v2446 = vld [vmem:[#allocation14 + $0xfd0] sm:$0xff]
    %v2447 = vld [vmem:[#allocation14 + $0xfd8] sm:$0xff]
    %v2448 = vld [vmem:[#allocation14 + $0xfe0] sm:$0xff]
    %v2449 = vld [vmem:[#allocation14 + $0xfe8] sm:$0xff]
    %v2450 = vld [vmem:[#allocation14 + $0xff0] sm:$0xff]
    %v2451 = vld [vmem:[#allocation14 + $0xff8] sm:$0xff]
    %v2452 = vld [vmem:[#allocation14 + $0x1000] sm:$0xff]
    %v2453 = vld [vmem:[#allocation14 + $0x1008] sm:$0xff]
    %v2454 = vld [vmem:[#allocation14 + $0x1010] sm:$0xff]
    %v2455 = vld [vmem:[#allocation14 + $0x1018] sm:$0xff]
    %v2456 = vld [vmem:[#allocation14 + $0x1020] sm:$0xff]
    %v2457 = vld [vmem:[#allocation14 + $0x1028] sm:$0xff]
    %v2458 = vld [vmem:[#allocation14 + $0x1030] sm:$0xff]
    %v2459 = vld [vmem:[#allocation14 + $0x1038] sm:$0xff]
    %v2460 = vld [vmem:[#allocation14 + $0x1040] sm:$0xff]
    %v2461 = vld [vmem:[#allocation14 + $0x1048] sm:$0xff]
    %v2462 = vld [vmem:[#allocation14 + $0x1050] sm:$0xff]
    %v2463 = vld [vmem:[#allocation14 + $0x1058] sm:$0xff]
    %v2464 = vld [vmem:[#allocation14 + $0x1060] sm:$0xff]
    %v2465 = vld [vmem:[#allocation14 + $0x1068] sm:$0xff]
    %v2466 = vld [vmem:[#allocation14 + $0x1070] sm:$0xff]
    %v2467 = vld [vmem:[#allocation14 + $0x1078] sm:$0xff]
    %v2468 = vld [vmem:[#allocation14 + $0x1080] sm:$0xff]
    %v2469 = vld [vmem:[#allocation14 + $0x1088] sm:$0xff]
    %v2470 = vld [vmem:[#allocation14 + $0x1090] sm:$0xff]
    %v2471 = vld [vmem:[#allocation14 + $0x1098] sm:$0xff]
    %v2472 = vld [vmem:[#allocation14 + $0x10a0] sm:$0xff]
    %v2473 = vld [vmem:[#allocation14 + $0x10a8] sm:$0xff]
    %v2474 = vld [vmem:[#allocation14 + $0x10b0] sm:$0xff]
    %v2475 = vld [vmem:[#allocation14 + $0x10b8] sm:$0xff]
    %v2476 = vld [vmem:[#allocation14 + $0x10c0] sm:$0xff]
    %v2477 = vld [vmem:[#allocation14 + $0x10c8] sm:$0xff]
    %v2478 = vld [vmem:[#allocation14 + $0x10d0] sm:$0xff]
    %v2479 = vld [vmem:[#allocation14 + $0x10d8] sm:$0xff]
    %v2480 = vld [vmem:[#allocation14 + $0x10e0] sm:$0xff]
    %v2481 = vld [vmem:[#allocation14 + $0x10e8] sm:$0xff]
    %v2482 = vld [vmem:[#allocation14 + $0x10f0] sm:$0xff]
    %v2483 = vld [vmem:[#allocation14 + $0x10f8] sm:$0xff]
    %v2484 = vld [vmem:[#allocation14 + $0x1100] sm:$0xff]
    %v2485 = vld [vmem:[#allocation14 + $0x1108] sm:$0xff]
    %v2486 = vld [vmem:[#allocation14 + $0x1110] sm:$0xff]
    %v2487 = vld [vmem:[#allocation14 + $0x1118] sm:$0xff]
    %v2488 = vld [vmem:[#allocation14 + $0x1120] sm:$0xff]
    %v2489 = vld [vmem:[#allocation14 + $0x1128] sm:$0xff]
    %v2490 = vld [vmem:[#allocation14 + $0x1130] sm:$0xff]
    %v2491 = vld [vmem:[#allocation14 + $0x1138] sm:$0xff]
    %v2492 = vld [vmem:[#allocation14 + $0x1140] sm:$0xff]
    %v2493 = vld [vmem:[#allocation14 + $0x1148] sm:$0xff]
    %v2494 = vld [vmem:[#allocation14 + $0x1150] sm:$0xff]
    %v2495 = vld [vmem:[#allocation14 + $0x1158] sm:$0xff]
    %v2496 = vld [vmem:[#allocation14 + $0x1160] sm:$0xff]
    %v2497 = vld [vmem:[#allocation14 + $0x1168] sm:$0xff]
    %v2498 = vld [vmem:[#allocation14 + $0x1170] sm:$0xff]
    %v2499 = vld [vmem:[#allocation14 + $0x1178] sm:$0xff]
    %v2500 = vld [vmem:[#allocation14 + $0x1180] sm:$0xff]
    %v2501 = vld [vmem:[#allocation14 + $0x1188] sm:$0xff]
    %v2502 = vld [vmem:[#allocation14 + $0x1190] sm:$0xff]
    %v2503 = vld [vmem:[#allocation14 + $0x1198] sm:$0xff]
    %v2504 = vld [vmem:[#allocation14 + $0x11a0] sm:$0xff]
    %v2505 = vld [vmem:[#allocation14 + $0x11a8] sm:$0xff]
    %v2506 = vld [vmem:[#allocation14 + $0x11b0] sm:$0xff]
    %v2507 = vld [vmem:[#allocation14 + $0x11b8] sm:$0xff]
    %v2508 = vld [vmem:[#allocation14 + $0x11c0] sm:$0xff]
    %v2509 = vld [vmem:[#allocation14 + $0x11c8] sm:$0xff]
    %v2510 = vld [vmem:[#allocation14 + $0x11d0] sm:$0xff]
    %v2511 = vld [vmem:[#allocation14 + $0x11d8] sm:$0xff]
    %v2512 = vld [vmem:[#allocation14 + $0x11e0] sm:$0xff]
    %v2513 = vld [vmem:[#allocation14 + $0x11e8] sm:$0xff]
    %v2514 = vld [vmem:[#allocation14 + $0x11f0] sm:$0xff]
    %v2515 = vld [vmem:[#allocation14 + $0x11f8] sm:$0xff]
    %v2516 = vld [vmem:[#allocation14 + $0x1200] sm:$0xff]
    %v2517 = vld [vmem:[#allocation14 + $0x1208] sm:$0xff]
    %v2518 = vld [vmem:[#allocation14 + $0x1210] sm:$0xff]
    %v2519 = vld [vmem:[#allocation14 + $0x1218] sm:$0xff]
    %v2520 = vld [vmem:[#allocation14 + $0x1220] sm:$0xff]
    %v2521 = vld [vmem:[#allocation14 + $0x1228] sm:$0xff]
    %v2522 = vld [vmem:[#allocation14 + $0x1230] sm:$0xff]
    %v2523 = vld [vmem:[#allocation14 + $0x1238] sm:$0xff]
    %v2524 = vld [vmem:[#allocation14 + $0x1240] sm:$0xff]
    %v2525 = vld [vmem:[#allocation14 + $0x1248] sm:$0xff]
    %v2526 = vld [vmem:[#allocation14 + $0x1250] sm:$0xff]
    %v2527 = vld [vmem:[#allocation14 + $0x1258] sm:$0xff]
    %v2528 = vld [vmem:[#allocation14 + $0x1260] sm:$0xff]
    %v2529 = vld [vmem:[#allocation14 + $0x1268] sm:$0xff]
    %v2530 = vld [vmem:[#allocation14 + $0x1270] sm:$0xff]
    %v2531 = vld [vmem:[#allocation14 + $0x1278] sm:$0xff]
    %v2532 = vld [vmem:[#allocation14 + $0x1280] sm:$0xff]
    %v2533 = vld [vmem:[#allocation14 + $0x1288] sm:$0xff]
    %v2534 = vld [vmem:[#allocation14 + $0x1290] sm:$0xff]
    %v2535 = vld [vmem:[#allocation14 + $0x1298] sm:$0xff]
    %v2536 = vld [vmem:[#allocation14 + $0x12a0] sm:$0xff]
    %v2537 = vld [vmem:[#allocation14 + $0x12a8] sm:$0xff]
    %v2538 = vld [vmem:[#allocation14 + $0x12b0] sm:$0xff]
    %v2539 = vld [vmem:[#allocation14 + $0x12b8] sm:$0xff]
    %v2540 = vld [vmem:[#allocation14 + $0x12c0] sm:$0xff]
    %v2541 = vld [vmem:[#allocation14 + $0x12c8] sm:$0xff]
    %v2542 = vld [vmem:[#allocation14 + $0x12d0] sm:$0xff]
    %v2543 = vld [vmem:[#allocation14 + $0x12d8] sm:$0xff]
    %v2544 = vld [vmem:[#allocation14 + $0x12e0] sm:$0xff]
    %v2545 = vld [vmem:[#allocation14 + $0x12e8] sm:$0xff]
    %v2546 = vld [vmem:[#allocation14 + $0x12f0] sm:$0xff]
    %v2547 = vld [vmem:[#allocation14 + $0x12f8] sm:$0xff]
    %v2548 = vld [vmem:[#allocation14 + $0x1300] sm:$0xff]
    %v2549 = vld [vmem:[#allocation14 + $0x1308] sm:$0xff]
    %v2550 = vld [vmem:[#allocation14 + $0x1310] sm:$0xff]
    %v2551 = vld [vmem:[#allocation14 + $0x1318] sm:$0xff]
    %v2552 = vld [vmem:[#allocation14 + $0x1320] sm:$0xff]
    %v2553 = vld [vmem:[#allocation14 + $0x1328] sm:$0xff]
    %v2554 = vld [vmem:[#allocation14 + $0x1330] sm:$0xff]
    %v2555 = vld [vmem:[#allocation14 + $0x1338] sm:$0xff]
    %v2556 = vld [vmem:[#allocation14 + $0x1340] sm:$0xff]
    %v2557 = vld [vmem:[#allocation14 + $0x1348] sm:$0xff]
    %v2558 = vld [vmem:[#allocation14 + $0x1350] sm:$0xff]
    %v2559 = vld [vmem:[#allocation14 + $0x1358] sm:$0xff]
    %v2560 = vld [vmem:[#allocation14 + $0x1360] sm:$0xff]
    %v2561 = vld [vmem:[#allocation14 + $0x1368] sm:$0xff]
    %v2562 = vld [vmem:[#allocation14 + $0x1370] sm:$0xff]
    %v2563 = vld [vmem:[#allocation14 + $0x1378] sm:$0xff]
    %v2564 = vld [vmem:[#allocation14 + $0x1380] sm:$0xff]
    %v2565 = vld [vmem:[#allocation14 + $0x1388] sm:$0xff]
    %v2566 = vld [vmem:[#allocation14 + $0x1390] sm:$0xff]
    %v2567 = vld [vmem:[#allocation14 + $0x1398] sm:$0xff]
    %v2568 = vld [vmem:[#allocation14 + $0x13a0] sm:$0xff]
    %v2569 = vld [vmem:[#allocation14 + $0x13a8] sm:$0xff]
    %v2570 = vld [vmem:[#allocation14 + $0x13b0] sm:$0xff]
    %v2571 = vld [vmem:[#allocation14 + $0x13b8] sm:$0xff]
    %v2572 = vld [vmem:[#allocation14 + $0x13c0] sm:$0xff]
    %v2573 = vld [vmem:[#allocation14 + $0x13c8] sm:$0xff]
    %v2574 = vld [vmem:[#allocation14 + $0x13d0] sm:$0xff]
    %v2575 = vld [vmem:[#allocation14 + $0x13d8] sm:$0xff]
    %v2576 = vld [vmem:[#allocation14 + $0x13e0] sm:$0xff]
    %v2577 = vld [vmem:[#allocation14 + $0x13e8] sm:$0xff]
    %v2578 = vld [vmem:[#allocation14 + $0x13f0] sm:$0xff]
    %v2579 = vld [vmem:[#allocation14 + $0x13f8] sm:$0xff]
    %v2580 = vld [vmem:[#allocation14 + $0x1400] sm:$0xff]
    %v2581 = vld [vmem:[#allocation14 + $0x1408] sm:$0xff]
    %v2582 = vld [vmem:[#allocation14 + $0x1410] sm:$0xff]
    %v2583 = vld [vmem:[#allocation14 + $0x1418] sm:$0xff]
    %v2584 = vld [vmem:[#allocation14 + $0x1420] sm:$0xff]
    %v2585 = vld [vmem:[#allocation14 + $0x1428] sm:$0xff]
    %v2586 = vld [vmem:[#allocation14 + $0x1430] sm:$0xff]
    %v2587 = vld [vmem:[#allocation14 + $0x1438] sm:$0xff]
    %v2588 = vld [vmem:[#allocation14 + $0x1440] sm:$0xff]
    %v2589 = vld [vmem:[#allocation14 + $0x1448] sm:$0xff]
    %v2590 = vld [vmem:[#allocation14 + $0x1450] sm:$0xff]
    %v2591 = vld [vmem:[#allocation14 + $0x1458] sm:$0xff]
    %v2592 = vld [vmem:[#allocation14 + $0x1460] sm:$0xff]
    %v2593 = vld [vmem:[#allocation14 + $0x1468] sm:$0xff]
    %v2594 = vld [vmem:[#allocation14 + $0x1470] sm:$0xff]
    %v2595 = vld [vmem:[#allocation14 + $0x1478] sm:$0xff]
    %v2596 = vld [vmem:[#allocation14 + $0x1480] sm:$0xff]
    %v2597 = vld [vmem:[#allocation14 + $0x1488] sm:$0xff]
    %v2598 = vld [vmem:[#allocation14 + $0x1490] sm:$0xff]
    %v2599 = vld [vmem:[#allocation14 + $0x1498] sm:$0xff]
    %v2600 = vld [vmem:[#allocation14 + $0x14a0] sm:$0xff]
    %v2601 = vld [vmem:[#allocation14 + $0x14a8] sm:$0xff]
    %v2602 = vld [vmem:[#allocation14 + $0x14b0] sm:$0xff]
    %v2603 = vld [vmem:[#allocation14 + $0x14b8] sm:$0xff]
    %v2604 = vld [vmem:[#allocation14 + $0x14c0] sm:$0xff]
    %v2605 = vld [vmem:[#allocation14 + $0x14c8] sm:$0xff]
    %v2606 = vld [vmem:[#allocation14 + $0x14d0] sm:$0xff]
    %v2607 = vld [vmem:[#allocation14 + $0x14d8] sm:$0xff]
    %v2608 = vld [vmem:[#allocation14 + $0x14e0] sm:$0xff]
    %v2609 = vld [vmem:[#allocation14 + $0x14e8] sm:$0xff]
    %v2610 = vld [vmem:[#allocation14 + $0x14f0] sm:$0xff]
    %v2611 = vld [vmem:[#allocation14 + $0x14f8] sm:$0xff]
    %v2612 = vld [vmem:[#allocation14 + $0x1500] sm:$0xff]
    %v2613 = vld [vmem:[#allocation14 + $0x1508] sm:$0xff]
    %v2614 = vld [vmem:[#allocation14 + $0x1510] sm:$0xff]
    %v2615 = vld [vmem:[#allocation14 + $0x1518] sm:$0xff]
    %v2616 = vld [vmem:[#allocation14 + $0x1520] sm:$0xff]
    %v2617 = vld [vmem:[#allocation14 + $0x1528] sm:$0xff]
    %v2618 = vld [vmem:[#allocation14 + $0x1530] sm:$0xff]
    %v2619 = vld [vmem:[#allocation14 + $0x1538] sm:$0xff]
    %v2620 = vld [vmem:[#allocation14 + $0x1540] sm:$0xff]
    %v2621 = vld [vmem:[#allocation14 + $0x1548] sm:$0xff]
    %v2622 = vld [vmem:[#allocation14 + $0x1550] sm:$0xff]
    %v2623 = vld [vmem:[#allocation14 + $0x1558] sm:$0xff]
    %v2624 = vld [vmem:[#allocation14 + $0x1560] sm:$0xff]
    %v2625 = vld [vmem:[#allocation14 + $0x1568] sm:$0xff]
    %v2626 = vld [vmem:[#allocation14 + $0x1570] sm:$0xff]
    %v2627 = vld [vmem:[#allocation14 + $0x1578] sm:$0xff]
    %v2628 = vld [vmem:[#allocation14 + $0x1580] sm:$0xff]
    %v2629 = vld [vmem:[#allocation14 + $0x1588] sm:$0xff]
    %v2630 = vld [vmem:[#allocation14 + $0x1590] sm:$0xff]
    %v2631 = vld [vmem:[#allocation14 + $0x1598] sm:$0xff]
    %v2632 = vld [vmem:[#allocation14 + $0x15a0] sm:$0xff]
    %v2633 = vld [vmem:[#allocation14 + $0x15a8] sm:$0xff]
    %v2634 = vld [vmem:[#allocation14 + $0x15b0] sm:$0xff]
    %v2635 = vld [vmem:[#allocation14 + $0x15b8] sm:$0xff]
    %v2636 = vld [vmem:[#allocation14 + $0x15c0] sm:$0xff]
    %v2637 = vld [vmem:[#allocation14 + $0x15c8] sm:$0xff]
    %v2638 = vld [vmem:[#allocation14 + $0x15d0] sm:$0xff]
    %v2639 = vld [vmem:[#allocation14 + $0x15d8] sm:$0xff]
    %v2640 = vld [vmem:[#allocation14 + $0x15e0] sm:$0xff]
    %v2641 = vld [vmem:[#allocation14 + $0x15e8] sm:$0xff]
    %v2642 = vld [vmem:[#allocation14 + $0x15f0] sm:$0xff]
    %v2643 = vld [vmem:[#allocation14 + $0x15f8] sm:$0xff]
    %v2644 = vld [vmem:[#allocation14 + $0x1600] sm:$0xff]
    %v2645 = vld [vmem:[#allocation14 + $0x1608] sm:$0xff]
    %v2646 = vld [vmem:[#allocation14 + $0x1610] sm:$0xff]
    %v2647 = vld [vmem:[#allocation14 + $0x1618] sm:$0xff]
    %v2648 = vld [vmem:[#allocation14 + $0x1620] sm:$0xff]
    %v2649 = vld [vmem:[#allocation14 + $0x1628] sm:$0xff]
    %v2650 = vld [vmem:[#allocation14 + $0x1630] sm:$0xff]
    %v2651 = vld [vmem:[#allocation14 + $0x1638] sm:$0xff]
    %v2652 = vld [vmem:[#allocation14 + $0x1640] sm:$0xff]
    %v2653 = vld [vmem:[#allocation14 + $0x1648] sm:$0xff]
    %v2654 = vld [vmem:[#allocation14 + $0x1650] sm:$0xff]
    %v2655 = vld [vmem:[#allocation14 + $0x1658] sm:$0xff]
    %v2656 = vld [vmem:[#allocation14 + $0x1660] sm:$0xff]
    %v2657 = vld [vmem:[#allocation14 + $0x1668] sm:$0xff]
    %v2658 = vld [vmem:[#allocation14 + $0x1670] sm:$0xff]
    %v2659 = vld [vmem:[#allocation14 + $0x1678] sm:$0xff]
    %v2660 = vld [vmem:[#allocation14 + $0x1680] sm:$0xff]
    %v2661 = vld [vmem:[#allocation14 + $0x1688] sm:$0xff]
    %v2662 = vld [vmem:[#allocation14 + $0x1690] sm:$0xff]
    %v2663 = vld [vmem:[#allocation14 + $0x1698] sm:$0xff]
    %v2664 = vld [vmem:[#allocation14 + $0x16a0] sm:$0xff]
    %v2665 = vld [vmem:[#allocation14 + $0x16a8] sm:$0xff]
    %v2666 = vld [vmem:[#allocation14 + $0x16b0] sm:$0xff]
    %v2667 = vld [vmem:[#allocation14 + $0x16b8] sm:$0xff]
    %v2668 = vld [vmem:[#allocation14 + $0x16c0] sm:$0xff]
    %v2669 = vld [vmem:[#allocation14 + $0x16c8] sm:$0xff]
    %v2670 = vld [vmem:[#allocation14 + $0x16d0] sm:$0xff]
    %v2671 = vld [vmem:[#allocation14 + $0x16d8] sm:$0xff]
    %v2672 = vld [vmem:[#allocation14 + $0x16e0] sm:$0xff]
    %v2673 = vld [vmem:[#allocation14 + $0x16e8] sm:$0xff]
    %v2674 = vld [vmem:[#allocation14 + $0x16f0] sm:$0xff]
    %v2675 = vld [vmem:[#allocation14 + $0x16f8] sm:$0xff]
    %v2676 = vld [vmem:[#allocation14 + $0x1700] sm:$0xff]
    %v2677 = vld [vmem:[#allocation14 + $0x1708] sm:$0xff]
    %v2678 = vld [vmem:[#allocation14 + $0x1710] sm:$0xff]
    %v2679 = vld [vmem:[#allocation14 + $0x1718] sm:$0xff]
    %v2680 = vld [vmem:[#allocation14 + $0x1720] sm:$0xff]
    %v2681 = vld [vmem:[#allocation14 + $0x1728] sm:$0xff]
    %v2682 = vld [vmem:[#allocation14 + $0x1730] sm:$0xff]
    %v2683 = vld [vmem:[#allocation14 + $0x1738] sm:$0xff]
    %v2684 = vld [vmem:[#allocation14 + $0x1740] sm:$0xff]
    %v2685 = vld [vmem:[#allocation14 + $0x1748] sm:$0xff]
    %v2686 = vld [vmem:[#allocation14 + $0x1750] sm:$0xff]
    %v2687 = vld [vmem:[#allocation14 + $0x1758] sm:$0xff]
    %v2688 = vld [vmem:[#allocation14 + $0x1760] sm:$0xff]
    %v2689 = vld [vmem:[#allocation14 + $0x1768] sm:$0xff]
    %v2690 = vld [vmem:[#allocation14 + $0x1770] sm:$0xff]
    %v2691 = vld [vmem:[#allocation14 + $0x1778] sm:$0xff]
    %v2692 = vld [vmem:[#allocation14 + $0x1780] sm:$0xff]
    %v2693 = vld [vmem:[#allocation14 + $0x1788] sm:$0xff]
    %v2694 = vld [vmem:[#allocation14 + $0x1790] sm:$0xff]
    %v2695 = vld [vmem:[#allocation14 + $0x1798] sm:$0xff]
    %v2696 = vld [vmem:[#allocation14 + $0x17a0] sm:$0xff]
    %v2697 = vld [vmem:[#allocation14 + $0x17a8] sm:$0xff]
    %v2698 = vld [vmem:[#allocation14 + $0x17b0] sm:$0xff]
    %v2699 = vld [vmem:[#allocation14 + $0x17b8] sm:$0xff]
    %v2700 = vld [vmem:[#allocation14 + $0x17c0] sm:$0xff]
    %v2701 = vld [vmem:[#allocation14 + $0x17c8] sm:$0xff]
    %v2702 = vld [vmem:[#allocation14 + $0x17d0] sm:$0xff]
    %v2703 = vld [vmem:[#allocation14 + $0x17d8] sm:$0xff]
    %v2704 = vld [vmem:[#allocation14 + $0x17e0] sm:$0xff]
    %v2705 = vld [vmem:[#allocation14 + $0x17e8] sm:$0xff]
    %v2706 = vld [vmem:[#allocation14 + $0x17f0] sm:$0xff]
    %v2707 = vld [vmem:[#allocation14 + $0x17f8] sm:$0xff]
    %v2708 = vld [vmem:[#allocation16] sm:$0xff]
    %v2709 = vld [vmem:[#allocation16 + $0x8] sm:$0xf]
    %v2712 = vlaneseq
    %v2713 = vshrl.u32 %v2712, 7
    %v2714 = vsub.s32 0, %v2713
    %v2715 = vrot.slane %v2708, %v2714
    %v2716 = vlaneseq
    %v2717 = vshrl.u32 %v2716, 7
    %v2718 = vsub.s32 1, %v2717
    %v2719 = vrot.slane %v2708, %v2718
    %v2720 = vlaneseq
    %v2721 = vshrl.u32 %v2720, 7
    %v2722 = vsub.s32 2, %v2721
    %v2723 = vrot.slane %v2708, %v2722
    %v2724 = vlaneseq
    %v2725 = vshrl.u32 %v2724, 7
    %v2726 = vsub.s32 3, %v2725
    %v2727 = vrot.slane %v2708, %v2726
    %v2728 = vlaneseq
    %v2729 = vshrl.u32 %v2728, 7
    %v2730 = vsub.s32 4, %v2729
    %v2731 = vrot.slane %v2708, %v2730
    %v2732 = vlaneseq
    %v2733 = vshrl.u32 %v2732, 7
    %v2734 = vsub.s32 5, %v2733
    %v2735 = vrot.slane %v2708, %v2734
    %v2736 = vlaneseq
    %v2737 = vshrl.u32 %v2736, 7
    %v2738 = vsub.s32 6, %v2737
    %v2739 = vrot.slane %v2708, %v2738
    %v2740 = vlaneseq
    %v2741 = vshrl.u32 %v2740, 7
    %v2742 = vsub.s32 7, %v2741
    %v2743 = vrot.slane %v2708, %v2742
    %v2744 = vlaneseq
    %v2745 = vshrl.u32 %v2744, 7
    %v2746 = vsub.s32 0, %v2745
    %v2747 = vrot.slane %v2709, %v2746
    %v2748 = vlaneseq
    %v2749 = vshrl.u32 %v2748, 7
    %v2750 = vsub.s32 1, %v2749
    %v2751 = vrot.slane %v2709, %v2750
    %v2752 = vlaneseq
    %v2753 = vshrl.u32 %v2752, 7
    %v2754 = vsub.s32 2, %v2753
    %v2755 = vrot.slane %v2709, %v2754
    %v2756 = vlaneseq
    %v2757 = vshrl.u32 %v2756, 7
    %v2758 = vsub.s32 3, %v2757
    %v2759 = vrot.slane %v2709, %v2758
    %v3540 = vunpack.c.l.b16 %v1940
    %v3541 = vunpack.c.h.b16 %v1940
    %v3542 = vunpack.c.l.b16 %v1941
    %v3543 = vunpack.c.h.b16 %v1941
    %v3544 = vunpack.c.l.b16 %v1942
    %v3545 = vunpack.c.h.b16 %v1942
    %v3546 = vunpack.c.l.b16 %v1943
    %v3547 = vunpack.c.h.b16 %v1943
    %v3548 = vunpack.c.l.b16 %v1944
    %v3549 = vunpack.c.h.b16 %v1944
    %v3550 = vunpack.c.l.b16 %v1945
    %v3551 = vunpack.c.h.b16 %v1945
    %v3552 = vunpack.c.l.b16 %v1946
    %v3553 = vunpack.c.h.b16 %v1946
    %v3554 = vunpack.c.l.b16 %v1947
    %v3555 = vunpack.c.h.b16 %v1947
    %v3556 = vunpack.c.l.b16 %v1948
    %v3557 = vunpack.c.h.b16 %v1948
    %v3558 = vunpack.c.l.b16 %v1949
    %v3559 = vunpack.c.h.b16 %v1949
    %v3560 = vunpack.c.l.b16 %v1950
    %v3561 = vunpack.c.h.b16 %v1950
    %v3562 = vunpack.c.l.b16 %v1951
    %v3563 = vunpack.c.h.b16 %v1951
    %v3564 = vunpack.c.l.b16 %v1952
    %v3565 = vunpack.c.h.b16 %v1952
    %v3566 = vunpack.c.l.b16 %v1953
    %v3567 = vunpack.c.h.b16 %v1953
    %v3568 = vunpack.c.l.b16 %v1954
    %v3569 = vunpack.c.h.b16 %v1954
    %v3570 = vunpack.c.l.b16 %v1955
    %v3571 = vunpack.c.h.b16 %v1955
    %v3572 = vunpack.c.l.b16 %v1956
    %v3573 = vunpack.c.h.b16 %v1956
    %v3574 = vunpack.c.l.b16 %v1957
    %v3575 = vunpack.c.h.b16 %v1957
    %v3576 = vunpack.c.l.b16 %v1958
    %v3577 = vunpack.c.h.b16 %v1958
    %v3578 = vunpack.c.l.b16 %v1959
    %v3579 = vunpack.c.h.b16 %v1959
    %v3580 = vunpack.c.l.b16 %v1960
    %v3581 = vunpack.c.h.b16 %v1960
    %v3582 = vunpack.c.l.b16 %v1961
    %v3583 = vunpack.c.h.b16 %v1961
    %v3584 = vunpack.c.l.b16 %v1962
    %v3585 = vunpack.c.h.b16 %v1962
    %v3586 = vunpack.c.l.b16 %v1963
    %v3587 = vunpack.c.h.b16 %v1963
    %v3588 = vunpack.c.l.b16 %v1964
    %v3589 = vunpack.c.h.b16 %v1964
    %v3590 = vunpack.c.l.b16 %v1965
    %v3591 = vunpack.c.h.b16 %v1965
    %v3592 = vunpack.c.l.b16 %v1966
    %v3593 = vunpack.c.h.b16 %v1966
    %v3594 = vunpack.c.l.b16 %v1967
    %v3595 = vunpack.c.h.b16 %v1967
    %v3596 = vunpack.c.l.b16 %v1968
    %v3597 = vunpack.c.h.b16 %v1968
    %v3598 = vunpack.c.l.b16 %v1969
    %v3599 = vunpack.c.h.b16 %v1969
    %v3600 = vunpack.c.l.b16 %v1970
    %v3601 = vunpack.c.h.b16 %v1970
    %v3602 = vunpack.c.l.b16 %v1971
    %v3603 = vunpack.c.h.b16 %v1971
    %v3604 = vunpack.c.l.b16 %v1972
    %v3605 = vunpack.c.h.b16 %v1972
    %v3606 = vunpack.c.l.b16 %v1973
    %v3607 = vunpack.c.h.b16 %v1973
    %v3608 = vunpack.c.l.b16 %v1974
    %v3609 = vunpack.c.h.b16 %v1974
    %v3610 = vunpack.c.l.b16 %v1975
    %v3611 = vunpack.c.h.b16 %v1975
    %v3612 = vunpack.c.l.b16 %v1976
    %v3613 = vunpack.c.h.b16 %v1976
    %v3614 = vunpack.c.l.b16 %v1977
    %v3615 = vunpack.c.h.b16 %v1977
    %v3616 = vunpack.c.l.b16 %v1978
    %v3617 = vunpack.c.h.b16 %v1978
    %v3618 = vunpack.c.l.b16 %v1979
    %v3619 = vunpack.c.h.b16 %v1979
    %v3620 = vunpack.c.l.b16 %v1980
    %v3621 = vunpack.c.h.b16 %v1980
    %v3622 = vunpack.c.l.b16 %v1981
    %v3623 = vunpack.c.h.b16 %v1981
    %v3624 = vunpack.c.l.b16 %v1982
    %v3625 = vunpack.c.h.b16 %v1982
    %v3626 = vunpack.c.l.b16 %v1983
    %v3627 = vunpack.c.h.b16 %v1983
    %v3628 = vunpack.c.l.b16 %v1984
    %v3629 = vunpack.c.h.b16 %v1984
    %v3630 = vunpack.c.l.b16 %v1985
    %v3631 = vunpack.c.h.b16 %v1985
    %v3632 = vunpack.c.l.b16 %v1986
    %v3633 = vunpack.c.h.b16 %v1986
    %v3634 = vunpack.c.l.b16 %v1987
    %v3635 = vunpack.c.h.b16 %v1987
    %v3636 = vunpack.c.l.b16 %v1988
    %v3637 = vunpack.c.h.b16 %v1988
    %v3638 = vunpack.c.l.b16 %v1989
    %v3639 = vunpack.c.h.b16 %v1989
    %v3640 = vunpack.c.l.b16 %v1990
    %v3641 = vunpack.c.h.b16 %v1990
    %v3642 = vunpack.c.l.b16 %v1991
    %v3643 = vunpack.c.h.b16 %v1991
    %v3644 = vunpack.c.l.b16 %v1992
    %v3645 = vunpack.c.h.b16 %v1992
    %v3646 = vunpack.c.l.b16 %v1993
    %v3647 = vunpack.c.h.b16 %v1993
    %v3648 = vunpack.c.l.b16 %v1994
    %v3649 = vunpack.c.h.b16 %v1994
    %v3650 = vunpack.c.l.b16 %v1995
    %v3651 = vunpack.c.h.b16 %v1995
    %v3652 = vunpack.c.l.b16 %v1996
    %v3653 = vunpack.c.h.b16 %v1996
    %v3654 = vunpack.c.l.b16 %v1997
    %v3655 = vunpack.c.h.b16 %v1997
    %v3656 = vunpack.c.l.b16 %v1998
    %v3657 = vunpack.c.h.b16 %v1998
    %v3658 = vunpack.c.l.b16 %v1999
    %v3659 = vunpack.c.h.b16 %v1999
    %v3660 = vunpack.c.l.b16 %v2000
    %v3661 = vunpack.c.h.b16 %v2000
    %v3662 = vunpack.c.l.b16 %v2001
    %v3663 = vunpack.c.h.b16 %v2001
    %v3664 = vunpack.c.l.b16 %v2002
    %v3665 = vunpack.c.h.b16 %v2002
    %v3666 = vunpack.c.l.b16 %v2003
    %v3667 = vunpack.c.h.b16 %v2003
    %v3668 = vunpack.c.l.b16 %v2004
    %v3669 = vunpack.c.h.b16 %v2004
    %v3670 = vunpack.c.l.b16 %v2005
    %v3671 = vunpack.c.h.b16 %v2005
    %v3672 = vunpack.c.l.b16 %v2006
    %v3673 = vunpack.c.h.b16 %v2006
    %v3674 = vunpack.c.l.b16 %v2007
    %v3675 = vunpack.c.h.b16 %v2007
    %v3676 = vunpack.c.l.b16 %v2008
    %v3677 = vunpack.c.h.b16 %v2008
    %v3678 = vunpack.c.l.b16 %v2009
    %v3679 = vunpack.c.h.b16 %v2009
    %v3680 = vunpack.c.l.b16 %v2010
    %v3681 = vunpack.c.h.b16 %v2010
    %v3682 = vunpack.c.l.b16 %v2011
    %v3683 = vunpack.c.h.b16 %v2011
    %v3684 = vunpack.c.l.b16 %v2012
    %v3685 = vunpack.c.h.b16 %v2012
    %v3686 = vunpack.c.l.b16 %v2013
    %v3687 = vunpack.c.h.b16 %v2013
    %v3688 = vunpack.c.l.b16 %v2014
    %v3689 = vunpack.c.h.b16 %v2014
    %v3690 = vunpack.c.l.b16 %v2015
    %v3691 = vunpack.c.h.b16 %v2015
    %v3692 = vunpack.c.l.b16 %v2016
    %v3693 = vunpack.c.h.b16 %v2016
    %v3694 = vunpack.c.l.b16 %v2017
    %v3695 = vunpack.c.h.b16 %v2017
    %v3696 = vunpack.c.l.b16 %v2018
    %v3697 = vunpack.c.h.b16 %v2018
    %v3698 = vunpack.c.l.b16 %v2019
    %v3699 = vunpack.c.h.b16 %v2019
    %v3700 = vunpack.c.l.b16 %v2020
    %v3701 = vunpack.c.h.b16 %v2020
    %v3702 = vunpack.c.l.b16 %v2021
    %v3703 = vunpack.c.h.b16 %v2021
    %v3704 = vunpack.c.l.b16 %v2022
    %v3705 = vunpack.c.h.b16 %v2022
    %v3706 = vunpack.c.l.b16 %v2023
    %v3707 = vunpack.c.h.b16 %v2023
    %v3708 = vunpack.c.l.b16 %v2024
    %v3709 = vunpack.c.h.b16 %v2024
    %v3710 = vunpack.c.l.b16 %v2025
    %v3711 = vunpack.c.h.b16 %v2025
    %v3712 = vunpack.c.l.b16 %v2026
    %v3713 = vunpack.c.h.b16 %v2026
    %v3714 = vunpack.c.l.b16 %v2027
    %v3715 = vunpack.c.h.b16 %v2027
    %v3716 = vunpack.c.l.b16 %v2028
    %v3717 = vunpack.c.h.b16 %v2028
    %v3718 = vunpack.c.l.b16 %v2029
    %v3719 = vunpack.c.h.b16 %v2029
    %v3720 = vunpack.c.l.b16 %v2030
    %v3721 = vunpack.c.h.b16 %v2030
    %v3722 = vunpack.c.l.b16 %v2031
    %v3723 = vunpack.c.h.b16 %v2031
    %v3724 = vunpack.c.l.b16 %v2032
    %v3725 = vunpack.c.h.b16 %v2032
    %v3726 = vunpack.c.l.b16 %v2033
    %v3727 = vunpack.c.h.b16 %v2033
    %v3728 = vunpack.c.l.b16 %v2034
    %v3729 = vunpack.c.h.b16 %v2034
    %v3730 = vunpack.c.l.b16 %v2035
    %v3731 = vunpack.c.h.b16 %v2035
    %v3732 = vunpack.c.l.b16 %v2036
    %v3733 = vunpack.c.h.b16 %v2036
    %v3734 = vunpack.c.l.b16 %v2037
    %v3735 = vunpack.c.h.b16 %v2037
    %v3736 = vunpack.c.l.b16 %v2038
    %v3737 = vunpack.c.h.b16 %v2038
    %v3738 = vunpack.c.l.b16 %v2039
    %v3739 = vunpack.c.h.b16 %v2039
    %v3740 = vunpack.c.l.b16 %v2040
    %v3741 = vunpack.c.h.b16 %v2040
    %v3742 = vunpack.c.l.b16 %v2041
    %v3743 = vunpack.c.h.b16 %v2041
    %v3744 = vunpack.c.l.b16 %v2042
    %v3745 = vunpack.c.h.b16 %v2042
    %v3746 = vunpack.c.l.b16 %v2043
    %v3747 = vunpack.c.h.b16 %v2043
    %v3748 = vunpack.c.l.b16 %v2044
    %v3749 = vunpack.c.h.b16 %v2044
    %v3750 = vunpack.c.l.b16 %v2045
    %v3751 = vunpack.c.h.b16 %v2045
    %v3752 = vunpack.c.l.b16 %v2046
    %v3753 = vunpack.c.h.b16 %v2046
    %v3754 = vunpack.c.l.b16 %v2047
    %v3755 = vunpack.c.h.b16 %v2047
    %v3756 = vunpack.c.l.b16 %v2048
    %v3757 = vunpack.c.h.b16 %v2048
    %v3758 = vunpack.c.l.b16 %v2049
    %v3759 = vunpack.c.h.b16 %v2049
    %v3760 = vunpack.c.l.b16 %v2050
    %v3761 = vunpack.c.h.b16 %v2050
    %v3762 = vunpack.c.l.b16 %v2051
    %v3763 = vunpack.c.h.b16 %v2051
    %v3764 = vunpack.c.l.b16 %v2052
    %v3765 = vunpack.c.h.b16 %v2052
    %v3766 = vunpack.c.l.b16 %v2053
    %v3767 = vunpack.c.h.b16 %v2053
    %v3768 = vunpack.c.l.b16 %v2054
    %v3769 = vunpack.c.h.b16 %v2054
    %v3770 = vunpack.c.l.b16 %v2055
    %v3771 = vunpack.c.h.b16 %v2055
    %v3772 = vunpack.c.l.b16 %v2056
    %v3773 = vunpack.c.h.b16 %v2056
    %v3774 = vunpack.c.l.b16 %v2057
    %v3775 = vunpack.c.h.b16 %v2057
    %v3776 = vunpack.c.l.b16 %v2058
    %v3777 = vunpack.c.h.b16 %v2058
    %v3778 = vunpack.c.l.b16 %v2059
    %v3779 = vunpack.c.h.b16 %v2059
    %v3780 = vunpack.c.l.b16 %v2060
    %v3781 = vunpack.c.h.b16 %v2060
    %v3782 = vunpack.c.l.b16 %v2061
    %v3783 = vunpack.c.h.b16 %v2061
    %v3784 = vunpack.c.l.b16 %v2062
    %v3785 = vunpack.c.h.b16 %v2062
    %v3786 = vunpack.c.l.b16 %v2063
    %v3787 = vunpack.c.h.b16 %v2063
    %v3788 = vunpack.c.l.b16 %v2064
    %v3789 = vunpack.c.h.b16 %v2064
    %v3790 = vunpack.c.l.b16 %v2065
    %v3791 = vunpack.c.h.b16 %v2065
    %v3792 = vunpack.c.l.b16 %v2066
    %v3793 = vunpack.c.h.b16 %v2066
    %v3794 = vunpack.c.l.b16 %v2067
    %v3795 = vunpack.c.h.b16 %v2067
    %v3796 = vunpack.c.l.b16 %v2068
    %v3797 = vunpack.c.h.b16 %v2068
    %v3798 = vunpack.c.l.b16 %v2069
    %v3799 = vunpack.c.h.b16 %v2069
    %v3800 = vunpack.c.l.b16 %v2070
    %v3801 = vunpack.c.h.b16 %v2070
    %v3802 = vunpack.c.l.b16 %v2071
    %v3803 = vunpack.c.h.b16 %v2071
    %v3804 = vunpack.c.l.b16 %v2072
    %v3805 = vunpack.c.h.b16 %v2072
    %v3806 = vunpack.c.l.b16 %v2073
    %v3807 = vunpack.c.h.b16 %v2073
    %v3808 = vunpack.c.l.b16 %v2074
    %v3809 = vunpack.c.h.b16 %v2074
    %v3810 = vunpack.c.l.b16 %v2075
    %v3811 = vunpack.c.h.b16 %v2075
    %v3812 = vunpack.c.l.b16 %v2076
    %v3813 = vunpack.c.h.b16 %v2076
    %v3814 = vunpack.c.l.b16 %v2077
    %v3815 = vunpack.c.h.b16 %v2077
    %v3816 = vunpack.c.l.b16 %v2078
    %v3817 = vunpack.c.h.b16 %v2078
    %v3818 = vunpack.c.l.b16 %v2079
    %v3819 = vunpack.c.h.b16 %v2079
    %v3820 = vunpack.c.l.b16 %v2080
    %v3821 = vunpack.c.h.b16 %v2080
    %v3822 = vunpack.c.l.b16 %v2081
    %v3823 = vunpack.c.h.b16 %v2081
    %v3824 = vunpack.c.l.b16 %v2082
    %v3825 = vunpack.c.h.b16 %v2082
    %v3826 = vunpack.c.l.b16 %v2083
    %v3827 = vunpack.c.h.b16 %v2083
    %v3828 = vunpack.c.l.b16 %v2084
    %v3829 = vunpack.c.h.b16 %v2084
    %v3830 = vunpack.c.l.b16 %v2085
    %v3831 = vunpack.c.h.b16 %v2085
    %v3832 = vunpack.c.l.b16 %v2086
    %v3833 = vunpack.c.h.b16 %v2086
    %v3834 = vunpack.c.l.b16 %v2087
    %v3835 = vunpack.c.h.b16 %v2087
    %v3836 = vunpack.c.l.b16 %v2088
    %v3837 = vunpack.c.h.b16 %v2088
    %v3838 = vunpack.c.l.b16 %v2089
    %v3839 = vunpack.c.h.b16 %v2089
    %v3840 = vunpack.c.l.b16 %v2090
    %v3841 = vunpack.c.h.b16 %v2090
    %v3842 = vunpack.c.l.b16 %v2091
    %v3843 = vunpack.c.h.b16 %v2091
    %v3844 = vunpack.c.l.b16 %v2092
    %v3845 = vunpack.c.h.b16 %v2092
    %v3846 = vunpack.c.l.b16 %v2093
    %v3847 = vunpack.c.h.b16 %v2093
    %v3848 = vunpack.c.l.b16 %v2094
    %v3849 = vunpack.c.h.b16 %v2094
    %v3850 = vunpack.c.l.b16 %v2095
    %v3851 = vunpack.c.h.b16 %v2095
    %v3852 = vunpack.c.l.b16 %v2096
    %v3853 = vunpack.c.h.b16 %v2096
    %v3854 = vunpack.c.l.b16 %v2097
    %v3855 = vunpack.c.h.b16 %v2097
    %v3856 = vunpack.c.l.b16 %v2098
    %v3857 = vunpack.c.h.b16 %v2098
    %v3858 = vunpack.c.l.b16 %v2099
    %v3859 = vunpack.c.h.b16 %v2099
    %v3860 = vunpack.c.l.b16 %v2100
    %v3861 = vunpack.c.h.b16 %v2100
    %v3862 = vunpack.c.l.b16 %v2101
    %v3863 = vunpack.c.h.b16 %v2101
    %v3864 = vunpack.c.l.b16 %v2102
    %v3865 = vunpack.c.h.b16 %v2102
    %v3866 = vunpack.c.l.b16 %v2103
    %v3867 = vunpack.c.h.b16 %v2103
    %v3868 = vunpack.c.l.b16 %v2104
    %v3869 = vunpack.c.h.b16 %v2104
    %v3870 = vunpack.c.l.b16 %v2105
    %v3871 = vunpack.c.h.b16 %v2105
    %v3872 = vunpack.c.l.b16 %v2106
    %v3873 = vunpack.c.h.b16 %v2106
    %v3874 = vunpack.c.l.b16 %v2107
    %v3875 = vunpack.c.h.b16 %v2107
    %v3876 = vunpack.c.l.b16 %v2108
    %v3877 = vunpack.c.h.b16 %v2108
    %v3878 = vunpack.c.l.b16 %v2109
    %v3879 = vunpack.c.h.b16 %v2109
    %v3880 = vunpack.c.l.b16 %v2110
    %v3881 = vunpack.c.h.b16 %v2110
    %v3882 = vunpack.c.l.b16 %v2111
    %v3883 = vunpack.c.h.b16 %v2111
    %v3884 = vunpack.c.l.b16 %v2112
    %v3885 = vunpack.c.h.b16 %v2112
    %v3886 = vunpack.c.l.b16 %v2113
    %v3887 = vunpack.c.h.b16 %v2113
    %v3888 = vunpack.c.l.b16 %v2114
    %v3889 = vunpack.c.h.b16 %v2114
    %v3890 = vunpack.c.l.b16 %v2115
    %v3891 = vunpack.c.h.b16 %v2115
    %v3892 = vunpack.c.l.b16 %v2116
    %v3893 = vunpack.c.h.b16 %v2116
    %v3894 = vunpack.c.l.b16 %v2117
    %v3895 = vunpack.c.h.b16 %v2117
    %v3896 = vunpack.c.l.b16 %v2118
    %v3897 = vunpack.c.h.b16 %v2118
    %v3898 = vunpack.c.l.b16 %v2119
    %v3899 = vunpack.c.h.b16 %v2119
    %v3900 = vunpack.c.l.b16 %v2120
    %v3901 = vunpack.c.h.b16 %v2120
    %v3902 = vunpack.c.l.b16 %v2121
    %v3903 = vunpack.c.h.b16 %v2121
    %v3904 = vunpack.c.l.b16 %v2122
    %v3905 = vunpack.c.h.b16 %v2122
    %v3906 = vunpack.c.l.b16 %v2123
    %v3907 = vunpack.c.h.b16 %v2123
    %v3908 = vunpack.c.l.b16 %v2124
    %v3909 = vunpack.c.h.b16 %v2124
    %v3910 = vunpack.c.l.b16 %v2125
    %v3911 = vunpack.c.h.b16 %v2125
    %v3912 = vunpack.c.l.b16 %v2126
    %v3913 = vunpack.c.h.b16 %v2126
    %v3914 = vunpack.c.l.b16 %v2127
    %v3915 = vunpack.c.h.b16 %v2127
    %v3916 = vunpack.c.l.b16 %v2128
    %v3917 = vunpack.c.h.b16 %v2128
    %v3918 = vunpack.c.l.b16 %v2129
    %v3919 = vunpack.c.h.b16 %v2129
    %v3920 = vunpack.c.l.b16 %v2130
    %v3921 = vunpack.c.h.b16 %v2130
    %v3922 = vunpack.c.l.b16 %v2131
    %v3923 = vunpack.c.h.b16 %v2131
    %v3924 = vunpack.c.l.b16 %v2132
    %v3925 = vunpack.c.h.b16 %v2132
    %v3926 = vunpack.c.l.b16 %v2133
    %v3927 = vunpack.c.h.b16 %v2133
    %v3928 = vunpack.c.l.b16 %v2134
    %v3929 = vunpack.c.h.b16 %v2134
    %v3930 = vunpack.c.l.b16 %v2135
    %v3931 = vunpack.c.h.b16 %v2135
    %v3932 = vunpack.c.l.b16 %v2136
    %v3933 = vunpack.c.h.b16 %v2136
    %v3934 = vunpack.c.l.b16 %v2137
    %v3935 = vunpack.c.h.b16 %v2137
    %v3936 = vunpack.c.l.b16 %v2138
    %v3937 = vunpack.c.h.b16 %v2138
    %v3938 = vunpack.c.l.b16 %v2139
    %v3939 = vunpack.c.h.b16 %v2139
    %v3940 = vunpack.c.l.b16 %v2140
    %v3941 = vunpack.c.h.b16 %v2140
    %v3942 = vunpack.c.l.b16 %v2141
    %v3943 = vunpack.c.h.b16 %v2141
    %v3944 = vunpack.c.l.b16 %v2142
    %v3945 = vunpack.c.h.b16 %v2142
    %v3946 = vunpack.c.l.b16 %v2143
    %v3947 = vunpack.c.h.b16 %v2143
    %v3948 = vunpack.c.l.b16 %v2144
    %v3949 = vunpack.c.h.b16 %v2144
    %v3950 = vunpack.c.l.b16 %v2145
    %v3951 = vunpack.c.h.b16 %v2145
    %v3952 = vunpack.c.l.b16 %v2146
    %v3953 = vunpack.c.h.b16 %v2146
    %v3954 = vunpack.c.l.b16 %v2147
    %v3955 = vunpack.c.h.b16 %v2147
    %v3956 = vunpack.c.l.b16 %v2148
    %v3957 = vunpack.c.h.b16 %v2148
    %v3958 = vunpack.c.l.b16 %v2149
    %v3959 = vunpack.c.h.b16 %v2149
    %v3960 = vunpack.c.l.b16 %v2150
    %v3961 = vunpack.c.h.b16 %v2150
    %v3962 = vunpack.c.l.b16 %v2151
    %v3963 = vunpack.c.h.b16 %v2151
    %v3964 = vunpack.c.l.b16 %v2152
    %v3965 = vunpack.c.h.b16 %v2152
    %v3966 = vunpack.c.l.b16 %v2153
    %v3967 = vunpack.c.h.b16 %v2153
    %v3968 = vunpack.c.l.b16 %v2154
    %v3969 = vunpack.c.h.b16 %v2154
    %v3970 = vunpack.c.l.b16 %v2155
    %v3971 = vunpack.c.h.b16 %v2155
    %v3972 = vunpack.c.l.b16 %v2156
    %v3973 = vunpack.c.h.b16 %v2156
    %v3974 = vunpack.c.l.b16 %v2157
    %v3975 = vunpack.c.h.b16 %v2157
    %v3976 = vunpack.c.l.b16 %v2158
    %v3977 = vunpack.c.h.b16 %v2158
    %v3978 = vunpack.c.l.b16 %v2159
    %v3979 = vunpack.c.h.b16 %v2159
    %v3980 = vunpack.c.l.b16 %v2160
    %v3981 = vunpack.c.h.b16 %v2160
    %v3982 = vunpack.c.l.b16 %v2161
    %v3983 = vunpack.c.h.b16 %v2161
    %v3984 = vunpack.c.l.b16 %v2162
    %v3985 = vunpack.c.h.b16 %v2162
    %v3986 = vunpack.c.l.b16 %v2163
    %v3987 = vunpack.c.h.b16 %v2163
    %v3988 = vunpack.c.l.b16 %v2164
    %v3989 = vunpack.c.h.b16 %v2164
    %v3990 = vunpack.c.l.b16 %v2165
    %v3991 = vunpack.c.h.b16 %v2165
    %v3992 = vunpack.c.l.b16 %v2166
    %v3993 = vunpack.c.h.b16 %v2166
    %v3994 = vunpack.c.l.b16 %v2167
    %v3995 = vunpack.c.h.b16 %v2167
    %v3996 = vunpack.c.l.b16 %v2168
    %v3997 = vunpack.c.h.b16 %v2168
    %v3998 = vunpack.c.l.b16 %v2169
    %v3999 = vunpack.c.h.b16 %v2169
    %v4000 = vunpack.c.l.b16 %v2170
    %v4001 = vunpack.c.h.b16 %v2170
    %v4002 = vunpack.c.l.b16 %v2171
    %v4003 = vunpack.c.h.b16 %v2171
    %v4004 = vunpack.c.l.b16 %v2172
    %v4005 = vunpack.c.h.b16 %v2172
    %v4006 = vunpack.c.l.b16 %v2173
    %v4007 = vunpack.c.h.b16 %v2173
    %v4008 = vunpack.c.l.b16 %v2174
    %v4009 = vunpack.c.h.b16 %v2174
    %v4010 = vunpack.c.l.b16 %v2175
    %v4011 = vunpack.c.h.b16 %v2175
    %v4012 = vunpack.c.l.b16 %v2176
    %v4013 = vunpack.c.h.b16 %v2176
    %v4014 = vunpack.c.l.b16 %v2177
    %v4015 = vunpack.c.h.b16 %v2177
    %v4016 = vunpack.c.l.b16 %v2178
    %v4017 = vunpack.c.h.b16 %v2178
    %v4018 = vunpack.c.l.b16 %v2179
    %v4019 = vunpack.c.h.b16 %v2179
    %v4020 = vunpack.c.l.b16 %v2180
    %v4021 = vunpack.c.h.b16 %v2180
    %v4022 = vunpack.c.l.b16 %v2181
    %v4023 = vunpack.c.h.b16 %v2181
    %v4024 = vunpack.c.l.b16 %v2182
    %v4025 = vunpack.c.h.b16 %v2182
    %v4026 = vunpack.c.l.b16 %v2183
    %v4027 = vunpack.c.h.b16 %v2183
    %v4028 = vunpack.c.l.b16 %v2184
    %v4029 = vunpack.c.h.b16 %v2184
    %v4030 = vunpack.c.l.b16 %v2185
    %v4031 = vunpack.c.h.b16 %v2185
    %v4032 = vunpack.c.l.b16 %v2186
    %v4033 = vunpack.c.h.b16 %v2186
    %v4034 = vunpack.c.l.b16 %v2187
    %v4035 = vunpack.c.h.b16 %v2187
    %v4036 = vunpack.c.l.b16 %v2188
    %v4037 = vunpack.c.h.b16 %v2188
    %v4038 = vunpack.c.l.b16 %v2189
    %v4039 = vunpack.c.h.b16 %v2189
    %v4040 = vunpack.c.l.b16 %v2190
    %v4041 = vunpack.c.h.b16 %v2190
    %v4042 = vunpack.c.l.b16 %v2191
    %v4043 = vunpack.c.h.b16 %v2191
    %v4044 = vunpack.c.l.b16 %v2192
    %v4045 = vunpack.c.h.b16 %v2192
    %v4046 = vunpack.c.l.b16 %v2193
    %v4047 = vunpack.c.h.b16 %v2193
    %v4048 = vunpack.c.l.b16 %v2194
    %v4049 = vunpack.c.h.b16 %v2194
    %v4050 = vunpack.c.l.b16 %v2195
    %v4051 = vunpack.c.h.b16 %v2195
    %v4052 = vunpack.c.l.b16 %v2196
    %v4053 = vunpack.c.h.b16 %v2196
    %v4054 = vunpack.c.l.b16 %v2197
    %v4055 = vunpack.c.h.b16 %v2197
    %v4056 = vunpack.c.l.b16 %v2198
    %v4057 = vunpack.c.h.b16 %v2198
    %v4058 = vunpack.c.l.b16 %v2199
    %v4059 = vunpack.c.h.b16 %v2199
    %v4060 = vunpack.c.l.b16 %v2200
    %v4061 = vunpack.c.h.b16 %v2200
    %v4062 = vunpack.c.l.b16 %v2201
    %v4063 = vunpack.c.h.b16 %v2201
    %v4064 = vunpack.c.l.b16 %v2202
    %v4065 = vunpack.c.h.b16 %v2202
    %v4066 = vunpack.c.l.b16 %v2203
    %v4067 = vunpack.c.h.b16 %v2203
    %v4068 = vunpack.c.l.b16 %v2204
    %v4069 = vunpack.c.h.b16 %v2204
    %v4070 = vunpack.c.l.b16 %v2205
    %v4071 = vunpack.c.h.b16 %v2205
    %v4072 = vunpack.c.l.b16 %v2206
    %v4073 = vunpack.c.h.b16 %v2206
    %v4074 = vunpack.c.l.b16 %v2207
    %v4075 = vunpack.c.h.b16 %v2207
    %v4076 = vunpack.c.l.b16 %v2208
    %v4077 = vunpack.c.h.b16 %v2208
    %v4078 = vunpack.c.l.b16 %v2209
    %v4079 = vunpack.c.h.b16 %v2209
    %v4080 = vunpack.c.l.b16 %v2210
    %v4081 = vunpack.c.h.b16 %v2210
    %v4082 = vunpack.c.l.b16 %v2211
    %v4083 = vunpack.c.h.b16 %v2211
    %v4084 = vunpack.c.l.b16 %v2212
    %v4085 = vunpack.c.h.b16 %v2212
    %v4086 = vunpack.c.l.b16 %v2213
    %v4087 = vunpack.c.h.b16 %v2213
    %v4088 = vunpack.c.l.b16 %v2214
    %v4089 = vunpack.c.h.b16 %v2214
    %v4090 = vunpack.c.l.b16 %v2215
    %v4091 = vunpack.c.h.b16 %v2215
    %v4092 = vunpack.c.l.b16 %v2216
    %v4093 = vunpack.c.h.b16 %v2216
    %v4094 = vunpack.c.l.b16 %v2217
    %v4095 = vunpack.c.h.b16 %v2217
    %v4096 = vunpack.c.l.b16 %v2218
    %v4097 = vunpack.c.h.b16 %v2218
    %v4098 = vunpack.c.l.b16 %v2219
    %v4099 = vunpack.c.h.b16 %v2219
    %v4100 = vunpack.c.l.b16 %v2220
    %v4101 = vunpack.c.h.b16 %v2220
    %v4102 = vunpack.c.l.b16 %v2221
    %v4103 = vunpack.c.h.b16 %v2221
    %v4104 = vunpack.c.l.b16 %v2222
    %v4105 = vunpack.c.h.b16 %v2222
    %v4106 = vunpack.c.l.b16 %v2223
    %v4107 = vunpack.c.h.b16 %v2223
    %v4108 = vunpack.c.l.b16 %v2224
    %v4109 = vunpack.c.h.b16 %v2224
    %v4110 = vunpack.c.l.b16 %v2225
    %v4111 = vunpack.c.h.b16 %v2225
    %v4112 = vunpack.c.l.b16 %v2226
    %v4113 = vunpack.c.h.b16 %v2226
    %v4114 = vunpack.c.l.b16 %v2227
    %v4115 = vunpack.c.h.b16 %v2227
    %v4116 = vunpack.c.l.b16 %v2228
    %v4117 = vunpack.c.h.b16 %v2228
    %v4118 = vunpack.c.l.b16 %v2229
    %v4119 = vunpack.c.h.b16 %v2229
    %v4120 = vunpack.c.l.b16 %v2230
    %v4121 = vunpack.c.h.b16 %v2230
    %v4122 = vunpack.c.l.b16 %v2231
    %v4123 = vunpack.c.h.b16 %v2231
    %v4124 = vunpack.c.l.b16 %v2232
    %v4125 = vunpack.c.h.b16 %v2232
    %v4126 = vunpack.c.l.b16 %v2233
    %v4127 = vunpack.c.h.b16 %v2233
    %v4128 = vunpack.c.l.b16 %v2234
    %v4129 = vunpack.c.h.b16 %v2234
    %v4130 = vunpack.c.l.b16 %v2235
    %v4131 = vunpack.c.h.b16 %v2235
    %v4132 = vunpack.c.l.b16 %v2236
    %v4133 = vunpack.c.h.b16 %v2236
    %v4134 = vunpack.c.l.b16 %v2237
    %v4135 = vunpack.c.h.b16 %v2237
    %v4136 = vunpack.c.l.b16 %v2238
    %v4137 = vunpack.c.h.b16 %v2238
    %v4138 = vunpack.c.l.b16 %v2239
    %v4139 = vunpack.c.h.b16 %v2239
    %v4140 = vunpack.c.l.b16 %v2240
    %v4141 = vunpack.c.h.b16 %v2240
    %v4142 = vunpack.c.l.b16 %v2241
    %v4143 = vunpack.c.h.b16 %v2241
    %v4144 = vunpack.c.l.b16 %v2242
    %v4145 = vunpack.c.h.b16 %v2242
    %v4146 = vunpack.c.l.b16 %v2243
    %v4147 = vunpack.c.h.b16 %v2243
    %v4148 = vunpack.c.l.b16 %v2244
    %v4149 = vunpack.c.h.b16 %v2244
    %v4150 = vunpack.c.l.b16 %v2245
    %v4151 = vunpack.c.h.b16 %v2245
    %v4152 = vunpack.c.l.b16 %v2246
    %v4153 = vunpack.c.h.b16 %v2246
    %v4154 = vunpack.c.l.b16 %v2247
    %v4155 = vunpack.c.h.b16 %v2247
    %v4156 = vunpack.c.l.b16 %v2248
    %v4157 = vunpack.c.h.b16 %v2248
    %v4158 = vunpack.c.l.b16 %v2249
    %v4159 = vunpack.c.h.b16 %v2249
    %v4160 = vunpack.c.l.b16 %v2250
    %v4161 = vunpack.c.h.b16 %v2250
    %v4162 = vunpack.c.l.b16 %v2251
    %v4163 = vunpack.c.h.b16 %v2251
    %v4164 = vunpack.c.l.b16 %v2252
    %v4165 = vunpack.c.h.b16 %v2252
    %v4166 = vunpack.c.l.b16 %v2253
    %v4167 = vunpack.c.h.b16 %v2253
    %v4168 = vunpack.c.l.b16 %v2254
    %v4169 = vunpack.c.h.b16 %v2254
    %v4170 = vunpack.c.l.b16 %v2255
    %v4171 = vunpack.c.h.b16 %v2255
    %v4172 = vunpack.c.l.b16 %v2256
    %v4173 = vunpack.c.h.b16 %v2256
    %v4174 = vunpack.c.l.b16 %v2257
    %v4175 = vunpack.c.h.b16 %v2257
    %v4176 = vunpack.c.l.b16 %v2258
    %v4177 = vunpack.c.h.b16 %v2258
    %v4178 = vunpack.c.l.b16 %v2259
    %v4179 = vunpack.c.h.b16 %v2259
    %v4180 = vunpack.c.l.b16 %v2260
    %v4181 = vunpack.c.h.b16 %v2260
    %v4182 = vunpack.c.l.b16 %v2261
    %v4183 = vunpack.c.h.b16 %v2261
    %v4184 = vunpack.c.l.b16 %v2262
    %v4185 = vunpack.c.h.b16 %v2262
    %v4186 = vunpack.c.l.b16 %v2263
    %v4187 = vunpack.c.h.b16 %v2263
    %v4188 = vunpack.c.l.b16 %v2264
    %v4189 = vunpack.c.h.b16 %v2264
    %v4190 = vunpack.c.l.b16 %v2265
    %v4191 = vunpack.c.h.b16 %v2265
    %v4192 = vunpack.c.l.b16 %v2266
    %v4193 = vunpack.c.h.b16 %v2266
    %v4194 = vunpack.c.l.b16 %v2267
    %v4195 = vunpack.c.h.b16 %v2267
    %v4196 = vunpack.c.l.b16 %v2268
    %v4197 = vunpack.c.h.b16 %v2268
    %v4198 = vunpack.c.l.b16 %v2269
    %v4199 = vunpack.c.h.b16 %v2269
    %v4200 = vunpack.c.l.b16 %v2270
    %v4201 = vunpack.c.h.b16 %v2270
    %v4202 = vunpack.c.l.b16 %v2271
    %v4203 = vunpack.c.h.b16 %v2271
    %v4204 = vunpack.c.l.b16 %v2272
    %v4205 = vunpack.c.h.b16 %v2272
    %v4206 = vunpack.c.l.b16 %v2273
    %v4207 = vunpack.c.h.b16 %v2273
    %v4208 = vunpack.c.l.b16 %v2274
    %v4209 = vunpack.c.h.b16 %v2274
    %v4210 = vunpack.c.l.b16 %v2275
    %v4211 = vunpack.c.h.b16 %v2275
    %v4212 = vunpack.c.l.b16 %v2276
    %v4213 = vunpack.c.h.b16 %v2276
    %v4214 = vunpack.c.l.b16 %v2277
    %v4215 = vunpack.c.h.b16 %v2277
    %v4216 = vunpack.c.l.b16 %v2278
    %v4217 = vunpack.c.h.b16 %v2278
    %v4218 = vunpack.c.l.b16 %v2279
    %v4219 = vunpack.c.h.b16 %v2279
    %v4220 = vunpack.c.l.b16 %v2280
    %v4221 = vunpack.c.h.b16 %v2280
    %v4222 = vunpack.c.l.b16 %v2281
    %v4223 = vunpack.c.h.b16 %v2281
    %v4224 = vunpack.c.l.b16 %v2282
    %v4225 = vunpack.c.h.b16 %v2282
    %v4226 = vunpack.c.l.b16 %v2283
    %v4227 = vunpack.c.h.b16 %v2283
    %v4228 = vunpack.c.l.b16 %v2284
    %v4229 = vunpack.c.h.b16 %v2284
    %v4230 = vunpack.c.l.b16 %v2285
    %v4231 = vunpack.c.h.b16 %v2285
    %v4232 = vunpack.c.l.b16 %v2286
    %v4233 = vunpack.c.h.b16 %v2286
    %v4234 = vunpack.c.l.b16 %v2287
    %v4235 = vunpack.c.h.b16 %v2287
    %v4236 = vunpack.c.l.b16 %v2288
    %v4237 = vunpack.c.h.b16 %v2288
    %v4238 = vunpack.c.l.b16 %v2289
    %v4239 = vunpack.c.h.b16 %v2289
    %v4240 = vunpack.c.l.b16 %v2290
    %v4241 = vunpack.c.h.b16 %v2290
    %v4242 = vunpack.c.l.b16 %v2291
    %v4243 = vunpack.c.h.b16 %v2291
    %v4244 = vunpack.c.l.b16 %v2292
    %v4245 = vunpack.c.h.b16 %v2292
    %v4246 = vunpack.c.l.b16 %v2293
    %v4247 = vunpack.c.h.b16 %v2293
    %v4248 = vunpack.c.l.b16 %v2294
    %v4249 = vunpack.c.h.b16 %v2294
    %v4250 = vunpack.c.l.b16 %v2295
    %v4251 = vunpack.c.h.b16 %v2295
    %v4252 = vunpack.c.l.b16 %v2296
    %v4253 = vunpack.c.h.b16 %v2296
    %v4254 = vunpack.c.l.b16 %v2297
    %v4255 = vunpack.c.h.b16 %v2297
    %v4256 = vunpack.c.l.b16 %v2298
    %v4257 = vunpack.c.h.b16 %v2298
    %v4258 = vunpack.c.l.b16 %v2299
    %v4259 = vunpack.c.h.b16 %v2299
    %v4260 = vunpack.c.l.b16 %v2300
    %v4261 = vunpack.c.h.b16 %v2300
    %v4262 = vunpack.c.l.b16 %v2301
    %v4263 = vunpack.c.h.b16 %v2301
    %v4264 = vunpack.c.l.b16 %v2302
    %v4265 = vunpack.c.h.b16 %v2302
    %v4266 = vunpack.c.l.b16 %v2303
    %v4267 = vunpack.c.h.b16 %v2303
    %v4268 = vunpack.c.l.b16 %v2304
    %v4269 = vunpack.c.h.b16 %v2304
    %v4270 = vunpack.c.l.b16 %v2305
    %v4271 = vunpack.c.h.b16 %v2305
    %v4272 = vunpack.c.l.b16 %v2306
    %v4273 = vunpack.c.h.b16 %v2306
    %v4274 = vunpack.c.l.b16 %v2307
    %v4275 = vunpack.c.h.b16 %v2307
    %v4276 = vunpack.c.l.b16 %v2308
    %v4277 = vunpack.c.h.b16 %v2308
    %v4278 = vunpack.c.l.b16 %v2309
    %v4279 = vunpack.c.h.b16 %v2309
    %v4280 = vunpack.c.l.b16 %v2310
    %v4281 = vunpack.c.h.b16 %v2310
    %v4282 = vunpack.c.l.b16 %v2311
    %v4283 = vunpack.c.h.b16 %v2311
    %v4284 = vunpack.c.l.b16 %v2312
    %v4285 = vunpack.c.h.b16 %v2312
    %v4286 = vunpack.c.l.b16 %v2313
    %v4287 = vunpack.c.h.b16 %v2313
    %v4288 = vunpack.c.l.b16 %v2314
    %v4289 = vunpack.c.h.b16 %v2314
    %v4290 = vunpack.c.l.b16 %v2315
    %v4291 = vunpack.c.h.b16 %v2315
    %v4292 = vunpack.c.l.b16 %v2316
    %v4293 = vunpack.c.h.b16 %v2316
    %v4294 = vunpack.c.l.b16 %v2317
    %v4295 = vunpack.c.h.b16 %v2317
    %v4296 = vunpack.c.l.b16 %v2318
    %v4297 = vunpack.c.h.b16 %v2318
    %v4298 = vunpack.c.l.b16 %v2319
    %v4299 = vunpack.c.h.b16 %v2319
    %v4300 = vunpack.c.l.b16 %v2320
    %v4301 = vunpack.c.h.b16 %v2320
    %v4302 = vunpack.c.l.b16 %v2321
    %v4303 = vunpack.c.h.b16 %v2321
    %v4304 = vunpack.c.l.b16 %v2322
    %v4305 = vunpack.c.h.b16 %v2322
    %v4306 = vunpack.c.l.b16 %v2323
    %v4307 = vunpack.c.h.b16 %v2323
    %v4308 = vunpack.c.l.b16 %v2324
    %v4309 = vunpack.c.h.b16 %v2324
    %v4310 = vunpack.c.l.b16 %v2325
    %v4311 = vunpack.c.h.b16 %v2325
    %v4312 = vunpack.c.l.b16 %v2326
    %v4313 = vunpack.c.h.b16 %v2326
    %v4314 = vunpack.c.l.b16 %v2327
    %v4315 = vunpack.c.h.b16 %v2327
    %v4316 = vunpack.c.l.b16 %v2328
    %v4317 = vunpack.c.h.b16 %v2328
    %v4318 = vunpack.c.l.b16 %v2329
    %v4319 = vunpack.c.h.b16 %v2329
    %v4320 = vunpack.c.l.b16 %v2330
    %v4321 = vunpack.c.h.b16 %v2330
    %v4322 = vunpack.c.l.b16 %v2331
    %v4323 = vunpack.c.h.b16 %v2331
    %v4324 = vunpack.c.l.b16 %v2332
    %v4325 = vunpack.c.h.b16 %v2332
    %v4326 = vunpack.c.l.b16 %v2333
    %v4327 = vunpack.c.h.b16 %v2333
    %v4328 = vunpack.c.l.b16 %v2334
    %v4329 = vunpack.c.h.b16 %v2334
    %v4330 = vunpack.c.l.b16 %v2335
    %v4331 = vunpack.c.h.b16 %v2335
    %v4332 = vunpack.c.l.b16 %v2336
    %v4333 = vunpack.c.h.b16 %v2336
    %v4334 = vunpack.c.l.b16 %v2337
    %v4335 = vunpack.c.h.b16 %v2337
    %v4336 = vunpack.c.l.b16 %v2338
    %v4337 = vunpack.c.h.b16 %v2338
    %v4338 = vunpack.c.l.b16 %v2339
    %v4339 = vunpack.c.h.b16 %v2339
    %v4340 = vunpack.c.l.b16 %v2340
    %v4341 = vunpack.c.h.b16 %v2340
    %v4342 = vunpack.c.l.b16 %v2341
    %v4343 = vunpack.c.h.b16 %v2341
    %v4344 = vunpack.c.l.b16 %v2342
    %v4345 = vunpack.c.h.b16 %v2342
    %v4346 = vunpack.c.l.b16 %v2343
    %v4347 = vunpack.c.h.b16 %v2343
    %v4348 = vunpack.c.l.b16 %v2344
    %v4349 = vunpack.c.h.b16 %v2344
    %v4350 = vunpack.c.l.b16 %v2345
    %v4351 = vunpack.c.h.b16 %v2345
    %v4352 = vunpack.c.l.b16 %v2346
    %v4353 = vunpack.c.h.b16 %v2346
    %v4354 = vunpack.c.l.b16 %v2347
    %v4355 = vunpack.c.h.b16 %v2347
    %v4356 = vunpack.c.l.b16 %v2348
    %v4357 = vunpack.c.h.b16 %v2348
    %v4358 = vunpack.c.l.b16 %v2349
    %v4359 = vunpack.c.h.b16 %v2349
    %v4360 = vunpack.c.l.b16 %v2350
    %v4361 = vunpack.c.h.b16 %v2350
    %v4362 = vunpack.c.l.b16 %v2351
    %v4363 = vunpack.c.h.b16 %v2351
    %v4364 = vunpack.c.l.b16 %v2352
    %v4365 = vunpack.c.h.b16 %v2352
    %v4366 = vunpack.c.l.b16 %v2353
    %v4367 = vunpack.c.h.b16 %v2353
    %v4368 = vunpack.c.l.b16 %v2354
    %v4369 = vunpack.c.h.b16 %v2354
    %v4370 = vunpack.c.l.b16 %v2355
    %v4371 = vunpack.c.h.b16 %v2355
    %v4372 = vunpack.c.l.b16 %v2356
    %v4373 = vunpack.c.h.b16 %v2356
    %v4374 = vunpack.c.l.b16 %v2357
    %v4375 = vunpack.c.h.b16 %v2357
    %v4376 = vunpack.c.l.b16 %v2358
    %v4377 = vunpack.c.h.b16 %v2358
    %v4378 = vunpack.c.l.b16 %v2359
    %v4379 = vunpack.c.h.b16 %v2359
    %v4380 = vunpack.c.l.b16 %v2360
    %v4381 = vunpack.c.h.b16 %v2360
    %v4382 = vunpack.c.l.b16 %v2361
    %v4383 = vunpack.c.h.b16 %v2361
    %v4384 = vunpack.c.l.b16 %v2362
    %v4385 = vunpack.c.h.b16 %v2362
    %v4386 = vunpack.c.l.b16 %v2363
    %v4387 = vunpack.c.h.b16 %v2363
    %v4388 = vunpack.c.l.b16 %v2364
    %v4389 = vunpack.c.h.b16 %v2364
    %v4390 = vunpack.c.l.b16 %v2365
    %v4391 = vunpack.c.h.b16 %v2365
    %v4392 = vunpack.c.l.b16 %v2366
    %v4393 = vunpack.c.h.b16 %v2366
    %v4394 = vunpack.c.l.b16 %v2367
    %v4395 = vunpack.c.h.b16 %v2367
    %v4396 = vunpack.c.l.b16 %v2368
    %v4397 = vunpack.c.h.b16 %v2368
    %v4398 = vunpack.c.l.b16 %v2369
    %v4399 = vunpack.c.h.b16 %v2369
    %v4400 = vunpack.c.l.b16 %v2370
    %v4401 = vunpack.c.h.b16 %v2370
    %v4402 = vunpack.c.l.b16 %v2371
    %v4403 = vunpack.c.h.b16 %v2371
    %v4404 = vunpack.c.l.b16 %v2372
    %v4405 = vunpack.c.h.b16 %v2372
    %v4406 = vunpack.c.l.b16 %v2373
    %v4407 = vunpack.c.h.b16 %v2373
    %v4408 = vunpack.c.l.b16 %v2374
    %v4409 = vunpack.c.h.b16 %v2374
    %v4410 = vunpack.c.l.b16 %v2375
    %v4411 = vunpack.c.h.b16 %v2375
    %v4412 = vunpack.c.l.b16 %v2376
    %v4413 = vunpack.c.h.b16 %v2376
    %v4414 = vunpack.c.l.b16 %v2377
    %v4415 = vunpack.c.h.b16 %v2377
    %v4416 = vunpack.c.l.b16 %v2378
    %v4417 = vunpack.c.h.b16 %v2378
    %v4418 = vunpack.c.l.b16 %v2379
    %v4419 = vunpack.c.h.b16 %v2379
    %v4420 = vunpack.c.l.b16 %v2380
    %v4421 = vunpack.c.h.b16 %v2380
    %v4422 = vunpack.c.l.b16 %v2381
    %v4423 = vunpack.c.h.b16 %v2381
    %v4424 = vunpack.c.l.b16 %v2382
    %v4425 = vunpack.c.h.b16 %v2382
    %v4426 = vunpack.c.l.b16 %v2383
    %v4427 = vunpack.c.h.b16 %v2383
    %v4428 = vunpack.c.l.b16 %v2384
    %v4429 = vunpack.c.h.b16 %v2384
    %v4430 = vunpack.c.l.b16 %v2385
    %v4431 = vunpack.c.h.b16 %v2385
    %v4432 = vunpack.c.l.b16 %v2386
    %v4433 = vunpack.c.h.b16 %v2386
    %v4434 = vunpack.c.l.b16 %v2387
    %v4435 = vunpack.c.h.b16 %v2387
    %v4436 = vunpack.c.l.b16 %v2388
    %v4437 = vunpack.c.h.b16 %v2388
    %v4438 = vunpack.c.l.b16 %v2389
    %v4439 = vunpack.c.h.b16 %v2389
    %v4440 = vunpack.c.l.b16 %v2390
    %v4441 = vunpack.c.h.b16 %v2390
    %v4442 = vunpack.c.l.b16 %v2391
    %v4443 = vunpack.c.h.b16 %v2391
    %v4444 = vunpack.c.l.b16 %v2392
    %v4445 = vunpack.c.h.b16 %v2392
    %v4446 = vunpack.c.l.b16 %v2393
    %v4447 = vunpack.c.h.b16 %v2393
    %v4448 = vunpack.c.l.b16 %v2394
    %v4449 = vunpack.c.h.b16 %v2394
    %v4450 = vunpack.c.l.b16 %v2395
    %v4451 = vunpack.c.h.b16 %v2395
    %v4452 = vunpack.c.l.b16 %v2396
    %v4453 = vunpack.c.h.b16 %v2396
    %v4454 = vunpack.c.l.b16 %v2397
    %v4455 = vunpack.c.h.b16 %v2397
    %v4456 = vunpack.c.l.b16 %v2398
    %v4457 = vunpack.c.h.b16 %v2398
    %v4458 = vunpack.c.l.b16 %v2399
    %v4459 = vunpack.c.h.b16 %v2399
    %v4460 = vunpack.c.l.b16 %v2400
    %v4461 = vunpack.c.h.b16 %v2400
    %v4462 = vunpack.c.l.b16 %v2401
    %v4463 = vunpack.c.h.b16 %v2401
    %v4464 = vunpack.c.l.b16 %v2402
    %v4465 = vunpack.c.h.b16 %v2402
    %v4466 = vunpack.c.l.b16 %v2403
    %v4467 = vunpack.c.h.b16 %v2403
    %v4468 = vunpack.c.l.b16 %v2404
    %v4469 = vunpack.c.h.b16 %v2404
    %v4470 = vunpack.c.l.b16 %v2405
    %v4471 = vunpack.c.h.b16 %v2405
    %v4472 = vunpack.c.l.b16 %v2406
    %v4473 = vunpack.c.h.b16 %v2406
    %v4474 = vunpack.c.l.b16 %v2407
    %v4475 = vunpack.c.h.b16 %v2407
    %v4476 = vunpack.c.l.b16 %v2408
    %v4477 = vunpack.c.h.b16 %v2408
    %v4478 = vunpack.c.l.b16 %v2409
    %v4479 = vunpack.c.h.b16 %v2409
    %v4480 = vunpack.c.l.b16 %v2410
    %v4481 = vunpack.c.h.b16 %v2410
    %v4482 = vunpack.c.l.b16 %v2411
    %v4483 = vunpack.c.h.b16 %v2411
    %v4484 = vunpack.c.l.b16 %v2412
    %v4485 = vunpack.c.h.b16 %v2412
    %v4486 = vunpack.c.l.b16 %v2413
    %v4487 = vunpack.c.h.b16 %v2413
    %v4488 = vunpack.c.l.b16 %v2414
    %v4489 = vunpack.c.h.b16 %v2414
    %v4490 = vunpack.c.l.b16 %v2415
    %v4491 = vunpack.c.h.b16 %v2415
    %v4492 = vunpack.c.l.b16 %v2416
    %v4493 = vunpack.c.h.b16 %v2416
    %v4494 = vunpack.c.l.b16 %v2417
    %v4495 = vunpack.c.h.b16 %v2417
    %v4496 = vunpack.c.l.b16 %v2418
    %v4497 = vunpack.c.h.b16 %v2418
    %v4498 = vunpack.c.l.b16 %v2419
    %v4499 = vunpack.c.h.b16 %v2419
    %v4500 = vunpack.c.l.b16 %v2420
    %v4501 = vunpack.c.h.b16 %v2420
    %v4502 = vunpack.c.l.b16 %v2421
    %v4503 = vunpack.c.h.b16 %v2421
    %v4504 = vunpack.c.l.b16 %v2422
    %v4505 = vunpack.c.h.b16 %v2422
    %v4506 = vunpack.c.l.b16 %v2423
    %v4507 = vunpack.c.h.b16 %v2423
    %v4508 = vunpack.c.l.b16 %v2424
    %v4509 = vunpack.c.h.b16 %v2424
    %v4510 = vunpack.c.l.b16 %v2425
    %v4511 = vunpack.c.h.b16 %v2425
    %v4512 = vunpack.c.l.b16 %v2426
    %v4513 = vunpack.c.h.b16 %v2426
    %v4514 = vunpack.c.l.b16 %v2427
    %v4515 = vunpack.c.h.b16 %v2427
    %v4516 = vunpack.c.l.b16 %v2428
    %v4517 = vunpack.c.h.b16 %v2428
    %v4518 = vunpack.c.l.b16 %v2429
    %v4519 = vunpack.c.h.b16 %v2429
    %v4520 = vunpack.c.l.b16 %v2430
    %v4521 = vunpack.c.h.b16 %v2430
    %v4522 = vunpack.c.l.b16 %v2431
    %v4523 = vunpack.c.h.b16 %v2431
    %v4524 = vunpack.c.l.b16 %v2432
    %v4525 = vunpack.c.h.b16 %v2432
    %v4526 = vunpack.c.l.b16 %v2433
    %v4527 = vunpack.c.h.b16 %v2433
    %v4528 = vunpack.c.l.b16 %v2434
    %v4529 = vunpack.c.h.b16 %v2434
    %v4530 = vunpack.c.l.b16 %v2435
    %v4531 = vunpack.c.h.b16 %v2435
    %v4532 = vunpack.c.l.b16 %v2436
    %v4533 = vunpack.c.h.b16 %v2436
    %v4534 = vunpack.c.l.b16 %v2437
    %v4535 = vunpack.c.h.b16 %v2437
    %v4536 = vunpack.c.l.b16 %v2438
    %v4537 = vunpack.c.h.b16 %v2438
    %v4538 = vunpack.c.l.b16 %v2439
    %v4539 = vunpack.c.h.b16 %v2439
    %v4540 = vunpack.c.l.b16 %v2440
    %v4541 = vunpack.c.h.b16 %v2440
    %v4542 = vunpack.c.l.b16 %v2441
    %v4543 = vunpack.c.h.b16 %v2441
    %v4544 = vunpack.c.l.b16 %v2442
    %v4545 = vunpack.c.h.b16 %v2442
    %v4546 = vunpack.c.l.b16 %v2443
    %v4547 = vunpack.c.h.b16 %v2443
    %v4548 = vunpack.c.l.b16 %v2444
    %v4549 = vunpack.c.h.b16 %v2444
    %v4550 = vunpack.c.l.b16 %v2445
    %v4551 = vunpack.c.h.b16 %v2445
    %v4552 = vunpack.c.l.b16 %v2446
    %v4553 = vunpack.c.h.b16 %v2446
    %v4554 = vunpack.c.l.b16 %v2447
    %v4555 = vunpack.c.h.b16 %v2447
    %v4556 = vunpack.c.l.b16 %v2448
    %v4557 = vunpack.c.h.b16 %v2448
    %v4558 = vunpack.c.l.b16 %v2449
    %v4559 = vunpack.c.h.b16 %v2449
    %v4560 = vunpack.c.l.b16 %v2450
    %v4561 = vunpack.c.h.b16 %v2450
    %v4562 = vunpack.c.l.b16 %v2451
    %v4563 = vunpack.c.h.b16 %v2451
    %v4564 = vunpack.c.l.b16 %v2452
    %v4565 = vunpack.c.h.b16 %v2452
    %v4566 = vunpack.c.l.b16 %v2453
    %v4567 = vunpack.c.h.b16 %v2453
    %v4568 = vunpack.c.l.b16 %v2454
    %v4569 = vunpack.c.h.b16 %v2454
    %v4570 = vunpack.c.l.b16 %v2455
    %v4571 = vunpack.c.h.b16 %v2455
    %v4572 = vunpack.c.l.b16 %v2456
    %v4573 = vunpack.c.h.b16 %v2456
    %v4574 = vunpack.c.l.b16 %v2457
    %v4575 = vunpack.c.h.b16 %v2457
    %v4576 = vunpack.c.l.b16 %v2458
    %v4577 = vunpack.c.h.b16 %v2458
    %v4578 = vunpack.c.l.b16 %v2459
    %v4579 = vunpack.c.h.b16 %v2459
    %v4580 = vunpack.c.l.b16 %v2460
    %v4581 = vunpack.c.h.b16 %v2460
    %v4582 = vunpack.c.l.b16 %v2461
    %v4583 = vunpack.c.h.b16 %v2461
    %v4584 = vunpack.c.l.b16 %v2462
    %v4585 = vunpack.c.h.b16 %v2462
    %v4586 = vunpack.c.l.b16 %v2463
    %v4587 = vunpack.c.h.b16 %v2463
    %v4588 = vunpack.c.l.b16 %v2464
    %v4589 = vunpack.c.h.b16 %v2464
    %v4590 = vunpack.c.l.b16 %v2465
    %v4591 = vunpack.c.h.b16 %v2465
    %v4592 = vunpack.c.l.b16 %v2466
    %v4593 = vunpack.c.h.b16 %v2466
    %v4594 = vunpack.c.l.b16 %v2467
    %v4595 = vunpack.c.h.b16 %v2467
    %v4596 = vunpack.c.l.b16 %v2468
    %v4597 = vunpack.c.h.b16 %v2468
    %v4598 = vunpack.c.l.b16 %v2469
    %v4599 = vunpack.c.h.b16 %v2469
    %v4600 = vunpack.c.l.b16 %v2470
    %v4601 = vunpack.c.h.b16 %v2470
    %v4602 = vunpack.c.l.b16 %v2471
    %v4603 = vunpack.c.h.b16 %v2471
    %v4604 = vunpack.c.l.b16 %v2472
    %v4605 = vunpack.c.h.b16 %v2472
    %v4606 = vunpack.c.l.b16 %v2473
    %v4607 = vunpack.c.h.b16 %v2473
    %v4608 = vunpack.c.l.b16 %v2474
    %v4609 = vunpack.c.h.b16 %v2474
    %v4610 = vunpack.c.l.b16 %v2475
    %v4611 = vunpack.c.h.b16 %v2475
    %v4612 = vunpack.c.l.b16 %v2476
    %v4613 = vunpack.c.h.b16 %v2476
    %v4614 = vunpack.c.l.b16 %v2477
    %v4615 = vunpack.c.h.b16 %v2477
    %v4616 = vunpack.c.l.b16 %v2478
    %v4617 = vunpack.c.h.b16 %v2478
    %v4618 = vunpack.c.l.b16 %v2479
    %v4619 = vunpack.c.h.b16 %v2479
    %v4620 = vunpack.c.l.b16 %v2480
    %v4621 = vunpack.c.h.b16 %v2480
    %v4622 = vunpack.c.l.b16 %v2481
    %v4623 = vunpack.c.h.b16 %v2481
    %v4624 = vunpack.c.l.b16 %v2482
    %v4625 = vunpack.c.h.b16 %v2482
    %v4626 = vunpack.c.l.b16 %v2483
    %v4627 = vunpack.c.h.b16 %v2483
    %v4628 = vunpack.c.l.b16 %v2484
    %v4629 = vunpack.c.h.b16 %v2484
    %v4630 = vunpack.c.l.b16 %v2485
    %v4631 = vunpack.c.h.b16 %v2485
    %v4632 = vunpack.c.l.b16 %v2486
    %v4633 = vunpack.c.h.b16 %v2486
    %v4634 = vunpack.c.l.b16 %v2487
    %v4635 = vunpack.c.h.b16 %v2487
    %v4636 = vunpack.c.l.b16 %v2488
    %v4637 = vunpack.c.h.b16 %v2488
    %v4638 = vunpack.c.l.b16 %v2489
    %v4639 = vunpack.c.h.b16 %v2489
    %v4640 = vunpack.c.l.b16 %v2490
    %v4641 = vunpack.c.h.b16 %v2490
    %v4642 = vunpack.c.l.b16 %v2491
    %v4643 = vunpack.c.h.b16 %v2491
    %v4644 = vunpack.c.l.b16 %v2492
    %v4645 = vunpack.c.h.b16 %v2492
    %v4646 = vunpack.c.l.b16 %v2493
    %v4647 = vunpack.c.h.b16 %v2493
    %v4648 = vunpack.c.l.b16 %v2494
    %v4649 = vunpack.c.h.b16 %v2494
    %v4650 = vunpack.c.l.b16 %v2495
    %v4651 = vunpack.c.h.b16 %v2495
    %v4652 = vunpack.c.l.b16 %v2496
    %v4653 = vunpack.c.h.b16 %v2496
    %v4654 = vunpack.c.l.b16 %v2497
    %v4655 = vunpack.c.h.b16 %v2497
    %v4656 = vunpack.c.l.b16 %v2498
    %v4657 = vunpack.c.h.b16 %v2498
    %v4658 = vunpack.c.l.b16 %v2499
    %v4659 = vunpack.c.h.b16 %v2499
    %v4660 = vunpack.c.l.b16 %v2500
    %v4661 = vunpack.c.h.b16 %v2500
    %v4662 = vunpack.c.l.b16 %v2501
    %v4663 = vunpack.c.h.b16 %v2501
    %v4664 = vunpack.c.l.b16 %v2502
    %v4665 = vunpack.c.h.b16 %v2502
    %v4666 = vunpack.c.l.b16 %v2503
    %v4667 = vunpack.c.h.b16 %v2503
    %v4668 = vunpack.c.l.b16 %v2504
    %v4669 = vunpack.c.h.b16 %v2504
    %v4670 = vunpack.c.l.b16 %v2505
    %v4671 = vunpack.c.h.b16 %v2505
    %v4672 = vunpack.c.l.b16 %v2506
    %v4673 = vunpack.c.h.b16 %v2506
    %v4674 = vunpack.c.l.b16 %v2507
    %v4675 = vunpack.c.h.b16 %v2507
    %v4676 = vunpack.c.l.b16 %v2508
    %v4677 = vunpack.c.h.b16 %v2508
    %v4678 = vunpack.c.l.b16 %v2509
    %v4679 = vunpack.c.h.b16 %v2509
    %v4680 = vunpack.c.l.b16 %v2510
    %v4681 = vunpack.c.h.b16 %v2510
    %v4682 = vunpack.c.l.b16 %v2511
    %v4683 = vunpack.c.h.b16 %v2511
    %v4684 = vunpack.c.l.b16 %v2512
    %v4685 = vunpack.c.h.b16 %v2512
    %v4686 = vunpack.c.l.b16 %v2513
    %v4687 = vunpack.c.h.b16 %v2513
    %v4688 = vunpack.c.l.b16 %v2514
    %v4689 = vunpack.c.h.b16 %v2514
    %v4690 = vunpack.c.l.b16 %v2515
    %v4691 = vunpack.c.h.b16 %v2515
    %v4692 = vunpack.c.l.b16 %v2516
    %v4693 = vunpack.c.h.b16 %v2516
    %v4694 = vunpack.c.l.b16 %v2517
    %v4695 = vunpack.c.h.b16 %v2517
    %v4696 = vunpack.c.l.b16 %v2518
    %v4697 = vunpack.c.h.b16 %v2518
    %v4698 = vunpack.c.l.b16 %v2519
    %v4699 = vunpack.c.h.b16 %v2519
    %v4700 = vunpack.c.l.b16 %v2520
    %v4701 = vunpack.c.h.b16 %v2520
    %v4702 = vunpack.c.l.b16 %v2521
    %v4703 = vunpack.c.h.b16 %v2521
    %v4704 = vunpack.c.l.b16 %v2522
    %v4705 = vunpack.c.h.b16 %v2522
    %v4706 = vunpack.c.l.b16 %v2523
    %v4707 = vunpack.c.h.b16 %v2523
    %v4708 = vunpack.c.l.b16 %v2524
    %v4709 = vunpack.c.h.b16 %v2524
    %v4710 = vunpack.c.l.b16 %v2525
    %v4711 = vunpack.c.h.b16 %v2525
    %v4712 = vunpack.c.l.b16 %v2526
    %v4713 = vunpack.c.h.b16 %v2526
    %v4714 = vunpack.c.l.b16 %v2527
    %v4715 = vunpack.c.h.b16 %v2527
    %v4716 = vunpack.c.l.b16 %v2528
    %v4717 = vunpack.c.h.b16 %v2528
    %v4718 = vunpack.c.l.b16 %v2529
    %v4719 = vunpack.c.h.b16 %v2529
    %v4720 = vunpack.c.l.b16 %v2530
    %v4721 = vunpack.c.h.b16 %v2530
    %v4722 = vunpack.c.l.b16 %v2531
    %v4723 = vunpack.c.h.b16 %v2531
    %v4724 = vunpack.c.l.b16 %v2532
    %v4725 = vunpack.c.h.b16 %v2532
    %v4726 = vunpack.c.l.b16 %v2533
    %v4727 = vunpack.c.h.b16 %v2533
    %v4728 = vunpack.c.l.b16 %v2534
    %v4729 = vunpack.c.h.b16 %v2534
    %v4730 = vunpack.c.l.b16 %v2535
    %v4731 = vunpack.c.h.b16 %v2535
    %v4732 = vunpack.c.l.b16 %v2536
    %v4733 = vunpack.c.h.b16 %v2536
    %v4734 = vunpack.c.l.b16 %v2537
    %v4735 = vunpack.c.h.b16 %v2537
    %v4736 = vunpack.c.l.b16 %v2538
    %v4737 = vunpack.c.h.b16 %v2538
    %v4738 = vunpack.c.l.b16 %v2539
    %v4739 = vunpack.c.h.b16 %v2539
    %v4740 = vunpack.c.l.b16 %v2540
    %v4741 = vunpack.c.h.b16 %v2540
    %v4742 = vunpack.c.l.b16 %v2541
    %v4743 = vunpack.c.h.b16 %v2541
    %v4744 = vunpack.c.l.b16 %v2542
    %v4745 = vunpack.c.h.b16 %v2542
    %v4746 = vunpack.c.l.b16 %v2543
    %v4747 = vunpack.c.h.b16 %v2543
    %v4748 = vunpack.c.l.b16 %v2544
    %v4749 = vunpack.c.h.b16 %v2544
    %v4750 = vunpack.c.l.b16 %v2545
    %v4751 = vunpack.c.h.b16 %v2545
    %v4752 = vunpack.c.l.b16 %v2546
    %v4753 = vunpack.c.h.b16 %v2546
    %v4754 = vunpack.c.l.b16 %v2547
    %v4755 = vunpack.c.h.b16 %v2547
    %v4756 = vunpack.c.l.b16 %v2548
    %v4757 = vunpack.c.h.b16 %v2548
    %v4758 = vunpack.c.l.b16 %v2549
    %v4759 = vunpack.c.h.b16 %v2549
    %v4760 = vunpack.c.l.b16 %v2550
    %v4761 = vunpack.c.h.b16 %v2550
    %v4762 = vunpack.c.l.b16 %v2551
    %v4763 = vunpack.c.h.b16 %v2551
    %v4764 = vunpack.c.l.b16 %v2552
    %v4765 = vunpack.c.h.b16 %v2552
    %v4766 = vunpack.c.l.b16 %v2553
    %v4767 = vunpack.c.h.b16 %v2553
    %v4768 = vunpack.c.l.b16 %v2554
    %v4769 = vunpack.c.h.b16 %v2554
    %v4770 = vunpack.c.l.b16 %v2555
    %v4771 = vunpack.c.h.b16 %v2555
    %v4772 = vunpack.c.l.b16 %v2556
    %v4773 = vunpack.c.h.b16 %v2556
    %v4774 = vunpack.c.l.b16 %v2557
    %v4775 = vunpack.c.h.b16 %v2557
    %v4776 = vunpack.c.l.b16 %v2558
    %v4777 = vunpack.c.h.b16 %v2558
    %v4778 = vunpack.c.l.b16 %v2559
    %v4779 = vunpack.c.h.b16 %v2559
    %v4780 = vunpack.c.l.b16 %v2560
    %v4781 = vunpack.c.h.b16 %v2560
    %v4782 = vunpack.c.l.b16 %v2561
    %v4783 = vunpack.c.h.b16 %v2561
    %v4784 = vunpack.c.l.b16 %v2562
    %v4785 = vunpack.c.h.b16 %v2562
    %v4786 = vunpack.c.l.b16 %v2563
    %v4787 = vunpack.c.h.b16 %v2563
    %v4788 = vunpack.c.l.b16 %v2564
    %v4789 = vunpack.c.h.b16 %v2564
    %v4790 = vunpack.c.l.b16 %v2565
    %v4791 = vunpack.c.h.b16 %v2565
    %v4792 = vunpack.c.l.b16 %v2566
    %v4793 = vunpack.c.h.b16 %v2566
    %v4794 = vunpack.c.l.b16 %v2567
    %v4795 = vunpack.c.h.b16 %v2567
    %v4796 = vunpack.c.l.b16 %v2568
    %v4797 = vunpack.c.h.b16 %v2568
    %v4798 = vunpack.c.l.b16 %v2569
    %v4799 = vunpack.c.h.b16 %v2569
    %v4800 = vunpack.c.l.b16 %v2570
    %v4801 = vunpack.c.h.b16 %v2570
    %v4802 = vunpack.c.l.b16 %v2571
    %v4803 = vunpack.c.h.b16 %v2571
    %v4804 = vunpack.c.l.b16 %v2572
    %v4805 = vunpack.c.h.b16 %v2572
    %v4806 = vunpack.c.l.b16 %v2573
    %v4807 = vunpack.c.h.b16 %v2573
    %v4808 = vunpack.c.l.b16 %v2574
    %v4809 = vunpack.c.h.b16 %v2574
    %v4810 = vunpack.c.l.b16 %v2575
    %v4811 = vunpack.c.h.b16 %v2575
    %v4812 = vunpack.c.l.b16 %v2576
    %v4813 = vunpack.c.h.b16 %v2576
    %v4814 = vunpack.c.l.b16 %v2577
    %v4815 = vunpack.c.h.b16 %v2577
    %v4816 = vunpack.c.l.b16 %v2578
    %v4817 = vunpack.c.h.b16 %v2578
    %v4818 = vunpack.c.l.b16 %v2579
    %v4819 = vunpack.c.h.b16 %v2579
    %v4820 = vunpack.c.l.b16 %v2580
    %v4821 = vunpack.c.h.b16 %v2580
    %v4822 = vunpack.c.l.b16 %v2581
    %v4823 = vunpack.c.h.b16 %v2581
    %v4824 = vunpack.c.l.b16 %v2582
    %v4825 = vunpack.c.h.b16 %v2582
    %v4826 = vunpack.c.l.b16 %v2583
    %v4827 = vunpack.c.h.b16 %v2583
    %v4828 = vunpack.c.l.b16 %v2584
    %v4829 = vunpack.c.h.b16 %v2584
    %v4830 = vunpack.c.l.b16 %v2585
    %v4831 = vunpack.c.h.b16 %v2585
    %v4832 = vunpack.c.l.b16 %v2586
    %v4833 = vunpack.c.h.b16 %v2586
    %v4834 = vunpack.c.l.b16 %v2587
    %v4835 = vunpack.c.h.b16 %v2587
    %v4836 = vunpack.c.l.b16 %v2588
    %v4837 = vunpack.c.h.b16 %v2588
    %v4838 = vunpack.c.l.b16 %v2589
    %v4839 = vunpack.c.h.b16 %v2589
    %v4840 = vunpack.c.l.b16 %v2590
    %v4841 = vunpack.c.h.b16 %v2590
    %v4842 = vunpack.c.l.b16 %v2591
    %v4843 = vunpack.c.h.b16 %v2591
    %v4844 = vunpack.c.l.b16 %v2592
    %v4845 = vunpack.c.h.b16 %v2592
    %v4846 = vunpack.c.l.b16 %v2593
    %v4847 = vunpack.c.h.b16 %v2593
    %v4848 = vunpack.c.l.b16 %v2594
    %v4849 = vunpack.c.h.b16 %v2594
    %v4850 = vunpack.c.l.b16 %v2595
    %v4851 = vunpack.c.h.b16 %v2595
    %v4852 = vunpack.c.l.b16 %v2596
    %v4853 = vunpack.c.h.b16 %v2596
    %v4854 = vunpack.c.l.b16 %v2597
    %v4855 = vunpack.c.h.b16 %v2597
    %v4856 = vunpack.c.l.b16 %v2598
    %v4857 = vunpack.c.h.b16 %v2598
    %v4858 = vunpack.c.l.b16 %v2599
    %v4859 = vunpack.c.h.b16 %v2599
    %v4860 = vunpack.c.l.b16 %v2600
    %v4861 = vunpack.c.h.b16 %v2600
    %v4862 = vunpack.c.l.b16 %v2601
    %v4863 = vunpack.c.h.b16 %v2601
    %v4864 = vunpack.c.l.b16 %v2602
    %v4865 = vunpack.c.h.b16 %v2602
    %v4866 = vunpack.c.l.b16 %v2603
    %v4867 = vunpack.c.h.b16 %v2603
    %v4868 = vunpack.c.l.b16 %v2604
    %v4869 = vunpack.c.h.b16 %v2604
    %v4870 = vunpack.c.l.b16 %v2605
    %v4871 = vunpack.c.h.b16 %v2605
    %v4872 = vunpack.c.l.b16 %v2606
    %v4873 = vunpack.c.h.b16 %v2606
    %v4874 = vunpack.c.l.b16 %v2607
    %v4875 = vunpack.c.h.b16 %v2607
    %v4876 = vunpack.c.l.b16 %v2608
    %v4877 = vunpack.c.h.b16 %v2608
    %v4878 = vunpack.c.l.b16 %v2609
    %v4879 = vunpack.c.h.b16 %v2609
    %v4880 = vunpack.c.l.b16 %v2610
    %v4881 = vunpack.c.h.b16 %v2610
    %v4882 = vunpack.c.l.b16 %v2611
    %v4883 = vunpack.c.h.b16 %v2611
    %v4884 = vunpack.c.l.b16 %v2612
    %v4885 = vunpack.c.h.b16 %v2612
    %v4886 = vunpack.c.l.b16 %v2613
    %v4887 = vunpack.c.h.b16 %v2613
    %v4888 = vunpack.c.l.b16 %v2614
    %v4889 = vunpack.c.h.b16 %v2614
    %v4890 = vunpack.c.l.b16 %v2615
    %v4891 = vunpack.c.h.b16 %v2615
    %v4892 = vunpack.c.l.b16 %v2616
    %v4893 = vunpack.c.h.b16 %v2616
    %v4894 = vunpack.c.l.b16 %v2617
    %v4895 = vunpack.c.h.b16 %v2617
    %v4896 = vunpack.c.l.b16 %v2618
    %v4897 = vunpack.c.h.b16 %v2618
    %v4898 = vunpack.c.l.b16 %v2619
    %v4899 = vunpack.c.h.b16 %v2619
    %v4900 = vunpack.c.l.b16 %v2620
    %v4901 = vunpack.c.h.b16 %v2620
    %v4902 = vunpack.c.l.b16 %v2621
    %v4903 = vunpack.c.h.b16 %v2621
    %v4904 = vunpack.c.l.b16 %v2622
    %v4905 = vunpack.c.h.b16 %v2622
    %v4906 = vunpack.c.l.b16 %v2623
    %v4907 = vunpack.c.h.b16 %v2623
    %v4908 = vunpack.c.l.b16 %v2624
    %v4909 = vunpack.c.h.b16 %v2624
    %v4910 = vunpack.c.l.b16 %v2625
    %v4911 = vunpack.c.h.b16 %v2625
    %v4912 = vunpack.c.l.b16 %v2626
    %v4913 = vunpack.c.h.b16 %v2626
    %v4914 = vunpack.c.l.b16 %v2627
    %v4915 = vunpack.c.h.b16 %v2627
    %v4916 = vunpack.c.l.b16 %v2628
    %v4917 = vunpack.c.h.b16 %v2628
    %v4918 = vunpack.c.l.b16 %v2629
    %v4919 = vunpack.c.h.b16 %v2629
    %v4920 = vunpack.c.l.b16 %v2630
    %v4921 = vunpack.c.h.b16 %v2630
    %v4922 = vunpack.c.l.b16 %v2631
    %v4923 = vunpack.c.h.b16 %v2631
    %v4924 = vunpack.c.l.b16 %v2632
    %v4925 = vunpack.c.h.b16 %v2632
    %v4926 = vunpack.c.l.b16 %v2633
    %v4927 = vunpack.c.h.b16 %v2633
    %v4928 = vunpack.c.l.b16 %v2634
    %v4929 = vunpack.c.h.b16 %v2634
    %v4930 = vunpack.c.l.b16 %v2635
    %v4931 = vunpack.c.h.b16 %v2635
    %v4932 = vunpack.c.l.b16 %v2636
    %v4933 = vunpack.c.h.b16 %v2636
    %v4934 = vunpack.c.l.b16 %v2637
    %v4935 = vunpack.c.h.b16 %v2637
    %v4936 = vunpack.c.l.b16 %v2638
    %v4937 = vunpack.c.h.b16 %v2638
    %v4938 = vunpack.c.l.b16 %v2639
    %v4939 = vunpack.c.h.b16 %v2639
    %v4940 = vunpack.c.l.b16 %v2640
    %v4941 = vunpack.c.h.b16 %v2640
    %v4942 = vunpack.c.l.b16 %v2641
    %v4943 = vunpack.c.h.b16 %v2641
    %v4944 = vunpack.c.l.b16 %v2642
    %v4945 = vunpack.c.h.b16 %v2642
    %v4946 = vunpack.c.l.b16 %v2643
    %v4947 = vunpack.c.h.b16 %v2643
    %v4948 = vunpack.c.l.b16 %v2644
    %v4949 = vunpack.c.h.b16 %v2644
    %v4950 = vunpack.c.l.b16 %v2645
    %v4951 = vunpack.c.h.b16 %v2645
    %v4952 = vunpack.c.l.b16 %v2646
    %v4953 = vunpack.c.h.b16 %v2646
    %v4954 = vunpack.c.l.b16 %v2647
    %v4955 = vunpack.c.h.b16 %v2647
    %v4956 = vunpack.c.l.b16 %v2648
    %v4957 = vunpack.c.h.b16 %v2648
    %v4958 = vunpack.c.l.b16 %v2649
    %v4959 = vunpack.c.h.b16 %v2649
    %v4960 = vunpack.c.l.b16 %v2650
    %v4961 = vunpack.c.h.b16 %v2650
    %v4962 = vunpack.c.l.b16 %v2651
    %v4963 = vunpack.c.h.b16 %v2651
    %v4964 = vunpack.c.l.b16 %v2652
    %v4965 = vunpack.c.h.b16 %v2652
    %v4966 = vunpack.c.l.b16 %v2653
    %v4967 = vunpack.c.h.b16 %v2653
    %v4968 = vunpack.c.l.b16 %v2654
    %v4969 = vunpack.c.h.b16 %v2654
    %v4970 = vunpack.c.l.b16 %v2655
    %v4971 = vunpack.c.h.b16 %v2655
    %v4972 = vunpack.c.l.b16 %v2656
    %v4973 = vunpack.c.h.b16 %v2656
    %v4974 = vunpack.c.l.b16 %v2657
    %v4975 = vunpack.c.h.b16 %v2657
    %v4976 = vunpack.c.l.b16 %v2658
    %v4977 = vunpack.c.h.b16 %v2658
    %v4978 = vunpack.c.l.b16 %v2659
    %v4979 = vunpack.c.h.b16 %v2659
    %v4980 = vunpack.c.l.b16 %v2660
    %v4981 = vunpack.c.h.b16 %v2660
    %v4982 = vunpack.c.l.b16 %v2661
    %v4983 = vunpack.c.h.b16 %v2661
    %v4984 = vunpack.c.l.b16 %v2662
    %v4985 = vunpack.c.h.b16 %v2662
    %v4986 = vunpack.c.l.b16 %v2663
    %v4987 = vunpack.c.h.b16 %v2663
    %v4988 = vunpack.c.l.b16 %v2664
    %v4989 = vunpack.c.h.b16 %v2664
    %v4990 = vunpack.c.l.b16 %v2665
    %v4991 = vunpack.c.h.b16 %v2665
    %v4992 = vunpack.c.l.b16 %v2666
    %v4993 = vunpack.c.h.b16 %v2666
    %v4994 = vunpack.c.l.b16 %v2667
    %v4995 = vunpack.c.h.b16 %v2667
    %v4996 = vunpack.c.l.b16 %v2668
    %v4997 = vunpack.c.h.b16 %v2668
    %v4998 = vunpack.c.l.b16 %v2669
    %v4999 = vunpack.c.h.b16 %v2669
    %v5000 = vunpack.c.l.b16 %v2670
    %v5001 = vunpack.c.h.b16 %v2670
    %v5002 = vunpack.c.l.b16 %v2671
    %v5003 = vunpack.c.h.b16 %v2671
    %v5004 = vunpack.c.l.b16 %v2672
    %v5005 = vunpack.c.h.b16 %v2672
    %v5006 = vunpack.c.l.b16 %v2673
    %v5007 = vunpack.c.h.b16 %v2673
    %v5008 = vunpack.c.l.b16 %v2674
    %v5009 = vunpack.c.h.b16 %v2674
    %v5010 = vunpack.c.l.b16 %v2675
    %v5011 = vunpack.c.h.b16 %v2675
    %v5012 = vunpack.c.l.b16 %v2676
    %v5013 = vunpack.c.h.b16 %v2676
    %v5014 = vunpack.c.l.b16 %v2677
    %v5015 = vunpack.c.h.b16 %v2677
    %v5016 = vunpack.c.l.b16 %v2678
    %v5017 = vunpack.c.h.b16 %v2678
    %v5018 = vunpack.c.l.b16 %v2679
    %v5019 = vunpack.c.h.b16 %v2679
    %v5020 = vunpack.c.l.b16 %v2680
    %v5021 = vunpack.c.h.b16 %v2680
    %v5022 = vunpack.c.l.b16 %v2681
    %v5023 = vunpack.c.h.b16 %v2681
    %v5024 = vunpack.c.l.b16 %v2682
    %v5025 = vunpack.c.h.b16 %v2682
    %v5026 = vunpack.c.l.b16 %v2683
    %v5027 = vunpack.c.h.b16 %v2683
    %v5028 = vunpack.c.l.b16 %v2684
    %v5029 = vunpack.c.h.b16 %v2684
    %v5030 = vunpack.c.l.b16 %v2685
    %v5031 = vunpack.c.h.b16 %v2685
    %v5032 = vunpack.c.l.b16 %v2686
    %v5033 = vunpack.c.h.b16 %v2686
    %v5034 = vunpack.c.l.b16 %v2687
    %v5035 = vunpack.c.h.b16 %v2687
    %v5036 = vunpack.c.l.b16 %v2688
    %v5037 = vunpack.c.h.b16 %v2688
    %v5038 = vunpack.c.l.b16 %v2689
    %v5039 = vunpack.c.h.b16 %v2689
    %v5040 = vunpack.c.l.b16 %v2690
    %v5041 = vunpack.c.h.b16 %v2690
    %v5042 = vunpack.c.l.b16 %v2691
    %v5043 = vunpack.c.h.b16 %v2691
    %v5044 = vunpack.c.l.b16 %v2692
    %v5045 = vunpack.c.h.b16 %v2692
    %v5046 = vunpack.c.l.b16 %v2693
    %v5047 = vunpack.c.h.b16 %v2693
    %v5048 = vunpack.c.l.b16 %v2694
    %v5049 = vunpack.c.h.b16 %v2694
    %v5050 = vunpack.c.l.b16 %v2695
    %v5051 = vunpack.c.h.b16 %v2695
    %v5052 = vunpack.c.l.b16 %v2696
    %v5053 = vunpack.c.h.b16 %v2696
    %v5054 = vunpack.c.l.b16 %v2697
    %v5055 = vunpack.c.h.b16 %v2697
    %v5056 = vunpack.c.l.b16 %v2698
    %v5057 = vunpack.c.h.b16 %v2698
    %v5058 = vunpack.c.l.b16 %v2699
    %v5059 = vunpack.c.h.b16 %v2699
    %v5060 = vunpack.c.l.b16 %v2700
    %v5061 = vunpack.c.h.b16 %v2700
    %v5062 = vunpack.c.l.b16 %v2701
    %v5063 = vunpack.c.h.b16 %v2701
    %v5064 = vunpack.c.l.b16 %v2702
    %v5065 = vunpack.c.h.b16 %v2702
    %v5066 = vunpack.c.l.b16 %v2703
    %v5067 = vunpack.c.h.b16 %v2703
    %v5068 = vunpack.c.l.b16 %v2704
    %v5069 = vunpack.c.h.b16 %v2704
    %v5070 = vunpack.c.l.b16 %v2705
    %v5071 = vunpack.c.h.b16 %v2705
    %v5072 = vunpack.c.l.b16 %v2706
    %v5073 = vunpack.c.h.b16 %v2706
    %v5074 = vunpack.c.l.b16 %v2707
    %v5075 = vunpack.c.h.b16 %v2707
    %v5076 = vpack.c.b16 %v3552, %v3540
    %v5077 = vpack.c.b16 %v3553, %v3541
    %v5078 = vpack.c.b16 %v3554, %v3542
    %v5079 = vpack.c.b16 %v3555, %v3543
    %v5080 = vpack.c.b16 %v3556, %v3544
    %v5081 = vpack.c.b16 %v3557, %v3545
    %v5082 = vpack.c.b16 %v3558, %v3546
    %v5083 = vpack.c.b16 %v3559, %v3547
    %v5084 = vpack.c.b16 %v3560, %v3548
    %v5085 = vpack.c.b16 %v3561, %v3549
    %v5086 = vpack.c.b16 %v3562, %v3550
    %v5087 = vpack.c.b16 %v3563, %v3551
    %v5088 = vpack.c.b16 %v3576, %v3564
    %v5089 = vpack.c.b16 %v3577, %v3565
    %v5090 = vpack.c.b16 %v3578, %v3566
    %v5091 = vpack.c.b16 %v3579, %v3567
    %v5092 = vpack.c.b16 %v3580, %v3568
    %v5093 = vpack.c.b16 %v3581, %v3569
    %v5094 = vpack.c.b16 %v3582, %v3570
    %v5095 = vpack.c.b16 %v3583, %v3571
    %v5096 = vpack.c.b16 %v3584, %v3572
    %v5097 = vpack.c.b16 %v3585, %v3573
    %v5098 = vpack.c.b16 %v3586, %v3574
    %v5099 = vpack.c.b16 %v3587, %v3575
    %v5100 = vpack.c.b16 %v3600, %v3588
    %v5101 = vpack.c.b16 %v3601, %v3589
    %v5102 = vpack.c.b16 %v3602, %v3590
    %v5103 = vpack.c.b16 %v3603, %v3591
    %v5104 = vpack.c.b16 %v3604, %v3592
    %v5105 = vpack.c.b16 %v3605, %v3593
    %v5106 = vpack.c.b16 %v3606, %v3594
    %v5107 = vpack.c.b16 %v3607, %v3595
    %v5108 = vpack.c.b16 %v3608, %v3596
    %v5109 = vpack.c.b16 %v3609, %v3597
    %v5110 = vpack.c.b16 %v3610, %v3598
    %v5111 = vpack.c.b16 %v3611, %v3599
    %v5112 = vpack.c.b16 %v3624, %v3612
    %v5113 = vpack.c.b16 %v3625, %v3613
    %v5114 = vpack.c.b16 %v3626, %v3614
    %v5115 = vpack.c.b16 %v3627, %v3615
    %v5116 = vpack.c.b16 %v3628, %v3616
    %v5117 = vpack.c.b16 %v3629, %v3617
    %v5118 = vpack.c.b16 %v3630, %v3618
    %v5119 = vpack.c.b16 %v3631, %v3619
    %v5120 = vpack.c.b16 %v3632, %v3620
    %v5121 = vpack.c.b16 %v3633, %v3621
    %v5122 = vpack.c.b16 %v3634, %v3622
    %v5123 = vpack.c.b16 %v3635, %v3623
    %v5124 = vpack.c.b16 %v3648, %v3636
    %v5125 = vpack.c.b16 %v3649, %v3637
    %v5126 = vpack.c.b16 %v3650, %v3638
    %v5127 = vpack.c.b16 %v3651, %v3639
    %v5128 = vpack.c.b16 %v3652, %v3640
    %v5129 = vpack.c.b16 %v3653, %v3641
    %v5130 = vpack.c.b16 %v3654, %v3642
    %v5131 = vpack.c.b16 %v3655, %v3643
    %v5132 = vpack.c.b16 %v3656, %v3644
    %v5133 = vpack.c.b16 %v3657, %v3645
    %v5134 = vpack.c.b16 %v3658, %v3646
    %v5135 = vpack.c.b16 %v3659, %v3647
    %v5136 = vpack.c.b16 %v3672, %v3660
    %v5137 = vpack.c.b16 %v3673, %v3661
    %v5138 = vpack.c.b16 %v3674, %v3662
    %v5139 = vpack.c.b16 %v3675, %v3663
    %v5140 = vpack.c.b16 %v3676, %v3664
    %v5141 = vpack.c.b16 %v3677, %v3665
    %v5142 = vpack.c.b16 %v3678, %v3666
    %v5143 = vpack.c.b16 %v3679, %v3667
    %v5144 = vpack.c.b16 %v3680, %v3668
    %v5145 = vpack.c.b16 %v3681, %v3669
    %v5146 = vpack.c.b16 %v3682, %v3670
    %v5147 = vpack.c.b16 %v3683, %v3671
    %v5148 = vpack.c.b16 %v3696, %v3684
    %v5149 = vpack.c.b16 %v3697, %v3685
    %v5150 = vpack.c.b16 %v3698, %v3686
    %v5151 = vpack.c.b16 %v3699, %v3687
    %v5152 = vpack.c.b16 %v3700, %v3688
    %v5153 = vpack.c.b16 %v3701, %v3689
    %v5154 = vpack.c.b16 %v3702, %v3690
    %v5155 = vpack.c.b16 %v3703, %v3691
    %v5156 = vpack.c.b16 %v3704, %v3692
    %v5157 = vpack.c.b16 %v3705, %v3693
    %v5158 = vpack.c.b16 %v3706, %v3694
    %v5159 = vpack.c.b16 %v3707, %v3695
    %v5160 = vpack.c.b16 %v3720, %v3708
    %v5161 = vpack.c.b16 %v3721, %v3709
    %v5162 = vpack.c.b16 %v3722, %v3710
    %v5163 = vpack.c.b16 %v3723, %v3711
    %v5164 = vpack.c.b16 %v3724, %v3712
    %v5165 = vpack.c.b16 %v3725, %v3713
    %v5166 = vpack.c.b16 %v3726, %v3714
    %v5167 = vpack.c.b16 %v3727, %v3715
    %v5168 = vpack.c.b16 %v3728, %v3716
    %v5169 = vpack.c.b16 %v3729, %v3717
    %v5170 = vpack.c.b16 %v3730, %v3718
    %v5171 = vpack.c.b16 %v3731, %v3719
    %v5172 = vpack.c.b16 %v3744, %v3732
    %v5173 = vpack.c.b16 %v3745, %v3733
    %v5174 = vpack.c.b16 %v3746, %v3734
    %v5175 = vpack.c.b16 %v3747, %v3735
    %v5176 = vpack.c.b16 %v3748, %v3736
    %v5177 = vpack.c.b16 %v3749, %v3737
    %v5178 = vpack.c.b16 %v3750, %v3738
    %v5179 = vpack.c.b16 %v3751, %v3739
    %v5180 = vpack.c.b16 %v3752, %v3740
    %v5181 = vpack.c.b16 %v3753, %v3741
    %v5182 = vpack.c.b16 %v3754, %v3742
    %v5183 = vpack.c.b16 %v3755, %v3743
    %v5184 = vpack.c.b16 %v3768, %v3756
    %v5185 = vpack.c.b16 %v3769, %v3757
    %v5186 = vpack.c.b16 %v3770, %v3758
    %v5187 = vpack.c.b16 %v3771, %v3759
    %v5188 = vpack.c.b16 %v3772, %v3760
    %v5189 = vpack.c.b16 %v3773, %v3761
    %v5190 = vpack.c.b16 %v3774, %v3762
    %v5191 = vpack.c.b16 %v3775, %v3763
    %v5192 = vpack.c.b16 %v3776, %v3764
    %v5193 = vpack.c.b16 %v3777, %v3765
    %v5194 = vpack.c.b16 %v3778, %v3766
    %v5195 = vpack.c.b16 %v3779, %v3767
    %v5196 = vpack.c.b16 %v3792, %v3780
    %v5197 = vpack.c.b16 %v3793, %v3781
    %v5198 = vpack.c.b16 %v3794, %v3782
    %v5199 = vpack.c.b16 %v3795, %v3783
    %v5200 = vpack.c.b16 %v3796, %v3784
    %v5201 = vpack.c.b16 %v3797, %v3785
    %v5202 = vpack.c.b16 %v3798, %v3786
    %v5203 = vpack.c.b16 %v3799, %v3787
    %v5204 = vpack.c.b16 %v3800, %v3788
    %v5205 = vpack.c.b16 %v3801, %v3789
    %v5206 = vpack.c.b16 %v3802, %v3790
    %v5207 = vpack.c.b16 %v3803, %v3791
    %v5208 = vpack.c.b16 %v3816, %v3804
    %v5209 = vpack.c.b16 %v3817, %v3805
    %v5210 = vpack.c.b16 %v3818, %v3806
    %v5211 = vpack.c.b16 %v3819, %v3807
    %v5212 = vpack.c.b16 %v3820, %v3808
    %v5213 = vpack.c.b16 %v3821, %v3809
    %v5214 = vpack.c.b16 %v3822, %v3810
    %v5215 = vpack.c.b16 %v3823, %v3811
    %v5216 = vpack.c.b16 %v3824, %v3812
    %v5217 = vpack.c.b16 %v3825, %v3813
    %v5218 = vpack.c.b16 %v3826, %v3814
    %v5219 = vpack.c.b16 %v3827, %v3815
    %v5220 = vpack.c.b16 %v3840, %v3828
    %v5221 = vpack.c.b16 %v3841, %v3829
    %v5222 = vpack.c.b16 %v3842, %v3830
    %v5223 = vpack.c.b16 %v3843, %v3831
    %v5224 = vpack.c.b16 %v3844, %v3832
    %v5225 = vpack.c.b16 %v3845, %v3833
    %v5226 = vpack.c.b16 %v3846, %v3834
    %v5227 = vpack.c.b16 %v3847, %v3835
    %v5228 = vpack.c.b16 %v3848, %v3836
    %v5229 = vpack.c.b16 %v3849, %v3837
    %v5230 = vpack.c.b16 %v3850, %v3838
    %v5231 = vpack.c.b16 %v3851, %v3839
    %v5232 = vpack.c.b16 %v3864, %v3852
    %v5233 = vpack.c.b16 %v3865, %v3853
    %v5234 = vpack.c.b16 %v3866, %v3854
    %v5235 = vpack.c.b16 %v3867, %v3855
    %v5236 = vpack.c.b16 %v3868, %v3856
    %v5237 = vpack.c.b16 %v3869, %v3857
    %v5238 = vpack.c.b16 %v3870, %v3858
    %v5239 = vpack.c.b16 %v3871, %v3859
    %v5240 = vpack.c.b16 %v3872, %v3860
    %v5241 = vpack.c.b16 %v3873, %v3861
    %v5242 = vpack.c.b16 %v3874, %v3862
    %v5243 = vpack.c.b16 %v3875, %v3863
    %v5244 = vpack.c.b16 %v3888, %v3876
    %v5245 = vpack.c.b16 %v3889, %v3877
    %v5246 = vpack.c.b16 %v3890, %v3878
    %v5247 = vpack.c.b16 %v3891, %v3879
    %v5248 = vpack.c.b16 %v3892, %v3880
    %v5249 = vpack.c.b16 %v3893, %v3881
    %v5250 = vpack.c.b16 %v3894, %v3882
    %v5251 = vpack.c.b16 %v3895, %v3883
    %v5252 = vpack.c.b16 %v3896, %v3884
    %v5253 = vpack.c.b16 %v3897, %v3885
    %v5254 = vpack.c.b16 %v3898, %v3886
    %v5255 = vpack.c.b16 %v3899, %v3887
    %v5256 = vpack.c.b16 %v3912, %v3900
    %v5257 = vpack.c.b16 %v3913, %v3901
    %v5258 = vpack.c.b16 %v3914, %v3902
    %v5259 = vpack.c.b16 %v3915, %v3903
    %v5260 = vpack.c.b16 %v3916, %v3904
    %v5261 = vpack.c.b16 %v3917, %v3905
    %v5262 = vpack.c.b16 %v3918, %v3906
    %v5263 = vpack.c.b16 %v3919, %v3907
    %v5264 = vpack.c.b16 %v3920, %v3908
    %v5265 = vpack.c.b16 %v3921, %v3909
    %v5266 = vpack.c.b16 %v3922, %v3910
    %v5267 = vpack.c.b16 %v3923, %v3911
    %v5268 = vpack.c.b16 %v3936, %v3924
    %v5269 = vpack.c.b16 %v3937, %v3925
    %v5270 = vpack.c.b16 %v3938, %v3926
    %v5271 = vpack.c.b16 %v3939, %v3927
    %v5272 = vpack.c.b16 %v3940, %v3928
    %v5273 = vpack.c.b16 %v3941, %v3929
    %v5274 = vpack.c.b16 %v3942, %v3930
    %v5275 = vpack.c.b16 %v3943, %v3931
    %v5276 = vpack.c.b16 %v3944, %v3932
    %v5277 = vpack.c.b16 %v3945, %v3933
    %v5278 = vpack.c.b16 %v3946, %v3934
    %v5279 = vpack.c.b16 %v3947, %v3935
    %v5280 = vpack.c.b16 %v3960, %v3948
    %v5281 = vpack.c.b16 %v3961, %v3949
    %v5282 = vpack.c.b16 %v3962, %v3950
    %v5283 = vpack.c.b16 %v3963, %v3951
    %v5284 = vpack.c.b16 %v3964, %v3952
    %v5285 = vpack.c.b16 %v3965, %v3953
    %v5286 = vpack.c.b16 %v3966, %v3954
    %v5287 = vpack.c.b16 %v3967, %v3955
    %v5288 = vpack.c.b16 %v3968, %v3956
    %v5289 = vpack.c.b16 %v3969, %v3957
    %v5290 = vpack.c.b16 %v3970, %v3958
    %v5291 = vpack.c.b16 %v3971, %v3959
    %v5292 = vpack.c.b16 %v3984, %v3972
    %v5293 = vpack.c.b16 %v3985, %v3973
    %v5294 = vpack.c.b16 %v3986, %v3974
    %v5295 = vpack.c.b16 %v3987, %v3975
    %v5296 = vpack.c.b16 %v3988, %v3976
    %v5297 = vpack.c.b16 %v3989, %v3977
    %v5298 = vpack.c.b16 %v3990, %v3978
    %v5299 = vpack.c.b16 %v3991, %v3979
    %v5300 = vpack.c.b16 %v3992, %v3980
    %v5301 = vpack.c.b16 %v3993, %v3981
    %v5302 = vpack.c.b16 %v3994, %v3982
    %v5303 = vpack.c.b16 %v3995, %v3983
    %v5304 = vpack.c.b16 %v4008, %v3996
    %v5305 = vpack.c.b16 %v4009, %v3997
    %v5306 = vpack.c.b16 %v4010, %v3998
    %v5307 = vpack.c.b16 %v4011, %v3999
    %v5308 = vpack.c.b16 %v4012, %v4000
    %v5309 = vpack.c.b16 %v4013, %v4001
    %v5310 = vpack.c.b16 %v4014, %v4002
    %v5311 = vpack.c.b16 %v4015, %v4003
    %v5312 = vpack.c.b16 %v4016, %v4004
    %v5313 = vpack.c.b16 %v4017, %v4005
    %v5314 = vpack.c.b16 %v4018, %v4006
    %v5315 = vpack.c.b16 %v4019, %v4007
    %v5316 = vpack.c.b16 %v4032, %v4020
    %v5317 = vpack.c.b16 %v4033, %v4021
    %v5318 = vpack.c.b16 %v4034, %v4022
    %v5319 = vpack.c.b16 %v4035, %v4023
    %v5320 = vpack.c.b16 %v4036, %v4024
    %v5321 = vpack.c.b16 %v4037, %v4025
    %v5322 = vpack.c.b16 %v4038, %v4026
    %v5323 = vpack.c.b16 %v4039, %v4027
    %v5324 = vpack.c.b16 %v4040, %v4028
    %v5325 = vpack.c.b16 %v4041, %v4029
    %v5326 = vpack.c.b16 %v4042, %v4030
    %v5327 = vpack.c.b16 %v4043, %v4031
    %v5328 = vpack.c.b16 %v4056, %v4044
    %v5329 = vpack.c.b16 %v4057, %v4045
    %v5330 = vpack.c.b16 %v4058, %v4046
    %v5331 = vpack.c.b16 %v4059, %v4047
    %v5332 = vpack.c.b16 %v4060, %v4048
    %v5333 = vpack.c.b16 %v4061, %v4049
    %v5334 = vpack.c.b16 %v4062, %v4050
    %v5335 = vpack.c.b16 %v4063, %v4051
    %v5336 = vpack.c.b16 %v4064, %v4052
    %v5337 = vpack.c.b16 %v4065, %v4053
    %v5338 = vpack.c.b16 %v4066, %v4054
    %v5339 = vpack.c.b16 %v4067, %v4055
    %v5340 = vpack.c.b16 %v4080, %v4068
    %v5341 = vpack.c.b16 %v4081, %v4069
    %v5342 = vpack.c.b16 %v4082, %v4070
    %v5343 = vpack.c.b16 %v4083, %v4071
    %v5344 = vpack.c.b16 %v4084, %v4072
    %v5345 = vpack.c.b16 %v4085, %v4073
    %v5346 = vpack.c.b16 %v4086, %v4074
    %v5347 = vpack.c.b16 %v4087, %v4075
    %v5348 = vpack.c.b16 %v4088, %v4076
    %v5349 = vpack.c.b16 %v4089, %v4077
    %v5350 = vpack.c.b16 %v4090, %v4078
    %v5351 = vpack.c.b16 %v4091, %v4079
    %v5352 = vpack.c.b16 %v4104, %v4092
    %v5353 = vpack.c.b16 %v4105, %v4093
    %v5354 = vpack.c.b16 %v4106, %v4094
    %v5355 = vpack.c.b16 %v4107, %v4095
    %v5356 = vpack.c.b16 %v4108, %v4096
    %v5357 = vpack.c.b16 %v4109, %v4097
    %v5358 = vpack.c.b16 %v4110, %v4098
    %v5359 = vpack.c.b16 %v4111, %v4099
    %v5360 = vpack.c.b16 %v4112, %v4100
    %v5361 = vpack.c.b16 %v4113, %v4101
    %v5362 = vpack.c.b16 %v4114, %v4102
    %v5363 = vpack.c.b16 %v4115, %v4103
    %v5364 = vpack.c.b16 %v4128, %v4116
    %v5365 = vpack.c.b16 %v4129, %v4117
    %v5366 = vpack.c.b16 %v4130, %v4118
    %v5367 = vpack.c.b16 %v4131, %v4119
    %v5368 = vpack.c.b16 %v4132, %v4120
    %v5369 = vpack.c.b16 %v4133, %v4121
    %v5370 = vpack.c.b16 %v4134, %v4122
    %v5371 = vpack.c.b16 %v4135, %v4123
    %v5372 = vpack.c.b16 %v4136, %v4124
    %v5373 = vpack.c.b16 %v4137, %v4125
    %v5374 = vpack.c.b16 %v4138, %v4126
    %v5375 = vpack.c.b16 %v4139, %v4127
    %v5376 = vpack.c.b16 %v4152, %v4140
    %v5377 = vpack.c.b16 %v4153, %v4141
    %v5378 = vpack.c.b16 %v4154, %v4142
    %v5379 = vpack.c.b16 %v4155, %v4143
    %v5380 = vpack.c.b16 %v4156, %v4144
    %v5381 = vpack.c.b16 %v4157, %v4145
    %v5382 = vpack.c.b16 %v4158, %v4146
    %v5383 = vpack.c.b16 %v4159, %v4147
    %v5384 = vpack.c.b16 %v4160, %v4148
    %v5385 = vpack.c.b16 %v4161, %v4149
    %v5386 = vpack.c.b16 %v4162, %v4150
    %v5387 = vpack.c.b16 %v4163, %v4151
    %v5388 = vpack.c.b16 %v4176, %v4164
    %v5389 = vpack.c.b16 %v4177, %v4165
    %v5390 = vpack.c.b16 %v4178, %v4166
    %v5391 = vpack.c.b16 %v4179, %v4167
    %v5392 = vpack.c.b16 %v4180, %v4168
    %v5393 = vpack.c.b16 %v4181, %v4169
    %v5394 = vpack.c.b16 %v4182, %v4170
    %v5395 = vpack.c.b16 %v4183, %v4171
    %v5396 = vpack.c.b16 %v4184, %v4172
    %v5397 = vpack.c.b16 %v4185, %v4173
    %v5398 = vpack.c.b16 %v4186, %v4174
    %v5399 = vpack.c.b16 %v4187, %v4175
    %v5400 = vpack.c.b16 %v4200, %v4188
    %v5401 = vpack.c.b16 %v4201, %v4189
    %v5402 = vpack.c.b16 %v4202, %v4190
    %v5403 = vpack.c.b16 %v4203, %v4191
    %v5404 = vpack.c.b16 %v4204, %v4192
    %v5405 = vpack.c.b16 %v4205, %v4193
    %v5406 = vpack.c.b16 %v4206, %v4194
    %v5407 = vpack.c.b16 %v4207, %v4195
    %v5408 = vpack.c.b16 %v4208, %v4196
    %v5409 = vpack.c.b16 %v4209, %v4197
    %v5410 = vpack.c.b16 %v4210, %v4198
    %v5411 = vpack.c.b16 %v4211, %v4199
    %v5412 = vpack.c.b16 %v4224, %v4212
    %v5413 = vpack.c.b16 %v4225, %v4213
    %v5414 = vpack.c.b16 %v4226, %v4214
    %v5415 = vpack.c.b16 %v4227, %v4215
    %v5416 = vpack.c.b16 %v4228, %v4216
    %v5417 = vpack.c.b16 %v4229, %v4217
    %v5418 = vpack.c.b16 %v4230, %v4218
    %v5419 = vpack.c.b16 %v4231, %v4219
    %v5420 = vpack.c.b16 %v4232, %v4220
    %v5421 = vpack.c.b16 %v4233, %v4221
    %v5422 = vpack.c.b16 %v4234, %v4222
    %v5423 = vpack.c.b16 %v4235, %v4223
    %v5424 = vpack.c.b16 %v4248, %v4236
    %v5425 = vpack.c.b16 %v4249, %v4237
    %v5426 = vpack.c.b16 %v4250, %v4238
    %v5427 = vpack.c.b16 %v4251, %v4239
    %v5428 = vpack.c.b16 %v4252, %v4240
    %v5429 = vpack.c.b16 %v4253, %v4241
    %v5430 = vpack.c.b16 %v4254, %v4242
    %v5431 = vpack.c.b16 %v4255, %v4243
    %v5432 = vpack.c.b16 %v4256, %v4244
    %v5433 = vpack.c.b16 %v4257, %v4245
    %v5434 = vpack.c.b16 %v4258, %v4246
    %v5435 = vpack.c.b16 %v4259, %v4247
    %v5436 = vpack.c.b16 %v4272, %v4260
    %v5437 = vpack.c.b16 %v4273, %v4261
    %v5438 = vpack.c.b16 %v4274, %v4262
    %v5439 = vpack.c.b16 %v4275, %v4263
    %v5440 = vpack.c.b16 %v4276, %v4264
    %v5441 = vpack.c.b16 %v4277, %v4265
    %v5442 = vpack.c.b16 %v4278, %v4266
    %v5443 = vpack.c.b16 %v4279, %v4267
    %v5444 = vpack.c.b16 %v4280, %v4268
    %v5445 = vpack.c.b16 %v4281, %v4269
    %v5446 = vpack.c.b16 %v4282, %v4270
    %v5447 = vpack.c.b16 %v4283, %v4271
    %v5448 = vpack.c.b16 %v4296, %v4284
    %v5449 = vpack.c.b16 %v4297, %v4285
    %v5450 = vpack.c.b16 %v4298, %v4286
    %v5451 = vpack.c.b16 %v4299, %v4287
    %v5452 = vpack.c.b16 %v4300, %v4288
    %v5453 = vpack.c.b16 %v4301, %v4289
    %v5454 = vpack.c.b16 %v4302, %v4290
    %v5455 = vpack.c.b16 %v4303, %v4291
    %v5456 = vpack.c.b16 %v4304, %v4292
    %v5457 = vpack.c.b16 %v4305, %v4293
    %v5458 = vpack.c.b16 %v4306, %v4294
    %v5459 = vpack.c.b16 %v4307, %v4295
    %v5460 = vpack.c.b16 %v4320, %v4308
    %v5461 = vpack.c.b16 %v4321, %v4309
    %v5462 = vpack.c.b16 %v4322, %v4310
    %v5463 = vpack.c.b16 %v4323, %v4311
    %v5464 = vpack.c.b16 %v4324, %v4312
    %v5465 = vpack.c.b16 %v4325, %v4313
    %v5466 = vpack.c.b16 %v4326, %v4314
    %v5467 = vpack.c.b16 %v4327, %v4315
    %v5468 = vpack.c.b16 %v4328, %v4316
    %v5469 = vpack.c.b16 %v4329, %v4317
    %v5470 = vpack.c.b16 %v4330, %v4318
    %v5471 = vpack.c.b16 %v4331, %v4319
    %v5472 = vpack.c.b16 %v4344, %v4332
    %v5473 = vpack.c.b16 %v4345, %v4333
    %v5474 = vpack.c.b16 %v4346, %v4334
    %v5475 = vpack.c.b16 %v4347, %v4335
    %v5476 = vpack.c.b16 %v4348, %v4336
    %v5477 = vpack.c.b16 %v4349, %v4337
    %v5478 = vpack.c.b16 %v4350, %v4338
    %v5479 = vpack.c.b16 %v4351, %v4339
    %v5480 = vpack.c.b16 %v4352, %v4340
    %v5481 = vpack.c.b16 %v4353, %v4341
    %v5482 = vpack.c.b16 %v4354, %v4342
    %v5483 = vpack.c.b16 %v4355, %v4343
    %v5484 = vpack.c.b16 %v4368, %v4356
    %v5485 = vpack.c.b16 %v4369, %v4357
    %v5486 = vpack.c.b16 %v4370, %v4358
    %v5487 = vpack.c.b16 %v4371, %v4359
    %v5488 = vpack.c.b16 %v4372, %v4360
    %v5489 = vpack.c.b16 %v4373, %v4361
    %v5490 = vpack.c.b16 %v4374, %v4362
    %v5491 = vpack.c.b16 %v4375, %v4363
    %v5492 = vpack.c.b16 %v4376, %v4364
    %v5493 = vpack.c.b16 %v4377, %v4365
    %v5494 = vpack.c.b16 %v4378, %v4366
    %v5495 = vpack.c.b16 %v4379, %v4367
    %v5496 = vpack.c.b16 %v4392, %v4380
    %v5497 = vpack.c.b16 %v4393, %v4381
    %v5498 = vpack.c.b16 %v4394, %v4382
    %v5499 = vpack.c.b16 %v4395, %v4383
    %v5500 = vpack.c.b16 %v4396, %v4384
    %v5501 = vpack.c.b16 %v4397, %v4385
    %v5502 = vpack.c.b16 %v4398, %v4386
    %v5503 = vpack.c.b16 %v4399, %v4387
    %v5504 = vpack.c.b16 %v4400, %v4388
    %v5505 = vpack.c.b16 %v4401, %v4389
    %v5506 = vpack.c.b16 %v4402, %v4390
    %v5507 = vpack.c.b16 %v4403, %v4391
    %v5508 = vpack.c.b16 %v4416, %v4404
    %v5509 = vpack.c.b16 %v4417, %v4405
    %v5510 = vpack.c.b16 %v4418, %v4406
    %v5511 = vpack.c.b16 %v4419, %v4407
    %v5512 = vpack.c.b16 %v4420, %v4408
    %v5513 = vpack.c.b16 %v4421, %v4409
    %v5514 = vpack.c.b16 %v4422, %v4410
    %v5515 = vpack.c.b16 %v4423, %v4411
    %v5516 = vpack.c.b16 %v4424, %v4412
    %v5517 = vpack.c.b16 %v4425, %v4413
    %v5518 = vpack.c.b16 %v4426, %v4414
    %v5519 = vpack.c.b16 %v4427, %v4415
    %v5520 = vpack.c.b16 %v4440, %v4428
    %v5521 = vpack.c.b16 %v4441, %v4429
    %v5522 = vpack.c.b16 %v4442, %v4430
    %v5523 = vpack.c.b16 %v4443, %v4431
    %v5524 = vpack.c.b16 %v4444, %v4432
    %v5525 = vpack.c.b16 %v4445, %v4433
    %v5526 = vpack.c.b16 %v4446, %v4434
    %v5527 = vpack.c.b16 %v4447, %v4435
    %v5528 = vpack.c.b16 %v4448, %v4436
    %v5529 = vpack.c.b16 %v4449, %v4437
    %v5530 = vpack.c.b16 %v4450, %v4438
    %v5531 = vpack.c.b16 %v4451, %v4439
    %v5532 = vpack.c.b16 %v4464, %v4452
    %v5533 = vpack.c.b16 %v4465, %v4453
    %v5534 = vpack.c.b16 %v4466, %v4454
    %v5535 = vpack.c.b16 %v4467, %v4455
    %v5536 = vpack.c.b16 %v4468, %v4456
    %v5537 = vpack.c.b16 %v4469, %v4457
    %v5538 = vpack.c.b16 %v4470, %v4458
    %v5539 = vpack.c.b16 %v4471, %v4459
    %v5540 = vpack.c.b16 %v4472, %v4460
    %v5541 = vpack.c.b16 %v4473, %v4461
    %v5542 = vpack.c.b16 %v4474, %v4462
    %v5543 = vpack.c.b16 %v4475, %v4463
    %v5544 = vpack.c.b16 %v4488, %v4476
    %v5545 = vpack.c.b16 %v4489, %v4477
    %v5546 = vpack.c.b16 %v4490, %v4478
    %v5547 = vpack.c.b16 %v4491, %v4479
    %v5548 = vpack.c.b16 %v4492, %v4480
    %v5549 = vpack.c.b16 %v4493, %v4481
    %v5550 = vpack.c.b16 %v4494, %v4482
    %v5551 = vpack.c.b16 %v4495, %v4483
    %v5552 = vpack.c.b16 %v4496, %v4484
    %v5553 = vpack.c.b16 %v4497, %v4485
    %v5554 = vpack.c.b16 %v4498, %v4486
    %v5555 = vpack.c.b16 %v4499, %v4487
    %v5556 = vpack.c.b16 %v4512, %v4500
    %v5557 = vpack.c.b16 %v4513, %v4501
    %v5558 = vpack.c.b16 %v4514, %v4502
    %v5559 = vpack.c.b16 %v4515, %v4503
    %v5560 = vpack.c.b16 %v4516, %v4504
    %v5561 = vpack.c.b16 %v4517, %v4505
    %v5562 = vpack.c.b16 %v4518, %v4506
    %v5563 = vpack.c.b16 %v4519, %v4507
    %v5564 = vpack.c.b16 %v4520, %v4508
    %v5565 = vpack.c.b16 %v4521, %v4509
    %v5566 = vpack.c.b16 %v4522, %v4510
    %v5567 = vpack.c.b16 %v4523, %v4511
    %v5568 = vpack.c.b16 %v4536, %v4524
    %v5569 = vpack.c.b16 %v4537, %v4525
    %v5570 = vpack.c.b16 %v4538, %v4526
    %v5571 = vpack.c.b16 %v4539, %v4527
    %v5572 = vpack.c.b16 %v4540, %v4528
    %v5573 = vpack.c.b16 %v4541, %v4529
    %v5574 = vpack.c.b16 %v4542, %v4530
    %v5575 = vpack.c.b16 %v4543, %v4531
    %v5576 = vpack.c.b16 %v4544, %v4532
    %v5577 = vpack.c.b16 %v4545, %v4533
    %v5578 = vpack.c.b16 %v4546, %v4534
    %v5579 = vpack.c.b16 %v4547, %v4535
    %v5580 = vpack.c.b16 %v4560, %v4548
    %v5581 = vpack.c.b16 %v4561, %v4549
    %v5582 = vpack.c.b16 %v4562, %v4550
    %v5583 = vpack.c.b16 %v4563, %v4551
    %v5584 = vpack.c.b16 %v4564, %v4552
    %v5585 = vpack.c.b16 %v4565, %v4553
    %v5586 = vpack.c.b16 %v4566, %v4554
    %v5587 = vpack.c.b16 %v4567, %v4555
    %v5588 = vpack.c.b16 %v4568, %v4556
    %v5589 = vpack.c.b16 %v4569, %v4557
    %v5590 = vpack.c.b16 %v4570, %v4558
    %v5591 = vpack.c.b16 %v4571, %v4559
    %v5592 = vpack.c.b16 %v4584, %v4572
    %v5593 = vpack.c.b16 %v4585, %v4573
    %v5594 = vpack.c.b16 %v4586, %v4574
    %v5595 = vpack.c.b16 %v4587, %v4575
    %v5596 = vpack.c.b16 %v4588, %v4576
    %v5597 = vpack.c.b16 %v4589, %v4577
    %v5598 = vpack.c.b16 %v4590, %v4578
    %v5599 = vpack.c.b16 %v4591, %v4579
    %v5600 = vpack.c.b16 %v4592, %v4580
    %v5601 = vpack.c.b16 %v4593, %v4581
    %v5602 = vpack.c.b16 %v4594, %v4582
    %v5603 = vpack.c.b16 %v4595, %v4583
    %v5604 = vpack.c.b16 %v4608, %v4596
    %v5605 = vpack.c.b16 %v4609, %v4597
    %v5606 = vpack.c.b16 %v4610, %v4598
    %v5607 = vpack.c.b16 %v4611, %v4599
    %v5608 = vpack.c.b16 %v4612, %v4600
    %v5609 = vpack.c.b16 %v4613, %v4601
    %v5610 = vpack.c.b16 %v4614, %v4602
    %v5611 = vpack.c.b16 %v4615, %v4603
    %v5612 = vpack.c.b16 %v4616, %v4604
    %v5613 = vpack.c.b16 %v4617, %v4605
    %v5614 = vpack.c.b16 %v4618, %v4606
    %v5615 = vpack.c.b16 %v4619, %v4607
    %v5616 = vpack.c.b16 %v4632, %v4620
    %v5617 = vpack.c.b16 %v4633, %v4621
    %v5618 = vpack.c.b16 %v4634, %v4622
    %v5619 = vpack.c.b16 %v4635, %v4623
    %v5620 = vpack.c.b16 %v4636, %v4624
    %v5621 = vpack.c.b16 %v4637, %v4625
    %v5622 = vpack.c.b16 %v4638, %v4626
    %v5623 = vpack.c.b16 %v4639, %v4627
    %v5624 = vpack.c.b16 %v4640, %v4628
    %v5625 = vpack.c.b16 %v4641, %v4629
    %v5626 = vpack.c.b16 %v4642, %v4630
    %v5627 = vpack.c.b16 %v4643, %v4631
    %v5628 = vpack.c.b16 %v4656, %v4644
    %v5629 = vpack.c.b16 %v4657, %v4645
    %v5630 = vpack.c.b16 %v4658, %v4646
    %v5631 = vpack.c.b16 %v4659, %v4647
    %v5632 = vpack.c.b16 %v4660, %v4648
    %v5633 = vpack.c.b16 %v4661, %v4649
    %v5634 = vpack.c.b16 %v4662, %v4650
    %v5635 = vpack.c.b16 %v4663, %v4651
    %v5636 = vpack.c.b16 %v4664, %v4652
    %v5637 = vpack.c.b16 %v4665, %v4653
    %v5638 = vpack.c.b16 %v4666, %v4654
    %v5639 = vpack.c.b16 %v4667, %v4655
    %v5640 = vpack.c.b16 %v4680, %v4668
    %v5641 = vpack.c.b16 %v4681, %v4669
    %v5642 = vpack.c.b16 %v4682, %v4670
    %v5643 = vpack.c.b16 %v4683, %v4671
    %v5644 = vpack.c.b16 %v4684, %v4672
    %v5645 = vpack.c.b16 %v4685, %v4673
    %v5646 = vpack.c.b16 %v4686, %v4674
    %v5647 = vpack.c.b16 %v4687, %v4675
    %v5648 = vpack.c.b16 %v4688, %v4676
    %v5649 = vpack.c.b16 %v4689, %v4677
    %v5650 = vpack.c.b16 %v4690, %v4678
    %v5651 = vpack.c.b16 %v4691, %v4679
    %v5652 = vpack.c.b16 %v4704, %v4692
    %v5653 = vpack.c.b16 %v4705, %v4693
    %v5654 = vpack.c.b16 %v4706, %v4694
    %v5655 = vpack.c.b16 %v4707, %v4695
    %v5656 = vpack.c.b16 %v4708, %v4696
    %v5657 = vpack.c.b16 %v4709, %v4697
    %v5658 = vpack.c.b16 %v4710, %v4698
    %v5659 = vpack.c.b16 %v4711, %v4699
    %v5660 = vpack.c.b16 %v4712, %v4700
    %v5661 = vpack.c.b16 %v4713, %v4701
    %v5662 = vpack.c.b16 %v4714, %v4702
    %v5663 = vpack.c.b16 %v4715, %v4703
    %v5664 = vpack.c.b16 %v4728, %v4716
    %v5665 = vpack.c.b16 %v4729, %v4717
    %v5666 = vpack.c.b16 %v4730, %v4718
    %v5667 = vpack.c.b16 %v4731, %v4719
    %v5668 = vpack.c.b16 %v4732, %v4720
    %v5669 = vpack.c.b16 %v4733, %v4721
    %v5670 = vpack.c.b16 %v4734, %v4722
    %v5671 = vpack.c.b16 %v4735, %v4723
    %v5672 = vpack.c.b16 %v4736, %v4724
    %v5673 = vpack.c.b16 %v4737, %v4725
    %v5674 = vpack.c.b16 %v4738, %v4726
    %v5675 = vpack.c.b16 %v4739, %v4727
    %v5676 = vpack.c.b16 %v4752, %v4740
    %v5677 = vpack.c.b16 %v4753, %v4741
    %v5678 = vpack.c.b16 %v4754, %v4742
    %v5679 = vpack.c.b16 %v4755, %v4743
    %v5680 = vpack.c.b16 %v4756, %v4744
    %v5681 = vpack.c.b16 %v4757, %v4745
    %v5682 = vpack.c.b16 %v4758, %v4746
    %v5683 = vpack.c.b16 %v4759, %v4747
    %v5684 = vpack.c.b16 %v4760, %v4748
    %v5685 = vpack.c.b16 %v4761, %v4749
    %v5686 = vpack.c.b16 %v4762, %v4750
    %v5687 = vpack.c.b16 %v4763, %v4751
    %v5688 = vpack.c.b16 %v4776, %v4764
    %v5689 = vpack.c.b16 %v4777, %v4765
    %v5690 = vpack.c.b16 %v4778, %v4766
    %v5691 = vpack.c.b16 %v4779, %v4767
    %v5692 = vpack.c.b16 %v4780, %v4768
    %v5693 = vpack.c.b16 %v4781, %v4769
    %v5694 = vpack.c.b16 %v4782, %v4770
    %v5695 = vpack.c.b16 %v4783, %v4771
    %v5696 = vpack.c.b16 %v4784, %v4772
    %v5697 = vpack.c.b16 %v4785, %v4773
    %v5698 = vpack.c.b16 %v4786, %v4774
    %v5699 = vpack.c.b16 %v4787, %v4775
    %v5700 = vpack.c.b16 %v4800, %v4788
    %v5701 = vpack.c.b16 %v4801, %v4789
    %v5702 = vpack.c.b16 %v4802, %v4790
    %v5703 = vpack.c.b16 %v4803, %v4791
    %v5704 = vpack.c.b16 %v4804, %v4792
    %v5705 = vpack.c.b16 %v4805, %v4793
    %v5706 = vpack.c.b16 %v4806, %v4794
    %v5707 = vpack.c.b16 %v4807, %v4795
    %v5708 = vpack.c.b16 %v4808, %v4796
    %v5709 = vpack.c.b16 %v4809, %v4797
    %v5710 = vpack.c.b16 %v4810, %v4798
    %v5711 = vpack.c.b16 %v4811, %v4799
    %v5712 = vpack.c.b16 %v4824, %v4812
    %v5713 = vpack.c.b16 %v4825, %v4813
    %v5714 = vpack.c.b16 %v4826, %v4814
    %v5715 = vpack.c.b16 %v4827, %v4815
    %v5716 = vpack.c.b16 %v4828, %v4816
    %v5717 = vpack.c.b16 %v4829, %v4817
    %v5718 = vpack.c.b16 %v4830, %v4818
    %v5719 = vpack.c.b16 %v4831, %v4819
    %v5720 = vpack.c.b16 %v4832, %v4820
    %v5721 = vpack.c.b16 %v4833, %v4821
    %v5722 = vpack.c.b16 %v4834, %v4822
    %v5723 = vpack.c.b16 %v4835, %v4823
    %v5724 = vpack.c.b16 %v4848, %v4836
    %v5725 = vpack.c.b16 %v4849, %v4837
    %v5726 = vpack.c.b16 %v4850, %v4838
    %v5727 = vpack.c.b16 %v4851, %v4839
    %v5728 = vpack.c.b16 %v4852, %v4840
    %v5729 = vpack.c.b16 %v4853, %v4841
    %v5730 = vpack.c.b16 %v4854, %v4842
    %v5731 = vpack.c.b16 %v4855, %v4843
    %v5732 = vpack.c.b16 %v4856, %v4844
    %v5733 = vpack.c.b16 %v4857, %v4845
    %v5734 = vpack.c.b16 %v4858, %v4846
    %v5735 = vpack.c.b16 %v4859, %v4847
    %v5736 = vpack.c.b16 %v4872, %v4860
    %v5737 = vpack.c.b16 %v4873, %v4861
    %v5738 = vpack.c.b16 %v4874, %v4862
    %v5739 = vpack.c.b16 %v4875, %v4863
    %v5740 = vpack.c.b16 %v4876, %v4864
    %v5741 = vpack.c.b16 %v4877, %v4865
    %v5742 = vpack.c.b16 %v4878, %v4866
    %v5743 = vpack.c.b16 %v4879, %v4867
    %v5744 = vpack.c.b16 %v4880, %v4868
    %v5745 = vpack.c.b16 %v4881, %v4869
    %v5746 = vpack.c.b16 %v4882, %v4870
    %v5747 = vpack.c.b16 %v4883, %v4871
    %v5748 = vpack.c.b16 %v4896, %v4884
    %v5749 = vpack.c.b16 %v4897, %v4885
    %v5750 = vpack.c.b16 %v4898, %v4886
    %v5751 = vpack.c.b16 %v4899, %v4887
    %v5752 = vpack.c.b16 %v4900, %v4888
    %v5753 = vpack.c.b16 %v4901, %v4889
    %v5754 = vpack.c.b16 %v4902, %v4890
    %v5755 = vpack.c.b16 %v4903, %v4891
    %v5756 = vpack.c.b16 %v4904, %v4892
    %v5757 = vpack.c.b16 %v4905, %v4893
    %v5758 = vpack.c.b16 %v4906, %v4894
    %v5759 = vpack.c.b16 %v4907, %v4895
    %v5760 = vpack.c.b16 %v4920, %v4908
    %v5761 = vpack.c.b16 %v4921, %v4909
    %v5762 = vpack.c.b16 %v4922, %v4910
    %v5763 = vpack.c.b16 %v4923, %v4911
    %v5764 = vpack.c.b16 %v4924, %v4912
    %v5765 = vpack.c.b16 %v4925, %v4913
    %v5766 = vpack.c.b16 %v4926, %v4914
    %v5767 = vpack.c.b16 %v4927, %v4915
    %v5768 = vpack.c.b16 %v4928, %v4916
    %v5769 = vpack.c.b16 %v4929, %v4917
    %v5770 = vpack.c.b16 %v4930, %v4918
    %v5771 = vpack.c.b16 %v4931, %v4919
    %v5772 = vpack.c.b16 %v4944, %v4932
    %v5773 = vpack.c.b16 %v4945, %v4933
    %v5774 = vpack.c.b16 %v4946, %v4934
    %v5775 = vpack.c.b16 %v4947, %v4935
    %v5776 = vpack.c.b16 %v4948, %v4936
    %v5777 = vpack.c.b16 %v4949, %v4937
    %v5778 = vpack.c.b16 %v4950, %v4938
    %v5779 = vpack.c.b16 %v4951, %v4939
    %v5780 = vpack.c.b16 %v4952, %v4940
    %v5781 = vpack.c.b16 %v4953, %v4941
    %v5782 = vpack.c.b16 %v4954, %v4942
    %v5783 = vpack.c.b16 %v4955, %v4943
    %v5784 = vpack.c.b16 %v4968, %v4956
    %v5785 = vpack.c.b16 %v4969, %v4957
    %v5786 = vpack.c.b16 %v4970, %v4958
    %v5787 = vpack.c.b16 %v4971, %v4959
    %v5788 = vpack.c.b16 %v4972, %v4960
    %v5789 = vpack.c.b16 %v4973, %v4961
    %v5790 = vpack.c.b16 %v4974, %v4962
    %v5791 = vpack.c.b16 %v4975, %v4963
    %v5792 = vpack.c.b16 %v4976, %v4964
    %v5793 = vpack.c.b16 %v4977, %v4965
    %v5794 = vpack.c.b16 %v4978, %v4966
    %v5795 = vpack.c.b16 %v4979, %v4967
    %v5796 = vpack.c.b16 %v4992, %v4980
    %v5797 = vpack.c.b16 %v4993, %v4981
    %v5798 = vpack.c.b16 %v4994, %v4982
    %v5799 = vpack.c.b16 %v4995, %v4983
    %v5800 = vpack.c.b16 %v4996, %v4984
    %v5801 = vpack.c.b16 %v4997, %v4985
    %v5802 = vpack.c.b16 %v4998, %v4986
    %v5803 = vpack.c.b16 %v4999, %v4987
    %v5804 = vpack.c.b16 %v5000, %v4988
    %v5805 = vpack.c.b16 %v5001, %v4989
    %v5806 = vpack.c.b16 %v5002, %v4990
    %v5807 = vpack.c.b16 %v5003, %v4991
    %v5808 = vpack.c.b16 %v5016, %v5004
    %v5809 = vpack.c.b16 %v5017, %v5005
    %v5810 = vpack.c.b16 %v5018, %v5006
    %v5811 = vpack.c.b16 %v5019, %v5007
    %v5812 = vpack.c.b16 %v5020, %v5008
    %v5813 = vpack.c.b16 %v5021, %v5009
    %v5814 = vpack.c.b16 %v5022, %v5010
    %v5815 = vpack.c.b16 %v5023, %v5011
    %v5816 = vpack.c.b16 %v5024, %v5012
    %v5817 = vpack.c.b16 %v5025, %v5013
    %v5818 = vpack.c.b16 %v5026, %v5014
    %v5819 = vpack.c.b16 %v5027, %v5015
    %v5820 = vpack.c.b16 %v5040, %v5028
    %v5821 = vpack.c.b16 %v5041, %v5029
    %v5822 = vpack.c.b16 %v5042, %v5030
    %v5823 = vpack.c.b16 %v5043, %v5031
    %v5824 = vpack.c.b16 %v5044, %v5032
    %v5825 = vpack.c.b16 %v5045, %v5033
    %v5826 = vpack.c.b16 %v5046, %v5034
    %v5827 = vpack.c.b16 %v5047, %v5035
    %v5828 = vpack.c.b16 %v5048, %v5036
    %v5829 = vpack.c.b16 %v5049, %v5037
    %v5830 = vpack.c.b16 %v5050, %v5038
    %v5831 = vpack.c.b16 %v5051, %v5039
    %v5832 = vpack.c.b16 %v5064, %v5052
    %v5833 = vpack.c.b16 %v5065, %v5053
    %v5834 = vpack.c.b16 %v5066, %v5054
    %v5835 = vpack.c.b16 %v5067, %v5055
    %v5836 = vpack.c.b16 %v5068, %v5056
    %v5837 = vpack.c.b16 %v5069, %v5057
    %v5838 = vpack.c.b16 %v5070, %v5058
    %v5839 = vpack.c.b16 %v5071, %v5059
    %v5840 = vpack.c.b16 %v5072, %v5060
    %v5841 = vpack.c.b16 %v5073, %v5061
    %v5842 = vpack.c.b16 %v5074, %v5062
    %v5843 = vpack.c.b16 %v5075, %v5063
    %6612 = vmatprep.subr.bf16.mxu0 %v5077
    %6613 = vmatpush1.bf16.msra.mxu0 %v5076
    %6614 = vmatprep.subr.bf16.mxu0 %v5089
    %6615 = vmatpush1.bf16.msra.mxu0 %v5088
    %6616 = vmatprep.subr.bf16.mxu0 %v5101
    %6617 = vmatpush1.bf16.msra.mxu0 %v5100
    %6618 = vmatprep.subr.bf16.mxu0 %v5113
    %6619 = vmatpush1.bf16.msra.mxu0 %v5112
    %6620 = vmatprep.subr.bf16.mxu0 %v5125
    %6621 = vmatpush1.bf16.msra.mxu0 %v5124
    %6622 = vmatprep.subr.bf16.mxu0 %v5137
    %6623 = vmatpush1.bf16.msra.mxu0 %v5136
    %6624 = vmatprep.subr.bf16.mxu0 %v5149
    %6625 = vmatpush1.bf16.msra.mxu0 %v5148
    %6626 = vmatprep.subr.bf16.mxu0 %v5161
    %6627 = vmatpush1.bf16.msra.mxu0 %v5160
    %6628 = vmatprep.subr.bf16.mxu0 %v5173
    %6629 = vmatpush1.bf16.msra.mxu0 %v5172
    %6630 = vmatprep.subr.bf16.mxu0 %v5185
    %6631 = vmatpush1.bf16.msra.mxu0 %v5184
    %6632 = vmatprep.subr.bf16.mxu0 %v5197
    %6633 = vmatpush1.bf16.msra.mxu0 %v5196
    %6634 = vmatprep.subr.bf16.mxu0 %v5209
    %6635 = vmatpush1.bf16.msra.mxu0 %v5208
    %6636 = vmatprep.subr.bf16.mxu0 %v5221
    %6637 = vmatpush1.bf16.msra.mxu0 %v5220
    %6638 = vmatprep.subr.bf16.mxu0 %v5233
    %6639 = vmatpush1.bf16.msra.mxu0 %v5232
    %6640 = vmatprep.subr.bf16.mxu0 %v5245
    %6641 = vmatpush1.bf16.msra.mxu0 %v5244
    %6642 = vmatprep.subr.bf16.mxu0 %v5257
    %6643 = vmatpush1.bf16.msra.mxu0 %v5256
    %6644 = vmatprep.mubr.bf16.mxu0 %v1933
    %6645 = vmatmul.mubr.bf16.gmra.mrb[0].mxu0 %v1932
    %v6646 = vpop.f32.mrb[0].mxu0
    %v6647 = vadd.f32 %v2715, %v6646
    %v6648 = vpop.f32.mrb[0].mxu0
    %v6649 = vadd.f32 %v2719, %v6648
    %v6650 = vpop.f32.mrb[0].mxu0
    %v6651 = vpop.f32.mrb[0].mxu0
    %6652 = vdwg.mxu0
    %6653 = vmatprep.subr.bf16.mxu0 %v5269
    %6654 = vmatpush1.bf16.msra.mxu0 %v5268
    %6655 = vmatprep.subr.bf16.mxu0 %v5281
    %6656 = vmatpush1.bf16.msra.mxu0 %v5280
    %6657 = vmatprep.subr.bf16.mxu0 %v5293
    %6658 = vmatpush1.bf16.msra.mxu0 %v5292
    %6659 = vmatprep.subr.bf16.mxu0 %v5305
    %6660 = vmatpush1.bf16.msra.mxu0 %v5304
    %6661 = vmatprep.subr.bf16.mxu0 %v5317
    %6662 = vmatpush1.bf16.msra.mxu0 %v5316
    %6663 = vmatprep.subr.bf16.mxu0 %v5329
    %6664 = vmatpush1.bf16.msra.mxu0 %v5328
    %6665 = vmatprep.subr.bf16.mxu0 %v5341
    %6666 = vmatpush1.bf16.msra.mxu0 %v5340
    %6667 = vmatprep.subr.bf16.mxu0 %v5353
    %6668 = vmatpush1.bf16.msra.mxu0 %v5352
    %6669 = vmatprep.subr.bf16.mxu0 %v5365
    %6670 = vmatpush1.bf16.msra.mxu0 %v5364
    %6671 = vmatprep.subr.bf16.mxu0 %v5377
    %6672 = vmatpush1.bf16.msra.mxu0 %v5376
    %6673 = vmatprep.subr.bf16.mxu0 %v5389
    %6674 = vmatpush1.bf16.msra.mxu0 %v5388
    %6675 = vmatprep.subr.bf16.mxu0 %v5401
    %6676 = vmatpush1.bf16.msra.mxu0 %v5400
    %6677 = vmatprep.subr.bf16.mxu0 %v5413
    %6678 = vmatpush1.bf16.msra.mxu0 %v5412
    %6679 = vmatprep.subr.bf16.mxu0 %v5425
    %6680 = vmatpush1.bf16.msra.mxu0 %v5424
    %6681 = vmatprep.subr.bf16.mxu0 %v5437
    %6682 = vmatpush1.bf16.msra.mxu0 %v5436
    %6683 = vmatprep.subr.bf16.mxu0 %v5449
    %6684 = vmatpush1.bf16.msra.mxu0 %v5448
    %6685 = vmatprep.mubr.bf16.mxu0 %v1935
    %6686 = vmatmul.mubr.bf16.gmra.mrb[0].mxu0 %v1934
    %v6687 = vpop.f32.mrb[0].mxu0
    %v6688 = vadd.f32 %v6647, %v6687
    %v6689 = vpop.f32.mrb[0].mxu0
    %v6690 = vadd.f32 %v6649, %v6689
    %v6691 = vpop.f32.mrb[0].mxu0
    %v6692 = vpop.f32.mrb[0].mxu0
    %6693 = vdwg.mxu0
    %6694 = vmatprep.subr.bf16.mxu0 %v5461
    %6695 = vmatpush1.bf16.msra.mxu0 %v5460
    %6696 = vmatprep.subr.bf16.mxu0 %v5473
    %6697 = vmatpush1.bf16.msra.mxu0 %v5472
    %6698 = vmatprep.subr.bf16.mxu0 %v5485
    %6699 = vmatpush1.bf16.msra.mxu0 %v5484
    %6700 = vmatprep.subr.bf16.mxu0 %v5497
    %6701 = vmatpush1.bf16.msra.mxu0 %v5496
    %6702 = vmatprep.subr.bf16.mxu0 %v5509
    %6703 = vmatpush1.bf16.msra.mxu0 %v5508
    %6704 = vmatprep.subr.bf16.mxu0 %v5521
    %6705 = vmatpush1.bf16.msra.mxu0 %v5520
    %6706 = vmatprep.subr.bf16.mxu0 %v5533
    %6707 = vmatpush1.bf16.msra.mxu0 %v5532
    %6708 = vmatprep.subr.bf16.mxu0 %v5545
    %6709 = vmatpush1.bf16.msra.mxu0 %v5544
    %6710 = vmatprep.subr.bf16.mxu0 %v5557
    %6711 = vmatpush1.bf16.msra.mxu0 %v5556
    %6712 = vmatprep.subr.bf16.mxu0 %v5569
    %6713 = vmatpush1.bf16.msra.mxu0 %v5568
    %6714 = vmatprep.subr.bf16.mxu0 %v5581
    %6715 = vmatpush1.bf16.msra.mxu0 %v5580
    %6716 = vmatprep.subr.bf16.mxu0 %v5593
    %6717 = vmatpush1.bf16.msra.mxu0 %v5592
    %6718 = vmatprep.subr.bf16.mxu0 %v5605
    %6719 = vmatpush1.bf16.msra.mxu0 %v5604
    %6720 = vmatprep.subr.bf16.mxu0 %v5617
    %6721 = vmatpush1.bf16.msra.mxu0 %v5616
    %6722 = vmatprep.subr.bf16.mxu0 %v5629
    %6723 = vmatpush1.bf16.msra.mxu0 %v5628
    %6724 = vmatprep.subr.bf16.mxu0 %v5641
    %6725 = vmatpush1.bf16.msra.mxu0 %v5640
    %6726 = vmatprep.mubr.bf16.mxu0 %v1937
    %6727 = vmatmul.mubr.bf16.gmra.mrb[0].mxu0 %v1936
    %v6728 = vpop.f32.mrb[0].mxu0
    %v6729 = vadd.f32 %v6688, %v6728
    %v6730 = vpop.f32.mrb[0].mxu0
    %v6731 = vadd.f32 %v6690, %v6730
    %v6732 = vpop.f32.mrb[0].mxu0
    %v6733 = vpop.f32.mrb[0].mxu0
    %6734 = vdwg.mxu0
    %6735 = vmatprep.subr.bf16.mxu0 %v5653
    %6736 = vmatpush1.bf16.msra.mxu0 %v5652
    %6737 = vmatprep.subr.bf16.mxu0 %v5665
    %6738 = vmatpush1.bf16.msra.mxu0 %v5664
    %6739 = vmatprep.subr.bf16.mxu0 %v5677
    %6740 = vmatpush1.bf16.msra.mxu0 %v5676
    %6741 = vmatprep.subr.bf16.mxu0 %v5689
    %6742 = vmatpush1.bf16.msra.mxu0 %v5688
    %6743 = vmatprep.subr.bf16.mxu0 %v5701
    %6744 = vmatpush1.bf16.msra.mxu0 %v5700
    %6745 = vmatprep.subr.bf16.mxu0 %v5713
    %6746 = vmatpush1.bf16.msra.mxu0 %v5712
    %6747 = vmatprep.subr.bf16.mxu0 %v5725
    %6748 = vmatpush1.bf16.msra.mxu0 %v5724
    %6749 = vmatprep.subr.bf16.mxu0 %v5737
    %6750 = vmatpush1.bf16.msra.mxu0 %v5736
    %6751 = vmatprep.subr.bf16.mxu0 %v5749
    %6752 = vmatpush1.bf16.msra.mxu0 %v5748
    %6753 = vmatprep.subr.bf16.mxu0 %v5761
    %6754 = vmatpush1.bf16.msra.mxu0 %v5760
    %6755 = vmatprep.subr.bf16.mxu0 %v5773
    %6756 = vmatpush1.bf16.msra.mxu0 %v5772
    %6757 = vmatprep.subr.bf16.mxu0 %v5785
    %6758 = vmatpush1.bf16.msra.mxu0 %v5784
    %6759 = vmatprep.subr.bf16.mxu0 %v5797
    %6760 = vmatpush1.bf16.msra.mxu0 %v5796
    %6761 = vmatprep.subr.bf16.mxu0 %v5809
    %6762 = vmatpush1.bf16.msra.mxu0 %v5808
    %6763 = vmatprep.subr.bf16.mxu0 %v5821
    %6764 = vmatpush1.bf16.msra.mxu0 %v5820
    %6765 = vmatprep.subr.bf16.mxu0 %v5833
    %6766 = vmatpush1.bf16.msra.mxu0 %v5832
    %6767 = vmatprep.mubr.bf16.mxu0 %v1939
    %6768 = vmatmul.mubr.bf16.gmra.mrb[0].mxu0 %v1938
    %v6769 = vpop.f32.mrb[0].mxu0
    %v6770 = vadd.f32 %v6729, %v6769
    %v6771 = vpop.f32.mrb[0].mxu0
    %v6772 = vadd.f32 %v6731, %v6771
    %v6773 = vpop.f32.mrb[0].mxu0
    %v6774 = vpop.f32.mrb[0].mxu0
    %6775 = vdwg.mxu0
    %6776 = vmatprep.subr.bf16.mxu0 %v5079
    %6777 = vmatpush1.bf16.msra.mxu0 %v5078
    %6778 = vmatprep.subr.bf16.mxu0 %v5091
    %6779 = vmatpush1.bf16.msra.mxu0 %v5090
    %6780 = vmatprep.subr.bf16.mxu0 %v5103
    %6781 = vmatpush1.bf16.msra.mxu0 %v5102
    %6782 = vmatprep.subr.bf16.mxu0 %v5115
    %6783 = vmatpush1.bf16.msra.mxu0 %v5114
    %6784 = vmatprep.subr.bf16.mxu0 %v5127
    %6785 = vmatpush1.bf16.msra.mxu0 %v5126
    %6786 = vmatprep.subr.bf16.mxu0 %v5139
    %6787 = vmatpush1.bf16.msra.mxu0 %v5138
    %6788 = vmatprep.subr.bf16.mxu0 %v5151
    %6789 = vmatpush1.bf16.msra.mxu0 %v5150
    %6790 = vmatprep.subr.bf16.mxu0 %v5163
    %6791 = vmatpush1.bf16.msra.mxu0 %v5162
    %6792 = vmatprep.subr.bf16.mxu0 %v5175
    %6793 = vmatpush1.bf16.msra.mxu0 %v5174
    %6794 = vmatprep.subr.bf16.mxu0 %v5187
    %6795 = vmatpush1.bf16.msra.mxu0 %v5186
    %6796 = vmatprep.subr.bf16.mxu0 %v5199
    %6797 = vmatpush1.bf16.msra.mxu0 %v5198
    %6798 = vmatprep.subr.bf16.mxu0 %v5211
    %6799 = vmatpush1.bf16.msra.mxu0 %v5210
    %6800 = vmatprep.subr.bf16.mxu0 %v5223
    %6801 = vmatpush1.bf16.msra.mxu0 %v5222
    %6802 = vmatprep.subr.bf16.mxu0 %v5235
    %6803 = vmatpush1.bf16.msra.mxu0 %v5234
    %6804 = vmatprep.subr.bf16.mxu0 %v5247
    %6805 = vmatpush1.bf16.msra.mxu0 %v5246
    %6806 = vmatprep.subr.bf16.mxu0 %v5259
    %6807 = vmatpush1.bf16.msra.mxu0 %v5258
    %6808 = vmatprep.mubr.bf16.mxu0 %v1933
    %6809 = vmatmul.mubr.bf16.gmra.mrb[0].mxu0 %v1932
    %v6810 = vpop.f32.mrb[0].mxu0
    %v6811 = vadd.f32 %v2723, %v6810
    %v6812 = vpop.f32.mrb[0].mxu0
    %v6813 = vadd.f32 %v2727, %v6812
    %v6814 = vpop.f32.mrb[0].mxu0
    %v6815 = vpop.f32.mrb[0].mxu0
    %6816 = vdwg.mxu0
    %6817 = vmatprep.subr.bf16.mxu0 %v5271
    %6818 = vmatpush1.bf16.msra.mxu0 %v5270
    %6819 = vmatprep.subr.bf16.mxu0 %v5283
    %6820 = vmatpush1.bf16.msra.mxu0 %v5282
    %6821 = vmatprep.subr.bf16.mxu0 %v5295
    %6822 = vmatpush1.bf16.msra.mxu0 %v5294
    %6823 = vmatprep.subr.bf16.mxu0 %v5307
    %6824 = vmatpush1.bf16.msra.mxu0 %v5306
    %6825 = vmatprep.subr.bf16.mxu0 %v5319
    %6826 = vmatpush1.bf16.msra.mxu0 %v5318
    %6827 = vmatprep.subr.bf16.mxu0 %v5331
    %6828 = vmatpush1.bf16.msra.mxu0 %v5330
    %6829 = vmatprep.subr.bf16.mxu0 %v5343
    %6830 = vmatpush1.bf16.msra.mxu0 %v5342
    %6831 = vmatprep.subr.bf16.mxu0 %v5355
    %6832 = vmatpush1.bf16.msra.mxu0 %v5354
    %6833 = vmatprep.subr.bf16.mxu0 %v5367
    %6834 = vmatpush1.bf16.msra.mxu0 %v5366
    %6835 = vmatprep.subr.bf16.mxu0 %v5379
    %6836 = vmatpush1.bf16.msra.mxu0 %v5378
    %6837 = vmatprep.subr.bf16.mxu0 %v5391
    %6838 = vmatpush1.bf16.msra.mxu0 %v5390
    %6839 = vmatprep.subr.bf16.mxu0 %v5403
    %6840 = vmatpush1.bf16.msra.mxu0 %v5402
    %6841 = vmatprep.subr.bf16.mxu0 %v5415
    %6842 = vmatpush1.bf16.msra.mxu0 %v5414
    %6843 = vmatprep.subr.bf16.mxu0 %v5427
    %6844 = vmatpush1.bf16.msra.mxu0 %v5426
    %6845 = vmatprep.subr.bf16.mxu0 %v5439
    %6846 = vmatpush1.bf16.msra.mxu0 %v5438
    %6847 = vmatprep.subr.bf16.mxu0 %v5451
    %6848 = vmatpush1.bf16.msra.mxu0 %v5450
    %6849 = vmatprep.mubr.bf16.mxu0 %v1935
    %6850 = vmatmul.mubr.bf16.gmra.mrb[0].mxu0 %v1934
    %v6851 = vpop.f32.mrb[0].mxu0
    %v6852 = vadd.f32 %v6811, %v6851
    %v6853 = vpop.f32.mrb[0].mxu0
    %v6854 = vadd.f32 %v6813, %v6853
    %v6855 = vpop.f32.mrb[0].mxu0
    %v6856 = vpop.f32.mrb[0].mxu0
    %6857 = vdwg.mxu0
    %6858 = vmatprep.subr.bf16.mxu0 %v5463
    %6859 = vmatpush1.bf16.msra.mxu0 %v5462
    %6860 = vmatprep.subr.bf16.mxu0 %v5475
    %6861 = vmatpush1.bf16.msra.mxu0 %v5474
    %6862 = vmatprep.subr.bf16.mxu0 %v5487
    %6863 = vmatpush1.bf16.msra.mxu0 %v5486
    %6864 = vmatprep.subr.bf16.mxu0 %v5499
    %6865 = vmatpush1.bf16.msra.mxu0 %v5498
    %6866 = vmatprep.subr.bf16.mxu0 %v5511
    %6867 = vmatpush1.bf16.msra.mxu0 %v5510
    %6868 = vmatprep.subr.bf16.mxu0 %v5523
    %6869 = vmatpush1.bf16.msra.mxu0 %v5522
    %6870 = vmatprep.subr.bf16.mxu0 %v5535
    %6871 = vmatpush1.bf16.msra.mxu0 %v5534
    %6872 = vmatprep.subr.bf16.mxu0 %v5547
    %6873 = vmatpush1.bf16.msra.mxu0 %v5546
    %6874 = vmatprep.subr.bf16.mxu0 %v5559
    %6875 = vmatpush1.bf16.msra.mxu0 %v5558
    %6876 = vmatprep.subr.bf16.mxu0 %v5571
    %6877 = vmatpush1.bf16.msra.mxu0 %v5570
    %6878 = vmatprep.subr.bf16.mxu0 %v5583
    %6879 = vmatpush1.bf16.msra.mxu0 %v5582
    %6880 = vmatprep.subr.bf16.mxu0 %v5595
    %6881 = vmatpush1.bf16.msra.mxu0 %v5594
    %6882 = vmatprep.subr.bf16.mxu0 %v5607
    %6883 = vmatpush1.bf16.msra.mxu0 %v5606
    %6884 = vmatprep.subr.bf16.mxu0 %v5619
    %6885 = vmatpush1.bf16.msra.mxu0 %v5618
    %6886 = vmatprep.subr.bf16.mxu0 %v5631
    %6887 = vmatpush1.bf16.msra.mxu0 %v5630
    %6888 = vmatprep.subr.bf16.mxu0 %v5643
    %6889 = vmatpush1.bf16.msra.mxu0 %v5642
    %6890 = vmatprep.mubr.bf16.mxu0 %v1937
    %6891 = vmatmul.mubr.bf16.gmra.mrb[0].mxu0 %v1936
    %v6892 = vpop.f32.mrb[0].mxu0
    %v6893 = vadd.f32 %v6852, %v6892
    %v6894 = vpop.f32.mrb[0].mxu0
    %v6895 = vadd.f32 %v6854, %v6894
    %v6896 = vpop.f32.mrb[0].mxu0
    %v6897 = vpop.f32.mrb[0].mxu0
    %6898 = vdwg.mxu0
    %6899 = vmatprep.subr.bf16.mxu0 %v5655
    %6900 = vmatpush1.bf16.msra.mxu0 %v5654
    %6901 = vmatprep.subr.bf16.mxu0 %v5667
    %6902 = vmatpush1.bf16.msra.mxu0 %v5666
    %6903 = vmatprep.subr.bf16.mxu0 %v5679
    %6904 = vmatpush1.bf16.msra.mxu0 %v5678
    %6905 = vmatprep.subr.bf16.mxu0 %v5691
    %6906 = vmatpush1.bf16.msra.mxu0 %v5690
    %6907 = vmatprep.subr.bf16.mxu0 %v5703
    %6908 = vmatpush1.bf16.msra.mxu0 %v5702
    %6909 = vmatprep.subr.bf16.mxu0 %v5715
    %6910 = vmatpush1.bf16.msra.mxu0 %v5714
    %6911 = vmatprep.subr.bf16.mxu0 %v5727
    %6912 = vmatpush1.bf16.msra.mxu0 %v5726
    %6913 = vmatprep.subr.bf16.mxu0 %v5739
    %6914 = vmatpush1.bf16.msra.mxu0 %v5738
    %6915 = vmatprep.subr.bf16.mxu0 %v5751
    %6916 = vmatpush1.bf16.msra.mxu0 %v5750
    %6917 = vmatprep.subr.bf16.mxu0 %v5763
    %6918 = vmatpush1.bf16.msra.mxu0 %v5762
    %6919 = vmatprep.subr.bf16.mxu0 %v5775
    %6920 = vmatpush1.bf16.msra.mxu0 %v5774
    %6921 = vmatprep.subr.bf16.mxu0 %v5787
    %6922 = vmatpush1.bf16.msra.mxu0 %v5786
    %6923 = vmatprep.subr.bf16.mxu0 %v5799
    %6924 = vmatpush1.bf16.msra.mxu0 %v5798
    %6925 = vmatprep.subr.bf16.mxu0 %v5811
    %6926 = vmatpush1.bf16.msra.mxu0 %v5810
    %6927 = vmatprep.subr.bf16.mxu0 %v5823
    %6928 = vmatpush1.bf16.msra.mxu0 %v5822
    %6929 = vmatprep.subr.bf16.mxu0 %v5835
    %6930 = vmatpush1.bf16.msra.mxu0 %v5834
    %6931 = vmatprep.mubr.bf16.mxu0 %v1939
    %6932 = vmatmul.mubr.bf16.gmra.mrb[0].mxu0 %v1938
    %v6933 = vpop.f32.mrb[0].mxu0
    %v6934 = vadd.f32 %v6893, %v6933
    %v6935 = vpop.f32.mrb[0].mxu0
    %v6936 = vadd.f32 %v6895, %v6935
    %v6937 = vpop.f32.mrb[0].mxu0
    %v6938 = vpop.f32.mrb[0].mxu0
    %6939 = vdwg.mxu0
    %6940 = vmatprep.subr.bf16.mxu0 %v5081
    %6941 = vmatpush1.bf16.msra.mxu0 %v5080
    %6942 = vmatprep.subr.bf16.mxu0 %v5093
    %6943 = vmatpush1.bf16.msra.mxu0 %v5092
    %6944 = vmatprep.subr.bf16.mxu0 %v5105
    %6945 = vmatpush1.bf16.msra.mxu0 %v5104
    %6946 = vmatprep.subr.bf16.mxu0 %v5117
    %6947 = vmatpush1.bf16.msra.mxu0 %v5116
    %6948 = vmatprep.subr.bf16.mxu0 %v5129
    %6949 = vmatpush1.bf16.msra.mxu0 %v5128
    %6950 = vmatprep.subr.bf16.mxu0 %v5141
    %6951 = vmatpush1.bf16.msra.mxu0 %v5140
    %6952 = vmatprep.subr.bf16.mxu0 %v5153
    %6953 = vmatpush1.bf16.msra.mxu0 %v5152
    %6954 = vmatprep.subr.bf16.mxu0 %v5165
    %6955 = vmatpush1.bf16.msra.mxu0 %v5164
    %6956 = vmatprep.subr.bf16.mxu0 %v5177
    %6957 = vmatpush1.bf16.msra.mxu0 %v5176
    %6958 = vmatprep.subr.bf16.mxu0 %v5189
    %6959 = vmatpush1.bf16.msra.mxu0 %v5188
    %6960 = vmatprep.subr.bf16.mxu0 %v5201
    %6961 = vmatpush1.bf16.msra.mxu0 %v5200
    %6962 = vmatprep.subr.bf16.mxu0 %v5213
    %6963 = vmatpush1.bf16.msra.mxu0 %v5212
    %6964 = vmatprep.subr.bf16.mxu0 %v5225
    %6965 = vmatpush1.bf16.msra.mxu0 %v5224
    %6966 = vmatprep.subr.bf16.mxu0 %v5237
    %6967 = vmatpush1.bf16.msra.mxu0 %v5236
    %6968 = vmatprep.subr.bf16.mxu0 %v5249
    %6969 = vmatpush1.bf16.msra.mxu0 %v5248
    %6970 = vmatprep.subr.bf16.mxu0 %v5261
    %6971 = vmatpush1.bf16.msra.mxu0 %v5260
    %6972 = vmatprep.mubr.bf16.mxu0 %v1933
    %6973 = vmatmul.mubr.bf16.gmra.mrb[0].mxu0 %v1932
    %v6974 = vpop.f32.mrb[0].mxu0
    %v6975 = vadd.f32 %v2731, %v6974
    %v6976 = vpop.f32.mrb[0].mxu0
    %v6977 = vadd.f32 %v2735, %v6976
    %v6978 = vpop.f32.mrb[0].mxu0
    %v6979 = vpop.f32.mrb[0].mxu0
    %6980 = vdwg.mxu0
    %6981 = vmatprep.subr.bf16.mxu0 %v5273
    %6982 = vmatpush1.bf16.msra.mxu0 %v5272
    %6983 = vmatprep.subr.bf16.mxu0 %v5285
    %6984 = vmatpush1.bf16.msra.mxu0 %v5284
    %6985 = vmatprep.subr.bf16.mxu0 %v5297
    %6986 = vmatpush1.bf16.msra.mxu0 %v5296
    %6987 = vmatprep.subr.bf16.mxu0 %v5309
    %6988 = vmatpush1.bf16.msra.mxu0 %v5308
    %6989 = vmatprep.subr.bf16.mxu0 %v5321
    %6990 = vmatpush1.bf16.msra.mxu0 %v5320
    %6991 = vmatprep.subr.bf16.mxu0 %v5333
    %6992 = vmatpush1.bf16.msra.mxu0 %v5332
    %6993 = vmatprep.subr.bf16.mxu0 %v5345
    %6994 = vmatpush1.bf16.msra.mxu0 %v5344
    %6995 = vmatprep.subr.bf16.mxu0 %v5357
    %6996 = vmatpush1.bf16.msra.mxu0 %v5356
    %6997 = vmatprep.subr.bf16.mxu0 %v5369
    %6998 = vmatpush1.bf16.msra.mxu0 %v5368
    %6999 = vmatprep.subr.bf16.mxu0 %v5381
    %7000 = vmatpush1.bf16.msra.mxu0 %v5380
    %7001 = vmatprep.subr.bf16.mxu0 %v5393
    %7002 = vmatpush1.bf16.msra.mxu0 %v5392
    %7003 = vmatprep.subr.bf16.mxu0 %v5405
    %7004 = vmatpush1.bf16.msra.mxu0 %v5404
    %7005 = vmatprep.subr.bf16.mxu0 %v5417
    %7006 = vmatpush1.bf16.msra.mxu0 %v5416
    %7007 = vmatprep.subr.bf16.mxu0 %v5429
    %7008 = vmatpush1.bf16.msra.mxu0 %v5428
    %7009 = vmatprep.subr.bf16.mxu0 %v5441
    %7010 = vmatpush1.bf16.msra.mxu0 %v5440
    %7011 = vmatprep.subr.bf16.mxu0 %v5453
    %7012 = vmatpush1.bf16.msra.mxu0 %v5452
    %7013 = vmatprep.mubr.bf16.mxu0 %v1935
    %7014 = vmatmul.mubr.bf16.gmra.mrb[0].mxu0 %v1934
    %v7015 = vpop.f32.mrb[0].mxu0
    %v7016 = vadd.f32 %v6975, %v7015
    %v7017 = vpop.f32.mrb[0].mxu0
    %v7018 = vadd.f32 %v6977, %v7017
    %v7019 = vpop.f32.mrb[0].mxu0
    %v7020 = vpop.f32.mrb[0].mxu0
    %7021 = vdwg.mxu0
    %7022 = vmatprep.subr.bf16.mxu0 %v5465
    %7023 = vmatpush1.bf16.msra.mxu0 %v5464
    %7024 = vmatprep.subr.bf16.mxu0 %v5477
    %7025 = vmatpush1.bf16.msra.mxu0 %v5476
    %7026 = vmatprep.subr.bf16.mxu0 %v5489
    %7027 = vmatpush1.bf16.msra.mxu0 %v5488
    %7028 = vmatprep.subr.bf16.mxu0 %v5501
    %7029 = vmatpush1.bf16.msra.mxu0 %v5500
    %7030 = vmatprep.subr.bf16.mxu0 %v5513
    %7031 = vmatpush1.bf16.msra.mxu0 %v5512
    %7032 = vmatprep.subr.bf16.mxu0 %v5525
    %7033 = vmatpush1.bf16.msra.mxu0 %v5524
    %7034 = vmatprep.subr.bf16.mxu0 %v5537
    %7035 = vmatpush1.bf16.msra.mxu0 %v5536
    %7036 = vmatprep.subr.bf16.mxu0 %v5549
    %7037 = vmatpush1.bf16.msra.mxu0 %v5548
    %7038 = vmatprep.subr.bf16.mxu0 %v5561
    %7039 = vmatpush1.bf16.msra.mxu0 %v5560
    %7040 = vmatprep.subr.bf16.mxu0 %v5573
    %7041 = vmatpush1.bf16.msra.mxu0 %v5572
    %7042 = vmatprep.subr.bf16.mxu0 %v5585
    %7043 = vmatpush1.bf16.msra.mxu0 %v5584
    %7044 = vmatprep.subr.bf16.mxu0 %v5597
    %7045 = vmatpush1.bf16.msra.mxu0 %v5596
    %7046 = vmatprep.subr.bf16.mxu0 %v5609
    %7047 = vmatpush1.bf16.msra.mxu0 %v5608
    %7048 = vmatprep.subr.bf16.mxu0 %v5621
    %7049 = vmatpush1.bf16.msra.mxu0 %v5620
    %7050 = vmatprep.subr.bf16.mxu0 %v5633
    %7051 = vmatpush1.bf16.msra.mxu0 %v5632
    %7052 = vmatprep.subr.bf16.mxu0 %v5645
    %7053 = vmatpush1.bf16.msra.mxu0 %v5644
    %7054 = vmatprep.mubr.bf16.mxu0 %v1937
    %7055 = vmatmul.mubr.bf16.gmra.mrb[0].mxu0 %v1936
    %v7056 = vpop.f32.mrb[0].mxu0
    %v7057 = vadd.f32 %v7016, %v7056
    %v7058 = vpop.f32.mrb[0].mxu0
    %v7059 = vadd.f32 %v7018, %v7058
    %v7060 = vpop.f32.mrb[0].mxu0
    %v7061 = vpop.f32.mrb[0].mxu0
    %7062 = vdwg.mxu0
    %7063 = vmatprep.subr.bf16.mxu0 %v5657
    %7064 = vmatpush1.bf16.msra.mxu0 %v5656
    %7065 = vmatprep.subr.bf16.mxu0 %v5669
    %7066 = vmatpush1.bf16.msra.mxu0 %v5668
    %7067 = vmatprep.subr.bf16.mxu0 %v5681
    %7068 = vmatpush1.bf16.msra.mxu0 %v5680
    %7069 = vmatprep.subr.bf16.mxu0 %v5693
    %7070 = vmatpush1.bf16.msra.mxu0 %v5692
    %7071 = vmatprep.subr.bf16.mxu0 %v5705
    %7072 = vmatpush1.bf16.msra.mxu0 %v5704
    %7073 = vmatprep.subr.bf16.mxu0 %v5717
    %7074 = vmatpush1.bf16.msra.mxu0 %v5716
    %7075 = vmatprep.subr.bf16.mxu0 %v5729
    %7076 = vmatpush1.bf16.msra.mxu0 %v5728
    %7077 = vmatprep.subr.bf16.mxu0 %v5741
    %7078 = vmatpush1.bf16.msra.mxu0 %v5740
    %7079 = vmatprep.subr.bf16.mxu0 %v5753
    %7080 = vmatpush1.bf16.msra.mxu0 %v5752
    %7081 = vmatprep.subr.bf16.mxu0 %v5765
    %7082 = vmatpush1.bf16.msra.mxu0 %v5764
    %7083 = vmatprep.subr.bf16.mxu0 %v5777
    %7084 = vmatpush1.bf16.msra.mxu0 %v5776
    %7085 = vmatprep.subr.bf16.mxu0 %v5789
    %7086 = vmatpush1.bf16.msra.mxu0 %v5788
    %7087 = vmatprep.subr.bf16.mxu0 %v5801
    %7088 = vmatpush1.bf16.msra.mxu0 %v5800
    %7089 = vmatprep.subr.bf16.mxu0 %v5813
    %7090 = vmatpush1.bf16.msra.mxu0 %v5812
    %7091 = vmatprep.subr.bf16.mxu0 %v5825
    %7092 = vmatpush1.bf16.msra.mxu0 %v5824
    %7093 = vmatprep.subr.bf16.mxu0 %v5837
    %7094 = vmatpush1.bf16.msra.mxu0 %v5836
    %7095 = vmatprep.mubr.bf16.mxu0 %v1939
    %7096 = vmatmul.mubr.bf16.gmra.mrb[0].mxu0 %v1938
    %v7097 = vpop.f32.mrb[0].mxu0
    %v7098 = vadd.f32 %v7057, %v7097
    %v7099 = vpop.f32.mrb[0].mxu0
    %v7100 = vadd.f32 %v7059, %v7099
    %v7101 = vpop.f32.mrb[0].mxu0
    %v7102 = vpop.f32.mrb[0].mxu0
    %7103 = vdwg.mxu0
    %7104 = vmatprep.subr.bf16.mxu0 %v5083
    %7105 = vmatpush1.bf16.msra.mxu0 %v5082
    %7106 = vmatprep.subr.bf16.mxu0 %v5095
    %7107 = vmatpush1.bf16.msra.mxu0 %v5094
    %7108 = vmatprep.subr.bf16.mxu0 %v5107
    %7109 = vmatpush1.bf16.msra.mxu0 %v5106
    %7110 = vmatprep.subr.bf16.mxu0 %v5119
    %7111 = vmatpush1.bf16.msra.mxu0 %v5118
    %7112 = vmatprep.subr.bf16.mxu0 %v5131
    %7113 = vmatpush1.bf16.msra.mxu0 %v5130
    %7114 = vmatprep.subr.bf16.mxu0 %v5143
    %7115 = vmatpush1.bf16.msra.mxu0 %v5142
    %7116 = vmatprep.subr.bf16.mxu0 %v5155
    %7117 = vmatpush1.bf16.msra.mxu0 %v5154
    %7118 = vmatprep.subr.bf16.mxu0 %v5167
    %7119 = vmatpush1.bf16.msra.mxu0 %v5166
    %7120 = vmatprep.subr.bf16.mxu0 %v5179
    %7121 = vmatpush1.bf16.msra.mxu0 %v5178
    %7122 = vmatprep.subr.bf16.mxu0 %v5191
    %7123 = vmatpush1.bf16.msra.mxu0 %v5190
    %7124 = vmatprep.subr.bf16.mxu0 %v5203
    %7125 = vmatpush1.bf16.msra.mxu0 %v5202
    %7126 = vmatprep.subr.bf16.mxu0 %v5215
    %7127 = vmatpush1.bf16.msra.mxu0 %v5214
    %7128 = vmatprep.subr.bf16.mxu0 %v5227
    %7129 = vmatpush1.bf16.msra.mxu0 %v5226
    %7130 = vmatprep.subr.bf16.mxu0 %v5239
    %7131 = vmatpush1.bf16.msra.mxu0 %v5238
    %7132 = vmatprep.subr.bf16.mxu0 %v5251
    %7133 = vmatpush1.bf16.msra.mxu0 %v5250
    %7134 = vmatprep.subr.bf16.mxu0 %v5263
    %7135 = vmatpush1.bf16.msra.mxu0 %v5262
    %7136 = vmatprep.mubr.bf16.mxu0 %v1933
    %7137 = vmatmul.mubr.bf16.gmra.mrb[0].mxu0 %v1932
    %v7138 = vpop.f32.mrb[0].mxu0
    %v7139 = vadd.f32 %v2739, %v7138
    %v7140 = vpop.f32.mrb[0].mxu0
    %v7141 = vadd.f32 %v2743, %v7140
    %v7142 = vpop.f32.mrb[0].mxu0
    %v7143 = vpop.f32.mrb[0].mxu0
    %7144 = vdwg.mxu0
    %7145 = vmatprep.subr.bf16.mxu0 %v5275
    %7146 = vmatpush1.bf16.msra.mxu0 %v5274
    %7147 = vmatprep.subr.bf16.mxu0 %v5287
    %7148 = vmatpush1.bf16.msra.mxu0 %v5286
    %7149 = vmatprep.subr.bf16.mxu0 %v5299
    %7150 = vmatpush1.bf16.msra.mxu0 %v5298
    %7151 = vmatprep.subr.bf16.mxu0 %v5311
    %7152 = vmatpush1.bf16.msra.mxu0 %v5310
    %7153 = vmatprep.subr.bf16.mxu0 %v5323
    %7154 = vmatpush1.bf16.msra.mxu0 %v5322
    %7155 = vmatprep.subr.bf16.mxu0 %v5335
    %7156 = vmatpush1.bf16.msra.mxu0 %v5334
    %7157 = vmatprep.subr.bf16.mxu0 %v5347
    %7158 = vmatpush1.bf16.msra.mxu0 %v5346
    %7159 = vmatprep.subr.bf16.mxu0 %v5359
    %7160 = vmatpush1.bf16.msra.mxu0 %v5358
    %7161 = vmatprep.subr.bf16.mxu0 %v5371
    %7162 = vmatpush1.bf16.msra.mxu0 %v5370
    %7163 = vmatprep.subr.bf16.mxu0 %v5383
    %7164 = vmatpush1.bf16.msra.mxu0 %v5382
    %7165 = vmatprep.subr.bf16.mxu0 %v5395
    %7166 = vmatpush1.bf16.msra.mxu0 %v5394
    %7167 = vmatprep.subr.bf16.mxu0 %v5407
    %7168 = vmatpush1.bf16.msra.mxu0 %v5406
    %7169 = vmatprep.subr.bf16.mxu0 %v5419
    %7170 = vmatpush1.bf16.msra.mxu0 %v5418
    %7171 = vmatprep.subr.bf16.mxu0 %v5431
    %7172 = vmatpush1.bf16.msra.mxu0 %v5430
    %7173 = vmatprep.subr.bf16.mxu0 %v5443
    %7174 = vmatpush1.bf16.msra.mxu0 %v5442
    %7175 = vmatprep.subr.bf16.mxu0 %v5455
    %7176 = vmatpush1.bf16.msra.mxu0 %v5454
    %7177 = vmatprep.mubr.bf16.mxu0 %v1935
    %7178 = vmatmul.mubr.bf16.gmra.mrb[0].mxu0 %v1934
    %v7179 = vpop.f32.mrb[0].mxu0
    %v7180 = vadd.f32 %v7139, %v7179
    %v7181 = vpop.f32.mrb[0].mxu0
    %v7182 = vadd.f32 %v7141, %v7181
    %v7183 = vpop.f32.mrb[0].mxu0
    %v7184 = vpop.f32.mrb[0].mxu0
    %7185 = vdwg.mxu0
    %7186 = vmatprep.subr.bf16.mxu0 %v5467
    %7187 = vmatpush1.bf16.msra.mxu0 %v5466
    %7188 = vmatprep.subr.bf16.mxu0 %v5479
    %7189 = vmatpush1.bf16.msra.mxu0 %v5478
    %7190 = vmatprep.subr.bf16.mxu0 %v5491
    %7191 = vmatpush1.bf16.msra.mxu0 %v5490
    %7192 = vmatprep.subr.bf16.mxu0 %v5503
    %7193 = vmatpush1.bf16.msra.mxu0 %v5502
    %7194 = vmatprep.subr.bf16.mxu0 %v5515
    %7195 = vmatpush1.bf16.msra.mxu0 %v5514
    %7196 = vmatprep.subr.bf16.mxu0 %v5527
    %7197 = vmatpush1.bf16.msra.mxu0 %v5526
    %7198 = vmatprep.subr.bf16.mxu0 %v5539
    %7199 = vmatpush1.bf16.msra.mxu0 %v5538
    %7200 = vmatprep.subr.bf16.mxu0 %v5551
    %7201 = vmatpush1.bf16.msra.mxu0 %v5550
    %7202 = vmatprep.subr.bf16.mxu0 %v5563
    %7203 = vmatpush1.bf16.msra.mxu0 %v5562
    %7204 = vmatprep.subr.bf16.mxu0 %v5575
    %7205 = vmatpush1.bf16.msra.mxu0 %v5574
    %7206 = vmatprep.subr.bf16.mxu0 %v5587
    %7207 = vmatpush1.bf16.msra.mxu0 %v5586
    %7208 = vmatprep.subr.bf16.mxu0 %v5599
    %7209 = vmatpush1.bf16.msra.mxu0 %v5598
    %7210 = vmatprep.subr.bf16.mxu0 %v5611
    %7211 = vmatpush1.bf16.msra.mxu0 %v5610
    %7212 = vmatprep.subr.bf16.mxu0 %v5623
    %7213 = vmatpush1.bf16.msra.mxu0 %v5622
    %7214 = vmatprep.subr.bf16.mxu0 %v5635
    %7215 = vmatpush1.bf16.msra.mxu0 %v5634
    %7216 = vmatprep.subr.bf16.mxu0 %v5647
    %7217 = vmatpush1.bf16.msra.mxu0 %v5646
    %7218 = vmatprep.mubr.bf16.mxu0 %v1937
    %7219 = vmatmul.mubr.bf16.gmra.mrb[0].mxu0 %v1936
    %v7220 = vpop.f32.mrb[0].mxu0
    %v7221 = vadd.f32 %v7180, %v7220
    %v7222 = vpop.f32.mrb[0].mxu0
    %v7223 = vadd.f32 %v7182, %v7222
    %v7224 = vpop.f32.mrb[0].mxu0
    %v7225 = vpop.f32.mrb[0].mxu0
    %7226 = vdwg.mxu0
    %7227 = vmatprep.subr.bf16.mxu0 %v5659
    %7228 = vmatpush1.bf16.msra.mxu0 %v5658
    %7229 = vmatprep.subr.bf16.mxu0 %v5671
    %7230 = vmatpush1.bf16.msra.mxu0 %v5670
    %7231 = vmatprep.subr.bf16.mxu0 %v5683
    %7232 = vmatpush1.bf16.msra.mxu0 %v5682
    %7233 = vmatprep.subr.bf16.mxu0 %v5695
    %7234 = vmatpush1.bf16.msra.mxu0 %v5694
    %7235 = vmatprep.subr.bf16.mxu0 %v5707
    %7236 = vmatpush1.bf16.msra.mxu0 %v5706
    %7237 = vmatprep.subr.bf16.mxu0 %v5719
    %7238 = vmatpush1.bf16.msra.mxu0 %v5718
    %7239 = vmatprep.subr.bf16.mxu0 %v5731
    %7240 = vmatpush1.bf16.msra.mxu0 %v5730
    %7241 = vmatprep.subr.bf16.mxu0 %v5743
    %7242 = vmatpush1.bf16.msra.mxu0 %v5742
    %7243 = vmatprep.subr.bf16.mxu0 %v5755
    %7244 = vmatpush1.bf16.msra.mxu0 %v5754
    %7245 = vmatprep.subr.bf16.mxu0 %v5767
    %7246 = vmatpush1.bf16.msra.mxu0 %v5766
    %7247 = vmatprep.subr.bf16.mxu0 %v5779
    %7248 = vmatpush1.bf16.msra.mxu0 %v5778
    %7249 = vmatprep.subr.bf16.mxu0 %v5791
    %7250 = vmatpush1.bf16.msra.mxu0 %v5790
    %7251 = vmatprep.subr.bf16.mxu0 %v5803
    %7252 = vmatpush1.bf16.msra.mxu0 %v5802
    %7253 = vmatprep.subr.bf16.mxu0 %v5815
    %7254 = vmatpush1.bf16.msra.mxu0 %v5814
    %7255 = vmatprep.subr.bf16.mxu0 %v5827
    %7256 = vmatpush1.bf16.msra.mxu0 %v5826
    %7257 = vmatprep.subr.bf16.mxu0 %v5839
    %7258 = vmatpush1.bf16.msra.mxu0 %v5838
    %7259 = vmatprep.mubr.bf16.mxu0 %v1939
    %7260 = vmatmul.mubr.bf16.gmra.mrb[0].mxu0 %v1938
    %v7261 = vpop.f32.mrb[0].mxu0
    %v7262 = vadd.f32 %v7221, %v7261
    %v7263 = vpop.f32.mrb[0].mxu0
    %v7264 = vadd.f32 %v7223, %v7263
    %v7265 = vpop.f32.mrb[0].mxu0
    %v7266 = vpop.f32.mrb[0].mxu0
    %7267 = vdwg.mxu0
    %7268 = vmatprep.subr.bf16.mxu0 %v5085
    %7269 = vmatpush1.bf16.msra.mxu0 %v5084
    %7270 = vmatprep.subr.bf16.mxu0 %v5097
    %7271 = vmatpush1.bf16.msra.mxu0 %v5096
    %7272 = vmatprep.subr.bf16.mxu0 %v5109
    %7273 = vmatpush1.bf16.msra.mxu0 %v5108
    %7274 = vmatprep.subr.bf16.mxu0 %v5121
    %7275 = vmatpush1.bf16.msra.mxu0 %v5120
    %7276 = vmatprep.subr.bf16.mxu0 %v5133
    %7277 = vmatpush1.bf16.msra.mxu0 %v5132
    %7278 = vmatprep.subr.bf16.mxu0 %v5145
    %7279 = vmatpush1.bf16.msra.mxu0 %v5144
    %7280 = vmatprep.subr.bf16.mxu0 %v5157
    %7281 = vmatpush1.bf16.msra.mxu0 %v5156
    %7282 = vmatprep.subr.bf16.mxu0 %v5169
    %7283 = vmatpush1.bf16.msra.mxu0 %v5168
    %7284 = vmatprep.subr.bf16.mxu0 %v5181
    %7285 = vmatpush1.bf16.msra.mxu0 %v5180
    %7286 = vmatprep.subr.bf16.mxu0 %v5193
    %7287 = vmatpush1.bf16.msra.mxu0 %v5192
    %7288 = vmatprep.subr.bf16.mxu0 %v5205
    %7289 = vmatpush1.bf16.msra.mxu0 %v5204
    %7290 = vmatprep.subr.bf16.mxu0 %v5217
    %7291 = vmatpush1.bf16.msra.mxu0 %v5216
    %7292 = vmatprep.subr.bf16.mxu0 %v5229
    %7293 = vmatpush1.bf16.msra.mxu0 %v5228
    %7294 = vmatprep.subr.bf16.mxu0 %v5241
    %7295 = vmatpush1.bf16.msra.mxu0 %v5240
    %7296 = vmatprep.subr.bf16.mxu0 %v5253
    %7297 = vmatpush1.bf16.msra.mxu0 %v5252
    %7298 = vmatprep.subr.bf16.mxu0 %v5265
    %7299 = vmatpush1.bf16.msra.mxu0 %v5264
    %7300 = vmatprep.mubr.bf16.mxu0 %v1933
    %7301 = vmatmul.mubr.bf16.gmra.mrb[0].mxu0 %v1932
    %v7302 = vpop.f32.mrb[0].mxu0
    %v7303 = vadd.f32 %v2747, %v7302
    %v7304 = vpop.f32.mrb[0].mxu0
    %v7305 = vadd.f32 %v2751, %v7304
    %v7306 = vpop.f32.mrb[0].mxu0
    %v7307 = vpop.f32.mrb[0].mxu0
    %7308 = vdwg.mxu0
    %7309 = vmatprep.subr.bf16.mxu0 %v5277
    %7310 = vmatpush1.bf16.msra.mxu0 %v5276
    %7311 = vmatprep.subr.bf16.mxu0 %v5289
    %7312 = vmatpush1.bf16.msra.mxu0 %v5288
    %7313 = vmatprep.subr.bf16.mxu0 %v5301
    %7314 = vmatpush1.bf16.msra.mxu0 %v5300
    %7315 = vmatprep.subr.bf16.mxu0 %v5313
    %7316 = vmatpush1.bf16.msra.mxu0 %v5312
    %7317 = vmatprep.subr.bf16.mxu0 %v5325
    %7318 = vmatpush1.bf16.msra.mxu0 %v5324
    %7319 = vmatprep.subr.bf16.mxu0 %v5337
    %7320 = vmatpush1.bf16.msra.mxu0 %v5336
    %7321 = vmatprep.subr.bf16.mxu0 %v5349
    %7322 = vmatpush1.bf16.msra.mxu0 %v5348
    %7323 = vmatprep.subr.bf16.mxu0 %v5361
    %7324 = vmatpush1.bf16.msra.mxu0 %v5360
    %7325 = vmatprep.subr.bf16.mxu0 %v5373
    %7326 = vmatpush1.bf16.msra.mxu0 %v5372
    %7327 = vmatprep.subr.bf16.mxu0 %v5385
    %7328 = vmatpush1.bf16.msra.mxu0 %v5384
    %7329 = vmatprep.subr.bf16.mxu0 %v5397
    %7330 = vmatpush1.bf16.msra.mxu0 %v5396
    %7331 = vmatprep.subr.bf16.mxu0 %v5409
    %7332 = vmatpush1.bf16.msra.mxu0 %v5408
    %7333 = vmatprep.subr.bf16.mxu0 %v5421
    %7334 = vmatpush1.bf16.msra.mxu0 %v5420
    %7335 = vmatprep.subr.bf16.mxu0 %v5433
    %7336 = vmatpush1.bf16.msra.mxu0 %v5432
    %7337 = vmatprep.subr.bf16.mxu0 %v5445
    %7338 = vmatpush1.bf16.msra.mxu0 %v5444
    %7339 = vmatprep.subr.bf16.mxu0 %v5457
    %7340 = vmatpush1.bf16.msra.mxu0 %v5456
    %7341 = vmatprep.mubr.bf16.mxu0 %v1935
    %7342 = vmatmul.mubr.bf16.gmra.mrb[0].mxu0 %v1934
    %v7343 = vpop.f32.mrb[0].mxu0
    %v7344 = vadd.f32 %v7303, %v7343
    %v7345 = vpop.f32.mrb[0].mxu0
    %v7346 = vadd.f32 %v7305, %v7345
    %v7347 = vpop.f32.mrb[0].mxu0
    %v7348 = vpop.f32.mrb[0].mxu0
    %7349 = vdwg.mxu0
    %7350 = vmatprep.subr.bf16.mxu0 %v5469
    %7351 = vmatpush1.bf16.msra.mxu0 %v5468
    %7352 = vmatprep.subr.bf16.mxu0 %v5481
    %7353 = vmatpush1.bf16.msra.mxu0 %v5480
    %7354 = vmatprep.subr.bf16.mxu0 %v5493
    %7355 = vmatpush1.bf16.msra.mxu0 %v5492
    %7356 = vmatprep.subr.bf16.mxu0 %v5505
    %7357 = vmatpush1.bf16.msra.mxu0 %v5504
    %7358 = vmatprep.subr.bf16.mxu0 %v5517
    %7359 = vmatpush1.bf16.msra.mxu0 %v5516
    %7360 = vmatprep.subr.bf16.mxu0 %v5529
    %7361 = vmatpush1.bf16.msra.mxu0 %v5528
    %7362 = vmatprep.subr.bf16.mxu0 %v5541
    %7363 = vmatpush1.bf16.msra.mxu0 %v5540
    %7364 = vmatprep.subr.bf16.mxu0 %v5553
    %7365 = vmatpush1.bf16.msra.mxu0 %v5552
    %7366 = vmatprep.subr.bf16.mxu0 %v5565
    %7367 = vmatpush1.bf16.msra.mxu0 %v5564
    %7368 = vmatprep.subr.bf16.mxu0 %v5577
    %7369 = vmatpush1.bf16.msra.mxu0 %v5576
    %7370 = vmatprep.subr.bf16.mxu0 %v5589
    %7371 = vmatpush1.bf16.msra.mxu0 %v5588
    %7372 = vmatprep.subr.bf16.mxu0 %v5601
    %7373 = vmatpush1.bf16.msra.mxu0 %v5600
    %7374 = vmatprep.subr.bf16.mxu0 %v5613
    %7375 = vmatpush1.bf16.msra.mxu0 %v5612
    %7376 = vmatprep.subr.bf16.mxu0 %v5625
    %7377 = vmatpush1.bf16.msra.mxu0 %v5624
    %7378 = vmatprep.subr.bf16.mxu0 %v5637
    %7379 = vmatpush1.bf16.msra.mxu0 %v5636
    %7380 = vmatprep.subr.bf16.mxu0 %v5649
    %7381 = vmatpush1.bf16.msra.mxu0 %v5648
    %7382 = vmatprep.mubr.bf16.mxu0 %v1937
    %7383 = vmatmul.mubr.bf16.gmra.mrb[0].mxu0 %v1936
    %v7384 = vpop.f32.mrb[0].mxu0
    %v7385 = vadd.f32 %v7344, %v7384
    %v7386 = vpop.f32.mrb[0].mxu0
    %v7387 = vadd.f32 %v7346, %v7386
    %v7388 = vpop.f32.mrb[0].mxu0
    %v7389 = vpop.f32.mrb[0].mxu0
    %7390 = vdwg.mxu0
    %7391 = vmatprep.subr.bf16.mxu0 %v5661
    %7392 = vmatpush1.bf16.msra.mxu0 %v5660
    %7393 = vmatprep.subr.bf16.mxu0 %v5673
    %7394 = vmatpush1.bf16.msra.mxu0 %v5672
    %7395 = vmatprep.subr.bf16.mxu0 %v5685
    %7396 = vmatpush1.bf16.msra.mxu0 %v5684
    %7397 = vmatprep.subr.bf16.mxu0 %v5697
    %7398 = vmatpush1.bf16.msra.mxu0 %v5696
    %7399 = vmatprep.subr.bf16.mxu0 %v5709
    %7400 = vmatpush1.bf16.msra.mxu0 %v5708
    %7401 = vmatprep.subr.bf16.mxu0 %v5721
    %7402 = vmatpush1.bf16.msra.mxu0 %v5720
    %7403 = vmatprep.subr.bf16.mxu0 %v5733
    %7404 = vmatpush1.bf16.msra.mxu0 %v5732
    %7405 = vmatprep.subr.bf16.mxu0 %v5745
    %7406 = vmatpush1.bf16.msra.mxu0 %v5744
    %7407 = vmatprep.subr.bf16.mxu0 %v5757
    %7408 = vmatpush1.bf16.msra.mxu0 %v5756
    %7409 = vmatprep.subr.bf16.mxu0 %v5769
    %7410 = vmatpush1.bf16.msra.mxu0 %v5768
    %7411 = vmatprep.subr.bf16.mxu0 %v5781
    %7412 = vmatpush1.bf16.msra.mxu0 %v5780
    %7413 = vmatprep.subr.bf16.mxu0 %v5793
    %7414 = vmatpush1.bf16.msra.mxu0 %v5792
    %7415 = vmatprep.subr.bf16.mxu0 %v5805
    %7416 = vmatpush1.bf16.msra.mxu0 %v5804
    %7417 = vmatprep.subr.bf16.mxu0 %v5817
    %7418 = vmatpush1.bf16.msra.mxu0 %v5816
    %7419 = vmatprep.subr.bf16.mxu0 %v5829
    %7420 = vmatpush1.bf16.msra.mxu0 %v5828
    %7421 = vmatprep.subr.bf16.mxu0 %v5841
    %7422 = vmatpush1.bf16.msra.mxu0 %v5840
    %7423 = vmatprep.mubr.bf16.mxu0 %v1939
    %7424 = vmatmul.mubr.bf16.gmra.mrb[0].mxu0 %v1938
    %v7425 = vpop.f32.mrb[0].mxu0
    %v7426 = vadd.f32 %v7385, %v7425
    %v7427 = vpop.f32.mrb[0].mxu0
    %v7428 = vadd.f32 %v7387, %v7427
    %v7429 = vpop.f32.mrb[0].mxu0
    %v7430 = vpop.f32.mrb[0].mxu0
    %7431 = vdwg.mxu0
    %7432 = vmatprep.subr.bf16.mxu0 %v5087
    %7433 = vmatpush1.bf16.msra.mxu0 %v5086
    %7434 = vmatprep.subr.bf16.mxu0 %v5099
    %7435 = vmatpush1.bf16.msra.mxu0 %v5098
    %7436 = vmatprep.subr.bf16.mxu0 %v5111
    %7437 = vmatpush1.bf16.msra.mxu0 %v5110
    %7438 = vmatprep.subr.bf16.mxu0 %v5123
    %7439 = vmatpush1.bf16.msra.mxu0 %v5122
    %7440 = vmatprep.subr.bf16.mxu0 %v5135
    %7441 = vmatpush1.bf16.msra.mxu0 %v5134
    %7442 = vmatprep.subr.bf16.mxu0 %v5147
    %7443 = vmatpush1.bf16.msra.mxu0 %v5146
    %7444 = vmatprep.subr.bf16.mxu0 %v5159
    %7445 = vmatpush1.bf16.msra.mxu0 %v5158
    %7446 = vmatprep.subr.bf16.mxu0 %v5171
    %7447 = vmatpush1.bf16.msra.mxu0 %v5170
    %7448 = vmatprep.subr.bf16.mxu0 %v5183
    %7449 = vmatpush1.bf16.msra.mxu0 %v5182
    %7450 = vmatprep.subr.bf16.mxu0 %v5195
    %7451 = vmatpush1.bf16.msra.mxu0 %v5194
    %7452 = vmatprep.subr.bf16.mxu0 %v5207
    %7453 = vmatpush1.bf16.msra.mxu0 %v5206
    %7454 = vmatprep.subr.bf16.mxu0 %v5219
    %7455 = vmatpush1.bf16.msra.mxu0 %v5218
    %7456 = vmatprep.subr.bf16.mxu0 %v5231
    %7457 = vmatpush1.bf16.msra.mxu0 %v5230
    %7458 = vmatprep.subr.bf16.mxu0 %v5243
    %7459 = vmatpush1.bf16.msra.mxu0 %v5242
    %7460 = vmatprep.subr.bf16.mxu0 %v5255
    %7461 = vmatpush1.bf16.msra.mxu0 %v5254
    %7462 = vmatprep.subr.bf16.mxu0 %v5267
    %7463 = vmatpush1.bf16.msra.mxu0 %v5266
    %7464 = vmatprep.mubr.bf16.mxu0 %v1933
    %7465 = vmatmul.mubr.bf16.gmra.mrb[0].mxu0 %v1932
    %v7466 = vpop.f32.mrb[0].mxu0
    %v7467 = vadd.f32 %v2755, %v7466
    %v7468 = vpop.f32.mrb[0].mxu0
    %v7469 = vadd.f32 %v2759, %v7468
    %v7470 = vpop.f32.mrb[0].mxu0
    %v7471 = vpop.f32.mrb[0].mxu0
    %7472 = vdwg.mxu0
    %7473 = vmatprep.subr.bf16.mxu0 %v5279
    %7474 = vmatpush1.bf16.msra.mxu0 %v5278
    %7475 = vmatprep.subr.bf16.mxu0 %v5291
    %7476 = vmatpush1.bf16.msra.mxu0 %v5290
    %7477 = vmatprep.subr.bf16.mxu0 %v5303
    %7478 = vmatpush1.bf16.msra.mxu0 %v5302
    %7479 = vmatprep.subr.bf16.mxu0 %v5315
    %7480 = vmatpush1.bf16.msra.mxu0 %v5314
    %7481 = vmatprep.subr.bf16.mxu0 %v5327
    %7482 = vmatpush1.bf16.msra.mxu0 %v5326
    %7483 = vmatprep.subr.bf16.mxu0 %v5339
    %7484 = vmatpush1.bf16.msra.mxu0 %v5338
    %7485 = vmatprep.subr.bf16.mxu0 %v5351
    %7486 = vmatpush1.bf16.msra.mxu0 %v5350
    %7487 = vmatprep.subr.bf16.mxu0 %v5363
    %7488 = vmatpush1.bf16.msra.mxu0 %v5362
    %7489 = vmatprep.subr.bf16.mxu0 %v5375
    %7490 = vmatpush1.bf16.msra.mxu0 %v5374
    %7491 = vmatprep.subr.bf16.mxu0 %v5387
    %7492 = vmatpush1.bf16.msra.mxu0 %v5386
    %7493 = vmatprep.subr.bf16.mxu0 %v5399
    %7494 = vmatpush1.bf16.msra.mxu0 %v5398
    %7495 = vmatprep.subr.bf16.mxu0 %v5411
    %7496 = vmatpush1.bf16.msra.mxu0 %v5410
    %7497 = vmatprep.subr.bf16.mxu0 %v5423
    %7498 = vmatpush1.bf16.msra.mxu0 %v5422
    %7499 = vmatprep.subr.bf16.mxu0 %v5435
    %7500 = vmatpush1.bf16.msra.mxu0 %v5434
    %7501 = vmatprep.subr.bf16.mxu0 %v5447
    %7502 = vmatpush1.bf16.msra.mxu0 %v5446
    %7503 = vmatprep.subr.bf16.mxu0 %v5459
    %7504 = vmatpush1.bf16.msra.mxu0 %v5458
    %7505 = vmatprep.mubr.bf16.mxu0 %v1935
    %7506 = vmatmul.mubr.bf16.gmra.mrb[0].mxu0 %v1934
    %v7507 = vpop.f32.mrb[0].mxu0
    %v7508 = vadd.f32 %v7467, %v7507
    %v7509 = vpop.f32.mrb[0].mxu0
    %v7510 = vadd.f32 %v7469, %v7509
    %v7511 = vpop.f32.mrb[0].mxu0
    %v7512 = vpop.f32.mrb[0].mxu0
    %7513 = vdwg.mxu0
    %7514 = vmatprep.subr.bf16.mxu0 %v5471
    %7515 = vmatpush1.bf16.msra.mxu0 %v5470
    %7516 = vmatprep.subr.bf16.mxu0 %v5483
    %7517 = vmatpush1.bf16.msra.mxu0 %v5482
    %7518 = vmatprep.subr.bf16.mxu0 %v5495
    %7519 = vmatpush1.bf16.msra.mxu0 %v5494
    %7520 = vmatprep.subr.bf16.mxu0 %v5507
    %7521 = vmatpush1.bf16.msra.mxu0 %v5506
    %7522 = vmatprep.subr.bf16.mxu0 %v5519
    %7523 = vmatpush1.bf16.msra.mxu0 %v5518
    %7524 = vmatprep.subr.bf16.mxu0 %v5531
    %7525 = vmatpush1.bf16.msra.mxu0 %v5530
    %7526 = vmatprep.subr.bf16.mxu0 %v5543
    %7527 = vmatpush1.bf16.msra.mxu0 %v5542
    %7528 = vmatprep.subr.bf16.mxu0 %v5555
    %7529 = vmatpush1.bf16.msra.mxu0 %v5554
    %7530 = vmatprep.subr.bf16.mxu0 %v5567
    %7531 = vmatpush1.bf16.msra.mxu0 %v5566
    %7532 = vmatprep.subr.bf16.mxu0 %v5579
    %7533 = vmatpush1.bf16.msra.mxu0 %v5578
    %7534 = vmatprep.subr.bf16.mxu0 %v5591
    %7535 = vmatpush1.bf16.msra.mxu0 %v5590
    %7536 = vmatprep.subr.bf16.mxu0 %v5603
    %7537 = vmatpush1.bf16.msra.mxu0 %v5602
    %7538 = vmatprep.subr.bf16.mxu0 %v5615
    %7539 = vmatpush1.bf16.msra.mxu0 %v5614
    %7540 = vmatprep.subr.bf16.mxu0 %v5627
    %7541 = vmatpush1.bf16.msra.mxu0 %v5626
    %7542 = vmatprep.subr.bf16.mxu0 %v5639
    %7543 = vmatpush1.bf16.msra.mxu0 %v5638
    %7544 = vmatprep.subr.bf16.mxu0 %v5651
    %7545 = vmatpush1.bf16.msra.mxu0 %v5650
    %7546 = vmatprep.mubr.bf16.mxu0 %v1937
    %7547 = vmatmul.mubr.bf16.gmra.mrb[0].mxu0 %v1936
    %v7548 = vpop.f32.mrb[0].mxu0
    %v7549 = vadd.f32 %v7508, %v7548
    %v7550 = vpop.f32.mrb[0].mxu0
    %v7551 = vadd.f32 %v7510, %v7550
    %v7552 = vpop.f32.mrb[0].mxu0
    %v7553 = vpop.f32.mrb[0].mxu0
    %7554 = vdwg.mxu0
    %7555 = vmatprep.subr.bf16.mxu0 %v5663
    %7556 = vmatpush1.bf16.msra.mxu0 %v5662
    %7557 = vmatprep.subr.bf16.mxu0 %v5675
    %7558 = vmatpush1.bf16.msra.mxu0 %v5674
    %7559 = vmatprep.subr.bf16.mxu0 %v5687
    %7560 = vmatpush1.bf16.msra.mxu0 %v5686
    %7561 = vmatprep.subr.bf16.mxu0 %v5699
    %7562 = vmatpush1.bf16.msra.mxu0 %v5698
    %7563 = vmatprep.subr.bf16.mxu0 %v5711
    %7564 = vmatpush1.bf16.msra.mxu0 %v5710
    %7565 = vmatprep.subr.bf16.mxu0 %v5723
    %7566 = vmatpush1.bf16.msra.mxu0 %v5722
    %7567 = vmatprep.subr.bf16.mxu0 %v5735
    %7568 = vmatpush1.bf16.msra.mxu0 %v5734
    %7569 = vmatprep.subr.bf16.mxu0 %v5747
    %7570 = vmatpush1.bf16.msra.mxu0 %v5746
    %7571 = vmatprep.subr.bf16.mxu0 %v5759
    %7572 = vmatpush1.bf16.msra.mxu0 %v5758
    %7573 = vmatprep.subr.bf16.mxu0 %v5771
    %7574 = vmatpush1.bf16.msra.mxu0 %v5770
    %7575 = vmatprep.subr.bf16.mxu0 %v5783
    %7576 = vmatpush1.bf16.msra.mxu0 %v5782
    %7577 = vmatprep.subr.bf16.mxu0 %v5795
    %7578 = vmatpush1.bf16.msra.mxu0 %v5794
    %7579 = vmatprep.subr.bf16.mxu0 %v5807
    %7580 = vmatpush1.bf16.msra.mxu0 %v5806
    %7581 = vmatprep.subr.bf16.mxu0 %v5819
    %7582 = vmatpush1.bf16.msra.mxu0 %v5818
    %7583 = vmatprep.subr.bf16.mxu0 %v5831
    %7584 = vmatpush1.bf16.msra.mxu0 %v5830
    %7585 = vmatprep.subr.bf16.mxu0 %v5843
    %7586 = vmatpush1.bf16.msra.mxu0 %v5842
    %7587 = vmatprep.mubr.bf16.mxu0 %v1939
    %7588 = vmatmul.mubr.bf16.gmra.mrb[0].mxu0 %v1938
    %v7589 = vpop.f32.mrb[0].mxu0
    %v7590 = vadd.f32 %v7549, %v7589
    %v7591 = vpop.f32.mrb[0].mxu0
    %v7592 = vadd.f32 %v7551, %v7591
    %v7593 = vpop.f32.mrb[0].mxu0
    %v7594 = vpop.f32.mrb[0].mxu0
    %7595 = vdwg.mxu0
    %v7596 = vld [vmem:[#allocation17] sm:$0xf]
    %v7598 = vlaneseq
    %v7599 = vshrl.u32 %v7598, 7
    %v7600 = vsub.s32 0, %v7599
    %v7601 = vrot.slane %v7596, %v7600
    %v7602 = vlaneseq
    %v7603 = vshrl.u32 %v7602, 7
    %v7604 = vsub.s32 1, %v7603
    %v7605 = vrot.slane %v7596, %v7604
    %v7606 = vlaneseq
    %v7607 = vshrl.u32 %v7606, 7
    %v7608 = vsub.s32 2, %v7607
    %v7609 = vrot.slane %v7596, %v7608
    %v7610 = vlaneseq
    %v7611 = vshrl.u32 %v7610, 7
    %v7612 = vsub.s32 3, %v7611
    %v7613 = vrot.slane %v7596, %v7612
    %7618 = vmatprep.subr.bf16.mxu0 %v5469
    %7619 = vmatpush1.bf16.msra.mxu0 %v5468
    %7620 = vmatprep.subr.bf16.mxu0 %v5481
    %7621 = vmatpush1.bf16.msra.mxu0 %v5480
    %7622 = vmatprep.subr.bf16.mxu0 %v5493
    %7623 = vmatpush1.bf16.msra.mxu0 %v5492
    %7624 = vmatprep.subr.bf16.mxu0 %v5505
    %7625 = vmatpush1.bf16.msra.mxu0 %v5504
    %7626 = vmatprep.subr.bf16.mxu0 %v5517
    %7627 = vmatpush1.bf16.msra.mxu0 %v5516
    %7628 = vmatprep.subr.bf16.mxu0 %v5529
    %7629 = vmatpush1.bf16.msra.mxu0 %v5528
    %7630 = vmatprep.subr.bf16.mxu0 %v5541
    %7631 = vmatpush1.bf16.msra.mxu0 %v5540
    %7632 = vmatprep.subr.bf16.mxu0 %v5553
    %7633 = vmatpush1.bf16.msra.mxu0 %v5552
    %7634 = vmatprep.subr.bf16.mxu0 %v5565
    %7635 = vmatpush1.bf16.msra.mxu0 %v5564
    %7636 = vmatprep.subr.bf16.mxu0 %v5577
    %7637 = vmatpush1.bf16.msra.mxu0 %v5576
    %7638 = vmatprep.subr.bf16.mxu0 %v5589
    %7639 = vmatpush1.bf16.msra.mxu0 %v5588
    %7640 = vmatprep.subr.bf16.mxu0 %v5601
    %7641 = vmatpush1.bf16.msra.mxu0 %v5600
    %7642 = vmatprep.subr.bf16.mxu0 %v5613
    %7643 = vmatpush1.bf16.msra.mxu0 %v5612
    %7644 = vmatprep.subr.bf16.mxu0 %v5625
    %7645 = vmatpush1.bf16.msra.mxu0 %v5624
    %7646 = vmatprep.subr.bf16.mxu0 %v5637
    %7647 = vmatpush1.bf16.msra.mxu0 %v5636
    %7648 = vmatprep.subr.bf16.mxu0 %v5649
    %7649 = vmatpush1.bf16.msra.mxu0 %v5648
    %7650 = vmatprep.mubr.bf16.mxu0 %v1937
    %7651 = vmatmul.mubr.bf16.gmra.mrb[0].mxu0 %v1936
    %v7652 = vpop.f32.mrb[0].mxu0
    %v7653 = vadd.f32 %v7601, %v7652
    %v7654 = vpop.f32.mrb[0].mxu0
    %v7655 = vadd.f32 %v7605, %v7654
    %v7656 = vpop.f32.mrb[0].mxu0
    %v7657 = vpop.f32.mrb[0].mxu0
    %7658 = vdwg.mxu0
    %7659 = vmatprep.subr.bf16.mxu0 %v5661
    %7660 = vmatpush1.bf16.msra.mxu0 %v5660
    %7661 = vmatprep.subr.bf16.mxu0 %v5673
    %7662 = vmatpush1.bf16.msra.mxu0 %v5672
    %7663 = vmatprep.subr.bf16.mxu0 %v5685
    %7664 = vmatpush1.bf16.msra.mxu0 %v5684
    %7665 = vmatprep.subr.bf16.mxu0 %v5697
    %7666 = vmatpush1.bf16.msra.mxu0 %v5696
    %7667 = vmatprep.subr.bf16.mxu0 %v5709
    %7668 = vmatpush1.bf16.msra.mxu0 %v5708
    %7669 = vmatprep.subr.bf16.mxu0 %v5721
    %7670 = vmatpush1.bf16.msra.mxu0 %v5720
    %7671 = vmatprep.subr.bf16.mxu0 %v5733
    %7672 = vmatpush1.bf16.msra.mxu0 %v5732
    %7673 = vmatprep.subr.bf16.mxu0 %v5745
    %7674 = vmatpush1.bf16.msra.mxu0 %v5744
    %7675 = vmatprep.subr.bf16.mxu0 %v5757
    %7676 = vmatpush1.bf16.msra.mxu0 %v5756
    %7677 = vmatprep.subr.bf16.mxu0 %v5769
    %7678 = vmatpush1.bf16.msra.mxu0 %v5768
    %7679 = vmatprep.subr.bf16.mxu0 %v5781
    %7680 = vmatpush1.bf16.msra.mxu0 %v5780
    %7681 = vmatprep.subr.bf16.mxu0 %v5793
    %7682 = vmatpush1.bf16.msra.mxu0 %v5792
    %7683 = vmatprep.subr.bf16.mxu0 %v5805
    %7684 = vmatpush1.bf16.msra.mxu0 %v5804
    %7685 = vmatprep.subr.bf16.mxu0 %v5817
    %7686 = vmatpush1.bf16.msra.mxu0 %v5816
    %7687 = vmatprep.subr.bf16.mxu0 %v5829
    %7688 = vmatpush1.bf16.msra.mxu0 %v5828
    %7689 = vmatprep.subr.bf16.mxu0 %v5841
    %7690 = vmatpush1.bf16.msra.mxu0 %v5840
    %7691 = vmatprep.mubr.bf16.mxu0 %v1939
    %7692 = vmatmul.mubr.bf16.gmra.mrb[0].mxu0 %v1938
    %v7693 = vpop.f32.mrb[0].mxu0
    %v7694 = vadd.f32 %v7653, %v7693
    %v7695 = vpop.f32.mrb[0].mxu0
    %v7696 = vadd.f32 %v7655, %v7695
    %v7697 = vpop.f32.mrb[0].mxu0
    %v7698 = vpop.f32.mrb[0].mxu0
    %7699 = vdwg.mxu0
    %7700 = vmatprep.subr.bf16.mxu0 %v5471
    %7701 = vmatpush1.bf16.msra.mxu0 %v5470
    %7702 = vmatprep.subr.bf16.mxu0 %v5483
    %7703 = vmatpush1.bf16.msra.mxu0 %v5482
    %7704 = vmatprep.subr.bf16.mxu0 %v5495
    %7705 = vmatpush1.bf16.msra.mxu0 %v5494
    %7706 = vmatprep.subr.bf16.mxu0 %v5507
    %7707 = vmatpush1.bf16.msra.mxu0 %v5506
    %7708 = vmatprep.subr.bf16.mxu0 %v5519
    %7709 = vmatpush1.bf16.msra.mxu0 %v5518
    %7710 = vmatprep.subr.bf16.mxu0 %v5531
    %7711 = vmatpush1.bf16.msra.mxu0 %v5530
    %7712 = vmatprep.subr.bf16.mxu0 %v5543
    %7713 = vmatpush1.bf16.msra.mxu0 %v5542
    %7714 = vmatprep.subr.bf16.mxu0 %v5555
    %7715 = vmatpush1.bf16.msra.mxu0 %v5554
    %7716 = vmatprep.subr.bf16.mxu0 %v5567
    %7717 = vmatpush1.bf16.msra.mxu0 %v5566
    %7718 = vmatprep.subr.bf16.mxu0 %v5579
    %7719 = vmatpush1.bf16.msra.mxu0 %v5578
    %7720 = vmatprep.subr.bf16.mxu0 %v5591
    %7721 = vmatpush1.bf16.msra.mxu0 %v5590
    %7722 = vmatprep.subr.bf16.mxu0 %v5603
    %7723 = vmatpush1.bf16.msra.mxu0 %v5602
    %7724 = vmatprep.subr.bf16.mxu0 %v5615
    %7725 = vmatpush1.bf16.msra.mxu0 %v5614
    %7726 = vmatprep.subr.bf16.mxu0 %v5627
    %7727 = vmatpush1.bf16.msra.mxu0 %v5626
    %7728 = vmatprep.subr.bf16.mxu0 %v5639
    %7729 = vmatpush1.bf16.msra.mxu0 %v5638
    %7730 = vmatprep.subr.bf16.mxu0 %v5651
    %7731 = vmatpush1.bf16.msra.mxu0 %v5650
    %7732 = vmatprep.mubr.bf16.mxu0 %v1937
    %7733 = vmatmul.mubr.bf16.gmra.mrb[0].mxu0 %v1936
    %v7734 = vpop.f32.mrb[0].mxu0
    %v7735 = vadd.f32 %v7609, %v7734
    %v7736 = vpop.f32.mrb[0].mxu0
    %v7737 = vadd.f32 %v7613, %v7736
    %v7738 = vpop.f32.mrb[0].mxu0
    %v7739 = vpop.f32.mrb[0].mxu0
    %7740 = vdwg.mxu0
    %7741 = vmatprep.subr.bf16.mxu0 %v5663
    %7742 = vmatpush1.bf16.msra.mxu0 %v5662
    %7743 = vmatprep.subr.bf16.mxu0 %v5675
    %7744 = vmatpush1.bf16.msra.mxu0 %v5674
    %7745 = vmatprep.subr.bf16.mxu0 %v5687
    %7746 = vmatpush1.bf16.msra.mxu0 %v5686
    %7747 = vmatprep.subr.bf16.mxu0 %v5699
    %7748 = vmatpush1.bf16.msra.mxu0 %v5698
    %7749 = vmatprep.subr.bf16.mxu0 %v5711
    %7750 = vmatpush1.bf16.msra.mxu0 %v5710
    %7751 = vmatprep.subr.bf16.mxu0 %v5723
    %7752 = vmatpush1.bf16.msra.mxu0 %v5722
    %7753 = vmatprep.subr.bf16.mxu0 %v5735
    %7754 = vmatpush1.bf16.msra.mxu0 %v5734
    %7755 = vmatprep.subr.bf16.mxu0 %v5747
    %7756 = vmatpush1.bf16.msra.mxu0 %v5746
    %7757 = vmatprep.subr.bf16.mxu0 %v5759
    %7758 = vmatpush1.bf16.msra.mxu0 %v5758
    %7759 = vmatprep.subr.bf16.mxu0 %v5771
    %7760 = vmatpush1.bf16.msra.mxu0 %v5770
    %7761 = vmatprep.subr.bf16.mxu0 %v5783
    %7762 = vmatpush1.bf16.msra.mxu0 %v5782
    %7763 = vmatprep.subr.bf16.mxu0 %v5795
    %7764 = vmatpush1.bf16.msra.mxu0 %v5794
    %7765 = vmatprep.subr.bf16.mxu0 %v5807
    %7766 = vmatpush1.bf16.msra.mxu0 %v5806
    %7767 = vmatprep.subr.bf16.mxu0 %v5819
    %7768 = vmatpush1.bf16.msra.mxu0 %v5818
    %7769 = vmatprep.subr.bf16.mxu0 %v5831
    %7770 = vmatpush1.bf16.msra.mxu0 %v5830
    %7771 = vmatprep.subr.bf16.mxu0 %v5843
    %7772 = vmatpush1.bf16.msra.mxu0 %v5842
    %7773 = vmatprep.mubr.bf16.mxu0 %v1939
    %7774 = vmatmul.mubr.bf16.gmra.mrb[0].mxu0 %v1938
    %v7775 = vpop.f32.mrb[0].mxu0
    %v7776 = vadd.f32 %v7735, %v7775
    %v7777 = vpop.f32.mrb[0].mxu0
    %v7778 = vadd.f32 %v7737, %v7777
    %v7779 = vpop.f32.mrb[0].mxu0
    %v7780 = vpop.f32.mrb[0].mxu0
    %7781 = vdwg.mxu0
    %v7782 = vxor.u32 %v6770, 2147483648
    %v7783 = vxor.u32 %v6772, 2147483648
    %v7784 = vxor.u32 %v6934, 2147483648
    %v7785 = vxor.u32 %v6936, 2147483648
    %v7786 = vmul.f32 %v7782, 1.442695
    %v7787 = vpow.pop %v7786
    %v7788 = vmul.f32 %v7783, 1.442695
    %v7789 = vpow.pop %v7788
    %v7790 = vmul.f32 %v7784, 1.442695
    %v7791 = vpow.pop %v7790
    %v7792 = vmul.f32 %v7785, 1.442695
    %v7793 = vpow.pop %v7792
    %v7794 = vadd.f32 %v7787, 1.0
    %v7795 = vadd.f32 %v7789, 1.0
    %v7796 = vadd.f32 %v7791, 1.0
    %v7797 = vadd.f32 %v7793, 1.0
    %v7798 = vrcp.pop %v7794
    %v7799 = vmul.f32 1.0, %v7798
    %v7800 = vrcp.pop %v7795
    %v7801 = vmul.f32 1.0, %v7800
    %v7802 = vrcp.pop %v7796
    %v7803 = vmul.f32 1.0, %v7802
    %v7804 = vrcp.pop %v7797
    %v7805 = vmul.f32 1.0, %v7804
    %v7806 = vxor.u32 %v7098, 2147483648
    %v7807 = vxor.u32 %v7100, 2147483648
    %v7808 = vxor.u32 %v7262, 2147483648
    %v7809 = vxor.u32 %v7264, 2147483648
    %v7810 = vmul.f32 %v7806, 1.442695
    %v7811 = vpow.pop %v7810
    %v7812 = vmul.f32 %v7807, 1.442695
    %v7813 = vpow.pop %v7812
    %v7814 = vmul.f32 %v7808, 1.442695
    %v7815 = vpow.pop %v7814
    %v7816 = vmul.f32 %v7809, 1.442695
    %v7817 = vpow.pop %v7816
    %v7818 = vadd.f32 %v7811, 1.0
    %v7819 = vadd.f32 %v7813, 1.0
    %v7820 = vadd.f32 %v7815, 1.0
    %v7821 = vadd.f32 %v7817, 1.0
    %v7822 = vrcp.pop %v7818
    %v7823 = vmul.f32 1.0, %v7822
    %v7824 = vrcp.pop %v7819
    %v7825 = vmul.f32 1.0, %v7824
    %v7826 = vrcp.pop %v7820
    %v7827 = vmul.f32 1.0, %v7826
    %v7828 = vrcp.pop %v7821
    %v7829 = vmul.f32 1.0, %v7828
    %v7830 = vsub.f32 1.0, %v7799
    %v7831 = vsub.f32 1.0, %v7801
    %v7832 = vsub.f32 1.0, %v7803
    %v7833 = vsub.f32 1.0, %v7805
    %v7834 = vmul.f32 %v7830, %v7694
    %v7835 = vmul.f32 %v7831, %v7696
    %v7836 = vmul.f32 %v7832, %v7776
    %v7837 = vmul.f32 %v7833, %v7778
    %v7838 = vsub.f32 %v7426, %v7834
    %v7839 = vsub.f32 %v7428, %v7835
    %v7840 = vsub.f32 %v7590, %v7836
    %v7841 = vsub.f32 %v7592, %v7837
    %v7842 = vtanh.pop %v7838
    %v7843 = vtanh.pop %v7839
    %v7844 = vtanh.pop %v7840
    %v7845 = vtanh.pop %v7841
    %v7846 = vsub.f32 1.0, %v7823
    %v7847 = vsub.f32 1.0, %v7825
    %v7848 = vsub.f32 1.0, %v7827
    %v7849 = vsub.f32 1.0, %v7829
    %v7850 = vmul.f32 %v7846, %v7842
    %v7851 = vmul.f32 %v7847, %v7843
    %v7852 = vmul.f32 %v7848, %v7844
    %v7853 = vmul.f32 %v7849, %v7845
    %v7854 = vmul.f32 %v7823, %v197
    %v7855 = vmul.f32 %v7825, %v198
    %v7856 = vmul.f32 %v7827, %v199
    %v7857 = vmul.f32 %v7829, %v200
    %v7858 = vadd.f32 %v7850, %v7854
    %v7859 = vadd.f32 %v7851, %v7855
    %v7860 = vadd.f32 %v7852, %v7856
    %v7861 = vadd.f32 %v7853, %v7857
    %7862 = vst [vmem:[#allocation23] sm:$0xff] %v7858
    %7863 = vst [vmem:[#allocation23 + $0x8] sm:$0xff] %v7859
    %7864 = vst [vmem:[#allocation23 + $0x10] sm:$0xff] %v7860
    %7865 = vst [vmem:[#allocation23 + $0x18] sm:$0xff] %v7861
    %v7866 = vpack.c.bf16 %v7858, %v7858
    %v7867 = vpack.c.bf16 %v7859, %v7859
    %v7868 = vpack.c.bf16 %v7860, %v7860
    %v7869 = vpack.c.bf16 %v7861, %v7861
    %v7870 = vld [vmem:[#allocation19] sm:$0xf]
    %v7871 = vld [vmem:[#allocation19 + $0x4] sm:$0xf]
    %v7872 = vld [vmem:[#allocation19 + $0x8] sm:$0xf]
    %v7873 = vld [vmem:[#allocation19 + $0xc] sm:$0xf]
    %v7874 = vld [vmem:[#allocation19 + $0x10] sm:$0xf]
    %v7875 = vld [vmem:[#allocation19 + $0x14] sm:$0xf]
    %v7876 = vld [vmem:[#allocation19 + $0x18] sm:$0xf]
    %v7877 = vld [vmem:[#allocation19 + $0x1c] sm:$0xf]
    %v7878 = vld [vmem:[#allocation19 + $0x20] sm:$0xf]
    %v7879 = vld [vmem:[#allocation19 + $0x24] sm:$0xf]
    %v7880 = vld [vmem:[#allocation19 + $0x28] sm:$0xf]
    %v7881 = vld [vmem:[#allocation19 + $0x2c] sm:$0xf]
    %v7882 = vld [vmem:[#allocation19 + $0x30] sm:$0xf]
    %v7883 = vld [vmem:[#allocation19 + $0x34] sm:$0xf]
    %v7884 = vld [vmem:[#allocation19 + $0x38] sm:$0xf]
    %v7885 = vld [vmem:[#allocation19 + $0x3c] sm:$0xf]
    %v7886 = vld [vmem:[#allocation19 + $0x40] sm:$0xf]
    %v7887 = vld [vmem:[#allocation19 + $0x44] sm:$0xf]
    %v7888 = vld [vmem:[#allocation19 + $0x48] sm:$0xf]
    %v7889 = vld [vmem:[#allocation19 + $0x4c] sm:$0xf]
    %v7890 = vld [vmem:[#allocation19 + $0x50] sm:$0xf]
    %v7891 = vld [vmem:[#allocation19 + $0x54] sm:$0xf]
    %v7892 = vld [vmem:[#allocation19 + $0x58] sm:$0xf]
    %v7893 = vld [vmem:[#allocation19 + $0x5c] sm:$0xf]
    %v7894 = vld [vmem:[#allocation19 + $0x60] sm:$0xf]
    %v7895 = vld [vmem:[#allocation19 + $0x64] sm:$0xf]
    %v7896 = vld [vmem:[#allocation19 + $0x68] sm:$0xf]
    %v7897 = vld [vmem:[#allocation19 + $0x6c] sm:$0xf]
    %v7898 = vld [vmem:[#allocation19 + $0x70] sm:$0xf]
    %v7899 = vld [vmem:[#allocation19 + $0x74] sm:$0xf]
    %v7900 = vld [vmem:[#allocation19 + $0x78] sm:$0xf]
    %v7901 = vld [vmem:[#allocation19 + $0x7c] sm:$0xf]
    %v7902 = vld [vmem:[#allocation19 + $0x80] sm:$0xf]
    %v7903 = vld [vmem:[#allocation19 + $0x84] sm:$0xf]
    %v7904 = vld [vmem:[#allocation19 + $0x88] sm:$0xf]
    %v7905 = vld [vmem:[#allocation19 + $0x8c] sm:$0xf]
    %v7906 = vld [vmem:[#allocation19 + $0x90] sm:$0xf]
    %v7907 = vld [vmem:[#allocation19 + $0x94] sm:$0xf]
    %v7908 = vld [vmem:[#allocation19 + $0x98] sm:$0xf]
    %v7909 = vld [vmem:[#allocation19 + $0x9c] sm:$0xf]
    %v7910 = vld [vmem:[#allocation19 + $0xa0] sm:$0xf]
    %v7911 = vld [vmem:[#allocation19 + $0xa4] sm:$0xf]
    %v7912 = vld [vmem:[#allocation19 + $0xa8] sm:$0xf]
    %v7913 = vld [vmem:[#allocation19 + $0xac] sm:$0xf]
    %v7914 = vld [vmem:[#allocation19 + $0xb0] sm:$0xf]
    %v7915 = vld [vmem:[#allocation19 + $0xb4] sm:$0xf]
    %v7916 = vld [vmem:[#allocation19 + $0xb8] sm:$0xf]
    %v7917 = vld [vmem:[#allocation19 + $0xbc] sm:$0xf]
    %v7918 = vld [vmem:[#allocation19 + $0xc0] sm:$0xf]
    %v7919 = vld [vmem:[#allocation19 + $0xc4] sm:$0xf]
    %v7920 = vld [vmem:[#allocation19 + $0xc8] sm:$0xf]
    %v7921 = vld [vmem:[#allocation19 + $0xcc] sm:$0xf]
    %v7922 = vld [vmem:[#allocation19 + $0xd0] sm:$0xf]
    %v7923 = vld [vmem:[#allocation19 + $0xd4] sm:$0xf]
    %v7924 = vld [vmem:[#allocation19 + $0xd8] sm:$0xf]
    %v7925 = vld [vmem:[#allocation19 + $0xdc] sm:$0xf]
    %v7926 = vld [vmem:[#allocation19 + $0xe0] sm:$0xf]
    %v7927 = vld [vmem:[#allocation19 + $0xe4] sm:$0xf]
    %v7928 = vld [vmem:[#allocation19 + $0xe8] sm:$0xf]
    %v7929 = vld [vmem:[#allocation19 + $0xec] sm:$0xf]
    %v7930 = vld [vmem:[#allocation19 + $0xf0] sm:$0xf]
    %v7931 = vld [vmem:[#allocation19 + $0xf4] sm:$0xf]
    %v7932 = vld [vmem:[#allocation19 + $0xf8] sm:$0xf]
    %v7933 = vld [vmem:[#allocation19 + $0xfc] sm:$0xf]
    %v7934 = vld [vmem:[#allocation20] sm:$0x1]
    %v7936 = vlaneseq
    %v7937 = vshrl.u32 %v7936, 7
    %v7938 = vsub.s32 0, %v7937
    %v7939 = vrot.slane %v7934, %v7938
    %v8005 = vunpack.c.l.b16 %v7870
    %v8006 = vunpack.c.l.b16 %v7871
    %v8007 = vunpack.c.l.b16 %v7872
    %v8008 = vunpack.c.l.b16 %v7873
    %v8009 = vunpack.c.l.b16 %v7874
    %v8010 = vunpack.c.l.b16 %v7875
    %v8011 = vunpack.c.l.b16 %v7876
    %v8012 = vunpack.c.l.b16 %v7877
    %v8013 = vunpack.c.l.b16 %v7878
    %v8014 = vunpack.c.l.b16 %v7879
    %v8015 = vunpack.c.l.b16 %v7880
    %v8016 = vunpack.c.l.b16 %v7881
    %v8017 = vunpack.c.l.b16 %v7882
    %v8018 = vunpack.c.l.b16 %v7883
    %v8019 = vunpack.c.l.b16 %v7884
    %v8020 = vunpack.c.l.b16 %v7885
    %v8021 = vunpack.c.l.b16 %v7886
    %v8022 = vunpack.c.l.b16 %v7887
    %v8023 = vunpack.c.l.b16 %v7888
    %v8024 = vunpack.c.l.b16 %v7889
    %v8025 = vunpack.c.l.b16 %v7890
    %v8026 = vunpack.c.l.b16 %v7891
    %v8027 = vunpack.c.l.b16 %v7892
    %v8028 = vunpack.c.l.b16 %v7893
    %v8029 = vunpack.c.l.b16 %v7894
    %v8030 = vunpack.c.l.b16 %v7895
    %v8031 = vunpack.c.l.b16 %v7896
    %v8032 = vunpack.c.l.b16 %v7897
    %v8033 = vunpack.c.l.b16 %v7898
    %v8034 = vunpack.c.l.b16 %v7899
    %v8035 = vunpack.c.l.b16 %v7900
    %v8036 = vunpack.c.l.b16 %v7901
    %v8037 = vunpack.c.l.b16 %v7902
    %v8038 = vunpack.c.l.b16 %v7903
    %v8039 = vunpack.c.l.b16 %v7904
    %v8040 = vunpack.c.l.b16 %v7905
    %v8041 = vunpack.c.l.b16 %v7906
    %v8042 = vunpack.c.l.b16 %v7907
    %v8043 = vunpack.c.l.b16 %v7908
    %v8044 = vunpack.c.l.b16 %v7909
    %v8045 = vunpack.c.l.b16 %v7910
    %v8046 = vunpack.c.l.b16 %v7911
    %v8047 = vunpack.c.l.b16 %v7912
    %v8048 = vunpack.c.l.b16 %v7913
    %v8049 = vunpack.c.l.b16 %v7914
    %v8050 = vunpack.c.l.b16 %v7915
    %v8051 = vunpack.c.l.b16 %v7916
    %v8052 = vunpack.c.l.b16 %v7917
    %v8053 = vunpack.c.l.b16 %v7918
    %v8054 = vunpack.c.l.b16 %v7919
    %v8055 = vunpack.c.l.b16 %v7920
    %v8056 = vunpack.c.l.b16 %v7921
    %v8057 = vunpack.c.l.b16 %v7922
    %v8058 = vunpack.c.l.b16 %v7923
    %v8059 = vunpack.c.l.b16 %v7924
    %v8060 = vunpack.c.l.b16 %v7925
    %v8061 = vunpack.c.l.b16 %v7926
    %v8062 = vunpack.c.l.b16 %v7927
    %v8063 = vunpack.c.l.b16 %v7928
    %v8064 = vunpack.c.l.b16 %v7929
    %v8065 = vunpack.c.l.b16 %v7930
    %v8066 = vunpack.c.l.b16 %v7931
    %v8067 = vunpack.c.l.b16 %v7932
    %v8068 = vunpack.c.l.b16 %v7933
    %v8069 = vpack.c.b16 %v8006, %v8005
    %v8070 = vpack.c.b16 %v8008, %v8007
    %v8071 = vpack.c.b16 %v8010, %v8009
    %v8072 = vpack.c.b16 %v8012, %v8011
    %v8073 = vpack.c.b16 %v8014, %v8013
    %v8074 = vpack.c.b16 %v8016, %v8015
    %v8075 = vpack.c.b16 %v8018, %v8017
    %v8076 = vpack.c.b16 %v8020, %v8019
    %v8077 = vpack.c.b16 %v8022, %v8021
    %v8078 = vpack.c.b16 %v8024, %v8023
    %v8079 = vpack.c.b16 %v8026, %v8025
    %v8080 = vpack.c.b16 %v8028, %v8027
    %v8081 = vpack.c.b16 %v8030, %v8029
    %v8082 = vpack.c.b16 %v8032, %v8031
    %v8083 = vpack.c.b16 %v8034, %v8033
    %v8084 = vpack.c.b16 %v8036, %v8035
    %v8085 = vpack.c.b16 %v8038, %v8037
    %v8086 = vpack.c.b16 %v8040, %v8039
    %v8087 = vpack.c.b16 %v8042, %v8041
    %v8088 = vpack.c.b16 %v8044, %v8043
    %v8089 = vpack.c.b16 %v8046, %v8045
    %v8090 = vpack.c.b16 %v8048, %v8047
    %v8091 = vpack.c.b16 %v8050, %v8049
    %v8092 = vpack.c.b16 %v8052, %v8051
    %v8093 = vpack.c.b16 %v8054, %v8053
    %v8094 = vpack.c.b16 %v8056, %v8055
    %v8095 = vpack.c.b16 %v8058, %v8057
    %v8096 = vpack.c.b16 %v8060, %v8059
    %v8097 = vpack.c.b16 %v8062, %v8061
    %v8098 = vpack.c.b16 %v8064, %v8063
    %v8099 = vpack.c.b16 %v8066, %v8065
    %v8100 = vpack.c.b16 %v8068, %v8067
    %8133 = vmatprep.subr.bf16.mxu0 0
    %8134 = vmatpush1.bf16.msra.mxu0 %v8069
    %8135 = vmatprep.subr.bf16.mxu0 0
    %8136 = vmatpush1.bf16.msra.mxu0 %v8070
    %8137 = vmatprep.subr.bf16.mxu0 0
    %8138 = vmatpush1.bf16.msra.mxu0 %v8071
    %8139 = vmatprep.subr.bf16.mxu0 0
    %8140 = vmatpush1.bf16.msra.mxu0 %v8072
    %8141 = vmatprep.subr.bf16.mxu0 0
    %8142 = vmatpush1.bf16.msra.mxu0 %v8073
    %8143 = vmatprep.subr.bf16.mxu0 0
    %8144 = vmatpush1.bf16.msra.mxu0 %v8074
    %8145 = vmatprep.subr.bf16.mxu0 0
    %8146 = vmatpush1.bf16.msra.mxu0 %v8075
    %8147 = vmatprep.subr.bf16.mxu0 0
    %8148 = vmatpush1.bf16.msra.mxu0 %v8076
    %8149 = vmatprep.subr.bf16.mxu0 0
    %8150 = vmatpush1.bf16.msra.mxu0 %v8077
    %8151 = vmatprep.subr.bf16.mxu0 0
    %8152 = vmatpush1.bf16.msra.mxu0 %v8078
    %8153 = vmatprep.subr.bf16.mxu0 0
    %8154 = vmatpush1.bf16.msra.mxu0 %v8079
    %8155 = vmatprep.subr.bf16.mxu0 0
    %8156 = vmatpush1.bf16.msra.mxu0 %v8080
    %8157 = vmatprep.subr.bf16.mxu0 0
    %8158 = vmatpush1.bf16.msra.mxu0 %v8081
    %8159 = vmatprep.subr.bf16.mxu0 0
    %8160 = vmatpush1.bf16.msra.mxu0 %v8082
    %8161 = vmatprep.subr.bf16.mxu0 0
    %8162 = vmatpush1.bf16.msra.mxu0 %v8083
    %8163 = vmatprep.subr.bf16.mxu0 0
    %8164 = vmatpush1.bf16.msra.mxu0 %v8084
    %8165 = vmatprep.mubr.bf16.mxu0 %v7867
    %8166 = vmatmul.mubr.bf16.gmra.mrb[0].mxu0 %v7866
    %v8167 = vpop.f32.mrb[0].mxu0
    %v8168 = vadd.f32 %v7939, %v8167
    %v8169 = vpop.f32.mrb[0].mxu0
    %v8170 = vpop.f32.mrb[0].mxu0
    %v8171 = vpop.f32.mrb[0].mxu0
    %8172 = vdwg.mxu0
    %8173 = vmatprep.subr.bf16.mxu0 0
    %8174 = vmatpush1.bf16.msra.mxu0 %v8085
    %8175 = vmatprep.subr.bf16.mxu0 0
    %8176 = vmatpush1.bf16.msra.mxu0 %v8086
    %8177 = vmatprep.subr.bf16.mxu0 0
    %8178 = vmatpush1.bf16.msra.mxu0 %v8087
    %8179 = vmatprep.subr.bf16.mxu0 0
    %8180 = vmatpush1.bf16.msra.mxu0 %v8088
    %8181 = vmatprep.subr.bf16.mxu0 0
    %8182 = vmatpush1.bf16.msra.mxu0 %v8089
    %8183 = vmatprep.subr.bf16.mxu0 0
    %8184 = vmatpush1.bf16.msra.mxu0 %v8090
    %8185 = vmatprep.subr.bf16.mxu0 0
    %8186 = vmatpush1.bf16.msra.mxu0 %v8091
    %8187 = vmatprep.subr.bf16.mxu0 0
    %8188 = vmatpush1.bf16.msra.mxu0 %v8092
    %8189 = vmatprep.subr.bf16.mxu0 0
    %8190 = vmatpush1.bf16.msra.mxu0 %v8093
    %8191 = vmatprep.subr.bf16.mxu0 0
    %8192 = vmatpush1.bf16.msra.mxu0 %v8094
    %8193 = vmatprep.subr.bf16.mxu0 0
    %8194 = vmatpush1.bf16.msra.mxu0 %v8095
    %8195 = vmatprep.subr.bf16.mxu0 0
    %8196 = vmatpush1.bf16.msra.mxu0 %v8096
    %8197 = vmatprep.subr.bf16.mxu0 0
    %8198 = vmatpush1.bf16.msra.mxu0 %v8097
    %8199 = vmatprep.subr.bf16.mxu0 0
    %8200 = vmatpush1.bf16.msra.mxu0 %v8098
    %8201 = vmatprep.subr.bf16.mxu0 0
    %8202 = vmatpush1.bf16.msra.mxu0 %v8099
    %8203 = vmatprep.subr.bf16.mxu0 0
    %8204 = vmatpush1.bf16.msra.mxu0 %v8100
    %8205 = vmatprep.mubr.bf16.mxu0 %v7869
    %8206 = vmatmul.mubr.bf16.gmra.mrb[0].mxu0 %v7868
    %v8207 = vpop.f32.mrb[0].mxu0
    %v8208 = vadd.f32 %v8168, %v8207
    %v8209 = vpop.f32.mrb[0].mxu0
    %v8210 = vpop.f32.mrb[0].mxu0
    %v8211 = vpop.f32.mrb[0].mxu0
    %8212 = vdwg.mxu0
    %vm8213 = vcmp.gt.f32.partialorder %v196, 0.5
    %v8214 = vsel %vm8213, %v8208, -1e+10
    %v8215 = vlaneseq
    %v8216 = vand.u32 %v8215, 127
    %8217 = vmax.xlane.f32.xlu0 %v8214
    %v8218 = vpop.xlane.xlu0 %8217
    %vm8219 = vcmp.eq.f32.partialorder %v8214, %v8218
    %v8220 = vsel %vm8219, %v8216, 1073741824
    %v8221 = vand.u32 %v8220, 65535
    %v8222 = vshra.s32 %v8220, 16
    %v8223 = vcvt.s32.f32 %v8221
    %v8224 = vcvt.s32.f32 %v8222
    %8225 = vmin.xlane.f32.xlu0 %v8224
    %v8226 = vpop.xlane.xlu0 %8225
    %vm8227 = vcmp.eq.f32.partialorder %v8224, %v8226
    %v8228 = vsel %vm8227, %v8223, inf
    %8229 = vmin.xlane.f32.xlu0 %v8228
    %v8230 = vpop.xlane.xlu0 %8229
    %v8231 = vcvt.f32.s32 %v8230
    %v8232 = vcvt.f32.s32 %v8226
    %v8233 = vshll.u32 %v8232, 16
    %v8234 = vadd.s32 %v8233, %v8231
    %8235 = vst [vmem:[#allocation22] sm:$0xff] %v8234
    // Predicated region
    $region98: #{tpu_custom_call.1} parent=1 // pred_check
      _
    $region99: #{tpu_custom_call.1} parent=1 // pred_check_branch
      %8237 = sbr.rel (0) target = $region101
    $region100: #{tpu_custom_call.1} parent=1 // pred_region
      %s8239 = ssub.s32 128, 128
      %8240 = vsyncadd [#allocation4], %s8239
      %s8242 = sshll.u32 [#allocation22], 4
      %s8243 = int_to_ptr.vmem [resolvable:$true] %s8242
      %8245 = dma.vmem_to_hbm [thread:$0]  %s8243, 128, %s12, [#allocation4]
    $region101: #{tpu_custom_call.1} parent=1 // pred_fallthru
      _
    // Predicated region
    $region102: #{tpu_custom_call.1} parent=1 // pred_check
      _
    $region103: #{tpu_custom_call.1} parent=1 // pred_check_branch
      %8247 = sbr.rel (0) target = $region105
    $region104: #{tpu_custom_call.1} parent=1 // pred_region
      %s8249 = ssub.s32 512, 512
      %8250 = vsyncadd [#allocation24], %s8249
      %s8252 = sshll.u32 [#allocation23], 4
      %s8253 = int_to_ptr.vmem [resolvable:$true] %s8252
      %8255 = dma.vmem_to_hbm [thread:$0]  %s8253, 512, %s13, [#allocation24]
    $region105: #{tpu_custom_call.1} parent=1 // pred_fallthru
      _
    // Predicated region
    $region106: #{tpu_custom_call.1} parent=1 // pred_check
      _
    $region107: #{tpu_custom_call.1} parent=1 // pred_check_branch
      %8257 = sbr.rel (0) target = $region109
    $region108: #{tpu_custom_call.1} parent=1 // pred_region
      %8258 = dma.done [#allocation4], 128
    $region109: #{tpu_custom_call.1} parent=1 // pred_fallthru
      _
    // Predicated region
    $region110: #{tpu_custom_call.1} parent=1 // pred_check
      _
    $region111: #{tpu_custom_call.1} parent=1 // pred_check_branch
      %8260 = sbr.rel (0) target = $region113
    $region112: #{tpu_custom_call.1} parent=1 // pred_region
      %8261 = dma.done [#allocation24], 512
    $region113: #{tpu_custom_call.1} parent=1 // pred_fallthru
      _
    %8262 = vsyncpa [#allocation3], 1
    %8263 = vsyncpa [#allocation6], 1
    %8264 = vsyncpa [#allocation9], 1
    %8265 = vsyncpa [#allocation12], 1
    %8266 = vsyncpa [#allocation15], 1
    %8267 = vsyncpa [#allocation18], 1
    %8268 = vsyncpa [#allocation21], 1
    %8269 = vsyncpa [#allocation4], 1
    %8270 = vsyncpa [#allocation24], 1

</llo_original>
